<compile_context>
chip_gen: v7x
topology: tpu7x:2x2x1
jax: 0.10.0
libtpu: 0.0.40
codegen_flags: <defaults>
</compile_context>

<pallas_src>
import functools

import numpy as np
import jax
import jax.numpy as jnp
from jax.experimental import pallas as pl
from jax.experimental.pallas import tpu as pltpu

BN_EPS = 0.8  # nn.BatchNorm2d(num_hiddens, 0.8) -> eps = 0.8


# ----------------------------------------------------------------------------
# Fully-fused F2F forward kernel (one image per grid step)
# ----------------------------------------------------------------------------
def _f2f_fused_kernel(x_ref, w_ref, aff_ref, mask_ref, out_ref,
                      stack_ref, skip_ref, res_ref,
                      *, n_res, n_tail, C_pad, Lpad, offsets):
    """Whole F2F forward for ONE image, fully resident in VMEM.

    x_ref   : (1, C_pad, Lpad) f32   padded flat activation (zero ring / tail)
    w_ref   : (L, C_pad, KK*C_pad) bf16   folded conv weights, (cout, tap*cin)
    aff_ref : (L, C_pad, 2) f32     [:, :, 0] = folded BN shift, [:, :, 1] = PReLU alpha
    mask_ref: (1, Lpad) f32         1.0 on interior pixels, 0.0 on padding ring/tail
    out_ref : (1, C_pad, Lpad) f32
    """
    mask = mask_ref[...]                                    # (1, Lpad)

    def conv_layer(li, act):
        # act: (C_pad, Lpad) f32 with zero padding ring -> (C_pad, Lpad) f32
        for t, off in enumerate(offsets):
            sh = (-off) % Lpad                              # roll so tap t lines up
            tap = act if sh == 0 else pltpu.roll(act, shift=sh, axis=1)
            stack_ref[t * C_pad:(t + 1) * C_pad, :] = tap.astype(jnp.bfloat16)
        acc = jnp.dot(w_ref[li], stack_ref[...],            # (C_pad, KK*C_pad) x (KK*C_pad, Lpad)
                      preferred_element_type=jnp.float32)   # -> (C_pad, Lpad) f32
        aff = aff_ref[li]                                   # (C_pad, 2)
        y = acc + aff[:, 0:1]                               # folded eval-BN + conv bias
        y = jnp.where(y >= 0.0, y, aff[:, 1:2] * y)         # PReLU (alpha=1 -> identity)
        return y * mask                                     # re-zero 'same' padding ring

    li = 0
    out1 = conv_layer(li, x_ref[0]); li += 1                # conv1
    skip_ref[...] = out1
    res_ref[...] = out1
    for _ in range(n_res):                                  # residual stack
        mid = conv_layer(li, res_ref[...]); li += 1
        res_ref[...] = res_ref[...] + conv_layer(li, mid); li += 1   # x + conv_block(x)
    out2 = conv_layer(li, res_ref[...]); li += 1            # conv2
    out = skip_ref[...] + out2                              # torch.add(out1, out2)
    for _ in range(n_tail):                                 # conv3 tail
        out = conv_layer(li, out); li += 1
    out_ref[0] = out                                        # lane-dense (C_pad, Lpad) store


# ----------------------------------------------------------------------------
# Host-side packing: fold eval-BN, pad channels, lay weights out per tap
# ----------------------------------------------------------------------------
def _layer_list(params):
    layers = [params['conv1']]
    for blk in params['res_blocks']:
        layers += [blk['c1'], blk['c2']]
    layers += [params['conv2']] + list(params['conv3'])
    return layers


def _pack_params(params, C_pad, Kmax):
    layers = _layer_list(params)
    L = len(layers)
    KK = Kmax * Kmax
    w_all = np.zeros((L, C_pad, KK * C_pad), np.float32)
    aff_all = np.zeros((L, C_pad, 2), np.float32)
    aff_all[:, :, 1] = 1.0                                  # default alpha=1 (identity)
    for li, lyr in enumerate(layers):
        w = np.asarray(lyr['w'], np.float32)                # (K, K, cin, cout)  HWIO
        K, _, cin, cout = w.shape
        b = np.asarray(lyr['b'], np.float32)
        if lyr['gamma'] is not None:                        # fold eval-mode BatchNorm
            scale = np.asarray(lyr['gamma'], np.float32) / np.sqrt(1.0 + BN_EPS)
            shift = np.asarray(lyr['beta'], np.float32) + scale * b
        else:
            scale = np.ones((cout,), np.float32)
            shift = b
        wf = w * scale                                      # scale broadcasts over cout
        d = Kmax // 2 - K // 2                              # center smaller kernels
        for dy in range(K):
            for dx in range(K):
                tap = (dy + d) * Kmax + (dx + d)
                w_all[li, :cout, tap * C_pad: tap * C_pad + cin] = wf[dy, dx].T
        aff_all[li, :cout, 0] = shift
        aff_all[li, :cout, 1] = lyr['alpha'] if lyr['alpha'] is not None else 1.0
    meta = dict(L=L, n_res=len(params['res_blocks']), n_tail=len(params['conv3']),
                out_ch=int(params['conv3'][-1]['w'].shape[-1]))
    return jnp.asarray(w_all, jnp.bfloat16), jnp.asarray(aff_all, jnp.float32), meta


# ----------------------------------------------------------------------------
# Wrapper: layout prep, single pallas_call
# ----------------------------------------------------------------------------
def f2f_forward(x_nchw, params):
    """Fused Pallas forward. x: (N, Cin, H, W) -> (N, Cout, H, W)."""
    x = jnp.asarray(x_nchw, jnp.float32)
    N, cin0, H, W = x.shape

    layers = _layer_list(params)
    Kmax = max(int(l['w'].shape[0]) for l in layers)
    C_pad = max(cin0, max(max(int(l['w'].shape[2]), int(l['w'].shape[3])) for l in layers))
    C_pad = -(-C_pad // 8) * 8                              # multiple of 8 sublanes
    pmax = Kmax // 2
    Hp, Wp = H + 2 * pmax, W + 2 * pmax
    Lflat = Hp * Wp
    Lpad = -(-Lflat // 128) * 128                           # lane-dense (multiple of 128)
    KK = Kmax * Kmax

    w_packed, aff_packed, meta = _pack_params(params, C_pad, Kmax)
    L, n_res, n_tail, out_ch = meta['L'], meta['n_res'], meta['n_tail'], meta['out_ch']

    # Interior mask: 1 on real pixels, 0 on padding ring / flat tail.
    m2 = np.zeros((Hp, Wp), np.float32)
    m2[pmax:pmax + H, pmax:pmax + W] = 1.0
    mask_np = np.zeros((1, Lpad), np.float32)
    mask_np[0, :Lflat] = m2.reshape(-1)
    mask = jnp.asarray(mask_np)

    # Tap offsets in flat padded coordinates (row stride Wp).
    offsets = tuple((ty - pmax) * Wp + (tx - pmax)
                    for ty in range(Kmax) for tx in range(Kmax))

    # Channels-on-sublane / spatial-on-lane, zero-padded input: (N, C_pad, Lpad).
    xp = jnp.pad(x, ((0, 0), (0, C_pad - cin0), (pmax, pmax), (pmax, pmax)))
    xf = jnp.pad(xp.reshape(N, C_pad, Lflat), ((0, 0), (0, 0), (0, Lpad - Lflat)))

    kernel = functools.partial(_f2f_fused_kernel, n_res=n_res, n_tail=n_tail,
                               C_pad=C_pad, Lpad=Lpad, offsets=offsets)

    flops = 2 * N * L * C_pad * (KK * C_pad) * Lpad
    bytes_accessed = int(xf.size * 4 + w_packed.size * 2 + aff_packed.size * 4
                         + mask.size * 4 + N * C_pad * Lpad * 4)
    cost = pl.CostEstimate(flops=flops, transcendentals=0, bytes_accessed=bytes_accessed)

    out_flat = pl.pallas_call(
        kernel,
        out_shape=jax.ShapeDtypeStruct((N, C_pad, Lpad), jnp.float32),
        grid=(N,),
        in_specs=[
            pl.BlockSpec((1, C_pad, Lpad), lambda n: (n, 0, 0)),        # x (per image)
            pl.BlockSpec((L, C_pad, KK * C_pad), lambda n: (0, 0, 0)),  # packed weights
            pl.BlockSpec((L, C_pad, 2), lambda n: (0, 0, 0)),           # packed shift/alpha
            pl.BlockSpec((1, Lpad), lambda n: (0, 0)),                  # interior mask
        ],
        out_specs=pl.BlockSpec((1, C_pad, Lpad), lambda n: (n, 0, 0)),
        scratch_shapes=[
            pltpu.VMEM((KK * C_pad, Lpad), jnp.bfloat16),   # rolled-tap GEMM operand
            pltpu.VMEM((C_pad, Lpad), jnp.float32),         # out1 (skip connection)
            pltpu.VMEM((C_pad, Lpad), jnp.float32),         # residual carry
        ],
        compiler_params=pltpu.CompilerParams(dimension_semantics=("parallel",)),
        cost_estimate=cost,
    )(xf, w_packed, aff_packed, mask)

    # Interior / real-channel extraction on the XLA side (tiny, lane-dense kernel store).
    out = out_flat[:, :out_ch, :Lflat].reshape(N, out_ch, Hp, Wp)
    return out[:, :, pmax:pmax + H, pmax:pmax + W]


# ----------------------------------------------------------------------------
# Pure-JAX reference (for a correctness check)
# ----------------------------------------------------------------------------
def _ref_apply_layer(x, lyr, residual=None):
    y = jax.lax.conv_general_dilated(
        x, lyr['w'], (1, 1), 'SAME',
        dimension_numbers=('NHWC', 'HWIO', 'NHWC')) + lyr['b']
    if lyr['gamma'] is not None:
        y = lyr['gamma'] * y / jnp.sqrt(1.0 + BN_EPS) + lyr['beta']
    a = 1.0 if lyr['alpha'] is None else lyr['alpha']
    y = jnp.where(y >= 0.0, y, a * y)
    if residual is not None:
        y = y + residual
    return y


def f2f_forward_ref(x_nchw, params):
    x = jnp.transpose(x_nchw, (0, 2, 3, 1))
    out1 = _ref_apply_layer(x, params['conv1'])
    h = out1
    for blk in params['res_blocks']:
        t = _ref_apply_layer(h, blk['c1'])
        h = _ref_apply_layer(t, blk['c2'], residual=h)
    out = _ref_apply_layer(h, params['conv2'], residual=out1)
    for lyr in params['conv3']:
        out = _ref_apply_layer(out, lyr)
    return jnp.transpose(out, (0, 3, 1, 2))


# ----------------------------------------------------------------------------
# Deterministic parameter construction
# ----------------------------------------------------------------------------
def _conv_layer_params(key, K, cin, cout, bn, alpha):
    kw, kb, kg, kbe = jax.random.split(key, 4)
    return {
        'w': 0.1 * jax.random.normal(kw, (K, K, cin, cout), jnp.float32),
        'b': 0.05 * jax.random.normal(kb, (cout,), jnp.float32),
        'gamma': (1.0 + 0.05 * jax.random.normal(kg, (cout,), jnp.float32)) if bn else None,
        'beta': (0.05 * jax.random.normal(kbe, (cout,), jnp.float32)) if bn else None,
        'alpha': alpha,   # nn.PReLU() scalar parameter (init 0.25); None -> no PReLU
    }


def make_params(key, in_ch, out_ch, nh, n_res, ks):
    k1, k2, k3 = ks
    keys = iter(jax.random.split(key, 6 + 2 * n_res))
    params = {
        'conv1': _conv_layer_params(next(keys), k1, in_ch, nh, True, 0.25),
        'res_blocks': [],
    }
    for _ in range(n_res):
        params['res_blocks'].append({
            'c1': _conv_layer_params(next(keys), 3, nh, nh, True, 0.25),
            'c2': _conv_layer_params(next(keys), 3, nh, nh, True, None),  # BN only
        })
    params['conv2'] = _conv_layer_params(next(keys), k2, nh, nh, True, 0.25)
    params['conv3'] = [
        _conv_layer_params(next(keys), k3, nh, nh // 2, False, 0.25),
        _conv_layer_params(next(keys), k3, nh // 2, nh // 4, False, 0.25),
        _conv_layer_params(next(keys), k3, nh // 4, out_ch, False, 0.25),
    ]
    return params


if __name__ == "__main__":
    root = jax.random.PRNGKey(0)
    kp, kx = jax.random.split(root)

    in_ch, out_ch, nh, n_res = 4, 3, 32, 2
    ks = (3, 3, 3)
    N, H, W = 2, 16, 16

    params = make_params(kp, in_ch, out_ch, nh, n_res, ks)
    x = jax.random.normal(kx, (N, in_ch, H, W), jnp.float32)

    y = jax.block_until_ready(f2f_forward(x, params))
    y_ref = jax.block_until_ready(f2f_forward_ref(x, params))

    assert y.shape == (N, out_ch, H, W), y.shape
    # bf16 MXU operands vs f32 reference -> slightly looser tolerance than pure f32.
    np.testing.assert_allclose(np.asarray(y), np.asarray(y_ref),
                               rtol=2e-2, atol=2e-2)
    print("KERNEL_OK")
</pallas_src>

<mosaic_0001>
module attributes {stable_mosaic.version = 11 : i64} {
  func.func @_f2f_fused_kernel(%arg0: i32, %arg1: memref<1x32x384xf32, #tpu.memory_space<vmem>>, %arg2: memref<9x32x288xbf16, #tpu.memory_space<vmem>>, %arg3: memref<9x32x2xf32, #tpu.memory_space<vmem>>, %arg4: memref<1x384xf32, #tpu.memory_space<vmem>>, %arg5: memref<1x32x384xf32, #tpu.memory_space<vmem>>, %arg6: memref<288x384xbf16, #tpu.memory_space<vmem>>, %arg7: memref<32x384xf32, #tpu.memory_space<vmem>>, %arg8: memref<32x384xf32, #tpu.memory_space<vmem>>) attributes {dimension_semantics = [#tpu.dimension_semantics<parallel>], iteration_bounds = array<i64: 2>, scalar_prefetch = 0 : i64, scratch_operands = 3 : i64, tpu.core_type = #tpu.core_type<tc>, window_params = [{transform_indices = @transform_0, window_bounds = array<i64: 1, 32, 384>}, {pipeline_mode = #tpu.pipeline_mode<synchronous>, transform_indices = @transform_1, window_bounds = array<i64: 9, 32, 288>}, {pipeline_mode = #tpu.pipeline_mode<synchronous>, transform_indices = @transform_2, window_bounds = array<i64: 9, 32, 2>}, {pipeline_mode = #tpu.pipeline_mode<synchronous>, transform_indices = @transform_3, window_bounds = array<i64: 1, 384>}, {transform_indices = @transform_4, window_bounds = array<i64: 1, 32, 384>}]} {
    %c0 = arith.constant 0 : index
    %c0_0 = arith.constant 0 : index
    %0 = vector.load %arg4[%c0, %c0_0] : memref<1x384xf32, #tpu.memory_space<vmem>>, vector<1x384xf32>
    %c0_1 = arith.constant 0 : index
    %c0_2 = arith.constant 0 : index
    %c0_3 = arith.constant 0 : index
    %1 = vector.load %arg1[%c0_1, %c0_2, %c0_3] : memref<1x32x384xf32, #tpu.memory_space<vmem>>, vector<1x32x384xf32>
    %2 = vector.shape_cast %1 : vector<1x32x384xf32> to vector<32x384xf32>
    %c19_i32 = arith.constant 19 : i32
    %3 = tpu.dynamic_rotate %2 by %c19_i32 dim 1 : vector<32x384xf32>, i32 -> vector<32x384xf32>
    %4 = arith.truncf %3 : vector<32x384xf32> to vector<32x384xbf16>
    %c0_4 = arith.constant 0 : index
    %c0_5 = arith.constant 0 : index
    %5 = vector.load %arg6[%c0_4, %c0_5] : memref<288x384xbf16, #tpu.memory_space<vmem>>, vector<32x384xbf16>
    tpu.vector_store %arg6[%c0_4, %c0_5], %4 {strides = array<i32>} : memref<288x384xbf16, #tpu.memory_space<vmem>>, vector<32x384xbf16>,
    %c18_i32 = arith.constant 18 : i32
    %6 = tpu.dynamic_rotate %2 by %c18_i32 dim 1 : vector<32x384xf32>, i32 -> vector<32x384xf32>
    %7 = arith.truncf %6 : vector<32x384xf32> to vector<32x384xbf16>
    %c32 = arith.constant 32 : index
    %c0_6 = arith.constant 0 : index
    %8 = vector.load %arg6[%c32, %c0_6] : memref<288x384xbf16, #tpu.memory_space<vmem>>, vector<32x384xbf16>
    tpu.vector_store %arg6[%c32, %c0_6], %7 {strides = array<i32>} : memref<288x384xbf16, #tpu.memory_space<vmem>>, vector<32x384xbf16>,
    %c17_i32 = arith.constant 17 : i32
    %9 = tpu.dynamic_rotate %2 by %c17_i32 dim 1 : vector<32x384xf32>, i32 -> vector<32x384xf32>
    %10 = arith.truncf %9 : vector<32x384xf32> to vector<32x384xbf16>
    %c64 = arith.constant 64 : index
    %c0_7 = arith.constant 0 : index
    %11 = vector.load %arg6[%c64, %c0_7] : memref<288x384xbf16, #tpu.memory_space<vmem>>, vector<32x384xbf16>
    tpu.vector_store %arg6[%c64, %c0_7], %10 {strides = array<i32>} : memref<288x384xbf16, #tpu.memory_space<vmem>>, vector<32x384xbf16>,
    %c1_i32 = arith.constant 1 : i32
    %12 = tpu.dynamic_rotate %2 by %c1_i32 dim 1 : vector<32x384xf32>, i32 -> vector<32x384xf32>
    %13 = arith.truncf %12 : vector<32x384xf32> to vector<32x384xbf16>
    %c96 = arith.constant 96 : index
    %c0_8 = arith.constant 0 : index
    %14 = vector.load %arg6[%c96, %c0_8] : memref<288x384xbf16, #tpu.memory_space<vmem>>, vector<32x384xbf16>
    tpu.vector_store %arg6[%c96, %c0_8], %13 {strides = array<i32>} : memref<288x384xbf16, #tpu.memory_space<vmem>>, vector<32x384xbf16>,
    %15 = arith.truncf %2 : vector<32x384xf32> to vector<32x384xbf16>
    %c128 = arith.constant 128 : index
    %c0_9 = arith.constant 0 : index
    %16 = vector.load %arg6[%c128, %c0_9] : memref<288x384xbf16, #tpu.memory_space<vmem>>, vector<32x384xbf16>
    tpu.vector_store %arg6[%c128, %c0_9], %15 {strides = array<i32>} : memref<288x384xbf16, #tpu.memory_space<vmem>>, vector<32x384xbf16>,
    %c383_i32 = arith.constant 383 : i32
    %17 = tpu.dynamic_rotate %2 by %c383_i32 dim 1 : vector<32x384xf32>, i32 -> vector<32x384xf32>
    %18 = arith.truncf %17 : vector<32x384xf32> to vector<32x384xbf16>
    %c160 = arith.constant 160 : index
    %c0_10 = arith.constant 0 : index
    %19 = vector.load %arg6[%c160, %c0_10] : memref<288x384xbf16, #tpu.memory_space<vmem>>, vector<32x384xbf16>
    tpu.vector_store %arg6[%c160, %c0_10], %18 {strides = array<i32>} : memref<288x384xbf16, #tpu.memory_space<vmem>>, vector<32x384xbf16>,
    %c367_i32 = arith.constant 367 : i32
    %20 = tpu.dynamic_rotate %2 by %c367_i32 dim 1 : vector<32x384xf32>, i32 -> vector<32x384xf32>
    %21 = arith.truncf %20 : vector<32x384xf32> to vector<32x384xbf16>
    %c192 = arith.constant 192 : index
    %c0_11 = arith.constant 0 : index
    %22 = vector.load %arg6[%c192, %c0_11] : memref<288x384xbf16, #tpu.memory_space<vmem>>, vector<32x384xbf16>
    tpu.vector_store %arg6[%c192, %c0_11], %21 {strides = array<i32>} : memref<288x384xbf16, #tpu.memory_space<vmem>>, vector<32x384xbf16>,
    %c366_i32 = arith.constant 366 : i32
    %23 = tpu.dynamic_rotate %2 by %c366_i32 dim 1 : vector<32x384xf32>, i32 -> vector<32x384xf32>
    %24 = arith.truncf %23 : vector<32x384xf32> to vector<32x384xbf16>
    %c224 = arith.constant 224 : index
    %c0_12 = arith.constant 0 : index
    %25 = vector.load %arg6[%c224, %c0_12] : memref<288x384xbf16, #tpu.memory_space<vmem>>, vector<32x384xbf16>
    tpu.vector_store %arg6[%c224, %c0_12], %24 {strides = array<i32>} : memref<288x384xbf16, #tpu.memory_space<vmem>>, vector<32x384xbf16>,
    %c365_i32 = arith.constant 365 : i32
    %26 = tpu.dynamic_rotate %2 by %c365_i32 dim 1 : vector<32x384xf32>, i32 -> vector<32x384xf32>
    %27 = arith.truncf %26 : vector<32x384xf32> to vector<32x384xbf16>
    %c256 = arith.constant 256 : index
    %c0_13 = arith.constant 0 : index
    %28 = vector.load %arg6[%c256, %c0_13] : memref<288x384xbf16, #tpu.memory_space<vmem>>, vector<32x384xbf16>
    tpu.vector_store %arg6[%c256, %c0_13], %27 {strides = array<i32>} : memref<288x384xbf16, #tpu.memory_space<vmem>>, vector<32x384xbf16>,
    %c0_14 = arith.constant 0 : index
    %c0_15 = arith.constant 0 : index
    %c0_16 = arith.constant 0 : index
    %29 = vector.load %arg2[%c0_14, %c0_15, %c0_16] : memref<9x32x288xbf16, #tpu.memory_space<vmem>>, vector<1x32x288xbf16>
    %30 = vector.shape_cast %29 : vector<1x32x288xbf16> to vector<32x288xbf16>
    %c0_17 = arith.constant 0 : index
    %c0_18 = arith.constant 0 : index
    %31 = vector.load %arg6[%c0_17, %c0_18] : memref<288x384xbf16, #tpu.memory_space<vmem>>, vector<288x384xbf16>
    %cst = arith.constant dense<0.000000e+00> : vector<32x384xf32>
    %32 = tpu.matmul %30, %31, %cst {dimension_numbers = #tpu.dot_dimension_numbers<[1], [0], [0], [1], [0, 0, 1, 1], [], []>} : vector<32x288xbf16>, vector<288x384xbf16>, vector<32x384xf32> -> vector<32x384xf32>
    %c0_19 = arith.constant 0 : index
    %c0_20 = arith.constant 0 : index
    %c0_21 = arith.constant 0 : index
    %33 = vector.load %arg3[%c0_19, %c0_20, %c0_21] : memref<9x32x2xf32, #tpu.memory_space<vmem>>, vector<1x32x2xf32>
    %34 = vector.shape_cast %33 : vector<1x32x2xf32> to vector<32x2xf32>
    %35 = vector.extract_strided_slice %34 {offsets = [0, 0], sizes = [32, 1], strides = [1, 1]} : vector<32x2xf32> to vector<32x1xf32>
    %36 = vector.broadcast %35 : vector<32x1xf32> to vector<32x384xf32>
    %37 = arith.addf %32, %36 : vector<32x384xf32>
    %cst_22 = arith.constant 0.000000e+00 : f32
    %38 = vector.broadcast %cst_22 : f32 to vector<32x384xf32>
    %39 = arith.cmpf oge, %37, %38 : vector<32x384xf32>
    %40 = vector.extract_strided_slice %34 {offsets = [0, 1], sizes = [32, 1], strides = [1, 1]} : vector<32x2xf32> to vector<32x1xf32>
    %41 = vector.broadcast %40 : vector<32x1xf32> to vector<32x384xf32>
    %42 = arith.mulf %41, %37 : vector<32x384xf32>
    %43 = arith.select %39, %37, %42 : vector<32x384xi1>, vector<32x384xf32>
    %44 = vector.broadcast %0 : vector<1x384xf32> to vector<32x384xf32>
    %45 = arith.mulf %43, %44 : vector<32x384xf32>
    %c0_23 = arith.constant 0 : index
    %c0_24 = arith.constant 0 : index
    %46 = vector.load %arg7[%c0_23, %c0_24] : memref<32x384xf32, #tpu.memory_space<vmem>>, vector<32x384xf32>
    tpu.vector_store %arg7[%c0_23, %c0_24], %45 {strides = array<i32>} : memref<32x384xf32, #tpu.memory_space<vmem>>, vector<32x384xf32>,
    %c0_25 = arith.constant 0 : index
    %c0_26 = arith.constant 0 : index
    %47 = vector.load %arg8[%c0_25, %c0_26] : memref<32x384xf32, #tpu.memory_space<vmem>>, vector<32x384xf32>
    tpu.vector_store %arg8[%c0_25, %c0_26], %45 {strides = array<i32>} : memref<32x384xf32, #tpu.memory_space<vmem>>, vector<32x384xf32>,
    %c0_27 = arith.constant 0 : index
    %c0_28 = arith.constant 0 : index
    %48 = vector.load %arg8[%c0_27, %c0_28] : memref<32x384xf32, #tpu.memory_space<vmem>>, vector<32x384xf32>
    %c19_i32_29 = arith.constant 19 : i32
    %49 = tpu.dynamic_rotate %48 by %c19_i32_29 dim 1 : vector<32x384xf32>, i32 -> vector<32x384xf32>
    %50 = arith.truncf %49 : vector<32x384xf32> to vector<32x384xbf16>
    %c0_30 = arith.constant 0 : index
    %c0_31 = arith.constant 0 : index
    %51 = vector.load %arg6[%c0_30, %c0_31] : memref<288x384xbf16, #tpu.memory_space<vmem>>, vector<32x384xbf16>
    tpu.vector_store %arg6[%c0_30, %c0_31], %50 {strides = array<i32>} : memref<288x384xbf16, #tpu.memory_space<vmem>>, vector<32x384xbf16>,
    %c18_i32_32 = arith.constant 18 : i32
    %52 = tpu.dynamic_rotate %48 by %c18_i32_32 dim 1 : vector<32x384xf32>, i32 -> vector<32x384xf32>
    %53 = arith.truncf %52 : vector<32x384xf32> to vector<32x384xbf16>
    %c32_33 = arith.constant 32 : index
    %c0_34 = arith.constant 0 : index
    %54 = vector.load %arg6[%c32_33, %c0_34] : memref<288x384xbf16, #tpu.memory_space<vmem>>, vector<32x384xbf16>
    tpu.vector_store %arg6[%c32_33, %c0_34], %53 {strides = array<i32>} : memref<288x384xbf16, #tpu.memory_space<vmem>>, vector<32x384xbf16>,
    %c17_i32_35 = arith.constant 17 : i32
    %55 = tpu.dynamic_rotate %48 by %c17_i32_35 dim 1 : vector<32x384xf32>, i32 -> vector<32x384xf32>
    %56 = arith.truncf %55 : vector<32x384xf32> to vector<32x384xbf16>
    %c64_36 = arith.constant 64 : index
    %c0_37 = arith.constant 0 : index
    %57 = vector.load %arg6[%c64_36, %c0_37] : memref<288x384xbf16, #tpu.memory_space<vmem>>, vector<32x384xbf16>
    tpu.vector_store %arg6[%c64_36, %c0_37], %56 {strides = array<i32>} : memref<288x384xbf16, #tpu.memory_space<vmem>>, vector<32x384xbf16>,
    %c1_i32_38 = arith.constant 1 : i32
    %58 = tpu.dynamic_rotate %48 by %c1_i32_38 dim 1 : vector<32x384xf32>, i32 -> vector<32x384xf32>
    %59 = arith.truncf %58 : vector<32x384xf32> to vector<32x384xbf16>
    %c96_39 = arith.constant 96 : index
    %c0_40 = arith.constant 0 : index
    %60 = vector.load %arg6[%c96_39, %c0_40] : memref<288x384xbf16, #tpu.memory_space<vmem>>, vector<32x384xbf16>
    tpu.vector_store %arg6[%c96_39, %c0_40], %59 {strides = array<i32>} : memref<288x384xbf16, #tpu.memory_space<vmem>>, vector<32x384xbf16>,
    %61 = arith.truncf %48 : vector<32x384xf32> to vector<32x384xbf16>
    %c128_41 = arith.constant 128 : index
    %c0_42 = arith.constant 0 : index
    %62 = vector.load %arg6[%c128_41, %c0_42] : memref<288x384xbf16, #tpu.memory_space<vmem>>, vector<32x384xbf16>
    tpu.vector_store %arg6[%c128_41, %c0_42], %61 {strides = array<i32>} : memref<288x384xbf16, #tpu.memory_space<vmem>>, vector<32x384xbf16>,
    %c383_i32_43 = arith.constant 383 : i32
    %63 = tpu.dynamic_rotate %48 by %c383_i32_43 dim 1 : vector<32x384xf32>, i32 -> vector<32x384xf32>
    %64 = arith.truncf %63 : vector<32x384xf32> to vector<32x384xbf16>
    %c160_44 = arith.constant 160 : index
    %c0_45 = arith.constant 0 : index
    %65 = vector.load %arg6[%c160_44, %c0_45] : memref<288x384xbf16, #tpu.memory_space<vmem>>, vector<32x384xbf16>
    tpu.vector_store %arg6[%c160_44, %c0_45], %64 {strides = array<i32>} : memref<288x384xbf16, #tpu.memory_space<vmem>>, vector<32x384xbf16>,
    %c367_i32_46 = arith.constant 367 : i32
    %66 = tpu.dynamic_rotate %48 by %c367_i32_46 dim 1 : vector<32x384xf32>, i32 -> vector<32x384xf32>
    %67 = arith.truncf %66 : vector<32x384xf32> to vector<32x384xbf16>
    %c192_47 = arith.constant 192 : index
    %c0_48 = arith.constant 0 : index
    %68 = vector.load %arg6[%c192_47, %c0_48] : memref<288x384xbf16, #tpu.memory_space<vmem>>, vector<32x384xbf16>
    tpu.vector_store %arg6[%c192_47, %c0_48], %67 {strides = array<i32>} : memref<288x384xbf16, #tpu.memory_space<vmem>>, vector<32x384xbf16>,
    %c366_i32_49 = arith.constant 366 : i32
    %69 = tpu.dynamic_rotate %48 by %c366_i32_49 dim 1 : vector<32x384xf32>, i32 -> vector<32x384xf32>
    %70 = arith.truncf %69 : vector<32x384xf32> to vector<32x384xbf16>
    %c224_50 = arith.constant 224 : index
    %c0_51 = arith.constant 0 : index
    %71 = vector.load %arg6[%c224_50, %c0_51] : memref<288x384xbf16, #tpu.memory_space<vmem>>, vector<32x384xbf16>
    tpu.vector_store %arg6[%c224_50, %c0_51], %70 {strides = array<i32>} : memref<288x384xbf16, #tpu.memory_space<vmem>>, vector<32x384xbf16>,
    %c365_i32_52 = arith.constant 365 : i32
    %72 = tpu.dynamic_rotate %48 by %c365_i32_52 dim 1 : vector<32x384xf32>, i32 -> vector<32x384xf32>
    %73 = arith.truncf %72 : vector<32x384xf32> to vector<32x384xbf16>
    %c256_53 = arith.constant 256 : index
    %c0_54 = arith.constant 0 : index
    %74 = vector.load %arg6[%c256_53, %c0_54] : memref<288x384xbf16, #tpu.memory_space<vmem>>, vector<32x384xbf16>
    tpu.vector_store %arg6[%c256_53, %c0_54], %73 {strides = array<i32>} : memref<288x384xbf16, #tpu.memory_space<vmem>>, vector<32x384xbf16>,
    %c1 = arith.constant 1 : index
    %c0_55 = arith.constant 0 : index
    %c0_56 = arith.constant 0 : index
    %75 = vector.load %arg2[%c1, %c0_55, %c0_56] : memref<9x32x288xbf16, #tpu.memory_space<vmem>>, vector<1x32x288xbf16>
    %76 = vector.shape_cast %75 : vector<1x32x288xbf16> to vector<32x288xbf16>
    %c0_57 = arith.constant 0 : index
    %c0_58 = arith.constant 0 : index
    %77 = vector.load %arg6[%c0_57, %c0_58] : memref<288x384xbf16, #tpu.memory_space<vmem>>, vector<288x384xbf16>
    %cst_59 = arith.constant dense<0.000000e+00> : vector<32x384xf32>
    %78 = tpu.matmul %76, %77, %cst_59 {dimension_numbers = #tpu.dot_dimension_numbers<[1], [0], [0], [1], [0, 0, 1, 1], [], []>} : vector<32x288xbf16>, vector<288x384xbf16>, vector<32x384xf32> -> vector<32x384xf32>
    %c1_60 = arith.constant 1 : index
    %c0_61 = arith.constant 0 : index
    %c0_62 = arith.constant 0 : index
    %79 = vector.load %arg3[%c1_60, %c0_61, %c0_62] : memref<9x32x2xf32, #tpu.memory_space<vmem>>, vector<1x32x2xf32>
    %80 = vector.shape_cast %79 : vector<1x32x2xf32> to vector<32x2xf32>
    %81 = vector.extract_strided_slice %80 {offsets = [0, 0], sizes = [32, 1], strides = [1, 1]} : vector<32x2xf32> to vector<32x1xf32>
    %82 = vector.broadcast %81 : vector<32x1xf32> to vector<32x384xf32>
    %83 = arith.addf %78, %82 : vector<32x384xf32>
    %cst_63 = arith.constant 0.000000e+00 : f32
    %84 = vector.broadcast %cst_63 : f32 to vector<32x384xf32>
    %85 = arith.cmpf oge, %83, %84 : vector<32x384xf32>
    %86 = vector.extract_strided_slice %80 {offsets = [0, 1], sizes = [32, 1], strides = [1, 1]} : vector<32x2xf32> to vector<32x1xf32>
    %87 = vector.broadcast %86 : vector<32x1xf32> to vector<32x384xf32>
    %88 = arith.mulf %87, %83 : vector<32x384xf32>
    %89 = arith.select %85, %83, %88 : vector<32x384xi1>, vector<32x384xf32>
    %90 = vector.broadcast %0 : vector<1x384xf32> to vector<32x384xf32>
    %91 = arith.mulf %89, %90 : vector<32x384xf32>
    %c0_64 = arith.constant 0 : index
    %c0_65 = arith.constant 0 : index
    %92 = vector.load %arg8[%c0_64, %c0_65] : memref<32x384xf32, #tpu.memory_space<vmem>>, vector<32x384xf32>
    %c19_i32_66 = arith.constant 19 : i32
    %93 = tpu.dynamic_rotate %91 by %c19_i32_66 dim 1 : vector<32x384xf32>, i32 -> vector<32x384xf32>
    %94 = arith.truncf %93 : vector<32x384xf32> to vector<32x384xbf16>
    %c0_67 = arith.constant 0 : index
    %c0_68 = arith.constant 0 : index
    %95 = vector.load %arg6[%c0_67, %c0_68] : memref<288x384xbf16, #tpu.memory_space<vmem>>, vector<32x384xbf16>
    tpu.vector_store %arg6[%c0_67, %c0_68], %94 {strides = array<i32>} : memref<288x384xbf16, #tpu.memory_space<vmem>>, vector<32x384xbf16>,
    %c18_i32_69 = arith.constant 18 : i32
    %96 = tpu.dynamic_rotate %91 by %c18_i32_69 dim 1 : vector<32x384xf32>, i32 -> vector<32x384xf32>
    %97 = arith.truncf %96 : vector<32x384xf32> to vector<32x384xbf16>
    %c32_70 = arith.constant 32 : index
    %c0_71 = arith.constant 0 : index
    %98 = vector.load %arg6[%c32_70, %c0_71] : memref<288x384xbf16, #tpu.memory_space<vmem>>, vector<32x384xbf16>
    tpu.vector_store %arg6[%c32_70, %c0_71], %97 {strides = array<i32>} : memref<288x384xbf16, #tpu.memory_space<vmem>>, vector<32x384xbf16>,
    %c17_i32_72 = arith.constant 17 : i32
    %99 = tpu.dynamic_rotate %91 by %c17_i32_72 dim 1 : vector<32x384xf32>, i32 -> vector<32x384xf32>
    %100 = arith.truncf %99 : vector<32x384xf32> to vector<32x384xbf16>
    %c64_73 = arith.constant 64 : index
    %c0_74 = arith.constant 0 : index
    %101 = vector.load %arg6[%c64_73, %c0_74] : memref<288x384xbf16, #tpu.memory_space<vmem>>, vector<32x384xbf16>
    tpu.vector_store %arg6[%c64_73, %c0_74], %100 {strides = array<i32>} : memref<288x384xbf16, #tpu.memory_space<vmem>>, vector<32x384xbf16>,
    %c1_i32_75 = arith.constant 1 : i32
    %102 = tpu.dynamic_rotate %91 by %c1_i32_75 dim 1 : vector<32x384xf32>, i32 -> vector<32x384xf32>
    %103 = arith.truncf %102 : vector<32x384xf32> to vector<32x384xbf16>
    %c96_76 = arith.constant 96 : index
    %c0_77 = arith.constant 0 : index
    %104 = vector.load %arg6[%c96_76, %c0_77] : memref<288x384xbf16, #tpu.memory_space<vmem>>, vector<32x384xbf16>
    tpu.vector_store %arg6[%c96_76, %c0_77], %103 {strides = array<i32>} : memref<288x384xbf16, #tpu.memory_space<vmem>>, vector<32x384xbf16>,
    %105 = arith.truncf %91 : vector<32x384xf32> to vector<32x384xbf16>
    %c128_78 = arith.constant 128 : index
    %c0_79 = arith.constant 0 : index
    %106 = vector.load %arg6[%c128_78, %c0_79] : memref<288x384xbf16, #tpu.memory_space<vmem>>, vector<32x384xbf16>
    tpu.vector_store %arg6[%c128_78, %c0_79], %105 {strides = array<i32>} : memref<288x384xbf16, #tpu.memory_space<vmem>>, vector<32x384xbf16>,
    %c383_i32_80 = arith.constant 383 : i32
    %107 = tpu.dynamic_rotate %91 by %c383_i32_80 dim 1 : vector<32x384xf32>, i32 -> vector<32x384xf32>
    %108 = arith.truncf %107 : vector<32x384xf32> to vector<32x384xbf16>
    %c160_81 = arith.constant 160 : index
    %c0_82 = arith.constant 0 : index
    %109 = vector.load %arg6[%c160_81, %c0_82] : memref<288x384xbf16, #tpu.memory_space<vmem>>, vector<32x384xbf16>
    tpu.vector_store %arg6[%c160_81, %c0_82], %108 {strides = array<i32>} : memref<288x384xbf16, #tpu.memory_space<vmem>>, vector<32x384xbf16>,
    %c367_i32_83 = arith.constant 367 : i32
    %110 = tpu.dynamic_rotate %91 by %c367_i32_83 dim 1 : vector<32x384xf32>, i32 -> vector<32x384xf32>
    %111 = arith.truncf %110 : vector<32x384xf32> to vector<32x384xbf16>
    %c192_84 = arith.constant 192 : index
    %c0_85 = arith.constant 0 : index
    %112 = vector.load %arg6[%c192_84, %c0_85] : memref<288x384xbf16, #tpu.memory_space<vmem>>, vector<32x384xbf16>
    tpu.vector_store %arg6[%c192_84, %c0_85], %111 {strides = array<i32>} : memref<288x384xbf16, #tpu.memory_space<vmem>>, vector<32x384xbf16>,
    %c366_i32_86 = arith.constant 366 : i32
    %113 = tpu.dynamic_rotate %91 by %c366_i32_86 dim 1 : vector<32x384xf32>, i32 -> vector<32x384xf32>
    %114 = arith.truncf %113 : vector<32x384xf32> to vector<32x384xbf16>
    %c224_87 = arith.constant 224 : index
    %c0_88 = arith.constant 0 : index
    %115 = vector.load %arg6[%c224_87, %c0_88] : memref<288x384xbf16, #tpu.memory_space<vmem>>, vector<32x384xbf16>
    tpu.vector_store %arg6[%c224_87, %c0_88], %114 {strides = array<i32>} : memref<288x384xbf16, #tpu.memory_space<vmem>>, vector<32x384xbf16>,
    %c365_i32_89 = arith.constant 365 : i32
    %116 = tpu.dynamic_rotate %91 by %c365_i32_89 dim 1 : vector<32x384xf32>, i32 -> vector<32x384xf32>
    %117 = arith.truncf %116 : vector<32x384xf32> to vector<32x384xbf16>
    %c256_90 = arith.constant 256 : index
    %c0_91 = arith.constant 0 : index
    %118 = vector.load %arg6[%c256_90, %c0_91] : memref<288x384xbf16, #tpu.memory_space<vmem>>, vector<32x384xbf16>
    tpu.vector_store %arg6[%c256_90, %c0_91], %117 {strides = array<i32>} : memref<288x384xbf16, #tpu.memory_space<vmem>>, vector<32x384xbf16>,
    %c2 = arith.constant 2 : index
    %c0_92 = arith.constant 0 : index
    %c0_93 = arith.constant 0 : index
    %119 = vector.load %arg2[%c2, %c0_92, %c0_93] : memref<9x32x288xbf16, #tpu.memory_space<vmem>>, vector<1x32x288xbf16>
    %120 = vector.shape_cast %119 : vector<1x32x288xbf16> to vector<32x288xbf16>
    %c0_94 = arith.constant 0 : index
    %c0_95 = arith.constant 0 : index
    %121 = vector.load %arg6[%c0_94, %c0_95] : memref<288x384xbf16, #tpu.memory_space<vmem>>, vector<288x384xbf16>
    %cst_96 = arith.constant dense<0.000000e+00> : vector<32x384xf32>
    %122 = tpu.matmul %120, %121, %cst_96 {dimension_numbers = #tpu.dot_dimension_numbers<[1], [0], [0], [1], [0, 0, 1, 1], [], []>} : vector<32x288xbf16>, vector<288x384xbf16>, vector<32x384xf32> -> vector<32x384xf32>
    %c2_97 = arith.constant 2 : index
    %c0_98 = arith.constant 0 : index
    %c0_99 = arith.constant 0 : index
    %123 = vector.load %arg3[%c2_97, %c0_98, %c0_99] : memref<9x32x2xf32, #tpu.memory_space<vmem>>, vector<1x32x2xf32>
    %124 = vector.shape_cast %123 : vector<1x32x2xf32> to vector<32x2xf32>
    %125 = vector.extract_strided_slice %124 {offsets = [0, 0], sizes = [32, 1], strides = [1, 1]} : vector<32x2xf32> to vector<32x1xf32>
    %126 = vector.broadcast %125 : vector<32x1xf32> to vector<32x384xf32>
    %127 = arith.addf %122, %126 : vector<32x384xf32>
    %cst_100 = arith.constant 0.000000e+00 : f32
    %128 = vector.broadcast %cst_100 : f32 to vector<32x384xf32>
    %129 = arith.cmpf oge, %127, %128 : vector<32x384xf32>
    %130 = vector.extract_strided_slice %124 {offsets = [0, 1], sizes = [32, 1], strides = [1, 1]} : vector<32x2xf32> to vector<32x1xf32>
    %131 = vector.broadcast %130 : vector<32x1xf32> to vector<32x384xf32>
    %132 = arith.mulf %131, %127 : vector<32x384xf32>
    %133 = arith.select %129, %127, %132 : vector<32x384xi1>, vector<32x384xf32>
    %134 = vector.broadcast %0 : vector<1x384xf32> to vector<32x384xf32>
    %135 = arith.mulf %133, %134 : vector<32x384xf32>
    %136 = arith.addf %92, %135 : vector<32x384xf32>
    %c0_101 = arith.constant 0 : index
    %c0_102 = arith.constant 0 : index
    %137 = vector.load %arg8[%c0_101, %c0_102] : memref<32x384xf32, #tpu.memory_space<vmem>>, vector<32x384xf32>
    tpu.vector_store %arg8[%c0_101, %c0_102], %136 {strides = array<i32>} : memref<32x384xf32, #tpu.memory_space<vmem>>, vector<32x384xf32>,
    %c0_103 = arith.constant 0 : index
    %c0_104 = arith.constant 0 : index
    %138 = vector.load %arg8[%c0_103, %c0_104] : memref<32x384xf32, #tpu.memory_space<vmem>>, vector<32x384xf32>
    %c19_i32_105 = arith.constant 19 : i32
    %139 = tpu.dynamic_rotate %138 by %c19_i32_105 dim 1 : vector<32x384xf32>, i32 -> vector<32x384xf32>
    %140 = arith.truncf %139 : vector<32x384xf32> to vector<32x384xbf16>
    %c0_106 = arith.constant 0 : index
    %c0_107 = arith.constant 0 : index
    %141 = vector.load %arg6[%c0_106, %c0_107] : memref<288x384xbf16, #tpu.memory_space<vmem>>, vector<32x384xbf16>
    tpu.vector_store %arg6[%c0_106, %c0_107], %140 {strides = array<i32>} : memref<288x384xbf16, #tpu.memory_space<vmem>>, vector<32x384xbf16>,
    %c18_i32_108 = arith.constant 18 : i32
    %142 = tpu.dynamic_rotate %138 by %c18_i32_108 dim 1 : vector<32x384xf32>, i32 -> vector<32x384xf32>
    %143 = arith.truncf %142 : vector<32x384xf32> to vector<32x384xbf16>
    %c32_109 = arith.constant 32 : index
    %c0_110 = arith.constant 0 : index
    %144 = vector.load %arg6[%c32_109, %c0_110] : memref<288x384xbf16, #tpu.memory_space<vmem>>, vector<32x384xbf16>
    tpu.vector_store %arg6[%c32_109, %c0_110], %143 {strides = array<i32>} : memref<288x384xbf16, #tpu.memory_space<vmem>>, vector<32x384xbf16>,
    %c17_i32_111 = arith.constant 17 : i32
    %145 = tpu.dynamic_rotate %138 by %c17_i32_111 dim 1 : vector<32x384xf32>, i32 -> vector<32x384xf32>
    %146 = arith.truncf %145 : vector<32x384xf32> to vector<32x384xbf16>
    %c64_112 = arith.constant 64 : index
    %c0_113 = arith.constant 0 : index
    %147 = vector.load %arg6[%c64_112, %c0_113] : memref<288x384xbf16, #tpu.memory_space<vmem>>, vector<32x384xbf16>
    tpu.vector_store %arg6[%c64_112, %c0_113], %146 {strides = array<i32>} : memref<288x384xbf16, #tpu.memory_space<vmem>>, vector<32x384xbf16>,
    %c1_i32_114 = arith.constant 1 : i32
    %148 = tpu.dynamic_rotate %138 by %c1_i32_114 dim 1 : vector<32x384xf32>, i32 -> vector<32x384xf32>
    %149 = arith.truncf %148 : vector<32x384xf32> to vector<32x384xbf16>
    %c96_115 = arith.constant 96 : index
    %c0_116 = arith.constant 0 : index
    %150 = vector.load %arg6[%c96_115, %c0_116] : memref<288x384xbf16, #tpu.memory_space<vmem>>, vector<32x384xbf16>
    tpu.vector_store %arg6[%c96_115, %c0_116], %149 {strides = array<i32>} : memref<288x384xbf16, #tpu.memory_space<vmem>>, vector<32x384xbf16>,
    %151 = arith.truncf %138 : vector<32x384xf32> to vector<32x384xbf16>
    %c128_117 = arith.constant 128 : index
    %c0_118 = arith.constant 0 : index
    %152 = vector.load %arg6[%c128_117, %c0_118] : memref<288x384xbf16, #tpu.memory_space<vmem>>, vector<32x384xbf16>
    tpu.vector_store %arg6[%c128_117, %c0_118], %151 {strides = array<i32>} : memref<288x384xbf16, #tpu.memory_space<vmem>>, vector<32x384xbf16>,
    %c383_i32_119 = arith.constant 383 : i32
    %153 = tpu.dynamic_rotate %138 by %c383_i32_119 dim 1 : vector<32x384xf32>, i32 -> vector<32x384xf32>
    %154 = arith.truncf %153 : vector<32x384xf32> to vector<32x384xbf16>
    %c160_120 = arith.constant 160 : index
    %c0_121 = arith.constant 0 : index
    %155 = vector.load %arg6[%c160_120, %c0_121] : memref<288x384xbf16, #tpu.memory_space<vmem>>, vector<32x384xbf16>
    tpu.vector_store %arg6[%c160_120, %c0_121], %154 {strides = array<i32>} : memref<288x384xbf16, #tpu.memory_space<vmem>>, vector<32x384xbf16>,
    %c367_i32_122 = arith.constant 367 : i32
    %156 = tpu.dynamic_rotate %138 by %c367_i32_122 dim 1 : vector<32x384xf32>, i32 -> vector<32x384xf32>
    %157 = arith.truncf %156 : vector<32x384xf32> to vector<32x384xbf16>
    %c192_123 = arith.constant 192 : index
    %c0_124 = arith.constant 0 : index
    %158 = vector.load %arg6[%c192_123, %c0_124] : memref<288x384xbf16, #tpu.memory_space<vmem>>, vector<32x384xbf16>
    tpu.vector_store %arg6[%c192_123, %c0_124], %157 {strides = array<i32>} : memref<288x384xbf16, #tpu.memory_space<vmem>>, vector<32x384xbf16>,
    %c366_i32_125 = arith.constant 366 : i32
    %159 = tpu.dynamic_rotate %138 by %c366_i32_125 dim 1 : vector<32x384xf32>, i32 -> vector<32x384xf32>
    %160 = arith.truncf %159 : vector<32x384xf32> to vector<32x384xbf16>
    %c224_126 = arith.constant 224 : index
    %c0_127 = arith.constant 0 : index
    %161 = vector.load %arg6[%c224_126, %c0_127] : memref<288x384xbf16, #tpu.memory_space<vmem>>, vector<32x384xbf16>
    tpu.vector_store %arg6[%c224_126, %c0_127], %160 {strides = array<i32>} : memref<288x384xbf16, #tpu.memory_space<vmem>>, vector<32x384xbf16>,
    %c365_i32_128 = arith.constant 365 : i32
    %162 = tpu.dynamic_rotate %138 by %c365_i32_128 dim 1 : vector<32x384xf32>, i32 -> vector<32x384xf32>
    %163 = arith.truncf %162 : vector<32x384xf32> to vector<32x384xbf16>
    %c256_129 = arith.constant 256 : index
    %c0_130 = arith.constant 0 : index
    %164 = vector.load %arg6[%c256_129, %c0_130] : memref<288x384xbf16, #tpu.memory_space<vmem>>, vector<32x384xbf16>
    tpu.vector_store %arg6[%c256_129, %c0_130], %163 {strides = array<i32>} : memref<288x384xbf16, #tpu.memory_space<vmem>>, vector<32x384xbf16>,
    %c3 = arith.constant 3 : index
    %c0_131 = arith.constant 0 : index
    %c0_132 = arith.constant 0 : index
    %165 = vector.load %arg2[%c3, %c0_131, %c0_132] : memref<9x32x288xbf16, #tpu.memory_space<vmem>>, vector<1x32x288xbf16>
    %166 = vector.shape_cast %165 : vector<1x32x288xbf16> to vector<32x288xbf16>
    %c0_133 = arith.constant 0 : index
    %c0_134 = arith.constant 0 : index
    %167 = vector.load %arg6[%c0_133, %c0_134] : memref<288x384xbf16, #tpu.memory_space<vmem>>, vector<288x384xbf16>
    %cst_135 = arith.constant dense<0.000000e+00> : vector<32x384xf32>
    %168 = tpu.matmul %166, %167, %cst_135 {dimension_numbers = #tpu.dot_dimension_numbers<[1], [0], [0], [1], [0, 0, 1, 1], [], []>} : vector<32x288xbf16>, vector<288x384xbf16>, vector<32x384xf32> -> vector<32x384xf32>
    %c3_136 = arith.constant 3 : index
    %c0_137 = arith.constant 0 : index
    %c0_138 = arith.constant 0 : index
    %169 = vector.load %arg3[%c3_136, %c0_137, %c0_138] : memref<9x32x2xf32, #tpu.memory_space<vmem>>, vector<1x32x2xf32>
    %170 = vector.shape_cast %169 : vector<1x32x2xf32> to vector<32x2xf32>
    %171 = vector.extract_strided_slice %170 {offsets = [0, 0], sizes = [32, 1], strides = [1, 1]} : vector<32x2xf32> to vector<32x1xf32>
    %172 = vector.broadcast %171 : vector<32x1xf32> to vector<32x384xf32>
    %173 = arith.addf %168, %172 : vector<32x384xf32>
    %cst_139 = arith.constant 0.000000e+00 : f32
    %174 = vector.broadcast %cst_139 : f32 to vector<32x384xf32>
    %175 = arith.cmpf oge, %173, %174 : vector<32x384xf32>
    %176 = vector.extract_strided_slice %170 {offsets = [0, 1], sizes = [32, 1], strides = [1, 1]} : vector<32x2xf32> to vector<32x1xf32>
    %177 = vector.broadcast %176 : vector<32x1xf32> to vector<32x384xf32>
    %178 = arith.mulf %177, %173 : vector<32x384xf32>
    %179 = arith.select %175, %173, %178 : vector<32x384xi1>, vector<32x384xf32>
    %180 = vector.broadcast %0 : vector<1x384xf32> to vector<32x384xf32>
    %181 = arith.mulf %179, %180 : vector<32x384xf32>
    %c0_140 = arith.constant 0 : index
    %c0_141 = arith.constant 0 : index
    %182 = vector.load %arg8[%c0_140, %c0_141] : memref<32x384xf32, #tpu.memory_space<vmem>>, vector<32x384xf32>
    %c19_i32_142 = arith.constant 19 : i32
    %183 = tpu.dynamic_rotate %181 by %c19_i32_142 dim 1 : vector<32x384xf32>, i32 -> vector<32x384xf32>
    %184 = arith.truncf %183 : vector<32x384xf32> to vector<32x384xbf16>
    %c0_143 = arith.constant 0 : index
    %c0_144 = arith.constant 0 : index
    %185 = vector.load %arg6[%c0_143, %c0_144] : memref<288x384xbf16, #tpu.memory_space<vmem>>, vector<32x384xbf16>
    tpu.vector_store %arg6[%c0_143, %c0_144], %184 {strides = array<i32>} : memref<288x384xbf16, #tpu.memory_space<vmem>>, vector<32x384xbf16>,
    %c18_i32_145 = arith.constant 18 : i32
    %186 = tpu.dynamic_rotate %181 by %c18_i32_145 dim 1 : vector<32x384xf32>, i32 -> vector<32x384xf32>
    %187 = arith.truncf %186 : vector<32x384xf32> to vector<32x384xbf16>
    %c32_146 = arith.constant 32 : index
    %c0_147 = arith.constant 0 : index
    %188 = vector.load %arg6[%c32_146, %c0_147] : memref<288x384xbf16, #tpu.memory_space<vmem>>, vector<32x384xbf16>
    tpu.vector_store %arg6[%c32_146, %c0_147], %187 {strides = array<i32>} : memref<288x384xbf16, #tpu.memory_space<vmem>>, vector<32x384xbf16>,
    %c17_i32_148 = arith.constant 17 : i32
    %189 = tpu.dynamic_rotate %181 by %c17_i32_148 dim 1 : vector<32x384xf32>, i32 -> vector<32x384xf32>
    %190 = arith.truncf %189 : vector<32x384xf32> to vector<32x384xbf16>
    %c64_149 = arith.constant 64 : index
    %c0_150 = arith.constant 0 : index
    %191 = vector.load %arg6[%c64_149, %c0_150] : memref<288x384xbf16, #tpu.memory_space<vmem>>, vector<32x384xbf16>
    tpu.vector_store %arg6[%c64_149, %c0_150], %190 {strides = array<i32>} : memref<288x384xbf16, #tpu.memory_space<vmem>>, vector<32x384xbf16>,
    %c1_i32_151 = arith.constant 1 : i32
    %192 = tpu.dynamic_rotate %181 by %c1_i32_151 dim 1 : vector<32x384xf32>, i32 -> vector<32x384xf32>
    %193 = arith.truncf %192 : vector<32x384xf32> to vector<32x384xbf16>
    %c96_152 = arith.constant 96 : index
    %c0_153 = arith.constant 0 : index
    %194 = vector.load %arg6[%c96_152, %c0_153] : memref<288x384xbf16, #tpu.memory_space<vmem>>, vector<32x384xbf16>
    tpu.vector_store %arg6[%c96_152, %c0_153], %193 {strides = array<i32>} : memref<288x384xbf16, #tpu.memory_space<vmem>>, vector<32x384xbf16>,
    %195 = arith.truncf %181 : vector<32x384xf32> to vector<32x384xbf16>
    %c128_154 = arith.constant 128 : index
    %c0_155 = arith.constant 0 : index
    %196 = vector.load %arg6[%c128_154, %c0_155] : memref<288x384xbf16, #tpu.memory_space<vmem>>, vector<32x384xbf16>
    tpu.vector_store %arg6[%c128_154, %c0_155], %195 {strides = array<i32>} : memref<288x384xbf16, #tpu.memory_space<vmem>>, vector<32x384xbf16>,
    %c383_i32_156 = arith.constant 383 : i32
    %197 = tpu.dynamic_rotate %181 by %c383_i32_156 dim 1 : vector<32x384xf32>, i32 -> vector<32x384xf32>
    %198 = arith.truncf %197 : vector<32x384xf32> to vector<32x384xbf16>
    %c160_157 = arith.constant 160 : index
    %c0_158 = arith.constant 0 : index
    %199 = vector.load %arg6[%c160_157, %c0_158] : memref<288x384xbf16, #tpu.memory_space<vmem>>, vector<32x384xbf16>
    tpu.vector_store %arg6[%c160_157, %c0_158], %198 {strides = array<i32>} : memref<288x384xbf16, #tpu.memory_space<vmem>>, vector<32x384xbf16>,
    %c367_i32_159 = arith.constant 367 : i32
    %200 = tpu.dynamic_rotate %181 by %c367_i32_159 dim 1 : vector<32x384xf32>, i32 -> vector<32x384xf32>
    %201 = arith.truncf %200 : vector<32x384xf32> to vector<32x384xbf16>
    %c192_160 = arith.constant 192 : index
    %c0_161 = arith.constant 0 : index
    %202 = vector.load %arg6[%c192_160, %c0_161] : memref<288x384xbf16, #tpu.memory_space<vmem>>, vector<32x384xbf16>
    tpu.vector_store %arg6[%c192_160, %c0_161], %201 {strides = array<i32>} : memref<288x384xbf16, #tpu.memory_space<vmem>>, vector<32x384xbf16>,
    %c366_i32_162 = arith.constant 366 : i32
    %203 = tpu.dynamic_rotate %181 by %c366_i32_162 dim 1 : vector<32x384xf32>, i32 -> vector<32x384xf32>
    %204 = arith.truncf %203 : vector<32x384xf32> to vector<32x384xbf16>
    %c224_163 = arith.constant 224 : index
    %c0_164 = arith.constant 0 : index
    %205 = vector.load %arg6[%c224_163, %c0_164] : memref<288x384xbf16, #tpu.memory_space<vmem>>, vector<32x384xbf16>
    tpu.vector_store %arg6[%c224_163, %c0_164], %204 {strides = array<i32>} : memref<288x384xbf16, #tpu.memory_space<vmem>>, vector<32x384xbf16>,
    %c365_i32_165 = arith.constant 365 : i32
    %206 = tpu.dynamic_rotate %181 by %c365_i32_165 dim 1 : vector<32x384xf32>, i32 -> vector<32x384xf32>
    %207 = arith.truncf %206 : vector<32x384xf32> to vector<32x384xbf16>
    %c256_166 = arith.constant 256 : index
    %c0_167 = arith.constant 0 : index
    %208 = vector.load %arg6[%c256_166, %c0_167] : memref<288x384xbf16, #tpu.memory_space<vmem>>, vector<32x384xbf16>
    tpu.vector_store %arg6[%c256_166, %c0_167], %207 {strides = array<i32>} : memref<288x384xbf16, #tpu.memory_space<vmem>>, vector<32x384xbf16>,
    %c4 = arith.constant 4 : index
    %c0_168 = arith.constant 0 : index
    %c0_169 = arith.constant 0 : index
    %209 = vector.load %arg2[%c4, %c0_168, %c0_169] : memref<9x32x288xbf16, #tpu.memory_space<vmem>>, vector<1x32x288xbf16>
    %210 = vector.shape_cast %209 : vector<1x32x288xbf16> to vector<32x288xbf16>
    %c0_170 = arith.constant 0 : index
    %c0_171 = arith.constant 0 : index
    %211 = vector.load %arg6[%c0_170, %c0_171] : memref<288x384xbf16, #tpu.memory_space<vmem>>, vector<288x384xbf16>
    %cst_172 = arith.constant dense<0.000000e+00> : vector<32x384xf32>
    %212 = tpu.matmul %210, %211, %cst_172 {dimension_numbers = #tpu.dot_dimension_numbers<[1], [0], [0], [1], [0, 0, 1, 1], [], []>} : vector<32x288xbf16>, vector<288x384xbf16>, vector<32x384xf32> -> vector<32x384xf32>
    %c4_173 = arith.constant 4 : index
    %c0_174 = arith.constant 0 : index
    %c0_175 = arith.constant 0 : index
    %213 = vector.load %arg3[%c4_173, %c0_174, %c0_175] : memref<9x32x2xf32, #tpu.memory_space<vmem>>, vector<1x32x2xf32>
    %214 = vector.shape_cast %213 : vector<1x32x2xf32> to vector<32x2xf32>
    %215 = vector.extract_strided_slice %214 {offsets = [0, 0], sizes = [32, 1], strides = [1, 1]} : vector<32x2xf32> to vector<32x1xf32>
    %216 = vector.broadcast %215 : vector<32x1xf32> to vector<32x384xf32>
    %217 = arith.addf %212, %216 : vector<32x384xf32>
    %cst_176 = arith.constant 0.000000e+00 : f32
    %218 = vector.broadcast %cst_176 : f32 to vector<32x384xf32>
    %219 = arith.cmpf oge, %217, %218 : vector<32x384xf32>
    %220 = vector.extract_strided_slice %214 {offsets = [0, 1], sizes = [32, 1], strides = [1, 1]} : vector<32x2xf32> to vector<32x1xf32>
    %221 = vector.broadcast %220 : vector<32x1xf32> to vector<32x384xf32>
    %222 = arith.mulf %221, %217 : vector<32x384xf32>
    %223 = arith.select %219, %217, %222 : vector<32x384xi1>, vector<32x384xf32>
    %224 = vector.broadcast %0 : vector<1x384xf32> to vector<32x384xf32>
    %225 = arith.mulf %223, %224 : vector<32x384xf32>
    %226 = arith.addf %182, %225 : vector<32x384xf32>
    %c0_177 = arith.constant 0 : index
    %c0_178 = arith.constant 0 : index
    %227 = vector.load %arg8[%c0_177, %c0_178] : memref<32x384xf32, #tpu.memory_space<vmem>>, vector<32x384xf32>
    tpu.vector_store %arg8[%c0_177, %c0_178], %226 {strides = array<i32>} : memref<32x384xf32, #tpu.memory_space<vmem>>, vector<32x384xf32>,
    %c0_179 = arith.constant 0 : index
    %c0_180 = arith.constant 0 : index
    %228 = vector.load %arg8[%c0_179, %c0_180] : memref<32x384xf32, #tpu.memory_space<vmem>>, vector<32x384xf32>
    %c19_i32_181 = arith.constant 19 : i32
    %229 = tpu.dynamic_rotate %228 by %c19_i32_181 dim 1 : vector<32x384xf32>, i32 -> vector<32x384xf32>
    %230 = arith.truncf %229 : vector<32x384xf32> to vector<32x384xbf16>
    %c0_182 = arith.constant 0 : index
    %c0_183 = arith.constant 0 : index
    %231 = vector.load %arg6[%c0_182, %c0_183] : memref<288x384xbf16, #tpu.memory_space<vmem>>, vector<32x384xbf16>
    tpu.vector_store %arg6[%c0_182, %c0_183], %230 {strides = array<i32>} : memref<288x384xbf16, #tpu.memory_space<vmem>>, vector<32x384xbf16>,
    %c18_i32_184 = arith.constant 18 : i32
    %232 = tpu.dynamic_rotate %228 by %c18_i32_184 dim 1 : vector<32x384xf32>, i32 -> vector<32x384xf32>
    %233 = arith.truncf %232 : vector<32x384xf32> to vector<32x384xbf16>
    %c32_185 = arith.constant 32 : index
    %c0_186 = arith.constant 0 : index
    %234 = vector.load %arg6[%c32_185, %c0_186] : memref<288x384xbf16, #tpu.memory_space<vmem>>, vector<32x384xbf16>
    tpu.vector_store %arg6[%c32_185, %c0_186], %233 {strides = array<i32>} : memref<288x384xbf16, #tpu.memory_space<vmem>>, vector<32x384xbf16>,
    %c17_i32_187 = arith.constant 17 : i32
    %235 = tpu.dynamic_rotate %228 by %c17_i32_187 dim 1 : vector<32x384xf32>, i32 -> vector<32x384xf32>
    %236 = arith.truncf %235 : vector<32x384xf32> to vector<32x384xbf16>
    %c64_188 = arith.constant 64 : index
    %c0_189 = arith.constant 0 : index
    %237 = vector.load %arg6[%c64_188, %c0_189] : memref<288x384xbf16, #tpu.memory_space<vmem>>, vector<32x384xbf16>
    tpu.vector_store %arg6[%c64_188, %c0_189], %236 {strides = array<i32>} : memref<288x384xbf16, #tpu.memory_space<vmem>>, vector<32x384xbf16>,
    %c1_i32_190 = arith.constant 1 : i32
    %238 = tpu.dynamic_rotate %228 by %c1_i32_190 dim 1 : vector<32x384xf32>, i32 -> vector<32x384xf32>
    %239 = arith.truncf %238 : vector<32x384xf32> to vector<32x384xbf16>
    %c96_191 = arith.constant 96 : index
    %c0_192 = arith.constant 0 : index
    %240 = vector.load %arg6[%c96_191, %c0_192] : memref<288x384xbf16, #tpu.memory_space<vmem>>, vector<32x384xbf16>
    tpu.vector_store %arg6[%c96_191, %c0_192], %239 {strides = array<i32>} : memref<288x384xbf16, #tpu.memory_space<vmem>>, vector<32x384xbf16>,
    %241 = arith.truncf %228 : vector<32x384xf32> to vector<32x384xbf16>
    %c128_193 = arith.constant 128 : index
    %c0_194 = arith.constant 0 : index
    %242 = vector.load %arg6[%c128_193, %c0_194] : memref<288x384xbf16, #tpu.memory_space<vmem>>, vector<32x384xbf16>
    tpu.vector_store %arg6[%c128_193, %c0_194], %241 {strides = array<i32>} : memref<288x384xbf16, #tpu.memory_space<vmem>>, vector<32x384xbf16>,
    %c383_i32_195 = arith.constant 383 : i32
    %243 = tpu.dynamic_rotate %228 by %c383_i32_195 dim 1 : vector<32x384xf32>, i32 -> vector<32x384xf32>
    %244 = arith.truncf %243 : vector<32x384xf32> to vector<32x384xbf16>
    %c160_196 = arith.constant 160 : index
    %c0_197 = arith.constant 0 : index
    %245 = vector.load %arg6[%c160_196, %c0_197] : memref<288x384xbf16, #tpu.memory_space<vmem>>, vector<32x384xbf16>
    tpu.vector_store %arg6[%c160_196, %c0_197], %244 {strides = array<i32>} : memref<288x384xbf16, #tpu.memory_space<vmem>>, vector<32x384xbf16>,
    %c367_i32_198 = arith.constant 367 : i32
    %246 = tpu.dynamic_rotate %228 by %c367_i32_198 dim 1 : vector<32x384xf32>, i32 -> vector<32x384xf32>
    %247 = arith.truncf %246 : vector<32x384xf32> to vector<32x384xbf16>
    %c192_199 = arith.constant 192 : index
    %c0_200 = arith.constant 0 : index
    %248 = vector.load %arg6[%c192_199, %c0_200] : memref<288x384xbf16, #tpu.memory_space<vmem>>, vector<32x384xbf16>
    tpu.vector_store %arg6[%c192_199, %c0_200], %247 {strides = array<i32>} : memref<288x384xbf16, #tpu.memory_space<vmem>>, vector<32x384xbf16>,
    %c366_i32_201 = arith.constant 366 : i32
    %249 = tpu.dynamic_rotate %228 by %c366_i32_201 dim 1 : vector<32x384xf32>, i32 -> vector<32x384xf32>
    %250 = arith.truncf %249 : vector<32x384xf32> to vector<32x384xbf16>
    %c224_202 = arith.constant 224 : index
    %c0_203 = arith.constant 0 : index
    %251 = vector.load %arg6[%c224_202, %c0_203] : memref<288x384xbf16, #tpu.memory_space<vmem>>, vector<32x384xbf16>
    tpu.vector_store %arg6[%c224_202, %c0_203], %250 {strides = array<i32>} : memref<288x384xbf16, #tpu.memory_space<vmem>>, vector<32x384xbf16>,
    %c365_i32_204 = arith.constant 365 : i32
    %252 = tpu.dynamic_rotate %228 by %c365_i32_204 dim 1 : vector<32x384xf32>, i32 -> vector<32x384xf32>
    %253 = arith.truncf %252 : vector<32x384xf32> to vector<32x384xbf16>
    %c256_205 = arith.constant 256 : index
    %c0_206 = arith.constant 0 : index
    %254 = vector.load %arg6[%c256_205, %c0_206] : memref<288x384xbf16, #tpu.memory_space<vmem>>, vector<32x384xbf16>
    tpu.vector_store %arg6[%c256_205, %c0_206], %253 {strides = array<i32>} : memref<288x384xbf16, #tpu.memory_space<vmem>>, vector<32x384xbf16>,
    %c5 = arith.constant 5 : index
    %c0_207 = arith.constant 0 : index
    %c0_208 = arith.constant 0 : index
    %255 = vector.load %arg2[%c5, %c0_207, %c0_208] : memref<9x32x288xbf16, #tpu.memory_space<vmem>>, vector<1x32x288xbf16>
    %256 = vector.shape_cast %255 : vector<1x32x288xbf16> to vector<32x288xbf16>
    %c0_209 = arith.constant 0 : index
    %c0_210 = arith.constant 0 : index
    %257 = vector.load %arg6[%c0_209, %c0_210] : memref<288x384xbf16, #tpu.memory_space<vmem>>, vector<288x384xbf16>
    %cst_211 = arith.constant dense<0.000000e+00> : vector<32x384xf32>
    %258 = tpu.matmul %256, %257, %cst_211 {dimension_numbers = #tpu.dot_dimension_numbers<[1], [0], [0], [1], [0, 0, 1, 1], [], []>} : vector<32x288xbf16>, vector<288x384xbf16>, vector<32x384xf32> -> vector<32x384xf32>
    %c5_212 = arith.constant 5 : index
    %c0_213 = arith.constant 0 : index
    %c0_214 = arith.constant 0 : index
    %259 = vector.load %arg3[%c5_212, %c0_213, %c0_214] : memref<9x32x2xf32, #tpu.memory_space<vmem>>, vector<1x32x2xf32>
    %260 = vector.shape_cast %259 : vector<1x32x2xf32> to vector<32x2xf32>
    %261 = vector.extract_strided_slice %260 {offsets = [0, 0], sizes = [32, 1], strides = [1, 1]} : vector<32x2xf32> to vector<32x1xf32>
    %262 = vector.broadcast %261 : vector<32x1xf32> to vector<32x384xf32>
    %263 = arith.addf %258, %262 : vector<32x384xf32>
    %cst_215 = arith.constant 0.000000e+00 : f32
    %264 = vector.broadcast %cst_215 : f32 to vector<32x384xf32>
    %265 = arith.cmpf oge, %263, %264 : vector<32x384xf32>
    %266 = vector.extract_strided_slice %260 {offsets = [0, 1], sizes = [32, 1], strides = [1, 1]} : vector<32x2xf32> to vector<32x1xf32>
    %267 = vector.broadcast %266 : vector<32x1xf32> to vector<32x384xf32>
    %268 = arith.mulf %267, %263 : vector<32x384xf32>
    %269 = arith.select %265, %263, %268 : vector<32x384xi1>, vector<32x384xf32>
    %270 = vector.broadcast %0 : vector<1x384xf32> to vector<32x384xf32>
    %271 = arith.mulf %269, %270 : vector<32x384xf32>
    %c0_216 = arith.constant 0 : index
    %c0_217 = arith.constant 0 : index
    %272 = vector.load %arg7[%c0_216, %c0_217] : memref<32x384xf32, #tpu.memory_space<vmem>>, vector<32x384xf32>
    %273 = arith.addf %272, %271 : vector<32x384xf32>
    %c19_i32_218 = arith.constant 19 : i32
    %274 = tpu.dynamic_rotate %273 by %c19_i32_218 dim 1 : vector<32x384xf32>, i32 -> vector<32x384xf32>
    %275 = arith.truncf %274 : vector<32x384xf32> to vector<32x384xbf16>
    %c0_219 = arith.constant 0 : index
    %c0_220 = arith.constant 0 : index
    %276 = vector.load %arg6[%c0_219, %c0_220] : memref<288x384xbf16, #tpu.memory_space<vmem>>, vector<32x384xbf16>
    tpu.vector_store %arg6[%c0_219, %c0_220], %275 {strides = array<i32>} : memref<288x384xbf16, #tpu.memory_space<vmem>>, vector<32x384xbf16>,
    %c18_i32_221 = arith.constant 18 : i32
    %277 = tpu.dynamic_rotate %273 by %c18_i32_221 dim 1 : vector<32x384xf32>, i32 -> vector<32x384xf32>
    %278 = arith.truncf %277 : vector<32x384xf32> to vector<32x384xbf16>
    %c32_222 = arith.constant 32 : index
    %c0_223 = arith.constant 0 : index
    %279 = vector.load %arg6[%c32_222, %c0_223] : memref<288x384xbf16, #tpu.memory_space<vmem>>, vector<32x384xbf16>
    tpu.vector_store %arg6[%c32_222, %c0_223], %278 {strides = array<i32>} : memref<288x384xbf16, #tpu.memory_space<vmem>>, vector<32x384xbf16>,
    %c17_i32_224 = arith.constant 17 : i32
    %280 = tpu.dynamic_rotate %273 by %c17_i32_224 dim 1 : vector<32x384xf32>, i32 -> vector<32x384xf32>
    %281 = arith.truncf %280 : vector<32x384xf32> to vector<32x384xbf16>
    %c64_225 = arith.constant 64 : index
    %c0_226 = arith.constant 0 : index
    %282 = vector.load %arg6[%c64_225, %c0_226] : memref<288x384xbf16, #tpu.memory_space<vmem>>, vector<32x384xbf16>
    tpu.vector_store %arg6[%c64_225, %c0_226], %281 {strides = array<i32>} : memref<288x384xbf16, #tpu.memory_space<vmem>>, vector<32x384xbf16>,
    %c1_i32_227 = arith.constant 1 : i32
    %283 = tpu.dynamic_rotate %273 by %c1_i32_227 dim 1 : vector<32x384xf32>, i32 -> vector<32x384xf32>
    %284 = arith.truncf %283 : vector<32x384xf32> to vector<32x384xbf16>
    %c96_228 = arith.constant 96 : index
    %c0_229 = arith.constant 0 : index
    %285 = vector.load %arg6[%c96_228, %c0_229] : memref<288x384xbf16, #tpu.memory_space<vmem>>, vector<32x384xbf16>
    tpu.vector_store %arg6[%c96_228, %c0_229], %284 {strides = array<i32>} : memref<288x384xbf16, #tpu.memory_space<vmem>>, vector<32x384xbf16>,
    %286 = arith.truncf %273 : vector<32x384xf32> to vector<32x384xbf16>
    %c128_230 = arith.constant 128 : index
    %c0_231 = arith.constant 0 : index
    %287 = vector.load %arg6[%c128_230, %c0_231] : memref<288x384xbf16, #tpu.memory_space<vmem>>, vector<32x384xbf16>
    tpu.vector_store %arg6[%c128_230, %c0_231], %286 {strides = array<i32>} : memref<288x384xbf16, #tpu.memory_space<vmem>>, vector<32x384xbf16>,
    %c383_i32_232 = arith.constant 383 : i32
    %288 = tpu.dynamic_rotate %273 by %c383_i32_232 dim 1 : vector<32x384xf32>, i32 -> vector<32x384xf32>
    %289 = arith.truncf %288 : vector<32x384xf32> to vector<32x384xbf16>
    %c160_233 = arith.constant 160 : index
    %c0_234 = arith.constant 0 : index
    %290 = vector.load %arg6[%c160_233, %c0_234] : memref<288x384xbf16, #tpu.memory_space<vmem>>, vector<32x384xbf16>
    tpu.vector_store %arg6[%c160_233, %c0_234], %289 {strides = array<i32>} : memref<288x384xbf16, #tpu.memory_space<vmem>>, vector<32x384xbf16>,
    %c367_i32_235 = arith.constant 367 : i32
    %291 = tpu.dynamic_rotate %273 by %c367_i32_235 dim 1 : vector<32x384xf32>, i32 -> vector<32x384xf32>
    %292 = arith.truncf %291 : vector<32x384xf32> to vector<32x384xbf16>
    %c192_236 = arith.constant 192 : index
    %c0_237 = arith.constant 0 : index
    %293 = vector.load %arg6[%c192_236, %c0_237] : memref<288x384xbf16, #tpu.memory_space<vmem>>, vector<32x384xbf16>
    tpu.vector_store %arg6[%c192_236, %c0_237], %292 {strides = array<i32>} : memref<288x384xbf16, #tpu.memory_space<vmem>>, vector<32x384xbf16>,
    %c366_i32_238 = arith.constant 366 : i32
    %294 = tpu.dynamic_rotate %273 by %c366_i32_238 dim 1 : vector<32x384xf32>, i32 -> vector<32x384xf32>
    %295 = arith.truncf %294 : vector<32x384xf32> to vector<32x384xbf16>
    %c224_239 = arith.constant 224 : index
    %c0_240 = arith.constant 0 : index
    %296 = vector.load %arg6[%c224_239, %c0_240] : memref<288x384xbf16, #tpu.memory_space<vmem>>, vector<32x384xbf16>
    tpu.vector_store %arg6[%c224_239, %c0_240], %295 {strides = array<i32>} : memref<288x384xbf16, #tpu.memory_space<vmem>>, vector<32x384xbf16>,
    %c365_i32_241 = arith.constant 365 : i32
    %297 = tpu.dynamic_rotate %273 by %c365_i32_241 dim 1 : vector<32x384xf32>, i32 -> vector<32x384xf32>
    %298 = arith.truncf %297 : vector<32x384xf32> to vector<32x384xbf16>
    %c256_242 = arith.constant 256 : index
    %c0_243 = arith.constant 0 : index
    %299 = vector.load %arg6[%c256_242, %c0_243] : memref<288x384xbf16, #tpu.memory_space<vmem>>, vector<32x384xbf16>
    tpu.vector_store %arg6[%c256_242, %c0_243], %298 {strides = array<i32>} : memref<288x384xbf16, #tpu.memory_space<vmem>>, vector<32x384xbf16>,
    %c6 = arith.constant 6 : index
    %c0_244 = arith.constant 0 : index
    %c0_245 = arith.constant 0 : index
    %300 = vector.load %arg2[%c6, %c0_244, %c0_245] : memref<9x32x288xbf16, #tpu.memory_space<vmem>>, vector<1x32x288xbf16>
    %301 = vector.shape_cast %300 : vector<1x32x288xbf16> to vector<32x288xbf16>
    %c0_246 = arith.constant 0 : index
    %c0_247 = arith.constant 0 : index
    %302 = vector.load %arg6[%c0_246, %c0_247] : memref<288x384xbf16, #tpu.memory_space<vmem>>, vector<288x384xbf16>
    %cst_248 = arith.constant dense<0.000000e+00> : vector<32x384xf32>
    %303 = tpu.matmul %301, %302, %cst_248 {dimension_numbers = #tpu.dot_dimension_numbers<[1], [0], [0], [1], [0, 0, 1, 1], [], []>} : vector<32x288xbf16>, vector<288x384xbf16>, vector<32x384xf32> -> vector<32x384xf32>
    %c6_249 = arith.constant 6 : index
    %c0_250 = arith.constant 0 : index
    %c0_251 = arith.constant 0 : index
    %304 = vector.load %arg3[%c6_249, %c0_250, %c0_251] : memref<9x32x2xf32, #tpu.memory_space<vmem>>, vector<1x32x2xf32>
    %305 = vector.shape_cast %304 : vector<1x32x2xf32> to vector<32x2xf32>
    %306 = vector.extract_strided_slice %305 {offsets = [0, 0], sizes = [32, 1], strides = [1, 1]} : vector<32x2xf32> to vector<32x1xf32>
    %307 = vector.broadcast %306 : vector<32x1xf32> to vector<32x384xf32>
    %308 = arith.addf %303, %307 : vector<32x384xf32>
    %cst_252 = arith.constant 0.000000e+00 : f32
    %309 = vector.broadcast %cst_252 : f32 to vector<32x384xf32>
    %310 = arith.cmpf oge, %308, %309 : vector<32x384xf32>
    %311 = vector.extract_strided_slice %305 {offsets = [0, 1], sizes = [32, 1], strides = [1, 1]} : vector<32x2xf32> to vector<32x1xf32>
    %312 = vector.broadcast %311 : vector<32x1xf32> to vector<32x384xf32>
    %313 = arith.mulf %312, %308 : vector<32x384xf32>
    %314 = arith.select %310, %308, %313 : vector<32x384xi1>, vector<32x384xf32>
    %315 = vector.broadcast %0 : vector<1x384xf32> to vector<32x384xf32>
    %316 = arith.mulf %314, %315 : vector<32x384xf32>
    %c19_i32_253 = arith.constant 19 : i32
    %317 = tpu.dynamic_rotate %316 by %c19_i32_253 dim 1 : vector<32x384xf32>, i32 -> vector<32x384xf32>
    %318 = arith.truncf %317 : vector<32x384xf32> to vector<32x384xbf16>
    %c0_254 = arith.constant 0 : index
    %c0_255 = arith.constant 0 : index
    %319 = vector.load %arg6[%c0_254, %c0_255] : memref<288x384xbf16, #tpu.memory_space<vmem>>, vector<32x384xbf16>
    tpu.vector_store %arg6[%c0_254, %c0_255], %318 {strides = array<i32>} : memref<288x384xbf16, #tpu.memory_space<vmem>>, vector<32x384xbf16>,
    %c18_i32_256 = arith.constant 18 : i32
    %320 = tpu.dynamic_rotate %316 by %c18_i32_256 dim 1 : vector<32x384xf32>, i32 -> vector<32x384xf32>
    %321 = arith.truncf %320 : vector<32x384xf32> to vector<32x384xbf16>
    %c32_257 = arith.constant 32 : index
    %c0_258 = arith.constant 0 : index
    %322 = vector.load %arg6[%c32_257, %c0_258] : memref<288x384xbf16, #tpu.memory_space<vmem>>, vector<32x384xbf16>
    tpu.vector_store %arg6[%c32_257, %c0_258], %321 {strides = array<i32>} : memref<288x384xbf16, #tpu.memory_space<vmem>>, vector<32x384xbf16>,
    %c17_i32_259 = arith.constant 17 : i32
    %323 = tpu.dynamic_rotate %316 by %c17_i32_259 dim 1 : vector<32x384xf32>, i32 -> vector<32x384xf32>
    %324 = arith.truncf %323 : vector<32x384xf32> to vector<32x384xbf16>
    %c64_260 = arith.constant 64 : index
    %c0_261 = arith.constant 0 : index
    %325 = vector.load %arg6[%c64_260, %c0_261] : memref<288x384xbf16, #tpu.memory_space<vmem>>, vector<32x384xbf16>
    tpu.vector_store %arg6[%c64_260, %c0_261], %324 {strides = array<i32>} : memref<288x384xbf16, #tpu.memory_space<vmem>>, vector<32x384xbf16>,
    %c1_i32_262 = arith.constant 1 : i32
    %326 = tpu.dynamic_rotate %316 by %c1_i32_262 dim 1 : vector<32x384xf32>, i32 -> vector<32x384xf32>
    %327 = arith.truncf %326 : vector<32x384xf32> to vector<32x384xbf16>
    %c96_263 = arith.constant 96 : index
    %c0_264 = arith.constant 0 : index
    %328 = vector.load %arg6[%c96_263, %c0_264] : memref<288x384xbf16, #tpu.memory_space<vmem>>, vector<32x384xbf16>
    tpu.vector_store %arg6[%c96_263, %c0_264], %327 {strides = array<i32>} : memref<288x384xbf16, #tpu.memory_space<vmem>>, vector<32x384xbf16>,
    %329 = arith.truncf %316 : vector<32x384xf32> to vector<32x384xbf16>
    %c128_265 = arith.constant 128 : index
    %c0_266 = arith.constant 0 : index
    %330 = vector.load %arg6[%c128_265, %c0_266] : memref<288x384xbf16, #tpu.memory_space<vmem>>, vector<32x384xbf16>
    tpu.vector_store %arg6[%c128_265, %c0_266], %329 {strides = array<i32>} : memref<288x384xbf16, #tpu.memory_space<vmem>>, vector<32x384xbf16>,
    %c383_i32_267 = arith.constant 383 : i32
    %331 = tpu.dynamic_rotate %316 by %c383_i32_267 dim 1 : vector<32x384xf32>, i32 -> vector<32x384xf32>
    %332 = arith.truncf %331 : vector<32x384xf32> to vector<32x384xbf16>
    %c160_268 = arith.constant 160 : index
    %c0_269 = arith.constant 0 : index
    %333 = vector.load %arg6[%c160_268, %c0_269] : memref<288x384xbf16, #tpu.memory_space<vmem>>, vector<32x384xbf16>
    tpu.vector_store %arg6[%c160_268, %c0_269], %332 {strides = array<i32>} : memref<288x384xbf16, #tpu.memory_space<vmem>>, vector<32x384xbf16>,
    %c367_i32_270 = arith.constant 367 : i32
    %334 = tpu.dynamic_rotate %316 by %c367_i32_270 dim 1 : vector<32x384xf32>, i32 -> vector<32x384xf32>
    %335 = arith.truncf %334 : vector<32x384xf32> to vector<32x384xbf16>
    %c192_271 = arith.constant 192 : index
    %c0_272 = arith.constant 0 : index
    %336 = vector.load %arg6[%c192_271, %c0_272] : memref<288x384xbf16, #tpu.memory_space<vmem>>, vector<32x384xbf16>
    tpu.vector_store %arg6[%c192_271, %c0_272], %335 {strides = array<i32>} : memref<288x384xbf16, #tpu.memory_space<vmem>>, vector<32x384xbf16>,
    %c366_i32_273 = arith.constant 366 : i32
    %337 = tpu.dynamic_rotate %316 by %c366_i32_273 dim 1 : vector<32x384xf32>, i32 -> vector<32x384xf32>
    %338 = arith.truncf %337 : vector<32x384xf32> to vector<32x384xbf16>
    %c224_274 = arith.constant 224 : index
    %c0_275 = arith.constant 0 : index
    %339 = vector.load %arg6[%c224_274, %c0_275] : memref<288x384xbf16, #tpu.memory_space<vmem>>, vector<32x384xbf16>
    tpu.vector_store %arg6[%c224_274, %c0_275], %338 {strides = array<i32>} : memref<288x384xbf16, #tpu.memory_space<vmem>>, vector<32x384xbf16>,
    %c365_i32_276 = arith.constant 365 : i32
    %340 = tpu.dynamic_rotate %316 by %c365_i32_276 dim 1 : vector<32x384xf32>, i32 -> vector<32x384xf32>
    %341 = arith.truncf %340 : vector<32x384xf32> to vector<32x384xbf16>
    %c256_277 = arith.constant 256 : index
    %c0_278 = arith.constant 0 : index
    %342 = vector.load %arg6[%c256_277, %c0_278] : memref<288x384xbf16, #tpu.memory_space<vmem>>, vector<32x384xbf16>
    tpu.vector_store %arg6[%c256_277, %c0_278], %341 {strides = array<i32>} : memref<288x384xbf16, #tpu.memory_space<vmem>>, vector<32x384xbf16>,
    %c7 = arith.constant 7 : index
    %c0_279 = arith.constant 0 : index
    %c0_280 = arith.constant 0 : index
    %343 = vector.load %arg2[%c7, %c0_279, %c0_280] : memref<9x32x288xbf16, #tpu.memory_space<vmem>>, vector<1x32x288xbf16>
    %344 = vector.shape_cast %343 : vector<1x32x288xbf16> to vector<32x288xbf16>
    %c0_281 = arith.constant 0 : index
    %c0_282 = arith.constant 0 : index
    %345 = vector.load %arg6[%c0_281, %c0_282] : memref<288x384xbf16, #tpu.memory_space<vmem>>, vector<288x384xbf16>
    %cst_283 = arith.constant dense<0.000000e+00> : vector<32x384xf32>
    %346 = tpu.matmul %344, %345, %cst_283 {dimension_numbers = #tpu.dot_dimension_numbers<[1], [0], [0], [1], [0, 0, 1, 1], [], []>} : vector<32x288xbf16>, vector<288x384xbf16>, vector<32x384xf32> -> vector<32x384xf32>
    %c7_284 = arith.constant 7 : index
    %c0_285 = arith.constant 0 : index
    %c0_286 = arith.constant 0 : index
    %347 = vector.load %arg3[%c7_284, %c0_285, %c0_286] : memref<9x32x2xf32, #tpu.memory_space<vmem>>, vector<1x32x2xf32>
    %348 = vector.shape_cast %347 : vector<1x32x2xf32> to vector<32x2xf32>
    %349 = vector.extract_strided_slice %348 {offsets = [0, 0], sizes = [32, 1], strides = [1, 1]} : vector<32x2xf32> to vector<32x1xf32>
    %350 = vector.broadcast %349 : vector<32x1xf32> to vector<32x384xf32>
    %351 = arith.addf %346, %350 : vector<32x384xf32>
    %cst_287 = arith.constant 0.000000e+00 : f32
    %352 = vector.broadcast %cst_287 : f32 to vector<32x384xf32>
    %353 = arith.cmpf oge, %351, %352 : vector<32x384xf32>
    %354 = vector.extract_strided_slice %348 {offsets = [0, 1], sizes = [32, 1], strides = [1, 1]} : vector<32x2xf32> to vector<32x1xf32>
    %355 = vector.broadcast %354 : vector<32x1xf32> to vector<32x384xf32>
    %356 = arith.mulf %355, %351 : vector<32x384xf32>
    %357 = arith.select %353, %351, %356 : vector<32x384xi1>, vector<32x384xf32>
    %358 = vector.broadcast %0 : vector<1x384xf32> to vector<32x384xf32>
    %359 = arith.mulf %357, %358 : vector<32x384xf32>
    %c19_i32_288 = arith.constant 19 : i32
    %360 = tpu.dynamic_rotate %359 by %c19_i32_288 dim 1 : vector<32x384xf32>, i32 -> vector<32x384xf32>
    %361 = arith.truncf %360 : vector<32x384xf32> to vector<32x384xbf16>
    %c0_289 = arith.constant 0 : index
    %c0_290 = arith.constant 0 : index
    %362 = vector.load %arg6[%c0_289, %c0_290] : memref<288x384xbf16, #tpu.memory_space<vmem>>, vector<32x384xbf16>
    tpu.vector_store %arg6[%c0_289, %c0_290], %361 {strides = array<i32>} : memref<288x384xbf16, #tpu.memory_space<vmem>>, vector<32x384xbf16>,
    %c18_i32_291 = arith.constant 18 : i32
    %363 = tpu.dynamic_rotate %359 by %c18_i32_291 dim 1 : vector<32x384xf32>, i32 -> vector<32x384xf32>
    %364 = arith.truncf %363 : vector<32x384xf32> to vector<32x384xbf16>
    %c32_292 = arith.constant 32 : index
    %c0_293 = arith.constant 0 : index
    %365 = vector.load %arg6[%c32_292, %c0_293] : memref<288x384xbf16, #tpu.memory_space<vmem>>, vector<32x384xbf16>
    tpu.vector_store %arg6[%c32_292, %c0_293], %364 {strides = array<i32>} : memref<288x384xbf16, #tpu.memory_space<vmem>>, vector<32x384xbf16>,
    %c17_i32_294 = arith.constant 17 : i32
    %366 = tpu.dynamic_rotate %359 by %c17_i32_294 dim 1 : vector<32x384xf32>, i32 -> vector<32x384xf32>
    %367 = arith.truncf %366 : vector<32x384xf32> to vector<32x384xbf16>
    %c64_295 = arith.constant 64 : index
    %c0_296 = arith.constant 0 : index
    %368 = vector.load %arg6[%c64_295, %c0_296] : memref<288x384xbf16, #tpu.memory_space<vmem>>, vector<32x384xbf16>
    tpu.vector_store %arg6[%c64_295, %c0_296], %367 {strides = array<i32>} : memref<288x384xbf16, #tpu.memory_space<vmem>>, vector<32x384xbf16>,
    %c1_i32_297 = arith.constant 1 : i32
    %369 = tpu.dynamic_rotate %359 by %c1_i32_297 dim 1 : vector<32x384xf32>, i32 -> vector<32x384xf32>
    %370 = arith.truncf %369 : vector<32x384xf32> to vector<32x384xbf16>
    %c96_298 = arith.constant 96 : index
    %c0_299 = arith.constant 0 : index
    %371 = vector.load %arg6[%c96_298, %c0_299] : memref<288x384xbf16, #tpu.memory_space<vmem>>, vector<32x384xbf16>
    tpu.vector_store %arg6[%c96_298, %c0_299], %370 {strides = array<i32>} : memref<288x384xbf16, #tpu.memory_space<vmem>>, vector<32x384xbf16>,
    %372 = arith.truncf %359 : vector<32x384xf32> to vector<32x384xbf16>
    %c128_300 = arith.constant 128 : index
    %c0_301 = arith.constant 0 : index
    %373 = vector.load %arg6[%c128_300, %c0_301] : memref<288x384xbf16, #tpu.memory_space<vmem>>, vector<32x384xbf16>
    tpu.vector_store %arg6[%c128_300, %c0_301], %372 {strides = array<i32>} : memref<288x384xbf16, #tpu.memory_space<vmem>>, vector<32x384xbf16>,
    %c383_i32_302 = arith.constant 383 : i32
    %374 = tpu.dynamic_rotate %359 by %c383_i32_302 dim 1 : vector<32x384xf32>, i32 -> vector<32x384xf32>
    %375 = arith.truncf %374 : vector<32x384xf32> to vector<32x384xbf16>
    %c160_303 = arith.constant 160 : index
    %c0_304 = arith.constant 0 : index
    %376 = vector.load %arg6[%c160_303, %c0_304] : memref<288x384xbf16, #tpu.memory_space<vmem>>, vector<32x384xbf16>
    tpu.vector_store %arg6[%c160_303, %c0_304], %375 {strides = array<i32>} : memref<288x384xbf16, #tpu.memory_space<vmem>>, vector<32x384xbf16>,
    %c367_i32_305 = arith.constant 367 : i32
    %377 = tpu.dynamic_rotate %359 by %c367_i32_305 dim 1 : vector<32x384xf32>, i32 -> vector<32x384xf32>
    %378 = arith.truncf %377 : vector<32x384xf32> to vector<32x384xbf16>
    %c192_306 = arith.constant 192 : index
    %c0_307 = arith.constant 0 : index
    %379 = vector.load %arg6[%c192_306, %c0_307] : memref<288x384xbf16, #tpu.memory_space<vmem>>, vector<32x384xbf16>
    tpu.vector_store %arg6[%c192_306, %c0_307], %378 {strides = array<i32>} : memref<288x384xbf16, #tpu.memory_space<vmem>>, vector<32x384xbf16>,
    %c366_i32_308 = arith.constant 366 : i32
    %380 = tpu.dynamic_rotate %359 by %c366_i32_308 dim 1 : vector<32x384xf32>, i32 -> vector<32x384xf32>
    %381 = arith.truncf %380 : vector<32x384xf32> to vector<32x384xbf16>
    %c224_309 = arith.constant 224 : index
    %c0_310 = arith.constant 0 : index
    %382 = vector.load %arg6[%c224_309, %c0_310] : memref<288x384xbf16, #tpu.memory_space<vmem>>, vector<32x384xbf16>
    tpu.vector_store %arg6[%c224_309, %c0_310], %381 {strides = array<i32>} : memref<288x384xbf16, #tpu.memory_space<vmem>>, vector<32x384xbf16>,
    %c365_i32_311 = arith.constant 365 : i32
    %383 = tpu.dynamic_rotate %359 by %c365_i32_311 dim 1 : vector<32x384xf32>, i32 -> vector<32x384xf32>
    %384 = arith.truncf %383 : vector<32x384xf32> to vector<32x384xbf16>
    %c256_312 = arith.constant 256 : index
    %c0_313 = arith.constant 0 : index
    %385 = vector.load %arg6[%c256_312, %c0_313] : memref<288x384xbf16, #tpu.memory_space<vmem>>, vector<32x384xbf16>
    tpu.vector_store %arg6[%c256_312, %c0_313], %384 {strides = array<i32>} : memref<288x384xbf16, #tpu.memory_space<vmem>>, vector<32x384xbf16>,
    %c8 = arith.constant 8 : index
    %c0_314 = arith.constant 0 : index
    %c0_315 = arith.constant 0 : index
    %386 = vector.load %arg2[%c8, %c0_314, %c0_315] : memref<9x32x288xbf16, #tpu.memory_space<vmem>>, vector<1x32x288xbf16>
    %387 = vector.shape_cast %386 : vector<1x32x288xbf16> to vector<32x288xbf16>
    %c0_316 = arith.constant 0 : index
    %c0_317 = arith.constant 0 : index
    %388 = vector.load %arg6[%c0_316, %c0_317] : memref<288x384xbf16, #tpu.memory_space<vmem>>, vector<288x384xbf16>
    %cst_318 = arith.constant dense<0.000000e+00> : vector<32x384xf32>
    %389 = tpu.matmul %387, %388, %cst_318 {dimension_numbers = #tpu.dot_dimension_numbers<[1], [0], [0], [1], [0, 0, 1, 1], [], []>} : vector<32x288xbf16>, vector<288x384xbf16>, vector<32x384xf32> -> vector<32x384xf32>
    %c8_319 = arith.constant 8 : index
    %c0_320 = arith.constant 0 : index
    %c0_321 = arith.constant 0 : index
    %390 = vector.load %arg3[%c8_319, %c0_320, %c0_321] : memref<9x32x2xf32, #tpu.memory_space<vmem>>, vector<1x32x2xf32>
    %391 = vector.shape_cast %390 : vector<1x32x2xf32> to vector<32x2xf32>
    %392 = vector.extract_strided_slice %391 {offsets = [0, 0], sizes = [32, 1], strides = [1, 1]} : vector<32x2xf32> to vector<32x1xf32>
    %393 = vector.broadcast %392 : vector<32x1xf32> to vector<32x384xf32>
    %394 = arith.addf %389, %393 : vector<32x384xf32>
    %cst_322 = arith.constant 0.000000e+00 : f32
    %395 = vector.broadcast %cst_322 : f32 to vector<32x384xf32>
    %396 = arith.cmpf oge, %394, %395 : vector<32x384xf32>
    %397 = vector.extract_strided_slice %391 {offsets = [0, 1], sizes = [32, 1], strides = [1, 1]} : vector<32x2xf32> to vector<32x1xf32>
    %398 = vector.broadcast %397 : vector<32x1xf32> to vector<32x384xf32>
    %399 = arith.mulf %398, %394 : vector<32x384xf32>
    %400 = arith.select %396, %394, %399 : vector<32x384xi1>, vector<32x384xf32>
    %401 = vector.broadcast %0 : vector<1x384xf32> to vector<32x384xf32>
    %402 = arith.mulf %400, %401 : vector<32x384xf32>
    %c0_323 = arith.constant 0 : index
    %c0_324 = arith.constant 0 : index
    %c0_325 = arith.constant 0 : index
    %403 = vector.load %arg5[%c0_323, %c0_324, %c0_325] : memref<1x32x384xf32, #tpu.memory_space<vmem>>, vector<1x32x384xf32>
    %404 = vector.shape_cast %403 : vector<1x32x384xf32> to vector<32x384xf32>
    %405 = vector.shape_cast %402 : vector<32x384xf32> to vector<1x32x384xf32>
    tpu.vector_store %arg5[%c0_323, %c0_324, %c0_325], %405 {strides = array<i32>} : memref<1x32x384xf32, #tpu.memory_space<vmem>>, vector<1x32x384xf32>,
    return
  }
  func.func @transform_0(%arg0: i32) -> (i32, i32, i32) {
    %c0_i32 = arith.constant 0 : i32
    %c0_i32_0 = arith.constant 0 : i32
    %c0_i32_1 = arith.constant 0 : i32
    return %arg0, %c0_i32, %c0_i32_0 : i32, i32, i32
  }
  func.func @transform_1(%arg0: i32) -> (i32, i32, i32) {
    %c0_i32 = arith.constant 0 : i32
    %c0_i32_0 = arith.constant 0 : i32
    %c0_i32_1 = arith.constant 0 : i32
    %c0_i32_2 = arith.constant 0 : i32
    return %c0_i32, %c0_i32_0, %c0_i32_1 : i32, i32, i32
  }
  func.func @transform_2(%arg0: i32) -> (i32, i32, i32) {
    %c0_i32 = arith.constant 0 : i32
    %c0_i32_0 = arith.constant 0 : i32
    %c0_i32_1 = arith.constant 0 : i32
    %c0_i32_2 = arith.constant 0 : i32
    return %c0_i32, %c0_i32_0, %c0_i32_1 : i32, i32, i32
  }
  func.func @transform_3(%arg0: i32) -> (i32, i32) {
    %c0_i32 = arith.constant 0 : i32
    %c0_i32_0 = arith.constant 0 : i32
    %c0_i32_1 = arith.constant 0 : i32
    return %c0_i32, %c0_i32_0 : i32, i32
  }
  func.func @transform_4(%arg0: i32) -> (i32, i32, i32) {
    %c0_i32 = arith.constant 0 : i32
    %c0_i32_0 = arith.constant 0 : i32
    %c0_i32_1 = arith.constant 0 : i32
    return %arg0, %c0_i32, %c0_i32_0 : i32, i32, i32
  }
}

</mosaic_0001>

<llo_original>
// kernel: tpu_custom_call.1
$region0: #{tpu_custom_call.1}
  #allocation0 [shape = 'u32[]', space=smem, size = 0x4, offset = 0x4, fixed_abs, tag = 'smem constant byte address 0x4 - core index']
  #allocation1 [shape = 'u32[144,128]{1,0:T(1,128)}', space=vmem, size = 0x12000, scoped, tag = 'internal scratch']
  #allocation2 [shape = 'bf16[288,384]{1,0:T(16,128)(2,1)}', space=vmem, size = 0x36000, scoped, tag = 'scratch operand']
  #allocation3 [shape = 'f32[32,384]{1,0:T(8,128)}', space=vmem, size = 0xc000, scoped, tag = 'scratch operand']
  #allocation4 [shape = 'f32[32,384]{1,0:T(8,128)}', space=vmem, size = 0xc000, scoped, tag = 'scratch operand']
  %s0 = inlined_call_operand.vmem [shape: f32[2,32,384], index: 0, kind: input, shape index: {}]
  %s1 = inlined_call_operand.hbm [shape: bf16[9,32,288], index: 1, kind: input, shape index: {}]
  %s2 = inlined_call_operand.vmem [shape: f32[9,32,2], index: 2, kind: input, shape index: {}]
  %s3 = inlined_call_operand.vmem [shape: f32[1,384], index: 3, kind: input, shape index: {}]
  %s4 = inlined_call_operand.hbm [shape: f32[2,32,384], index: 4, kind: output, shape index: {}]
  %s5 = sld [smem:[#allocation0]]
  $region53: #{tpu_custom_call.1} parent=0
    _
  %s7 = ssub.s32 1, %s5
  %s8 = scalar_select 0, %s7, %s5
  $region1: #{tpu_custom_call.1} parent=0
    #allocation5 [shape = 'u8[221184]{0}', space=vmem, size = 0x36000, scoped, tag = 'input window, operand 1, single buffered']
    #allocation6 [shape = 's32[2]{0}', space=sflag, size = 0x8, scoped, tag = 'scoped memory for tpu_custom_call.1']
    #allocation7 [shape = 's32[2]{0}', space=sflag, size = 0x8, scoped, tag = 'scoped memory for tpu_custom_call.1']
    #allocation8 [shape = 'u8[98304]{0}', space=vmem, size = 0x18000, scoped, tag = 'output window, operand 0']
    %9 = vsyncpa [#allocation6], 0
    %10 = vsyncpa [#allocation7], 0
    %s11 = scalar_lea.sflag [#allocation7], 1
    %12 = vsyncpa %s11, 0
    loop: start=0, step=1, limit=4
    $region2: #{tpu_custom_call.1} parent=1 // loop_pre_header
      _
    $region3: #{tpu_custom_call.1} parent=1 // loop_header
      %s14 = sphi 0, %s18
      %p15 = scmp.ge.s32.totalorder %s14, 4
      %s24 = sphi 0, %s26
      %s27 = sphi 0, %s24
      %s28 = sphi 0, %s27
      %s44 = sphi 0, %s28
      %s48 = sphi 0, %s48
      %s50 = sphi 0, %s48
      %s51 = sphi 0, %s50
      %s65 = sphi 0, %s51
      %s69 = sphi 0, %s69
      %s71 = sphi 0, %s69
      %s72 = sphi 0, %s71
      %s86 = sphi 0, %s72
      %s90 = sphi 0, %s90
      %s92 = sphi 0, %s90
      %s93 = sphi 0, %s92
      %s107 = sphi 0, %s93
      %s113 = sphi 0, %s115
      %s116 = sphi 0, %s113
      %s117 = sphi 0, %s116
      %s133 = sphi 0, %s117
    $region4: #{tpu_custom_call.1} parent=1 // loop_header_branch
      %17 = sbr.rel (%p15) target = $region8
    $region5: #{tpu_custom_call.1} parent=1 // loop_body
      %s19 = ssub.s32 %s14, 1
      %s20 = ssub.s32 %s14, 2
      %s21 = sadd.s32 %s14, 1
      %s22 = ssub.s32 %s14, %s21
      %p23 = scmp.eq.s32.totalorder %s22, 0
      %s25 = sadd.s32 %s24, 1
      %s26 = scalar_select %p23, %s24, %s25
      %p29 = pneg %p23
      %p30 = scmp.eq.s32.totalorder %s14, 1
      %p31 = por %p29, %p30
      %p32 = scmp.ne.s32.totalorder %s24, %s27
      %p33 = scmp.eq.s32.totalorder %s14, 0
      %p34 = por %p32, %p33
      %p35 = scmp.ne.s32.totalorder %s24, %s27
      %p36 = scmp.eq.s32.totalorder %s19, 1
      %p37 = por %p35, %p36
      %p38 = scmp.ne.s32.totalorder %s27, %s28
      %p39 = scmp.eq.s32.totalorder %s19, 0
      %p40 = por %p38, %p39
      %p41 = scmp.ne.s32.totalorder %s27, %s28
      %p42 = scmp.eq.s32.totalorder %s20, 1
      %p43 = por %p41, %p42
      %p45 = scmp.ne.s32.totalorder %s28, %s44
      %p46 = scmp.eq.s32.totalorder %s20, 0
      %p47 = por %p45, %p46
      %s49 = sadd.s32 %s48, 1
      %p52 = scmp.eq.s32.totalorder %s14, 1
      %p53 = scmp.ne.s32.totalorder %s48, %s50
      %p54 = scmp.eq.s32.totalorder %s14, 0
      %p55 = por %p53, %p54
      %p56 = scmp.ne.s32.totalorder %s48, %s50
      %p57 = scmp.eq.s32.totalorder %s19, 1
      %p58 = por %p56, %p57
      %p59 = scmp.ne.s32.totalorder %s50, %s51
      %p60 = scmp.eq.s32.totalorder %s19, 0
      %p61 = por %p59, %p60
      %p62 = scmp.ne.s32.totalorder %s50, %s51
      %p63 = scmp.eq.s32.totalorder %s20, 1
      %p64 = por %p62, %p63
      %p66 = scmp.ne.s32.totalorder %s51, %s65
      %p67 = scmp.eq.s32.totalorder %s20, 0
      %p68 = por %p66, %p67
      %s70 = sadd.s32 %s69, 1
      %p73 = scmp.eq.s32.totalorder %s14, 1
      %p74 = scmp.ne.s32.totalorder %s69, %s71
      %p75 = scmp.eq.s32.totalorder %s14, 0
      %p76 = por %p74, %p75
      %p77 = scmp.ne.s32.totalorder %s69, %s71
      %p78 = scmp.eq.s32.totalorder %s19, 1
      %p79 = por %p77, %p78
      %p80 = scmp.ne.s32.totalorder %s71, %s72
      %p81 = scmp.eq.s32.totalorder %s19, 0
      %p82 = por %p80, %p81
      %p83 = scmp.ne.s32.totalorder %s71, %s72
      %p84 = scmp.eq.s32.totalorder %s20, 1
      %p85 = por %p83, %p84
      %p87 = scmp.ne.s32.totalorder %s72, %s86
      %p88 = scmp.eq.s32.totalorder %s20, 0
      %p89 = por %p87, %p88
      %s91 = sadd.s32 %s90, 1
      %p94 = scmp.eq.s32.totalorder %s14, 1
      %p95 = scmp.ne.s32.totalorder %s90, %s92
      %p96 = scmp.eq.s32.totalorder %s14, 0
      %p97 = por %p95, %p96
      %p98 = scmp.ne.s32.totalorder %s90, %s92
      %p99 = scmp.eq.s32.totalorder %s19, 1
      %p100 = por %p98, %p99
      %p101 = scmp.ne.s32.totalorder %s92, %s93
      %p102 = scmp.eq.s32.totalorder %s19, 0
      %p103 = por %p101, %p102
      %p104 = scmp.ne.s32.totalorder %s92, %s93
      %p105 = scmp.eq.s32.totalorder %s20, 1
      %p106 = por %p104, %p105
      %p108 = scmp.ne.s32.totalorder %s93, %s107
      %p109 = scmp.eq.s32.totalorder %s20, 0
      %p110 = por %p108, %p109
      %s111 = ssub.s32 %s14, %s21
      %p112 = scmp.eq.s32.totalorder %s111, 0
      %s114 = sadd.s32 %s113, 1
      %s115 = scalar_select %p112, %s113, %s114
      %p118 = pneg %p112
      %p119 = scmp.eq.s32.totalorder %s14, 1
      %p120 = por %p118, %p119
      %p121 = scmp.ne.s32.totalorder %s113, %s116
      %p122 = scmp.eq.s32.totalorder %s14, 0
      %p123 = por %p121, %p122
      %p124 = scmp.ne.s32.totalorder %s113, %s116
      %p125 = scmp.eq.s32.totalorder %s19, 1
      %p126 = por %p124, %p125
      %p127 = scmp.ne.s32.totalorder %s116, %s117
      %p128 = scmp.eq.s32.totalorder %s19, 0
      %p129 = por %p127, %p128
      %p130 = scmp.ne.s32.totalorder %s116, %s117
      %p131 = scmp.eq.s32.totalorder %s20, 1
      %p132 = por %p130, %p131
      %p134 = scmp.ne.s32.totalorder %s117, %s133
      %p135 = scmp.eq.s32.totalorder %s20, 0
      %p136 = por %p134, %p135
      %p137 = scmp.le.s32.totalorder 1, %s14
      %p138 = scmp.lt.s32.totalorder %s14, 3
      %p139 = pnand %p137, %p138
      %p140 = pneg %p139
      // Predicated region
      $region9: #{tpu_custom_call.1} parent=5 // pred_check
        _
      $region10: #{tpu_custom_call.1} parent=5 // pred_check_branch
        %142 = sbr.rel (%p139) target = $region12
      $region11: #{tpu_custom_call.1} parent=5 // pred_region
        %s143 = ssub.s32 %s14, 1
        // Predicated region
        $region13: #{tpu_custom_call.1} parent=11 // pred_check
          %p144 = pneg %p61
        $region14: #{tpu_custom_call.1} parent=11 // pred_check_branch
          %146 = sbr.rel (%p144) target = $region16
        $region15: #{tpu_custom_call.1} parent=11 // pred_region
          %s148 = ssub.s32 6912, 6912
          %149 = vsyncadd [#allocation6], %s148
          %s150 = sshll.u32 [#allocation5], 4
          %s151 = int_to_ptr.vmem [resolvable:$true] %s150
          %156 = dma.hbm_to_vmem [thread:$0]  %s1, 6912, %s151, [#allocation6], 192, 192, 12
        $region16: #{tpu_custom_call.1} parent=11 // pred_fallthru
          _
        // Predicated region
        $region17: #{tpu_custom_call.1} parent=11 // pred_check
          %p157 = pneg %p82
        $region18: #{tpu_custom_call.1} parent=11 // pred_check_branch
          %159 = sbr.rel (%p157) target = $region20
        $region19: #{tpu_custom_call.1} parent=11 // pred_region
          _
        $region20: #{tpu_custom_call.1} parent=11 // pred_fallthru
          _
        // Predicated region
        $region21: #{tpu_custom_call.1} parent=11 // pred_check
          %p160 = pneg %p103
        $region22: #{tpu_custom_call.1} parent=11 // pred_check_branch
          %162 = sbr.rel (%p160) target = $region24
        $region23: #{tpu_custom_call.1} parent=11 // pred_region
          _
        $region24: #{tpu_custom_call.1} parent=11 // pred_fallthru
          _
      $region12: #{tpu_custom_call.1} parent=5 // pred_fallthru
        _
      %p163 = scmp.lt.s32.totalorder %s14, 2
      // Predicated region
      $region25: #{tpu_custom_call.1} parent=5 // pred_check
        %p164 = pneg %p163
      $region26: #{tpu_custom_call.1} parent=5 // pred_check_branch
        %166 = sbr.rel (%p164) target = $region28
      $region27: #{tpu_custom_call.1} parent=5 // pred_region
        // Predicated region
        $region29: #{tpu_custom_call.1} parent=27 // pred_check
          %p167 = pneg %p34
        $region30: #{tpu_custom_call.1} parent=27 // pred_check_branch
          %169 = sbr.rel (%p167) target = $region32
        $region31: #{tpu_custom_call.1} parent=27 // pred_region
          %p170 = scmp.lt.s32.totalorder %s14, 1
          %s171 = scalar_select %p170, %s14, 1
          %s172 = smul.addr %s171, 12
          %s173 = smul.addr %s172, 8
          %s174 = scalar_lea.vmem %s0, %s173
        $region32: #{tpu_custom_call.1} parent=27 // pred_fallthru
          _
      $region28: #{tpu_custom_call.1} parent=5 // pred_fallthru
        _
      %p175 = scmp.le.s32.totalorder 1, %s14
      %p176 = scmp.lt.s32.totalorder %s14, 3
      %p177 = pnand %p175, %p176
      %p178 = pneg %p177
      // Predicated region
      $region33: #{tpu_custom_call.1} parent=5 // pred_check
        _
      $region34: #{tpu_custom_call.1} parent=5 // pred_check_branch
        %180 = sbr.rel (%p177) target = $region36
      $region35: #{tpu_custom_call.1} parent=5 // pred_region
        %s181 = ssub.s32 %s14, 1
        // Predicated region
        $region37: #{tpu_custom_call.1} parent=35 // pred_check
          %p182 = pneg %p61
        $region38: #{tpu_custom_call.1} parent=35 // pred_check_branch
          %184 = sbr.rel (%p182) target = $region40
        $region39: #{tpu_custom_call.1} parent=35 // pred_region
          %185 = dma.done [#allocation6], 6912
        $region40: #{tpu_custom_call.1} parent=35 // pred_fallthru
          _
        %p186 = scmp.lt.s32.totalorder %s19, 1
        %s187 = scalar_select %p186, %s19, 1
        %s188 = smul.addr %s187, 12
        %s189 = smul.addr %s188, 8
        %s190 = scalar_lea.vmem %s0, %s189
        %p191 = pneg %p40
        %p192 = pneg %p37
        %p193 = pneg %p61
        %p194 = pneg %p58
        %p195 = pneg %p82
        %p196 = pneg %p79
        %p197 = pneg %p103
        %p198 = pneg %p100
        %p199 = pneg %p129
        %p200 = pneg %p126
        %s201 = sand.u32 %s116, 1
        %s202 = scalar_lea.sflag [#allocation7], %s201
        %s203 = sand.u32 %s116, 1
        %s204 = smul.addr %s203, 96
        %s205 = scalar_lea.vmem [#allocation8], %s204
        %p206 = scmp.lt.s32.totalorder %s19, 1
        %s207 = scalar_select %p206, %s19, 1
        %s208 = smul.addr %s207, 12
        %s209 = smul.addr %s208, 8
        %s210 = scalar_lea.vmem %s0, %s209
        %v212 = vld [vmem:[%s3] sm:$0x7]
        %v213 = vld [vmem:[%s210] sm:$0xff]
        %v214 = vld [vmem:[%s210 + $0x8] sm:$0xff]
        %v215 = vld [vmem:[%s210 + $0x10] sm:$0xff]
        %v216 = vld [vmem:[%s210 + $0x18] sm:$0xff]
        %v217 = vld [vmem:[%s210 + $0x20] sm:$0xff]
        %v218 = vld [vmem:[%s210 + $0x28] sm:$0xff]
        %v219 = vld [vmem:[%s210 + $0x30] sm:$0xff]
        %v220 = vld [vmem:[%s210 + $0x38] sm:$0xff]
        %v221 = vld [vmem:[%s210 + $0x40] sm:$0xff]
        %v222 = vld [vmem:[%s210 + $0x48] sm:$0xff]
        %v223 = vld [vmem:[%s210 + $0x50] sm:$0xff]
        %v224 = vld [vmem:[%s210 + $0x58] sm:$0xff]
        %225 = vrot.lane.b32.xlu0 %v213, 19
        %v226 = vpop.permute.xlu0 %225
        %227 = vrot.lane.b32.xlu0 %v216, 19
        %v228 = vpop.permute.xlu0 %227
        %229 = vrot.lane.b32.xlu0 %v219, 19
        %v230 = vpop.permute.xlu0 %229
        %231 = vrot.lane.b32.xlu0 %v222, 19
        %v232 = vpop.permute.xlu0 %231
        %233 = vrot.lane.b32.xlu0 %v214, 19
        %v234 = vpop.permute.xlu0 %233
        %235 = vrot.lane.b32.xlu0 %v217, 19
        %v236 = vpop.permute.xlu0 %235
        %237 = vrot.lane.b32.xlu0 %v220, 19
        %v238 = vpop.permute.xlu0 %237
        %239 = vrot.lane.b32.xlu0 %v223, 19
        %v240 = vpop.permute.xlu0 %239
        %241 = vrot.lane.b32.xlu0 %v215, 19
        %v242 = vpop.permute.xlu0 %241
        %243 = vrot.lane.b32.xlu0 %v218, 19
        %v244 = vpop.permute.xlu0 %243
        %245 = vrot.lane.b32.xlu0 %v221, 19
        %v246 = vpop.permute.xlu0 %245
        %247 = vrot.lane.b32.xlu0 %v224, 19
        %v248 = vpop.permute.xlu0 %247
        %v249 = vlaneseq
        %v250 = vand.u32 %v249, 127
        %vm251 = vcmp.lt.s32.totalorder %v250, 19
        %v252 = vsel %vm251, %v234, %v242
        %v253 = vsel %vm251, %v236, %v244
        %v254 = vsel %vm251, %v238, %v246
        %v255 = vsel %vm251, %v240, %v248
        %v256 = vsel %vm251, %v226, %v234
        %v257 = vsel %vm251, %v228, %v236
        %v258 = vsel %vm251, %v230, %v238
        %v259 = vsel %vm251, %v232, %v240
        %v260 = vsel %vm251, %v242, %v226
        %v261 = vsel %vm251, %v244, %v228
        %v262 = vsel %vm251, %v246, %v230
        %v263 = vsel %vm251, %v248, %v232
        %v264 = vpack.c.bf16 %v261, %v260
        %v265 = vpack.c.bf16 %v257, %v256
        %v266 = vpack.c.bf16 %v253, %v252
        %v267 = vpack.c.bf16 %v263, %v262
        %v268 = vpack.c.bf16 %v259, %v258
        %v269 = vpack.c.bf16 %v255, %v254
        %270 = vst [vmem:[#allocation2] sm:$0xff] %v264
        %271 = vst [vmem:[#allocation2 + $0x8] sm:$0xff] %v265
        %272 = vst [vmem:[#allocation2 + $0x10] sm:$0xff] %v266
        %273 = vst [vmem:[#allocation2 + $0x18] sm:$0xff] %v267
        %274 = vst [vmem:[#allocation2 + $0x20] sm:$0xff] %v268
        %275 = vst [vmem:[#allocation2 + $0x28] sm:$0xff] %v269
        %276 = vrot.lane.b32.xlu0 %v213, 18
        %v277 = vpop.permute.xlu0 %276
        %278 = vrot.lane.b32.xlu0 %v216, 18
        %v279 = vpop.permute.xlu0 %278
        %280 = vrot.lane.b32.xlu0 %v219, 18
        %v281 = vpop.permute.xlu0 %280
        %282 = vrot.lane.b32.xlu0 %v222, 18
        %v283 = vpop.permute.xlu0 %282
        %284 = vrot.lane.b32.xlu0 %v214, 18
        %v285 = vpop.permute.xlu0 %284
        %286 = vrot.lane.b32.xlu0 %v217, 18
        %v287 = vpop.permute.xlu0 %286
        %288 = vrot.lane.b32.xlu0 %v220, 18
        %v289 = vpop.permute.xlu0 %288
        %290 = vrot.lane.b32.xlu0 %v223, 18
        %v291 = vpop.permute.xlu0 %290
        %292 = vrot.lane.b32.xlu0 %v215, 18
        %v293 = vpop.permute.xlu0 %292
        %294 = vrot.lane.b32.xlu0 %v218, 18
        %v295 = vpop.permute.xlu0 %294
        %296 = vrot.lane.b32.xlu0 %v221, 18
        %v297 = vpop.permute.xlu0 %296
        %298 = vrot.lane.b32.xlu0 %v224, 18
        %v299 = vpop.permute.xlu0 %298
        %vm300 = vcmp.lt.s32.totalorder %v250, 18
        %v301 = vsel %vm300, %v285, %v293
        %v302 = vsel %vm300, %v287, %v295
        %v303 = vsel %vm300, %v289, %v297
        %v304 = vsel %vm300, %v291, %v299
        %v305 = vsel %vm300, %v277, %v285
        %v306 = vsel %vm300, %v279, %v287
        %v307 = vsel %vm300, %v281, %v289
        %v308 = vsel %vm300, %v283, %v291
        %v309 = vsel %vm300, %v293, %v277
        %v310 = vsel %vm300, %v295, %v279
        %v311 = vsel %vm300, %v297, %v281
        %v312 = vsel %vm300, %v299, %v283
        %v313 = vpack.c.bf16 %v310, %v309
        %v314 = vpack.c.bf16 %v306, %v305
        %v315 = vpack.c.bf16 %v302, %v301
        %v316 = vpack.c.bf16 %v312, %v311
        %v317 = vpack.c.bf16 %v308, %v307
        %v318 = vpack.c.bf16 %v304, %v303
        %319 = vst [vmem:[#allocation2 + $0x30] sm:$0xff] %v313
        %320 = vst [vmem:[#allocation2 + $0x38] sm:$0xff] %v314
        %321 = vst [vmem:[#allocation2 + $0x40] sm:$0xff] %v315
        %322 = vst [vmem:[#allocation2 + $0x48] sm:$0xff] %v316
        %323 = vst [vmem:[#allocation2 + $0x50] sm:$0xff] %v317
        %324 = vst [vmem:[#allocation2 + $0x58] sm:$0xff] %v318
        %325 = vrot.lane.b32.xlu0 %v213, 17
        %v326 = vpop.permute.xlu0 %325
        %327 = vrot.lane.b32.xlu0 %v216, 17
        %v328 = vpop.permute.xlu0 %327
        %329 = vrot.lane.b32.xlu0 %v219, 17
        %v330 = vpop.permute.xlu0 %329
        %331 = vrot.lane.b32.xlu0 %v222, 17
        %v332 = vpop.permute.xlu0 %331
        %333 = vrot.lane.b32.xlu0 %v214, 17
        %v334 = vpop.permute.xlu0 %333
        %335 = vrot.lane.b32.xlu0 %v217, 17
        %v336 = vpop.permute.xlu0 %335
        %337 = vrot.lane.b32.xlu0 %v220, 17
        %v338 = vpop.permute.xlu0 %337
        %339 = vrot.lane.b32.xlu0 %v223, 17
        %v340 = vpop.permute.xlu0 %339
        %341 = vrot.lane.b32.xlu0 %v215, 17
        %v342 = vpop.permute.xlu0 %341
        %343 = vrot.lane.b32.xlu0 %v218, 17
        %v344 = vpop.permute.xlu0 %343
        %345 = vrot.lane.b32.xlu0 %v221, 17
        %v346 = vpop.permute.xlu0 %345
        %347 = vrot.lane.b32.xlu0 %v224, 17
        %v348 = vpop.permute.xlu0 %347
        %vm349 = vcmp.lt.s32.totalorder %v250, 17
        %v350 = vsel %vm349, %v334, %v342
        %v351 = vsel %vm349, %v336, %v344
        %v352 = vsel %vm349, %v338, %v346
        %v353 = vsel %vm349, %v340, %v348
        %v354 = vsel %vm349, %v326, %v334
        %v355 = vsel %vm349, %v328, %v336
        %v356 = vsel %vm349, %v330, %v338
        %v357 = vsel %vm349, %v332, %v340
        %v358 = vsel %vm349, %v342, %v326
        %v359 = vsel %vm349, %v344, %v328
        %v360 = vsel %vm349, %v346, %v330
        %v361 = vsel %vm349, %v348, %v332
        %v362 = vpack.c.bf16 %v359, %v358
        %v363 = vpack.c.bf16 %v355, %v354
        %v364 = vpack.c.bf16 %v351, %v350
        %v365 = vpack.c.bf16 %v361, %v360
        %v366 = vpack.c.bf16 %v357, %v356
        %v367 = vpack.c.bf16 %v353, %v352
        %368 = vst [vmem:[#allocation2 + $0x60] sm:$0xff] %v362
        %369 = vst [vmem:[#allocation2 + $0x68] sm:$0xff] %v363
        %370 = vst [vmem:[#allocation2 + $0x70] sm:$0xff] %v364
        %371 = vst [vmem:[#allocation2 + $0x78] sm:$0xff] %v365
        %372 = vst [vmem:[#allocation2 + $0x80] sm:$0xff] %v366
        %373 = vst [vmem:[#allocation2 + $0x88] sm:$0xff] %v367
        %374 = vrot.lane.b32.xlu0 %v213, 1
        %v375 = vpop.permute.xlu0 %374
        %376 = vrot.lane.b32.xlu0 %v216, 1
        %v377 = vpop.permute.xlu0 %376
        %378 = vrot.lane.b32.xlu0 %v219, 1
        %v379 = vpop.permute.xlu0 %378
        %380 = vrot.lane.b32.xlu0 %v222, 1
        %v381 = vpop.permute.xlu0 %380
        %382 = vrot.lane.b32.xlu0 %v214, 1
        %v383 = vpop.permute.xlu0 %382
        %384 = vrot.lane.b32.xlu0 %v217, 1
        %v385 = vpop.permute.xlu0 %384
        %386 = vrot.lane.b32.xlu0 %v220, 1
        %v387 = vpop.permute.xlu0 %386
        %388 = vrot.lane.b32.xlu0 %v223, 1
        %v389 = vpop.permute.xlu0 %388
        %390 = vrot.lane.b32.xlu0 %v215, 1
        %v391 = vpop.permute.xlu0 %390
        %392 = vrot.lane.b32.xlu0 %v218, 1
        %v393 = vpop.permute.xlu0 %392
        %394 = vrot.lane.b32.xlu0 %v221, 1
        %v395 = vpop.permute.xlu0 %394
        %396 = vrot.lane.b32.xlu0 %v224, 1
        %v397 = vpop.permute.xlu0 %396
        %vm398 = vcmp.lt.s32.totalorder %v250, 1
        %v399 = vsel %vm398, %v383, %v391
        %v400 = vsel %vm398, %v385, %v393
        %v401 = vsel %vm398, %v387, %v395
        %v402 = vsel %vm398, %v389, %v397
        %v403 = vsel %vm398, %v375, %v383
        %v404 = vsel %vm398, %v377, %v385
        %v405 = vsel %vm398, %v379, %v387
        %v406 = vsel %vm398, %v381, %v389
        %v407 = vsel %vm398, %v391, %v375
        %v408 = vsel %vm398, %v393, %v377
        %v409 = vsel %vm398, %v395, %v379
        %v410 = vsel %vm398, %v397, %v381
        %v411 = vpack.c.bf16 %v408, %v407
        %v412 = vpack.c.bf16 %v404, %v403
        %v413 = vpack.c.bf16 %v400, %v399
        %v414 = vpack.c.bf16 %v410, %v409
        %v415 = vpack.c.bf16 %v406, %v405
        %v416 = vpack.c.bf16 %v402, %v401
        %417 = vst [vmem:[#allocation2 + $0x90] sm:$0xff] %v411
        %418 = vst [vmem:[#allocation2 + $0x98] sm:$0xff] %v412
        %419 = vst [vmem:[#allocation2 + $0xa0] sm:$0xff] %v413
        %420 = vst [vmem:[#allocation2 + $0xa8] sm:$0xff] %v414
        %421 = vst [vmem:[#allocation2 + $0xb0] sm:$0xff] %v415
        %422 = vst [vmem:[#allocation2 + $0xb8] sm:$0xff] %v416
        %v423 = vpack.c.bf16 %v216, %v213
        %v424 = vpack.c.bf16 %v217, %v214
        %v425 = vpack.c.bf16 %v218, %v215
        %v426 = vpack.c.bf16 %v222, %v219
        %v427 = vpack.c.bf16 %v223, %v220
        %v428 = vpack.c.bf16 %v224, %v221
        %429 = vst [vmem:[#allocation2 + $0xc0] sm:$0xff] %v423
        %430 = vst [vmem:[#allocation2 + $0xc8] sm:$0xff] %v424
        %431 = vst [vmem:[#allocation2 + $0xd0] sm:$0xff] %v425
        %432 = vst [vmem:[#allocation2 + $0xd8] sm:$0xff] %v426
        %433 = vst [vmem:[#allocation2 + $0xe0] sm:$0xff] %v427
        %434 = vst [vmem:[#allocation2 + $0xe8] sm:$0xff] %v428
        %435 = vrot.lane.b32.xlu0 %v213, 127
        %v436 = vpop.permute.xlu0 %435
        %437 = vrot.lane.b32.xlu0 %v216, 127
        %v438 = vpop.permute.xlu0 %437
        %439 = vrot.lane.b32.xlu0 %v219, 127
        %v440 = vpop.permute.xlu0 %439
        %441 = vrot.lane.b32.xlu0 %v222, 127
        %v442 = vpop.permute.xlu0 %441
        %443 = vrot.lane.b32.xlu0 %v214, 127
        %v444 = vpop.permute.xlu0 %443
        %445 = vrot.lane.b32.xlu0 %v217, 127
        %v446 = vpop.permute.xlu0 %445
        %447 = vrot.lane.b32.xlu0 %v220, 127
        %v448 = vpop.permute.xlu0 %447
        %449 = vrot.lane.b32.xlu0 %v223, 127
        %v450 = vpop.permute.xlu0 %449
        %451 = vrot.lane.b32.xlu0 %v215, 127
        %v452 = vpop.permute.xlu0 %451
        %453 = vrot.lane.b32.xlu0 %v218, 127
        %v454 = vpop.permute.xlu0 %453
        %455 = vrot.lane.b32.xlu0 %v221, 127
        %v456 = vpop.permute.xlu0 %455
        %457 = vrot.lane.b32.xlu0 %v224, 127
        %v458 = vpop.permute.xlu0 %457
        %vm459 = vcmp.lt.s32.totalorder %v250, 127
        %v460 = vsel %vm459, %v444, %v452
        %v461 = vsel %vm459, %v446, %v454
        %v462 = vsel %vm459, %v448, %v456
        %v463 = vsel %vm459, %v450, %v458
        %v464 = vsel %vm459, %v436, %v444
        %v465 = vsel %vm459, %v438, %v446
        %v466 = vsel %vm459, %v440, %v448
        %v467 = vsel %vm459, %v442, %v450
        %v468 = vsel %vm459, %v452, %v436
        %v469 = vsel %vm459, %v454, %v438
        %v470 = vsel %vm459, %v456, %v440
        %v471 = vsel %vm459, %v458, %v442
        %v472 = vpack.c.bf16 %v465, %v464
        %v473 = vpack.c.bf16 %v461, %v460
        %v474 = vpack.c.bf16 %v469, %v468
        %v475 = vpack.c.bf16 %v467, %v466
        %v476 = vpack.c.bf16 %v463, %v462
        %v477 = vpack.c.bf16 %v471, %v470
        %478 = vst [vmem:[#allocation2 + $0xf0] sm:$0xff] %v472
        %479 = vst [vmem:[#allocation2 + $0xf8] sm:$0xff] %v473
        %480 = vst [vmem:[#allocation2 + $0x100] sm:$0xff] %v474
        %481 = vst [vmem:[#allocation2 + $0x108] sm:$0xff] %v475
        %482 = vst [vmem:[#allocation2 + $0x110] sm:$0xff] %v476
        %483 = vst [vmem:[#allocation2 + $0x118] sm:$0xff] %v477
        %484 = vrot.lane.b32.xlu0 %v213, 111
        %v485 = vpop.permute.xlu0 %484
        %486 = vrot.lane.b32.xlu0 %v216, 111
        %v487 = vpop.permute.xlu0 %486
        %488 = vrot.lane.b32.xlu0 %v219, 111
        %v489 = vpop.permute.xlu0 %488
        %490 = vrot.lane.b32.xlu0 %v222, 111
        %v491 = vpop.permute.xlu0 %490
        %492 = vrot.lane.b32.xlu0 %v214, 111
        %v493 = vpop.permute.xlu0 %492
        %494 = vrot.lane.b32.xlu0 %v217, 111
        %v495 = vpop.permute.xlu0 %494
        %496 = vrot.lane.b32.xlu0 %v220, 111
        %v497 = vpop.permute.xlu0 %496
        %498 = vrot.lane.b32.xlu0 %v223, 111
        %v499 = vpop.permute.xlu0 %498
        %500 = vrot.lane.b32.xlu0 %v215, 111
        %v501 = vpop.permute.xlu0 %500
        %502 = vrot.lane.b32.xlu0 %v218, 111
        %v503 = vpop.permute.xlu0 %502
        %504 = vrot.lane.b32.xlu0 %v221, 111
        %v505 = vpop.permute.xlu0 %504
        %506 = vrot.lane.b32.xlu0 %v224, 111
        %v507 = vpop.permute.xlu0 %506
        %vm508 = vcmp.lt.s32.totalorder %v250, 111
        %v509 = vsel %vm508, %v493, %v501
        %v510 = vsel %vm508, %v495, %v503
        %v511 = vsel %vm508, %v497, %v505
        %v512 = vsel %vm508, %v499, %v507
        %v513 = vsel %vm508, %v485, %v493
        %v514 = vsel %vm508, %v487, %v495
        %v515 = vsel %vm508, %v489, %v497
        %v516 = vsel %vm508, %v491, %v499
        %v517 = vsel %vm508, %v501, %v485
        %v518 = vsel %vm508, %v503, %v487
        %v519 = vsel %vm508, %v505, %v489
        %v520 = vsel %vm508, %v507, %v491
        %v521 = vpack.c.bf16 %v514, %v513
        %v522 = vpack.c.bf16 %v510, %v509
        %v523 = vpack.c.bf16 %v518, %v517
        %v524 = vpack.c.bf16 %v516, %v515
        %v525 = vpack.c.bf16 %v512, %v511
        %v526 = vpack.c.bf16 %v520, %v519
        %527 = vst [vmem:[#allocation2 + $0x120] sm:$0xff] %v521
        %528 = vst [vmem:[#allocation2 + $0x128] sm:$0xff] %v522
        %529 = vst [vmem:[#allocation2 + $0x130] sm:$0xff] %v523
        %530 = vst [vmem:[#allocation2 + $0x138] sm:$0xff] %v524
        %531 = vst [vmem:[#allocation2 + $0x140] sm:$0xff] %v525
        %532 = vst [vmem:[#allocation2 + $0x148] sm:$0xff] %v526
        %533 = vrot.lane.b32.xlu0 %v213, 110
        %v534 = vpop.permute.xlu0 %533
        %535 = vrot.lane.b32.xlu0 %v216, 110
        %v536 = vpop.permute.xlu0 %535
        %537 = vrot.lane.b32.xlu0 %v219, 110
        %v538 = vpop.permute.xlu0 %537
        %539 = vrot.lane.b32.xlu0 %v222, 110
        %v540 = vpop.permute.xlu0 %539
        %541 = vrot.lane.b32.xlu0 %v214, 110
        %v542 = vpop.permute.xlu0 %541
        %543 = vrot.lane.b32.xlu0 %v217, 110
        %v544 = vpop.permute.xlu0 %543
        %545 = vrot.lane.b32.xlu0 %v220, 110
        %v546 = vpop.permute.xlu0 %545
        %547 = vrot.lane.b32.xlu0 %v223, 110
        %v548 = vpop.permute.xlu0 %547
        %549 = vrot.lane.b32.xlu0 %v215, 110
        %v550 = vpop.permute.xlu0 %549
        %551 = vrot.lane.b32.xlu0 %v218, 110
        %v552 = vpop.permute.xlu0 %551
        %553 = vrot.lane.b32.xlu0 %v221, 110
        %v554 = vpop.permute.xlu0 %553
        %555 = vrot.lane.b32.xlu0 %v224, 110
        %v556 = vpop.permute.xlu0 %555
        %vm557 = vcmp.lt.s32.totalorder %v250, 110
        %v558 = vsel %vm557, %v542, %v550
        %v559 = vsel %vm557, %v544, %v552
        %v560 = vsel %vm557, %v546, %v554
        %v561 = vsel %vm557, %v548, %v556
        %v562 = vsel %vm557, %v534, %v542
        %v563 = vsel %vm557, %v536, %v544
        %v564 = vsel %vm557, %v538, %v546
        %v565 = vsel %vm557, %v540, %v548
        %v566 = vsel %vm557, %v550, %v534
        %v567 = vsel %vm557, %v552, %v536
        %v568 = vsel %vm557, %v554, %v538
        %v569 = vsel %vm557, %v556, %v540
        %v570 = vpack.c.bf16 %v563, %v562
        %v571 = vpack.c.bf16 %v559, %v558
        %v572 = vpack.c.bf16 %v567, %v566
        %v573 = vpack.c.bf16 %v565, %v564
        %v574 = vpack.c.bf16 %v561, %v560
        %v575 = vpack.c.bf16 %v569, %v568
        %576 = vst [vmem:[#allocation2 + $0x150] sm:$0xff] %v570
        %577 = vst [vmem:[#allocation2 + $0x158] sm:$0xff] %v571
        %578 = vst [vmem:[#allocation2 + $0x160] sm:$0xff] %v572
        %579 = vst [vmem:[#allocation2 + $0x168] sm:$0xff] %v573
        %580 = vst [vmem:[#allocation2 + $0x170] sm:$0xff] %v574
        %581 = vst [vmem:[#allocation2 + $0x178] sm:$0xff] %v575
        %582 = vrot.lane.b32.xlu0 %v213, 109
        %v583 = vpop.permute.xlu0 %582
        %584 = vrot.lane.b32.xlu0 %v216, 109
        %v585 = vpop.permute.xlu0 %584
        %586 = vrot.lane.b32.xlu0 %v219, 109
        %v587 = vpop.permute.xlu0 %586
        %588 = vrot.lane.b32.xlu0 %v222, 109
        %v589 = vpop.permute.xlu0 %588
        %590 = vrot.lane.b32.xlu0 %v214, 109
        %v591 = vpop.permute.xlu0 %590
        %592 = vrot.lane.b32.xlu0 %v217, 109
        %v593 = vpop.permute.xlu0 %592
        %594 = vrot.lane.b32.xlu0 %v220, 109
        %v595 = vpop.permute.xlu0 %594
        %596 = vrot.lane.b32.xlu0 %v223, 109
        %v597 = vpop.permute.xlu0 %596
        %598 = vrot.lane.b32.xlu0 %v215, 109
        %v599 = vpop.permute.xlu0 %598
        %600 = vrot.lane.b32.xlu0 %v218, 109
        %v601 = vpop.permute.xlu0 %600
        %602 = vrot.lane.b32.xlu0 %v221, 109
        %v603 = vpop.permute.xlu0 %602
        %604 = vrot.lane.b32.xlu0 %v224, 109
        %v605 = vpop.permute.xlu0 %604
        %vm606 = vcmp.lt.s32.totalorder %v250, 109
        %v607 = vsel %vm606, %v591, %v599
        %v608 = vsel %vm606, %v593, %v601
        %v609 = vsel %vm606, %v595, %v603
        %v610 = vsel %vm606, %v597, %v605
        %v611 = vsel %vm606, %v583, %v591
        %v612 = vsel %vm606, %v585, %v593
        %v613 = vsel %vm606, %v587, %v595
        %v614 = vsel %vm606, %v589, %v597
        %v615 = vsel %vm606, %v599, %v583
        %v616 = vsel %vm606, %v601, %v585
        %v617 = vsel %vm606, %v603, %v587
        %v618 = vsel %vm606, %v605, %v589
        %v619 = vpack.c.bf16 %v612, %v611
        %v620 = vpack.c.bf16 %v608, %v607
        %v621 = vpack.c.bf16 %v616, %v615
        %v622 = vpack.c.bf16 %v614, %v613
        %v623 = vpack.c.bf16 %v610, %v609
        %v624 = vpack.c.bf16 %v618, %v617
        %625 = vst [vmem:[#allocation2 + $0x180] sm:$0xff] %v619
        %626 = vst [vmem:[#allocation2 + $0x188] sm:$0xff] %v620
        %627 = vst [vmem:[#allocation2 + $0x190] sm:$0xff] %v621
        %628 = vst [vmem:[#allocation2 + $0x198] sm:$0xff] %v622
        %629 = vst [vmem:[#allocation2 + $0x1a0] sm:$0xff] %v623
        %630 = vst [vmem:[#allocation2 + $0x1a8] sm:$0xff] %v624
        %v631 = vld [vmem:[#allocation5] sm:$0xff]
        %v632 = vld [vmem:[#allocation5 + $0x8] sm:$0xf]
        %v633 = vld [vmem:[#allocation5 + $0xc] sm:$0xff]
        %v634 = vld [vmem:[#allocation5 + $0x14] sm:$0xf]
        %v635 = vld [vmem:[#allocation5 + $0x18] sm:$0xff]
        %v636 = vld [vmem:[#allocation5 + $0x20] sm:$0xf]
        %v637 = vld [vmem:[#allocation5 + $0x24] sm:$0xff]
        %v638 = vld [vmem:[#allocation5 + $0x2c] sm:$0xf]
        %v639 = vld [vmem:[#allocation2] sm:$0xff]
        %v640 = vld [vmem:[#allocation2 + $0x8] sm:$0xff]
        %v641 = vld [vmem:[#allocation2 + $0x10] sm:$0xff]
        %v642 = vld [vmem:[#allocation2 + $0x18] sm:$0xff]
        %v643 = vld [vmem:[#allocation2 + $0x20] sm:$0xff]
        %v644 = vld [vmem:[#allocation2 + $0x28] sm:$0xff]
        %v645 = vld [vmem:[#allocation2 + $0x30] sm:$0xff]
        %v646 = vld [vmem:[#allocation2 + $0x38] sm:$0xff]
        %v647 = vld [vmem:[#allocation2 + $0x40] sm:$0xff]
        %v648 = vld [vmem:[#allocation2 + $0x48] sm:$0xff]
        %v649 = vld [vmem:[#allocation2 + $0x50] sm:$0xff]
        %v650 = vld [vmem:[#allocation2 + $0x58] sm:$0xff]
        %v651 = vld [vmem:[#allocation2 + $0x60] sm:$0xff]
        %v652 = vld [vmem:[#allocation2 + $0x68] sm:$0xff]
        %v653 = vld [vmem:[#allocation2 + $0x70] sm:$0xff]
        %v654 = vld [vmem:[#allocation2 + $0x78] sm:$0xff]
        %v655 = vld [vmem:[#allocation2 + $0x80] sm:$0xff]
        %v656 = vld [vmem:[#allocation2 + $0x88] sm:$0xff]
        %v657 = vld [vmem:[#allocation2 + $0x90] sm:$0xff]
        %v658 = vld [vmem:[#allocation2 + $0x98] sm:$0xff]
        %v659 = vld [vmem:[#allocation2 + $0xa0] sm:$0xff]
        %v660 = vld [vmem:[#allocation2 + $0xa8] sm:$0xff]
        %v661 = vld [vmem:[#allocation2 + $0xb0] sm:$0xff]
        %v662 = vld [vmem:[#allocation2 + $0xb8] sm:$0xff]
        %v663 = vld [vmem:[#allocation2 + $0xc0] sm:$0xff]
        %v664 = vld [vmem:[#allocation2 + $0xc8] sm:$0xff]
        %v665 = vld [vmem:[#allocation2 + $0xd0] sm:$0xff]
        %v666 = vld [vmem:[#allocation2 + $0xd8] sm:$0xff]
        %v667 = vld [vmem:[#allocation2 + $0xe0] sm:$0xff]
        %v668 = vld [vmem:[#allocation2 + $0xe8] sm:$0xff]
        %v669 = vld [vmem:[#allocation2 + $0xf0] sm:$0xff]
        %v670 = vld [vmem:[#allocation2 + $0xf8] sm:$0xff]
        %v671 = vld [vmem:[#allocation2 + $0x100] sm:$0xff]
        %v672 = vld [vmem:[#allocation2 + $0x108] sm:$0xff]
        %v673 = vld [vmem:[#allocation2 + $0x110] sm:$0xff]
        %v674 = vld [vmem:[#allocation2 + $0x118] sm:$0xff]
        %v675 = vld [vmem:[#allocation2 + $0x120] sm:$0xff]
        %v676 = vld [vmem:[#allocation2 + $0x128] sm:$0xff]
        %v677 = vld [vmem:[#allocation2 + $0x130] sm:$0xff]
        %v678 = vld [vmem:[#allocation2 + $0x138] sm:$0xff]
        %v679 = vld [vmem:[#allocation2 + $0x140] sm:$0xff]
        %v680 = vld [vmem:[#allocation2 + $0x148] sm:$0xff]
        %v681 = vld [vmem:[#allocation2 + $0x150] sm:$0xff]
        %v682 = vld [vmem:[#allocation2 + $0x158] sm:$0xff]
        %v683 = vld [vmem:[#allocation2 + $0x160] sm:$0xff]
        %v684 = vld [vmem:[#allocation2 + $0x168] sm:$0xff]
        %v685 = vld [vmem:[#allocation2 + $0x170] sm:$0xff]
        %v686 = vld [vmem:[#allocation2 + $0x178] sm:$0xff]
        %v687 = vld [vmem:[#allocation2 + $0x180] sm:$0xff]
        %v688 = vld [vmem:[#allocation2 + $0x188] sm:$0xff]
        %v689 = vld [vmem:[#allocation2 + $0x190] sm:$0xff]
        %v690 = vld [vmem:[#allocation2 + $0x198] sm:$0xff]
        %v691 = vld [vmem:[#allocation2 + $0x1a0] sm:$0xff]
        %v692 = vld [vmem:[#allocation2 + $0x1a8] sm:$0xff]
        %v693 = vld [vmem:[%s2] sm:$0xff]
        %v694 = vld [vmem:[%s2 + $0x8] sm:$0xff]
        %v695 = vld [vmem:[%s2 + $0x10] sm:$0xff]
        %v696 = vld [vmem:[%s2 + $0x18] sm:$0xff]
        %698 = vset.pattern.permute.xlu0 0
        %699 = vperm.xlu0 %698, %v693
        %v700 = vpop.permute.xlu0 %699
        %703 = vset.pattern.permute.xlu0 0
        %704 = vperm.xlu0 %703, %v694
        %v705 = vpop.permute.xlu0 %704
        %708 = vset.pattern.permute.xlu0 0
        %709 = vperm.xlu0 %708, %v695
        %v710 = vpop.permute.xlu0 %709
        %713 = vset.pattern.permute.xlu0 0
        %714 = vperm.xlu0 %713, %v696
        %v715 = vpop.permute.xlu0 %714
        %v725 = vunpack.c.l.b16 %v631
        %v726 = vunpack.c.h.b16 %v631
        %v727 = vunpack.c.l.b16 %v632
        %v728 = vunpack.c.l.b16 %v633
        %v729 = vunpack.c.h.b16 %v633
        %v730 = vunpack.c.l.b16 %v634
        %v731 = vunpack.c.l.b16 %v635
        %v732 = vunpack.c.h.b16 %v635
        %v733 = vunpack.c.l.b16 %v636
        %v734 = vunpack.c.l.b16 %v637
        %v735 = vunpack.c.h.b16 %v637
        %v736 = vunpack.c.l.b16 %v638
        %v737 = vpack.c.b16 %v728, %v725
        %v738 = vpack.c.b16 %v729, %v726
        %v739 = vpack.c.b16 %v730, %v727
        %v740 = vpack.c.b16 %v734, %v731
        %v741 = vpack.c.b16 %v735, %v732
        %v742 = vpack.c.b16 %v736, %v733
        %vm747 = vcmask 261120
        %v749 = vsel %vm747, %v739, 0
        %v752 = vsel %vm747, %v742, 0
        %754 = vmatprep.subr.bf16.mxu0 %v640
        %755 = vmatpush1.bf16.msra.mxu0 %v639
        %756 = vmatprep.subr.bf16.mxu0 %v643
        %757 = vmatpush1.bf16.msra.mxu0 %v642
        %758 = vmatprep.subr.bf16.mxu0 %v646
        %759 = vmatpush1.bf16.msra.mxu0 %v645
        %760 = vmatprep.subr.bf16.mxu0 %v649
        %761 = vmatpush1.bf16.msra.mxu0 %v648
        %762 = vmatprep.subr.bf16.mxu0 %v652
        %763 = vmatpush1.bf16.msra.mxu0 %v651
        %764 = vmatprep.subr.bf16.mxu0 %v655
        %765 = vmatpush1.bf16.msra.mxu0 %v654
        %766 = vmatprep.subr.bf16.mxu0 %v658
        %767 = vmatpush1.bf16.msra.mxu0 %v657
        %768 = vmatprep.subr.bf16.mxu0 %v661
        %769 = vmatpush1.bf16.msra.mxu0 %v660
        %770 = vmatprep.subr.bf16.mxu0 %v664
        %771 = vmatpush1.bf16.msra.mxu0 %v663
        %772 = vmatprep.subr.bf16.mxu0 %v667
        %773 = vmatpush1.bf16.msra.mxu0 %v666
        %774 = vmatprep.subr.bf16.mxu0 %v670
        %775 = vmatpush1.bf16.msra.mxu0 %v669
        %776 = vmatprep.subr.bf16.mxu0 %v673
        %777 = vmatpush1.bf16.msra.mxu0 %v672
        %778 = vmatprep.subr.bf16.mxu0 %v676
        %779 = vmatpush1.bf16.msra.mxu0 %v675
        %780 = vmatprep.subr.bf16.mxu0 %v679
        %781 = vmatpush1.bf16.msra.mxu0 %v678
        %782 = vmatprep.subr.bf16.mxu0 %v682
        %783 = vmatpush1.bf16.msra.mxu0 %v681
        %784 = vmatprep.subr.bf16.mxu0 %v685
        %785 = vmatpush1.bf16.msra.mxu0 %v684
        %786 = vmatprep.mubr.bf16.mxu0 %v738
        %787 = vmatmul.mubr.bf16.gmra.mrb[0].mxu0 %v737
        %v788 = vpop.f32.mrb[0].mxu0
        %v789 = vadd.f32 %v700, %v788
        %v790 = vpop.f32.mrb[0].mxu0
        %v791 = vadd.f32 %v700, %v790
        %v792 = vpop.f32.mrb[0].mxu0
        %v793 = vadd.f32 %v705, %v792
        %v794 = vpop.f32.mrb[0].mxu0
        %v795 = vadd.f32 %v705, %v794
        %796 = vmatprep.mubr.bf16.mxu0 %v741
        %797 = vmatmul.mubr.bf16.gmra.mrb[0].mxu0 %v740
        %v798 = vpop.f32.mrb[0].mxu0
        %v799 = vadd.f32 %v710, %v798
        %v800 = vpop.f32.mrb[0].mxu0
        %v801 = vadd.f32 %v710, %v800
        %v802 = vpop.f32.mrb[0].mxu0
        %v803 = vadd.f32 %v715, %v802
        %v804 = vpop.f32.mrb[0].mxu0
        %v805 = vadd.f32 %v715, %v804
        %806 = vdwg.mxu0
        %807 = vmatprep.subr.bf16.mxu0 %v688
        %808 = vmatpush1.bf16.msra.mxu0 %v687
        %809 = vmatprep.subr.bf16.mxu0 %v691
        %810 = vmatpush1.bf16.msra.mxu0 %v690
        %811 = vmatprep.subr.bf16.mxu0 0
        %812 = vmatpush1.bf16.msra.mxu0 0
        %813 = vmatprep.subr.bf16.mxu0 0
        %814 = vmatpush1.bf16.msra.mxu0 0
        %815 = vmatprep.subr.bf16.mxu0 0
        %816 = vmatpush1.bf16.msra.mxu0 0
        %817 = vmatprep.subr.bf16.mxu0 0
        %818 = vmatpush1.bf16.msra.mxu0 0
        %819 = vmatprep.subr.bf16.mxu0 0
        %820 = vmatpush1.bf16.msra.mxu0 0
        %821 = vmatprep.subr.bf16.mxu0 0
        %822 = vmatpush1.bf16.msra.mxu0 0
        %823 = vmatprep.subr.bf16.mxu0 0
        %824 = vmatpush1.bf16.msra.mxu0 0
        %825 = vmatprep.subr.bf16.mxu0 0
        %826 = vmatpush1.bf16.msra.mxu0 0
        %827 = vmatprep.subr.bf16.mxu0 0
        %828 = vmatpush1.bf16.msra.mxu0 0
        %829 = vmatprep.subr.bf16.mxu0 0
        %830 = vmatpush1.bf16.msra.mxu0 0
        %831 = vmatprep.subr.bf16.mxu0 0
        %832 = vmatpush1.bf16.msra.mxu0 0
        %833 = vmatprep.subr.bf16.mxu0 0
        %834 = vmatpush1.bf16.msra.mxu0 0
        %835 = vmatprep.subr.bf16.mxu0 0
        %836 = vmatpush1.bf16.msra.mxu0 0
        %837 = vmatprep.subr.bf16.mxu0 0
        %838 = vmatpush1.bf16.msra.mxu0 0
        %839 = vmatprep.mubr.bf16.mxu0 0
        %840 = vmatmul.mubr.bf16.gmra.mrb[0].mxu0 %v749
        %v841 = vpop.f32.mrb[0].mxu0
        %v842 = vadd.f32 %v789, %v841
        %v843 = vpop.f32.mrb[0].mxu0
        %v844 = vadd.f32 %v791, %v843
        %v845 = vpop.f32.mrb[0].mxu0
        %v846 = vadd.f32 %v793, %v845
        %v847 = vpop.f32.mrb[0].mxu0
        %v848 = vadd.f32 %v795, %v847
        %849 = vmatprep.mubr.bf16.mxu0 0
        %850 = vmatmul.mubr.bf16.gmra.mrb[0].mxu0 %v752
        %v851 = vpop.f32.mrb[0].mxu0
        %v852 = vadd.f32 %v799, %v851
        %v853 = vpop.f32.mrb[0].mxu0
        %v854 = vadd.f32 %v801, %v853
        %v855 = vpop.f32.mrb[0].mxu0
        %v856 = vadd.f32 %v803, %v855
        %v857 = vpop.f32.mrb[0].mxu0
        %v858 = vadd.f32 %v805, %v857
        %859 = vdwg.mxu0
        %860 = vmatprep.subr.bf16.mxu0 0
        %861 = vmatpush1.bf16.msra.mxu0 %v641
        %862 = vmatprep.subr.bf16.mxu0 0
        %863 = vmatpush1.bf16.msra.mxu0 %v644
        %864 = vmatprep.subr.bf16.mxu0 0
        %865 = vmatpush1.bf16.msra.mxu0 %v647
        %866 = vmatprep.subr.bf16.mxu0 0
        %867 = vmatpush1.bf16.msra.mxu0 %v650
        %868 = vmatprep.subr.bf16.mxu0 0
        %869 = vmatpush1.bf16.msra.mxu0 %v653
        %870 = vmatprep.subr.bf16.mxu0 0
        %871 = vmatpush1.bf16.msra.mxu0 %v656
        %872 = vmatprep.subr.bf16.mxu0 0
        %873 = vmatpush1.bf16.msra.mxu0 %v659
        %874 = vmatprep.subr.bf16.mxu0 0
        %875 = vmatpush1.bf16.msra.mxu0 %v662
        %876 = vmatprep.subr.bf16.mxu0 0
        %877 = vmatpush1.bf16.msra.mxu0 %v665
        %878 = vmatprep.subr.bf16.mxu0 0
        %879 = vmatpush1.bf16.msra.mxu0 %v668
        %880 = vmatprep.subr.bf16.mxu0 0
        %881 = vmatpush1.bf16.msra.mxu0 %v671
        %882 = vmatprep.subr.bf16.mxu0 0
        %883 = vmatpush1.bf16.msra.mxu0 %v674
        %884 = vmatprep.subr.bf16.mxu0 0
        %885 = vmatpush1.bf16.msra.mxu0 %v677
        %886 = vmatprep.subr.bf16.mxu0 0
        %887 = vmatpush1.bf16.msra.mxu0 %v680
        %888 = vmatprep.subr.bf16.mxu0 0
        %889 = vmatpush1.bf16.msra.mxu0 %v683
        %890 = vmatprep.subr.bf16.mxu0 0
        %891 = vmatpush1.bf16.msra.mxu0 %v686
        %892 = vmatprep.mubr.bf16.mxu0 %v738
        %893 = vmatmul.mubr.bf16.gmra.mrb[0].mxu0 %v737
        %v894 = vpop.f32.mrb[0].mxu0
        %v895 = vadd.f32 %v700, %v894
        %v896 = vpop.f32.mrb[0].mxu0
        %v897 = vpop.f32.mrb[0].mxu0
        %v898 = vadd.f32 %v705, %v897
        %v899 = vpop.f32.mrb[0].mxu0
        %900 = vmatprep.mubr.bf16.mxu0 %v741
        %901 = vmatmul.mubr.bf16.gmra.mrb[0].mxu0 %v740
        %v902 = vpop.f32.mrb[0].mxu0
        %v903 = vadd.f32 %v710, %v902
        %v904 = vpop.f32.mrb[0].mxu0
        %v905 = vpop.f32.mrb[0].mxu0
        %v906 = vadd.f32 %v715, %v905
        %v907 = vpop.f32.mrb[0].mxu0
        %908 = vdwg.mxu0
        %909 = vmatprep.subr.bf16.mxu0 0
        %910 = vmatpush1.bf16.msra.mxu0 %v689
        %911 = vmatprep.subr.bf16.mxu0 0
        %912 = vmatpush1.bf16.msra.mxu0 %v692
        %913 = vmatprep.subr.bf16.mxu0 0
        %914 = vmatpush1.bf16.msra.mxu0 0
        %915 = vmatprep.subr.bf16.mxu0 0
        %916 = vmatpush1.bf16.msra.mxu0 0
        %917 = vmatprep.subr.bf16.mxu0 0
        %918 = vmatpush1.bf16.msra.mxu0 0
        %919 = vmatprep.subr.bf16.mxu0 0
        %920 = vmatpush1.bf16.msra.mxu0 0
        %921 = vmatprep.subr.bf16.mxu0 0
        %922 = vmatpush1.bf16.msra.mxu0 0
        %923 = vmatprep.subr.bf16.mxu0 0
        %924 = vmatpush1.bf16.msra.mxu0 0
        %925 = vmatprep.subr.bf16.mxu0 0
        %926 = vmatpush1.bf16.msra.mxu0 0
        %927 = vmatprep.subr.bf16.mxu0 0
        %928 = vmatpush1.bf16.msra.mxu0 0
        %929 = vmatprep.subr.bf16.mxu0 0
        %930 = vmatpush1.bf16.msra.mxu0 0
        %931 = vmatprep.subr.bf16.mxu0 0
        %932 = vmatpush1.bf16.msra.mxu0 0
        %933 = vmatprep.subr.bf16.mxu0 0
        %934 = vmatpush1.bf16.msra.mxu0 0
        %935 = vmatprep.subr.bf16.mxu0 0
        %936 = vmatpush1.bf16.msra.mxu0 0
        %937 = vmatprep.subr.bf16.mxu0 0
        %938 = vmatpush1.bf16.msra.mxu0 0
        %939 = vmatprep.subr.bf16.mxu0 0
        %940 = vmatpush1.bf16.msra.mxu0 0
        %941 = vmatprep.mubr.bf16.mxu0 0
        %942 = vmatmul.mubr.bf16.gmra.mrb[0].mxu0 %v749
        %v943 = vpop.f32.mrb[0].mxu0
        %v944 = vadd.f32 %v895, %v943
        %v945 = vpop.f32.mrb[0].mxu0
        %v946 = vpop.f32.mrb[0].mxu0
        %v947 = vadd.f32 %v898, %v946
        %v948 = vpop.f32.mrb[0].mxu0
        %949 = vmatprep.mubr.bf16.mxu0 0
        %950 = vmatmul.mubr.bf16.gmra.mrb[0].mxu0 %v752
        %v951 = vpop.f32.mrb[0].mxu0
        %v952 = vadd.f32 %v903, %v951
        %v953 = vpop.f32.mrb[0].mxu0
        %v954 = vpop.f32.mrb[0].mxu0
        %v955 = vadd.f32 %v906, %v954
        %v956 = vpop.f32.mrb[0].mxu0
        %957 = vdwg.mxu0
        %vm958 = vcmp.ge.f32.partialorder %v842, 0.0
        %vm959 = vcmp.ge.f32.partialorder %v844, 0.0
        %vm960 = vcmp.ge.f32.partialorder %v944, 0.0
        %vm961 = vcmp.ge.f32.partialorder %v846, 0.0
        %vm962 = vcmp.ge.f32.partialorder %v848, 0.0
        %vm963 = vcmp.ge.f32.partialorder %v947, 0.0
        %vm964 = vcmp.ge.f32.partialorder %v852, 0.0
        %vm965 = vcmp.ge.f32.partialorder %v854, 0.0
        %vm966 = vcmp.ge.f32.partialorder %v952, 0.0
        %vm967 = vcmp.ge.f32.partialorder %v856, 0.0
        %vm968 = vcmp.ge.f32.partialorder %v858, 0.0
        %vm969 = vcmp.ge.f32.partialorder %v955, 0.0
        %970 = vset.pattern.permute.xlu0 1
        %971 = vperm.xlu0 %970, %v693
        %v972 = vpop.permute.xlu0 %971
        %974 = vset.pattern.permute.xlu0 1
        %975 = vperm.xlu0 %974, %v694
        %v976 = vpop.permute.xlu0 %975
        %978 = vset.pattern.permute.xlu0 1
        %979 = vperm.xlu0 %978, %v695
        %v980 = vpop.permute.xlu0 %979
        %982 = vset.pattern.permute.xlu0 1
        %983 = vperm.xlu0 %982, %v696
        %v984 = vpop.permute.xlu0 %983
        %v986 = vmul.f32 %v972, %v842
        %v987 = vmul.f32 %v972, %v844
        %v988 = vmul.f32 %v972, %v944
        %v989 = vmul.f32 %v976, %v846
        %v990 = vmul.f32 %v976, %v848
        %v991 = vmul.f32 %v976, %v947
        %v992 = vmul.f32 %v980, %v852
        %v993 = vmul.f32 %v980, %v854
        %v994 = vmul.f32 %v980, %v952
        %v995 = vmul.f32 %v984, %v856
        %v996 = vmul.f32 %v984, %v858
        %v997 = vmul.f32 %v984, %v955
        %v998 = vsel %vm958, %v842, %v986
        %v999 = vsel %vm959, %v844, %v987
        %v1000 = vsel %vm960, %v944, %v988
        %v1001 = vsel %vm961, %v846, %v989
        %v1002 = vsel %vm962, %v848, %v990
        %v1003 = vsel %vm963, %v947, %v991
        %v1004 = vsel %vm964, %v852, %v992
        %v1005 = vsel %vm965, %v854, %v993
        %v1006 = vsel %vm966, %v952, %v994
        %v1007 = vsel %vm967, %v856, %v995
        %v1008 = vsel %vm968, %v858, %v996
        %v1009 = vsel %vm969, %v955, %v997
        %v1011 = vlaneseq
        %v1012 = vshrl.u32 %v1011, 7
        %v1013 = vsub.s32 0, %v1012
        %v1014 = vrot.slane %v212, %v1013
        %v1015 = vlaneseq
        %v1016 = vshrl.u32 %v1015, 7
        %v1017 = vsub.s32 1, %v1016
        %v1018 = vrot.slane %v212, %v1017
        %v1019 = vlaneseq
        %v1020 = vshrl.u32 %v1019, 7
        %v1021 = vsub.s32 2, %v1020
        %v1022 = vrot.slane %v212, %v1021
        %v1026 = vmul.f32 %v998, %v1014
        %v1027 = vmul.f32 %v999, %v1018
        %v1028 = vmul.f32 %v1000, %v1022
        %v1029 = vmul.f32 %v1001, %v1014
        %v1030 = vmul.f32 %v1002, %v1018
        %v1031 = vmul.f32 %v1003, %v1022
        %v1032 = vmul.f32 %v1004, %v1014
        %v1033 = vmul.f32 %v1005, %v1018
        %v1034 = vmul.f32 %v1006, %v1022
        %v1035 = vmul.f32 %v1007, %v1014
        %v1036 = vmul.f32 %v1008, %v1018
        %v1037 = vmul.f32 %v1009, %v1022
        %1038 = vst [vmem:[#allocation3] sm:$0xff] %v1026
        %1039 = vst [vmem:[#allocation3 + $0x8] sm:$0xff] %v1027
        %1040 = vst [vmem:[#allocation3 + $0x10] sm:$0xff] %v1028
        %1041 = vst [vmem:[#allocation3 + $0x18] sm:$0xff] %v1029
        %1042 = vst [vmem:[#allocation3 + $0x20] sm:$0xff] %v1030
        %1043 = vst [vmem:[#allocation3 + $0x28] sm:$0xff] %v1031
        %1044 = vst [vmem:[#allocation3 + $0x30] sm:$0xff] %v1032
        %1045 = vst [vmem:[#allocation3 + $0x38] sm:$0xff] %v1033
        %1046 = vst [vmem:[#allocation3 + $0x40] sm:$0xff] %v1034
        %1047 = vst [vmem:[#allocation3 + $0x48] sm:$0xff] %v1035
        %1048 = vst [vmem:[#allocation3 + $0x50] sm:$0xff] %v1036
        %1049 = vst [vmem:[#allocation3 + $0x58] sm:$0xff] %v1037
        %1050 = vst [vmem:[#allocation4] sm:$0xff] %v1026
        %1051 = vst [vmem:[#allocation4 + $0x8] sm:$0xff] %v1027
        %1052 = vst [vmem:[#allocation4 + $0x10] sm:$0xff] %v1028
        %1053 = vst [vmem:[#allocation4 + $0x18] sm:$0xff] %v1029
        %1054 = vst [vmem:[#allocation4 + $0x20] sm:$0xff] %v1030
        %1055 = vst [vmem:[#allocation4 + $0x28] sm:$0xff] %v1031
        %1056 = vst [vmem:[#allocation4 + $0x30] sm:$0xff] %v1032
        %1057 = vst [vmem:[#allocation4 + $0x38] sm:$0xff] %v1033
        %1058 = vst [vmem:[#allocation4 + $0x40] sm:$0xff] %v1034
        %1059 = vst [vmem:[#allocation4 + $0x48] sm:$0xff] %v1035
        %1060 = vst [vmem:[#allocation4 + $0x50] sm:$0xff] %v1036
        %1061 = vst [vmem:[#allocation4 + $0x58] sm:$0xff] %v1037
        %v1062 = vld [vmem:[#allocation4] sm:$0xff]
        %v1063 = vld [vmem:[#allocation4 + $0x8] sm:$0xff]
        %v1064 = vld [vmem:[#allocation4 + $0x10] sm:$0xff]
        %v1065 = vld [vmem:[#allocation4 + $0x18] sm:$0xff]
        %v1066 = vld [vmem:[#allocation4 + $0x20] sm:$0xff]
        %v1067 = vld [vmem:[#allocation4 + $0x28] sm:$0xff]
        %v1068 = vld [vmem:[#allocation4 + $0x30] sm:$0xff]
        %v1069 = vld [vmem:[#allocation4 + $0x38] sm:$0xff]
        %v1070 = vld [vmem:[#allocation4 + $0x40] sm:$0xff]
        %v1071 = vld [vmem:[#allocation4 + $0x48] sm:$0xff]
        %v1072 = vld [vmem:[#allocation4 + $0x50] sm:$0xff]
        %v1073 = vld [vmem:[#allocation4 + $0x58] sm:$0xff]
        %1074 = vrot.lane.b32.xlu0 %v1062, 19
        %v1075 = vpop.permute.xlu0 %1074
        %1076 = vrot.lane.b32.xlu0 %v1065, 19
        %v1077 = vpop.permute.xlu0 %1076
        %1078 = vrot.lane.b32.xlu0 %v1068, 19
        %v1079 = vpop.permute.xlu0 %1078
        %1080 = vrot.lane.b32.xlu0 %v1071, 19
        %v1081 = vpop.permute.xlu0 %1080
        %1082 = vrot.lane.b32.xlu0 %v1063, 19
        %v1083 = vpop.permute.xlu0 %1082
        %1084 = vrot.lane.b32.xlu0 %v1066, 19
        %v1085 = vpop.permute.xlu0 %1084
        %1086 = vrot.lane.b32.xlu0 %v1069, 19
        %v1087 = vpop.permute.xlu0 %1086
        %1088 = vrot.lane.b32.xlu0 %v1072, 19
        %v1089 = vpop.permute.xlu0 %1088
        %1090 = vrot.lane.b32.xlu0 %v1064, 19
        %v1091 = vpop.permute.xlu0 %1090
        %1092 = vrot.lane.b32.xlu0 %v1067, 19
        %v1093 = vpop.permute.xlu0 %1092
        %1094 = vrot.lane.b32.xlu0 %v1070, 19
        %v1095 = vpop.permute.xlu0 %1094
        %1096 = vrot.lane.b32.xlu0 %v1073, 19
        %v1097 = vpop.permute.xlu0 %1096
        %v1098 = vsel %vm251, %v1083, %v1091
        %v1099 = vsel %vm251, %v1085, %v1093
        %v1100 = vsel %vm251, %v1087, %v1095
        %v1101 = vsel %vm251, %v1089, %v1097
        %v1102 = vsel %vm251, %v1075, %v1083
        %v1103 = vsel %vm251, %v1077, %v1085
        %v1104 = vsel %vm251, %v1079, %v1087
        %v1105 = vsel %vm251, %v1081, %v1089
        %v1106 = vsel %vm251, %v1091, %v1075
        %v1107 = vsel %vm251, %v1093, %v1077
        %v1108 = vsel %vm251, %v1095, %v1079
        %v1109 = vsel %vm251, %v1097, %v1081
        %v1110 = vpack.c.bf16 %v1107, %v1106
        %v1111 = vpack.c.bf16 %v1103, %v1102
        %v1112 = vpack.c.bf16 %v1099, %v1098
        %v1113 = vpack.c.bf16 %v1109, %v1108
        %v1114 = vpack.c.bf16 %v1105, %v1104
        %v1115 = vpack.c.bf16 %v1101, %v1100
        %1116 = vst [vmem:[#allocation2] sm:$0xff] %v1110
        %1117 = vst [vmem:[#allocation2 + $0x8] sm:$0xff] %v1111
        %1118 = vst [vmem:[#allocation2 + $0x10] sm:$0xff] %v1112
        %1119 = vst [vmem:[#allocation2 + $0x18] sm:$0xff] %v1113
        %1120 = vst [vmem:[#allocation2 + $0x20] sm:$0xff] %v1114
        %1121 = vst [vmem:[#allocation2 + $0x28] sm:$0xff] %v1115
        %1122 = vrot.lane.b32.xlu0 %v1062, 18
        %v1123 = vpop.permute.xlu0 %1122
        %1124 = vrot.lane.b32.xlu0 %v1065, 18
        %v1125 = vpop.permute.xlu0 %1124
        %1126 = vrot.lane.b32.xlu0 %v1068, 18
        %v1127 = vpop.permute.xlu0 %1126
        %1128 = vrot.lane.b32.xlu0 %v1071, 18
        %v1129 = vpop.permute.xlu0 %1128
        %1130 = vrot.lane.b32.xlu0 %v1063, 18
        %v1131 = vpop.permute.xlu0 %1130
        %1132 = vrot.lane.b32.xlu0 %v1066, 18
        %v1133 = vpop.permute.xlu0 %1132
        %1134 = vrot.lane.b32.xlu0 %v1069, 18
        %v1135 = vpop.permute.xlu0 %1134
        %1136 = vrot.lane.b32.xlu0 %v1072, 18
        %v1137 = vpop.permute.xlu0 %1136
        %1138 = vrot.lane.b32.xlu0 %v1064, 18
        %v1139 = vpop.permute.xlu0 %1138
        %1140 = vrot.lane.b32.xlu0 %v1067, 18
        %v1141 = vpop.permute.xlu0 %1140
        %1142 = vrot.lane.b32.xlu0 %v1070, 18
        %v1143 = vpop.permute.xlu0 %1142
        %1144 = vrot.lane.b32.xlu0 %v1073, 18
        %v1145 = vpop.permute.xlu0 %1144
        %v1146 = vsel %vm300, %v1131, %v1139
        %v1147 = vsel %vm300, %v1133, %v1141
        %v1148 = vsel %vm300, %v1135, %v1143
        %v1149 = vsel %vm300, %v1137, %v1145
        %v1150 = vsel %vm300, %v1123, %v1131
        %v1151 = vsel %vm300, %v1125, %v1133
        %v1152 = vsel %vm300, %v1127, %v1135
        %v1153 = vsel %vm300, %v1129, %v1137
        %v1154 = vsel %vm300, %v1139, %v1123
        %v1155 = vsel %vm300, %v1141, %v1125
        %v1156 = vsel %vm300, %v1143, %v1127
        %v1157 = vsel %vm300, %v1145, %v1129
        %v1158 = vpack.c.bf16 %v1155, %v1154
        %v1159 = vpack.c.bf16 %v1151, %v1150
        %v1160 = vpack.c.bf16 %v1147, %v1146
        %v1161 = vpack.c.bf16 %v1157, %v1156
        %v1162 = vpack.c.bf16 %v1153, %v1152
        %v1163 = vpack.c.bf16 %v1149, %v1148
        %1164 = vst [vmem:[#allocation2 + $0x30] sm:$0xff] %v1158
        %1165 = vst [vmem:[#allocation2 + $0x38] sm:$0xff] %v1159
        %1166 = vst [vmem:[#allocation2 + $0x40] sm:$0xff] %v1160
        %1167 = vst [vmem:[#allocation2 + $0x48] sm:$0xff] %v1161
        %1168 = vst [vmem:[#allocation2 + $0x50] sm:$0xff] %v1162
        %1169 = vst [vmem:[#allocation2 + $0x58] sm:$0xff] %v1163
        %1170 = vrot.lane.b32.xlu0 %v1062, 17
        %v1171 = vpop.permute.xlu0 %1170
        %1172 = vrot.lane.b32.xlu0 %v1065, 17
        %v1173 = vpop.permute.xlu0 %1172
        %1174 = vrot.lane.b32.xlu0 %v1068, 17
        %v1175 = vpop.permute.xlu0 %1174
        %1176 = vrot.lane.b32.xlu0 %v1071, 17
        %v1177 = vpop.permute.xlu0 %1176
        %1178 = vrot.lane.b32.xlu0 %v1063, 17
        %v1179 = vpop.permute.xlu0 %1178
        %1180 = vrot.lane.b32.xlu0 %v1066, 17
        %v1181 = vpop.permute.xlu0 %1180
        %1182 = vrot.lane.b32.xlu0 %v1069, 17
        %v1183 = vpop.permute.xlu0 %1182
        %1184 = vrot.lane.b32.xlu0 %v1072, 17
        %v1185 = vpop.permute.xlu0 %1184
        %1186 = vrot.lane.b32.xlu0 %v1064, 17
        %v1187 = vpop.permute.xlu0 %1186
        %1188 = vrot.lane.b32.xlu0 %v1067, 17
        %v1189 = vpop.permute.xlu0 %1188
        %1190 = vrot.lane.b32.xlu0 %v1070, 17
        %v1191 = vpop.permute.xlu0 %1190
        %1192 = vrot.lane.b32.xlu0 %v1073, 17
        %v1193 = vpop.permute.xlu0 %1192
        %v1194 = vsel %vm349, %v1179, %v1187
        %v1195 = vsel %vm349, %v1181, %v1189
        %v1196 = vsel %vm349, %v1183, %v1191
        %v1197 = vsel %vm349, %v1185, %v1193
        %v1198 = vsel %vm349, %v1171, %v1179
        %v1199 = vsel %vm349, %v1173, %v1181
        %v1200 = vsel %vm349, %v1175, %v1183
        %v1201 = vsel %vm349, %v1177, %v1185
        %v1202 = vsel %vm349, %v1187, %v1171
        %v1203 = vsel %vm349, %v1189, %v1173
        %v1204 = vsel %vm349, %v1191, %v1175
        %v1205 = vsel %vm349, %v1193, %v1177
        %v1206 = vpack.c.bf16 %v1203, %v1202
        %v1207 = vpack.c.bf16 %v1199, %v1198
        %v1208 = vpack.c.bf16 %v1195, %v1194
        %v1209 = vpack.c.bf16 %v1205, %v1204
        %v1210 = vpack.c.bf16 %v1201, %v1200
        %v1211 = vpack.c.bf16 %v1197, %v1196
        %1212 = vst [vmem:[#allocation2 + $0x60] sm:$0xff] %v1206
        %1213 = vst [vmem:[#allocation2 + $0x68] sm:$0xff] %v1207
        %1214 = vst [vmem:[#allocation2 + $0x70] sm:$0xff] %v1208
        %1215 = vst [vmem:[#allocation2 + $0x78] sm:$0xff] %v1209
        %1216 = vst [vmem:[#allocation2 + $0x80] sm:$0xff] %v1210
        %1217 = vst [vmem:[#allocation2 + $0x88] sm:$0xff] %v1211
        %1218 = vrot.lane.b32.xlu0 %v1062, 1
        %v1219 = vpop.permute.xlu0 %1218
        %1220 = vrot.lane.b32.xlu0 %v1065, 1
        %v1221 = vpop.permute.xlu0 %1220
        %1222 = vrot.lane.b32.xlu0 %v1068, 1
        %v1223 = vpop.permute.xlu0 %1222
        %1224 = vrot.lane.b32.xlu0 %v1071, 1
        %v1225 = vpop.permute.xlu0 %1224
        %1226 = vrot.lane.b32.xlu0 %v1063, 1
        %v1227 = vpop.permute.xlu0 %1226
        %1228 = vrot.lane.b32.xlu0 %v1066, 1
        %v1229 = vpop.permute.xlu0 %1228
        %1230 = vrot.lane.b32.xlu0 %v1069, 1
        %v1231 = vpop.permute.xlu0 %1230
        %1232 = vrot.lane.b32.xlu0 %v1072, 1
        %v1233 = vpop.permute.xlu0 %1232
        %1234 = vrot.lane.b32.xlu0 %v1064, 1
        %v1235 = vpop.permute.xlu0 %1234
        %1236 = vrot.lane.b32.xlu0 %v1067, 1
        %v1237 = vpop.permute.xlu0 %1236
        %1238 = vrot.lane.b32.xlu0 %v1070, 1
        %v1239 = vpop.permute.xlu0 %1238
        %1240 = vrot.lane.b32.xlu0 %v1073, 1
        %v1241 = vpop.permute.xlu0 %1240
        %v1242 = vsel %vm398, %v1227, %v1235
        %v1243 = vsel %vm398, %v1229, %v1237
        %v1244 = vsel %vm398, %v1231, %v1239
        %v1245 = vsel %vm398, %v1233, %v1241
        %v1246 = vsel %vm398, %v1219, %v1227
        %v1247 = vsel %vm398, %v1221, %v1229
        %v1248 = vsel %vm398, %v1223, %v1231
        %v1249 = vsel %vm398, %v1225, %v1233
        %v1250 = vsel %vm398, %v1235, %v1219
        %v1251 = vsel %vm398, %v1237, %v1221
        %v1252 = vsel %vm398, %v1239, %v1223
        %v1253 = vsel %vm398, %v1241, %v1225
        %v1254 = vpack.c.bf16 %v1251, %v1250
        %v1255 = vpack.c.bf16 %v1247, %v1246
        %v1256 = vpack.c.bf16 %v1243, %v1242
        %v1257 = vpack.c.bf16 %v1253, %v1252
        %v1258 = vpack.c.bf16 %v1249, %v1248
        %v1259 = vpack.c.bf16 %v1245, %v1244
        %1260 = vst [vmem:[#allocation2 + $0x90] sm:$0xff] %v1254
        %1261 = vst [vmem:[#allocation2 + $0x98] sm:$0xff] %v1255
        %1262 = vst [vmem:[#allocation2 + $0xa0] sm:$0xff] %v1256
        %1263 = vst [vmem:[#allocation2 + $0xa8] sm:$0xff] %v1257
        %1264 = vst [vmem:[#allocation2 + $0xb0] sm:$0xff] %v1258
        %1265 = vst [vmem:[#allocation2 + $0xb8] sm:$0xff] %v1259
        %v1266 = vpack.c.bf16 %v1065, %v1062
        %v1267 = vpack.c.bf16 %v1066, %v1063
        %v1268 = vpack.c.bf16 %v1067, %v1064
        %v1269 = vpack.c.bf16 %v1071, %v1068
        %v1270 = vpack.c.bf16 %v1072, %v1069
        %v1271 = vpack.c.bf16 %v1073, %v1070
        %1272 = vst [vmem:[#allocation2 + $0xc0] sm:$0xff] %v1266
        %1273 = vst [vmem:[#allocation2 + $0xc8] sm:$0xff] %v1267
        %1274 = vst [vmem:[#allocation2 + $0xd0] sm:$0xff] %v1268
        %1275 = vst [vmem:[#allocation2 + $0xd8] sm:$0xff] %v1269
        %1276 = vst [vmem:[#allocation2 + $0xe0] sm:$0xff] %v1270
        %1277 = vst [vmem:[#allocation2 + $0xe8] sm:$0xff] %v1271
        %1278 = vrot.lane.b32.xlu0 %v1062, 127
        %v1279 = vpop.permute.xlu0 %1278
        %1280 = vrot.lane.b32.xlu0 %v1065, 127
        %v1281 = vpop.permute.xlu0 %1280
        %1282 = vrot.lane.b32.xlu0 %v1068, 127
        %v1283 = vpop.permute.xlu0 %1282
        %1284 = vrot.lane.b32.xlu0 %v1071, 127
        %v1285 = vpop.permute.xlu0 %1284
        %1286 = vrot.lane.b32.xlu0 %v1063, 127
        %v1287 = vpop.permute.xlu0 %1286
        %1288 = vrot.lane.b32.xlu0 %v1066, 127
        %v1289 = vpop.permute.xlu0 %1288
        %1290 = vrot.lane.b32.xlu0 %v1069, 127
        %v1291 = vpop.permute.xlu0 %1290
        %1292 = vrot.lane.b32.xlu0 %v1072, 127
        %v1293 = vpop.permute.xlu0 %1292
        %1294 = vrot.lane.b32.xlu0 %v1064, 127
        %v1295 = vpop.permute.xlu0 %1294
        %1296 = vrot.lane.b32.xlu0 %v1067, 127
        %v1297 = vpop.permute.xlu0 %1296
        %1298 = vrot.lane.b32.xlu0 %v1070, 127
        %v1299 = vpop.permute.xlu0 %1298
        %1300 = vrot.lane.b32.xlu0 %v1073, 127
        %v1301 = vpop.permute.xlu0 %1300
        %v1302 = vsel %vm459, %v1287, %v1295
        %v1303 = vsel %vm459, %v1289, %v1297
        %v1304 = vsel %vm459, %v1291, %v1299
        %v1305 = vsel %vm459, %v1293, %v1301
        %v1306 = vsel %vm459, %v1279, %v1287
        %v1307 = vsel %vm459, %v1281, %v1289
        %v1308 = vsel %vm459, %v1283, %v1291
        %v1309 = vsel %vm459, %v1285, %v1293
        %v1310 = vsel %vm459, %v1295, %v1279
        %v1311 = vsel %vm459, %v1297, %v1281
        %v1312 = vsel %vm459, %v1299, %v1283
        %v1313 = vsel %vm459, %v1301, %v1285
        %v1314 = vpack.c.bf16 %v1307, %v1306
        %v1315 = vpack.c.bf16 %v1303, %v1302
        %v1316 = vpack.c.bf16 %v1311, %v1310
        %v1317 = vpack.c.bf16 %v1309, %v1308
        %v1318 = vpack.c.bf16 %v1305, %v1304
        %v1319 = vpack.c.bf16 %v1313, %v1312
        %1320 = vst [vmem:[#allocation2 + $0xf0] sm:$0xff] %v1314
        %1321 = vst [vmem:[#allocation2 + $0xf8] sm:$0xff] %v1315
        %1322 = vst [vmem:[#allocation2 + $0x100] sm:$0xff] %v1316
        %1323 = vst [vmem:[#allocation2 + $0x108] sm:$0xff] %v1317
        %1324 = vst [vmem:[#allocation2 + $0x110] sm:$0xff] %v1318
        %1325 = vst [vmem:[#allocation2 + $0x118] sm:$0xff] %v1319
        %1326 = vrot.lane.b32.xlu0 %v1062, 111
        %v1327 = vpop.permute.xlu0 %1326
        %1328 = vrot.lane.b32.xlu0 %v1065, 111
        %v1329 = vpop.permute.xlu0 %1328
        %1330 = vrot.lane.b32.xlu0 %v1068, 111
        %v1331 = vpop.permute.xlu0 %1330
        %1332 = vrot.lane.b32.xlu0 %v1071, 111
        %v1333 = vpop.permute.xlu0 %1332
        %1334 = vrot.lane.b32.xlu0 %v1063, 111
        %v1335 = vpop.permute.xlu0 %1334
        %1336 = vrot.lane.b32.xlu0 %v1066, 111
        %v1337 = vpop.permute.xlu0 %1336
        %1338 = vrot.lane.b32.xlu0 %v1069, 111
        %v1339 = vpop.permute.xlu0 %1338
        %1340 = vrot.lane.b32.xlu0 %v1072, 111
        %v1341 = vpop.permute.xlu0 %1340
        %1342 = vrot.lane.b32.xlu0 %v1064, 111
        %v1343 = vpop.permute.xlu0 %1342
        %1344 = vrot.lane.b32.xlu0 %v1067, 111
        %v1345 = vpop.permute.xlu0 %1344
        %1346 = vrot.lane.b32.xlu0 %v1070, 111
        %v1347 = vpop.permute.xlu0 %1346
        %1348 = vrot.lane.b32.xlu0 %v1073, 111
        %v1349 = vpop.permute.xlu0 %1348
        %v1350 = vsel %vm508, %v1335, %v1343
        %v1351 = vsel %vm508, %v1337, %v1345
        %v1352 = vsel %vm508, %v1339, %v1347
        %v1353 = vsel %vm508, %v1341, %v1349
        %v1354 = vsel %vm508, %v1327, %v1335
        %v1355 = vsel %vm508, %v1329, %v1337
        %v1356 = vsel %vm508, %v1331, %v1339
        %v1357 = vsel %vm508, %v1333, %v1341
        %v1358 = vsel %vm508, %v1343, %v1327
        %v1359 = vsel %vm508, %v1345, %v1329
        %v1360 = vsel %vm508, %v1347, %v1331
        %v1361 = vsel %vm508, %v1349, %v1333
        %v1362 = vpack.c.bf16 %v1355, %v1354
        %v1363 = vpack.c.bf16 %v1351, %v1350
        %v1364 = vpack.c.bf16 %v1359, %v1358
        %v1365 = vpack.c.bf16 %v1357, %v1356
        %v1366 = vpack.c.bf16 %v1353, %v1352
        %v1367 = vpack.c.bf16 %v1361, %v1360
        %1368 = vst [vmem:[#allocation2 + $0x120] sm:$0xff] %v1362
        %1369 = vst [vmem:[#allocation2 + $0x128] sm:$0xff] %v1363
        %1370 = vst [vmem:[#allocation2 + $0x130] sm:$0xff] %v1364
        %1371 = vst [vmem:[#allocation2 + $0x138] sm:$0xff] %v1365
        %1372 = vst [vmem:[#allocation2 + $0x140] sm:$0xff] %v1366
        %1373 = vst [vmem:[#allocation2 + $0x148] sm:$0xff] %v1367
        %1374 = vrot.lane.b32.xlu0 %v1062, 110
        %v1375 = vpop.permute.xlu0 %1374
        %1376 = vrot.lane.b32.xlu0 %v1065, 110
        %v1377 = vpop.permute.xlu0 %1376
        %1378 = vrot.lane.b32.xlu0 %v1068, 110
        %v1379 = vpop.permute.xlu0 %1378
        %1380 = vrot.lane.b32.xlu0 %v1071, 110
        %v1381 = vpop.permute.xlu0 %1380
        %1382 = vrot.lane.b32.xlu0 %v1063, 110
        %v1383 = vpop.permute.xlu0 %1382
        %1384 = vrot.lane.b32.xlu0 %v1066, 110
        %v1385 = vpop.permute.xlu0 %1384
        %1386 = vrot.lane.b32.xlu0 %v1069, 110
        %v1387 = vpop.permute.xlu0 %1386
        %1388 = vrot.lane.b32.xlu0 %v1072, 110
        %v1389 = vpop.permute.xlu0 %1388
        %1390 = vrot.lane.b32.xlu0 %v1064, 110
        %v1391 = vpop.permute.xlu0 %1390
        %1392 = vrot.lane.b32.xlu0 %v1067, 110
        %v1393 = vpop.permute.xlu0 %1392
        %1394 = vrot.lane.b32.xlu0 %v1070, 110
        %v1395 = vpop.permute.xlu0 %1394
        %1396 = vrot.lane.b32.xlu0 %v1073, 110
        %v1397 = vpop.permute.xlu0 %1396
        %v1398 = vsel %vm557, %v1383, %v1391
        %v1399 = vsel %vm557, %v1385, %v1393
        %v1400 = vsel %vm557, %v1387, %v1395
        %v1401 = vsel %vm557, %v1389, %v1397
        %v1402 = vsel %vm557, %v1375, %v1383
        %v1403 = vsel %vm557, %v1377, %v1385
        %v1404 = vsel %vm557, %v1379, %v1387
        %v1405 = vsel %vm557, %v1381, %v1389
        %v1406 = vsel %vm557, %v1391, %v1375
        %v1407 = vsel %vm557, %v1393, %v1377
        %v1408 = vsel %vm557, %v1395, %v1379
        %v1409 = vsel %vm557, %v1397, %v1381
        %v1410 = vpack.c.bf16 %v1403, %v1402
        %v1411 = vpack.c.bf16 %v1399, %v1398
        %v1412 = vpack.c.bf16 %v1407, %v1406
        %v1413 = vpack.c.bf16 %v1405, %v1404
        %v1414 = vpack.c.bf16 %v1401, %v1400
        %v1415 = vpack.c.bf16 %v1409, %v1408
        %1416 = vst [vmem:[#allocation2 + $0x150] sm:$0xff] %v1410
        %1417 = vst [vmem:[#allocation2 + $0x158] sm:$0xff] %v1411
        %1418 = vst [vmem:[#allocation2 + $0x160] sm:$0xff] %v1412
        %1419 = vst [vmem:[#allocation2 + $0x168] sm:$0xff] %v1413
        %1420 = vst [vmem:[#allocation2 + $0x170] sm:$0xff] %v1414
        %1421 = vst [vmem:[#allocation2 + $0x178] sm:$0xff] %v1415
        %1422 = vrot.lane.b32.xlu0 %v1062, 109
        %v1423 = vpop.permute.xlu0 %1422
        %1424 = vrot.lane.b32.xlu0 %v1065, 109
        %v1425 = vpop.permute.xlu0 %1424
        %1426 = vrot.lane.b32.xlu0 %v1068, 109
        %v1427 = vpop.permute.xlu0 %1426
        %1428 = vrot.lane.b32.xlu0 %v1071, 109
        %v1429 = vpop.permute.xlu0 %1428
        %1430 = vrot.lane.b32.xlu0 %v1063, 109
        %v1431 = vpop.permute.xlu0 %1430
        %1432 = vrot.lane.b32.xlu0 %v1066, 109
        %v1433 = vpop.permute.xlu0 %1432
        %1434 = vrot.lane.b32.xlu0 %v1069, 109
        %v1435 = vpop.permute.xlu0 %1434
        %1436 = vrot.lane.b32.xlu0 %v1072, 109
        %v1437 = vpop.permute.xlu0 %1436
        %1438 = vrot.lane.b32.xlu0 %v1064, 109
        %v1439 = vpop.permute.xlu0 %1438
        %1440 = vrot.lane.b32.xlu0 %v1067, 109
        %v1441 = vpop.permute.xlu0 %1440
        %1442 = vrot.lane.b32.xlu0 %v1070, 109
        %v1443 = vpop.permute.xlu0 %1442
        %1444 = vrot.lane.b32.xlu0 %v1073, 109
        %v1445 = vpop.permute.xlu0 %1444
        %v1446 = vsel %vm606, %v1431, %v1439
        %v1447 = vsel %vm606, %v1433, %v1441
        %v1448 = vsel %vm606, %v1435, %v1443
        %v1449 = vsel %vm606, %v1437, %v1445
        %v1450 = vsel %vm606, %v1423, %v1431
        %v1451 = vsel %vm606, %v1425, %v1433
        %v1452 = vsel %vm606, %v1427, %v1435
        %v1453 = vsel %vm606, %v1429, %v1437
        %v1454 = vsel %vm606, %v1439, %v1423
        %v1455 = vsel %vm606, %v1441, %v1425
        %v1456 = vsel %vm606, %v1443, %v1427
        %v1457 = vsel %vm606, %v1445, %v1429
        %v1458 = vpack.c.bf16 %v1451, %v1450
        %v1459 = vpack.c.bf16 %v1447, %v1446
        %v1460 = vpack.c.bf16 %v1455, %v1454
        %v1461 = vpack.c.bf16 %v1453, %v1452
        %v1462 = vpack.c.bf16 %v1449, %v1448
        %v1463 = vpack.c.bf16 %v1457, %v1456
        %1464 = vst [vmem:[#allocation2 + $0x180] sm:$0xff] %v1458
        %1465 = vst [vmem:[#allocation2 + $0x188] sm:$0xff] %v1459
        %1466 = vst [vmem:[#allocation2 + $0x190] sm:$0xff] %v1460
        %1467 = vst [vmem:[#allocation2 + $0x198] sm:$0xff] %v1461
        %1468 = vst [vmem:[#allocation2 + $0x1a0] sm:$0xff] %v1462
        %1469 = vst [vmem:[#allocation2 + $0x1a8] sm:$0xff] %v1463
        %s1470 = scalar_lea.vmem [#allocation5], 48
        %v1471 = vld [vmem:[%s1470] sm:$0xff]
        %v1472 = vld [vmem:[%s1470 + $0x8] sm:$0xf]
        %v1473 = vld [vmem:[%s1470 + $0xc] sm:$0xff]
        %v1474 = vld [vmem:[%s1470 + $0x14] sm:$0xf]
        %v1475 = vld [vmem:[%s1470 + $0x18] sm:$0xff]
        %v1476 = vld [vmem:[%s1470 + $0x20] sm:$0xf]
        %v1477 = vld [vmem:[%s1470 + $0x24] sm:$0xff]
        %v1478 = vld [vmem:[%s1470 + $0x2c] sm:$0xf]
        %v1479 = vld [vmem:[#allocation2] sm:$0xff]
        %v1480 = vld [vmem:[#allocation2 + $0x8] sm:$0xff]
        %v1481 = vld [vmem:[#allocation2 + $0x10] sm:$0xff]
        %v1482 = vld [vmem:[#allocation2 + $0x18] sm:$0xff]
        %v1483 = vld [vmem:[#allocation2 + $0x20] sm:$0xff]
        %v1484 = vld [vmem:[#allocation2 + $0x28] sm:$0xff]
        %v1485 = vld [vmem:[#allocation2 + $0x30] sm:$0xff]
        %v1486 = vld [vmem:[#allocation2 + $0x38] sm:$0xff]
        %v1487 = vld [vmem:[#allocation2 + $0x40] sm:$0xff]
        %v1488 = vld [vmem:[#allocation2 + $0x48] sm:$0xff]
        %v1489 = vld [vmem:[#allocation2 + $0x50] sm:$0xff]
        %v1490 = vld [vmem:[#allocation2 + $0x58] sm:$0xff]
        %v1491 = vld [vmem:[#allocation2 + $0x60] sm:$0xff]
        %v1492 = vld [vmem:[#allocation2 + $0x68] sm:$0xff]
        %v1493 = vld [vmem:[#allocation2 + $0x70] sm:$0xff]
        %v1494 = vld [vmem:[#allocation2 + $0x78] sm:$0xff]
        %v1495 = vld [vmem:[#allocation2 + $0x80] sm:$0xff]
        %v1496 = vld [vmem:[#allocation2 + $0x88] sm:$0xff]
        %v1497 = vld [vmem:[#allocation2 + $0x90] sm:$0xff]
        %v1498 = vld [vmem:[#allocation2 + $0x98] sm:$0xff]
        %v1499 = vld [vmem:[#allocation2 + $0xa0] sm:$0xff]
        %v1500 = vld [vmem:[#allocation2 + $0xa8] sm:$0xff]
        %v1501 = vld [vmem:[#allocation2 + $0xb0] sm:$0xff]
        %v1502 = vld [vmem:[#allocation2 + $0xb8] sm:$0xff]
        %v1503 = vld [vmem:[#allocation2 + $0xc0] sm:$0xff]
        %v1504 = vld [vmem:[#allocation2 + $0xc8] sm:$0xff]
        %v1505 = vld [vmem:[#allocation2 + $0xd0] sm:$0xff]
        %v1506 = vld [vmem:[#allocation2 + $0xd8] sm:$0xff]
        %v1507 = vld [vmem:[#allocation2 + $0xe0] sm:$0xff]
        %v1508 = vld [vmem:[#allocation2 + $0xe8] sm:$0xff]
        %v1509 = vld [vmem:[#allocation2 + $0xf0] sm:$0xff]
        %v1510 = vld [vmem:[#allocation2 + $0xf8] sm:$0xff]
        %v1511 = vld [vmem:[#allocation2 + $0x100] sm:$0xff]
        %v1512 = vld [vmem:[#allocation2 + $0x108] sm:$0xff]
        %v1513 = vld [vmem:[#allocation2 + $0x110] sm:$0xff]
        %v1514 = vld [vmem:[#allocation2 + $0x118] sm:$0xff]
        %v1515 = vld [vmem:[#allocation2 + $0x120] sm:$0xff]
        %v1516 = vld [vmem:[#allocation2 + $0x128] sm:$0xff]
        %v1517 = vld [vmem:[#allocation2 + $0x130] sm:$0xff]
        %v1518 = vld [vmem:[#allocation2 + $0x138] sm:$0xff]
        %v1519 = vld [vmem:[#allocation2 + $0x140] sm:$0xff]
        %v1520 = vld [vmem:[#allocation2 + $0x148] sm:$0xff]
        %v1521 = vld [vmem:[#allocation2 + $0x150] sm:$0xff]
        %v1522 = vld [vmem:[#allocation2 + $0x158] sm:$0xff]
        %v1523 = vld [vmem:[#allocation2 + $0x160] sm:$0xff]
        %v1524 = vld [vmem:[#allocation2 + $0x168] sm:$0xff]
        %v1525 = vld [vmem:[#allocation2 + $0x170] sm:$0xff]
        %v1526 = vld [vmem:[#allocation2 + $0x178] sm:$0xff]
        %v1527 = vld [vmem:[#allocation2 + $0x180] sm:$0xff]
        %v1528 = vld [vmem:[#allocation2 + $0x188] sm:$0xff]
        %v1529 = vld [vmem:[#allocation2 + $0x190] sm:$0xff]
        %v1530 = vld [vmem:[#allocation2 + $0x198] sm:$0xff]
        %v1531 = vld [vmem:[#allocation2 + $0x1a0] sm:$0xff]
        %v1532 = vld [vmem:[#allocation2 + $0x1a8] sm:$0xff]
        %s1533 = scalar_lea.vmem %s2, 32
        %v1534 = vld [vmem:[%s1533] sm:$0xff]
        %v1535 = vld [vmem:[%s1533 + $0x8] sm:$0xff]
        %v1536 = vld [vmem:[%s1533 + $0x10] sm:$0xff]
        %v1537 = vld [vmem:[%s1533 + $0x18] sm:$0xff]
        %1539 = vset.pattern.permute.xlu0 0
        %1540 = vperm.xlu0 %1539, %v1534
        %v1541 = vpop.permute.xlu0 %1540
        %1544 = vset.pattern.permute.xlu0 0
        %1545 = vperm.xlu0 %1544, %v1535
        %v1546 = vpop.permute.xlu0 %1545
        %1549 = vset.pattern.permute.xlu0 0
        %1550 = vperm.xlu0 %1549, %v1536
        %v1551 = vpop.permute.xlu0 %1550
        %1554 = vset.pattern.permute.xlu0 0
        %1555 = vperm.xlu0 %1554, %v1537
        %v1556 = vpop.permute.xlu0 %1555
        %v1566 = vunpack.c.l.b16 %v1471
        %v1567 = vunpack.c.h.b16 %v1471
        %v1568 = vunpack.c.l.b16 %v1472
        %v1569 = vunpack.c.l.b16 %v1473
        %v1570 = vunpack.c.h.b16 %v1473
        %v1571 = vunpack.c.l.b16 %v1474
        %v1572 = vunpack.c.l.b16 %v1475
        %v1573 = vunpack.c.h.b16 %v1475
        %v1574 = vunpack.c.l.b16 %v1476
        %v1575 = vunpack.c.l.b16 %v1477
        %v1576 = vunpack.c.h.b16 %v1477
        %v1577 = vunpack.c.l.b16 %v1478
        %v1578 = vpack.c.b16 %v1569, %v1566
        %v1579 = vpack.c.b16 %v1570, %v1567
        %v1580 = vpack.c.b16 %v1571, %v1568
        %v1581 = vpack.c.b16 %v1575, %v1572
        %v1582 = vpack.c.b16 %v1576, %v1573
        %v1583 = vpack.c.b16 %v1577, %v1574
        %v1589 = vsel %vm747, %v1580, 0
        %v1592 = vsel %vm747, %v1583, 0
        %1594 = vmatprep.subr.bf16.mxu0 %v1480
        %1595 = vmatpush1.bf16.msra.mxu0 %v1479
        %1596 = vmatprep.subr.bf16.mxu0 %v1483
        %1597 = vmatpush1.bf16.msra.mxu0 %v1482
        %1598 = vmatprep.subr.bf16.mxu0 %v1486
        %1599 = vmatpush1.bf16.msra.mxu0 %v1485
        %1600 = vmatprep.subr.bf16.mxu0 %v1489
        %1601 = vmatpush1.bf16.msra.mxu0 %v1488
        %1602 = vmatprep.subr.bf16.mxu0 %v1492
        %1603 = vmatpush1.bf16.msra.mxu0 %v1491
        %1604 = vmatprep.subr.bf16.mxu0 %v1495
        %1605 = vmatpush1.bf16.msra.mxu0 %v1494
        %1606 = vmatprep.subr.bf16.mxu0 %v1498
        %1607 = vmatpush1.bf16.msra.mxu0 %v1497
        %1608 = vmatprep.subr.bf16.mxu0 %v1501
        %1609 = vmatpush1.bf16.msra.mxu0 %v1500
        %1610 = vmatprep.subr.bf16.mxu0 %v1504
        %1611 = vmatpush1.bf16.msra.mxu0 %v1503
        %1612 = vmatprep.subr.bf16.mxu0 %v1507
        %1613 = vmatpush1.bf16.msra.mxu0 %v1506
        %1614 = vmatprep.subr.bf16.mxu0 %v1510
        %1615 = vmatpush1.bf16.msra.mxu0 %v1509
        %1616 = vmatprep.subr.bf16.mxu0 %v1513
        %1617 = vmatpush1.bf16.msra.mxu0 %v1512
        %1618 = vmatprep.subr.bf16.mxu0 %v1516
        %1619 = vmatpush1.bf16.msra.mxu0 %v1515
        %1620 = vmatprep.subr.bf16.mxu0 %v1519
        %1621 = vmatpush1.bf16.msra.mxu0 %v1518
        %1622 = vmatprep.subr.bf16.mxu0 %v1522
        %1623 = vmatpush1.bf16.msra.mxu0 %v1521
        %1624 = vmatprep.subr.bf16.mxu0 %v1525
        %1625 = vmatpush1.bf16.msra.mxu0 %v1524
        %1626 = vmatprep.mubr.bf16.mxu0 %v1579
        %1627 = vmatmul.mubr.bf16.gmra.mrb[0].mxu0 %v1578
        %v1628 = vpop.f32.mrb[0].mxu0
        %v1629 = vadd.f32 %v1541, %v1628
        %v1630 = vpop.f32.mrb[0].mxu0
        %v1631 = vadd.f32 %v1541, %v1630
        %v1632 = vpop.f32.mrb[0].mxu0
        %v1633 = vadd.f32 %v1546, %v1632
        %v1634 = vpop.f32.mrb[0].mxu0
        %v1635 = vadd.f32 %v1546, %v1634
        %1636 = vmatprep.mubr.bf16.mxu0 %v1582
        %1637 = vmatmul.mubr.bf16.gmra.mrb[0].mxu0 %v1581
        %v1638 = vpop.f32.mrb[0].mxu0
        %v1639 = vadd.f32 %v1551, %v1638
        %v1640 = vpop.f32.mrb[0].mxu0
        %v1641 = vadd.f32 %v1551, %v1640
        %v1642 = vpop.f32.mrb[0].mxu0
        %v1643 = vadd.f32 %v1556, %v1642
        %v1644 = vpop.f32.mrb[0].mxu0
        %v1645 = vadd.f32 %v1556, %v1644
        %1646 = vdwg.mxu0
        %1647 = vmatprep.subr.bf16.mxu0 %v1528
        %1648 = vmatpush1.bf16.msra.mxu0 %v1527
        %1649 = vmatprep.subr.bf16.mxu0 %v1531
        %1650 = vmatpush1.bf16.msra.mxu0 %v1530
        %1651 = vmatprep.subr.bf16.mxu0 0
        %1652 = vmatpush1.bf16.msra.mxu0 0
        %1653 = vmatprep.subr.bf16.mxu0 0
        %1654 = vmatpush1.bf16.msra.mxu0 0
        %1655 = vmatprep.subr.bf16.mxu0 0
        %1656 = vmatpush1.bf16.msra.mxu0 0
        %1657 = vmatprep.subr.bf16.mxu0 0
        %1658 = vmatpush1.bf16.msra.mxu0 0
        %1659 = vmatprep.subr.bf16.mxu0 0
        %1660 = vmatpush1.bf16.msra.mxu0 0
        %1661 = vmatprep.subr.bf16.mxu0 0
        %1662 = vmatpush1.bf16.msra.mxu0 0
        %1663 = vmatprep.subr.bf16.mxu0 0
        %1664 = vmatpush1.bf16.msra.mxu0 0
        %1665 = vmatprep.subr.bf16.mxu0 0
        %1666 = vmatpush1.bf16.msra.mxu0 0
        %1667 = vmatprep.subr.bf16.mxu0 0
        %1668 = vmatpush1.bf16.msra.mxu0 0
        %1669 = vmatprep.subr.bf16.mxu0 0
        %1670 = vmatpush1.bf16.msra.mxu0 0
        %1671 = vmatprep.subr.bf16.mxu0 0
        %1672 = vmatpush1.bf16.msra.mxu0 0
        %1673 = vmatprep.subr.bf16.mxu0 0
        %1674 = vmatpush1.bf16.msra.mxu0 0
        %1675 = vmatprep.subr.bf16.mxu0 0
        %1676 = vmatpush1.bf16.msra.mxu0 0
        %1677 = vmatprep.subr.bf16.mxu0 0
        %1678 = vmatpush1.bf16.msra.mxu0 0
        %1679 = vmatprep.mubr.bf16.mxu0 0
        %1680 = vmatmul.mubr.bf16.gmra.mrb[0].mxu0 %v1589
        %v1681 = vpop.f32.mrb[0].mxu0
        %v1682 = vadd.f32 %v1629, %v1681
        %v1683 = vpop.f32.mrb[0].mxu0
        %v1684 = vadd.f32 %v1631, %v1683
        %v1685 = vpop.f32.mrb[0].mxu0
        %v1686 = vadd.f32 %v1633, %v1685
        %v1687 = vpop.f32.mrb[0].mxu0
        %v1688 = vadd.f32 %v1635, %v1687
        %1689 = vmatprep.mubr.bf16.mxu0 0
        %1690 = vmatmul.mubr.bf16.gmra.mrb[0].mxu0 %v1592
        %v1691 = vpop.f32.mrb[0].mxu0
        %v1692 = vadd.f32 %v1639, %v1691
        %v1693 = vpop.f32.mrb[0].mxu0
        %v1694 = vadd.f32 %v1641, %v1693
        %v1695 = vpop.f32.mrb[0].mxu0
        %v1696 = vadd.f32 %v1643, %v1695
        %v1697 = vpop.f32.mrb[0].mxu0
        %v1698 = vadd.f32 %v1645, %v1697
        %1699 = vdwg.mxu0
        %1700 = vmatprep.subr.bf16.mxu0 0
        %1701 = vmatpush1.bf16.msra.mxu0 %v1481
        %1702 = vmatprep.subr.bf16.mxu0 0
        %1703 = vmatpush1.bf16.msra.mxu0 %v1484
        %1704 = vmatprep.subr.bf16.mxu0 0
        %1705 = vmatpush1.bf16.msra.mxu0 %v1487
        %1706 = vmatprep.subr.bf16.mxu0 0
        %1707 = vmatpush1.bf16.msra.mxu0 %v1490
        %1708 = vmatprep.subr.bf16.mxu0 0
        %1709 = vmatpush1.bf16.msra.mxu0 %v1493
        %1710 = vmatprep.subr.bf16.mxu0 0
        %1711 = vmatpush1.bf16.msra.mxu0 %v1496
        %1712 = vmatprep.subr.bf16.mxu0 0
        %1713 = vmatpush1.bf16.msra.mxu0 %v1499
        %1714 = vmatprep.subr.bf16.mxu0 0
        %1715 = vmatpush1.bf16.msra.mxu0 %v1502
        %1716 = vmatprep.subr.bf16.mxu0 0
        %1717 = vmatpush1.bf16.msra.mxu0 %v1505
        %1718 = vmatprep.subr.bf16.mxu0 0
        %1719 = vmatpush1.bf16.msra.mxu0 %v1508
        %1720 = vmatprep.subr.bf16.mxu0 0
        %1721 = vmatpush1.bf16.msra.mxu0 %v1511
        %1722 = vmatprep.subr.bf16.mxu0 0
        %1723 = vmatpush1.bf16.msra.mxu0 %v1514
        %1724 = vmatprep.subr.bf16.mxu0 0
        %1725 = vmatpush1.bf16.msra.mxu0 %v1517
        %1726 = vmatprep.subr.bf16.mxu0 0
        %1727 = vmatpush1.bf16.msra.mxu0 %v1520
        %1728 = vmatprep.subr.bf16.mxu0 0
        %1729 = vmatpush1.bf16.msra.mxu0 %v1523
        %1730 = vmatprep.subr.bf16.mxu0 0
        %1731 = vmatpush1.bf16.msra.mxu0 %v1526
        %1732 = vmatprep.mubr.bf16.mxu0 %v1579
        %1733 = vmatmul.mubr.bf16.gmra.mrb[0].mxu0 %v1578
        %v1734 = vpop.f32.mrb[0].mxu0
        %v1735 = vadd.f32 %v1541, %v1734
        %v1736 = vpop.f32.mrb[0].mxu0
        %v1737 = vpop.f32.mrb[0].mxu0
        %v1738 = vadd.f32 %v1546, %v1737
        %v1739 = vpop.f32.mrb[0].mxu0
        %1740 = vmatprep.mubr.bf16.mxu0 %v1582
        %1741 = vmatmul.mubr.bf16.gmra.mrb[0].mxu0 %v1581
        %v1742 = vpop.f32.mrb[0].mxu0
        %v1743 = vadd.f32 %v1551, %v1742
        %v1744 = vpop.f32.mrb[0].mxu0
        %v1745 = vpop.f32.mrb[0].mxu0
        %v1746 = vadd.f32 %v1556, %v1745
        %v1747 = vpop.f32.mrb[0].mxu0
        %1748 = vdwg.mxu0
        %1749 = vmatprep.subr.bf16.mxu0 0
        %1750 = vmatpush1.bf16.msra.mxu0 %v1529
        %1751 = vmatprep.subr.bf16.mxu0 0
        %1752 = vmatpush1.bf16.msra.mxu0 %v1532
        %1753 = vmatprep.subr.bf16.mxu0 0
        %1754 = vmatpush1.bf16.msra.mxu0 0
        %1755 = vmatprep.subr.bf16.mxu0 0
        %1756 = vmatpush1.bf16.msra.mxu0 0
        %1757 = vmatprep.subr.bf16.mxu0 0
        %1758 = vmatpush1.bf16.msra.mxu0 0
        %1759 = vmatprep.subr.bf16.mxu0 0
        %1760 = vmatpush1.bf16.msra.mxu0 0
        %1761 = vmatprep.subr.bf16.mxu0 0
        %1762 = vmatpush1.bf16.msra.mxu0 0
        %1763 = vmatprep.subr.bf16.mxu0 0
        %1764 = vmatpush1.bf16.msra.mxu0 0
        %1765 = vmatprep.subr.bf16.mxu0 0
        %1766 = vmatpush1.bf16.msra.mxu0 0
        %1767 = vmatprep.subr.bf16.mxu0 0
        %1768 = vmatpush1.bf16.msra.mxu0 0
        %1769 = vmatprep.subr.bf16.mxu0 0
        %1770 = vmatpush1.bf16.msra.mxu0 0
        %1771 = vmatprep.subr.bf16.mxu0 0
        %1772 = vmatpush1.bf16.msra.mxu0 0
        %1773 = vmatprep.subr.bf16.mxu0 0
        %1774 = vmatpush1.bf16.msra.mxu0 0
        %1775 = vmatprep.subr.bf16.mxu0 0
        %1776 = vmatpush1.bf16.msra.mxu0 0
        %1777 = vmatprep.subr.bf16.mxu0 0
        %1778 = vmatpush1.bf16.msra.mxu0 0
        %1779 = vmatprep.subr.bf16.mxu0 0
        %1780 = vmatpush1.bf16.msra.mxu0 0
        %1781 = vmatprep.mubr.bf16.mxu0 0
        %1782 = vmatmul.mubr.bf16.gmra.mrb[0].mxu0 %v1589
        %v1783 = vpop.f32.mrb[0].mxu0
        %v1784 = vadd.f32 %v1735, %v1783
        %v1785 = vpop.f32.mrb[0].mxu0
        %v1786 = vpop.f32.mrb[0].mxu0
        %v1787 = vadd.f32 %v1738, %v1786
        %v1788 = vpop.f32.mrb[0].mxu0
        %1789 = vmatprep.mubr.bf16.mxu0 0
        %1790 = vmatmul.mubr.bf16.gmra.mrb[0].mxu0 %v1592
        %v1791 = vpop.f32.mrb[0].mxu0
        %v1792 = vadd.f32 %v1743, %v1791
        %v1793 = vpop.f32.mrb[0].mxu0
        %v1794 = vpop.f32.mrb[0].mxu0
        %v1795 = vadd.f32 %v1746, %v1794
        %v1796 = vpop.f32.mrb[0].mxu0
        %1797 = vdwg.mxu0
        %vm1798 = vcmp.ge.f32.partialorder %v1682, 0.0
        %vm1799 = vcmp.ge.f32.partialorder %v1684, 0.0
        %vm1800 = vcmp.ge.f32.partialorder %v1784, 0.0
        %vm1801 = vcmp.ge.f32.partialorder %v1686, 0.0
        %vm1802 = vcmp.ge.f32.partialorder %v1688, 0.0
        %vm1803 = vcmp.ge.f32.partialorder %v1787, 0.0
        %vm1804 = vcmp.ge.f32.partialorder %v1692, 0.0
        %vm1805 = vcmp.ge.f32.partialorder %v1694, 0.0
        %vm1806 = vcmp.ge.f32.partialorder %v1792, 0.0
        %vm1807 = vcmp.ge.f32.partialorder %v1696, 0.0
        %vm1808 = vcmp.ge.f32.partialorder %v1698, 0.0
        %vm1809 = vcmp.ge.f32.partialorder %v1795, 0.0
        %1810 = vset.pattern.permute.xlu0 1
        %1811 = vperm.xlu0 %1810, %v1534
        %v1812 = vpop.permute.xlu0 %1811
        %1814 = vset.pattern.permute.xlu0 1
        %1815 = vperm.xlu0 %1814, %v1535
        %v1816 = vpop.permute.xlu0 %1815
        %1818 = vset.pattern.permute.xlu0 1
        %1819 = vperm.xlu0 %1818, %v1536
        %v1820 = vpop.permute.xlu0 %1819
        %1822 = vset.pattern.permute.xlu0 1
        %1823 = vperm.xlu0 %1822, %v1537
        %v1824 = vpop.permute.xlu0 %1823
        %v1826 = vmul.f32 %v1812, %v1682
        %v1827 = vmul.f32 %v1812, %v1684
        %v1828 = vmul.f32 %v1812, %v1784
        %v1829 = vmul.f32 %v1816, %v1686
        %v1830 = vmul.f32 %v1816, %v1688
        %v1831 = vmul.f32 %v1816, %v1787
        %v1832 = vmul.f32 %v1820, %v1692
        %v1833 = vmul.f32 %v1820, %v1694
        %v1834 = vmul.f32 %v1820, %v1792
        %v1835 = vmul.f32 %v1824, %v1696
        %v1836 = vmul.f32 %v1824, %v1698
        %v1837 = vmul.f32 %v1824, %v1795
        %v1838 = vsel %vm1798, %v1682, %v1826
        %v1839 = vsel %vm1799, %v1684, %v1827
        %v1840 = vsel %vm1800, %v1784, %v1828
        %v1841 = vsel %vm1801, %v1686, %v1829
        %v1842 = vsel %vm1802, %v1688, %v1830
        %v1843 = vsel %vm1803, %v1787, %v1831
        %v1844 = vsel %vm1804, %v1692, %v1832
        %v1845 = vsel %vm1805, %v1694, %v1833
        %v1846 = vsel %vm1806, %v1792, %v1834
        %v1847 = vsel %vm1807, %v1696, %v1835
        %v1848 = vsel %vm1808, %v1698, %v1836
        %v1849 = vsel %vm1809, %v1795, %v1837
        %v1850 = vmul.f32 %v1838, %v1014
        %v1851 = vmul.f32 %v1839, %v1018
        %v1852 = vmul.f32 %v1840, %v1022
        %v1853 = vmul.f32 %v1841, %v1014
        %v1854 = vmul.f32 %v1842, %v1018
        %v1855 = vmul.f32 %v1843, %v1022
        %v1856 = vmul.f32 %v1844, %v1014
        %v1857 = vmul.f32 %v1845, %v1018
        %v1858 = vmul.f32 %v1846, %v1022
        %v1859 = vmul.f32 %v1847, %v1014
        %v1860 = vmul.f32 %v1848, %v1018
        %v1861 = vmul.f32 %v1849, %v1022
        %v1862 = vld [vmem:[#allocation4] sm:$0xff]
        %v1863 = vld [vmem:[#allocation4 + $0x8] sm:$0xff]
        %v1864 = vld [vmem:[#allocation4 + $0x10] sm:$0xff]
        %v1865 = vld [vmem:[#allocation4 + $0x18] sm:$0xff]
        %v1866 = vld [vmem:[#allocation4 + $0x20] sm:$0xff]
        %v1867 = vld [vmem:[#allocation4 + $0x28] sm:$0xff]
        %v1868 = vld [vmem:[#allocation4 + $0x30] sm:$0xff]
        %v1869 = vld [vmem:[#allocation4 + $0x38] sm:$0xff]
        %v1870 = vld [vmem:[#allocation4 + $0x40] sm:$0xff]
        %v1871 = vld [vmem:[#allocation4 + $0x48] sm:$0xff]
        %v1872 = vld [vmem:[#allocation4 + $0x50] sm:$0xff]
        %v1873 = vld [vmem:[#allocation4 + $0x58] sm:$0xff]
        %1874 = vrot.lane.b32.xlu0 %v1850, 19
        %v1875 = vpop.permute.xlu0 %1874
        %1876 = vrot.lane.b32.xlu0 %v1853, 19
        %v1877 = vpop.permute.xlu0 %1876
        %1878 = vrot.lane.b32.xlu0 %v1856, 19
        %v1879 = vpop.permute.xlu0 %1878
        %1880 = vrot.lane.b32.xlu0 %v1859, 19
        %v1881 = vpop.permute.xlu0 %1880
        %1882 = vrot.lane.b32.xlu0 %v1851, 19
        %v1883 = vpop.permute.xlu0 %1882
        %1884 = vrot.lane.b32.xlu0 %v1854, 19
        %v1885 = vpop.permute.xlu0 %1884
        %1886 = vrot.lane.b32.xlu0 %v1857, 19
        %v1887 = vpop.permute.xlu0 %1886
        %1888 = vrot.lane.b32.xlu0 %v1860, 19
        %v1889 = vpop.permute.xlu0 %1888
        %1890 = vrot.lane.b32.xlu0 %v1852, 19
        %v1891 = vpop.permute.xlu0 %1890
        %1892 = vrot.lane.b32.xlu0 %v1855, 19
        %v1893 = vpop.permute.xlu0 %1892
        %1894 = vrot.lane.b32.xlu0 %v1858, 19
        %v1895 = vpop.permute.xlu0 %1894
        %1896 = vrot.lane.b32.xlu0 %v1861, 19
        %v1897 = vpop.permute.xlu0 %1896
        %v1898 = vsel %vm251, %v1883, %v1891
        %v1899 = vsel %vm251, %v1885, %v1893
        %v1900 = vsel %vm251, %v1887, %v1895
        %v1901 = vsel %vm251, %v1889, %v1897
        %v1902 = vsel %vm251, %v1875, %v1883
        %v1903 = vsel %vm251, %v1877, %v1885
        %v1904 = vsel %vm251, %v1879, %v1887
        %v1905 = vsel %vm251, %v1881, %v1889
        %v1906 = vsel %vm251, %v1891, %v1875
        %v1907 = vsel %vm251, %v1893, %v1877
        %v1908 = vsel %vm251, %v1895, %v1879
        %v1909 = vsel %vm251, %v1897, %v1881
        %v1910 = vpack.c.bf16 %v1907, %v1906
        %v1911 = vpack.c.bf16 %v1903, %v1902
        %v1912 = vpack.c.bf16 %v1899, %v1898
        %v1913 = vpack.c.bf16 %v1909, %v1908
        %v1914 = vpack.c.bf16 %v1905, %v1904
        %v1915 = vpack.c.bf16 %v1901, %v1900
        %1916 = vst [vmem:[#allocation2] sm:$0xff] %v1910
        %1917 = vst [vmem:[#allocation2 + $0x8] sm:$0xff] %v1911
        %1918 = vst [vmem:[#allocation2 + $0x10] sm:$0xff] %v1912
        %1919 = vst [vmem:[#allocation2 + $0x18] sm:$0xff] %v1913
        %1920 = vst [vmem:[#allocation2 + $0x20] sm:$0xff] %v1914
        %1921 = vst [vmem:[#allocation2 + $0x28] sm:$0xff] %v1915
        %1922 = vrot.lane.b32.xlu0 %v1850, 18
        %v1923 = vpop.permute.xlu0 %1922
        %1924 = vrot.lane.b32.xlu0 %v1853, 18
        %v1925 = vpop.permute.xlu0 %1924
        %1926 = vrot.lane.b32.xlu0 %v1856, 18
        %v1927 = vpop.permute.xlu0 %1926
        %1928 = vrot.lane.b32.xlu0 %v1859, 18
        %v1929 = vpop.permute.xlu0 %1928
        %1930 = vrot.lane.b32.xlu0 %v1851, 18
        %v1931 = vpop.permute.xlu0 %1930
        %1932 = vrot.lane.b32.xlu0 %v1854, 18
        %v1933 = vpop.permute.xlu0 %1932
        %1934 = vrot.lane.b32.xlu0 %v1857, 18
        %v1935 = vpop.permute.xlu0 %1934
        %1936 = vrot.lane.b32.xlu0 %v1860, 18
        %v1937 = vpop.permute.xlu0 %1936
        %1938 = vrot.lane.b32.xlu0 %v1852, 18
        %v1939 = vpop.permute.xlu0 %1938
        %1940 = vrot.lane.b32.xlu0 %v1855, 18
        %v1941 = vpop.permute.xlu0 %1940
        %1942 = vrot.lane.b32.xlu0 %v1858, 18
        %v1943 = vpop.permute.xlu0 %1942
        %1944 = vrot.lane.b32.xlu0 %v1861, 18
        %v1945 = vpop.permute.xlu0 %1944
        %v1946 = vsel %vm300, %v1931, %v1939
        %v1947 = vsel %vm300, %v1933, %v1941
        %v1948 = vsel %vm300, %v1935, %v1943
        %v1949 = vsel %vm300, %v1937, %v1945
        %v1950 = vsel %vm300, %v1923, %v1931
        %v1951 = vsel %vm300, %v1925, %v1933
        %v1952 = vsel %vm300, %v1927, %v1935
        %v1953 = vsel %vm300, %v1929, %v1937
        %v1954 = vsel %vm300, %v1939, %v1923
        %v1955 = vsel %vm300, %v1941, %v1925
        %v1956 = vsel %vm300, %v1943, %v1927
        %v1957 = vsel %vm300, %v1945, %v1929
        %v1958 = vpack.c.bf16 %v1955, %v1954
        %v1959 = vpack.c.bf16 %v1951, %v1950
        %v1960 = vpack.c.bf16 %v1947, %v1946
        %v1961 = vpack.c.bf16 %v1957, %v1956
        %v1962 = vpack.c.bf16 %v1953, %v1952
        %v1963 = vpack.c.bf16 %v1949, %v1948
        %1964 = vst [vmem:[#allocation2 + $0x30] sm:$0xff] %v1958
        %1965 = vst [vmem:[#allocation2 + $0x38] sm:$0xff] %v1959
        %1966 = vst [vmem:[#allocation2 + $0x40] sm:$0xff] %v1960
        %1967 = vst [vmem:[#allocation2 + $0x48] sm:$0xff] %v1961
        %1968 = vst [vmem:[#allocation2 + $0x50] sm:$0xff] %v1962
        %1969 = vst [vmem:[#allocation2 + $0x58] sm:$0xff] %v1963
        %1970 = vrot.lane.b32.xlu0 %v1850, 17
        %v1971 = vpop.permute.xlu0 %1970
        %1972 = vrot.lane.b32.xlu0 %v1853, 17
        %v1973 = vpop.permute.xlu0 %1972
        %1974 = vrot.lane.b32.xlu0 %v1856, 17
        %v1975 = vpop.permute.xlu0 %1974
        %1976 = vrot.lane.b32.xlu0 %v1859, 17
        %v1977 = vpop.permute.xlu0 %1976
        %1978 = vrot.lane.b32.xlu0 %v1851, 17
        %v1979 = vpop.permute.xlu0 %1978
        %1980 = vrot.lane.b32.xlu0 %v1854, 17
        %v1981 = vpop.permute.xlu0 %1980
        %1982 = vrot.lane.b32.xlu0 %v1857, 17
        %v1983 = vpop.permute.xlu0 %1982
        %1984 = vrot.lane.b32.xlu0 %v1860, 17
        %v1985 = vpop.permute.xlu0 %1984
        %1986 = vrot.lane.b32.xlu0 %v1852, 17
        %v1987 = vpop.permute.xlu0 %1986
        %1988 = vrot.lane.b32.xlu0 %v1855, 17
        %v1989 = vpop.permute.xlu0 %1988
        %1990 = vrot.lane.b32.xlu0 %v1858, 17
        %v1991 = vpop.permute.xlu0 %1990
        %1992 = vrot.lane.b32.xlu0 %v1861, 17
        %v1993 = vpop.permute.xlu0 %1992
        %v1994 = vsel %vm349, %v1979, %v1987
        %v1995 = vsel %vm349, %v1981, %v1989
        %v1996 = vsel %vm349, %v1983, %v1991
        %v1997 = vsel %vm349, %v1985, %v1993
        %v1998 = vsel %vm349, %v1971, %v1979
        %v1999 = vsel %vm349, %v1973, %v1981
        %v2000 = vsel %vm349, %v1975, %v1983
        %v2001 = vsel %vm349, %v1977, %v1985
        %v2002 = vsel %vm349, %v1987, %v1971
        %v2003 = vsel %vm349, %v1989, %v1973
        %v2004 = vsel %vm349, %v1991, %v1975
        %v2005 = vsel %vm349, %v1993, %v1977
        %v2006 = vpack.c.bf16 %v2003, %v2002
        %v2007 = vpack.c.bf16 %v1999, %v1998
        %v2008 = vpack.c.bf16 %v1995, %v1994
        %v2009 = vpack.c.bf16 %v2005, %v2004
        %v2010 = vpack.c.bf16 %v2001, %v2000
        %v2011 = vpack.c.bf16 %v1997, %v1996
        %2012 = vst [vmem:[#allocation2 + $0x60] sm:$0xff] %v2006
        %2013 = vst [vmem:[#allocation2 + $0x68] sm:$0xff] %v2007
        %2014 = vst [vmem:[#allocation2 + $0x70] sm:$0xff] %v2008
        %2015 = vst [vmem:[#allocation2 + $0x78] sm:$0xff] %v2009
        %2016 = vst [vmem:[#allocation2 + $0x80] sm:$0xff] %v2010
        %2017 = vst [vmem:[#allocation2 + $0x88] sm:$0xff] %v2011
        %2018 = vrot.lane.b32.xlu0 %v1850, 1
        %v2019 = vpop.permute.xlu0 %2018
        %2020 = vrot.lane.b32.xlu0 %v1853, 1
        %v2021 = vpop.permute.xlu0 %2020
        %2022 = vrot.lane.b32.xlu0 %v1856, 1
        %v2023 = vpop.permute.xlu0 %2022
        %2024 = vrot.lane.b32.xlu0 %v1859, 1
        %v2025 = vpop.permute.xlu0 %2024
        %2026 = vrot.lane.b32.xlu0 %v1851, 1
        %v2027 = vpop.permute.xlu0 %2026
        %2028 = vrot.lane.b32.xlu0 %v1854, 1
        %v2029 = vpop.permute.xlu0 %2028
        %2030 = vrot.lane.b32.xlu0 %v1857, 1
        %v2031 = vpop.permute.xlu0 %2030
        %2032 = vrot.lane.b32.xlu0 %v1860, 1
        %v2033 = vpop.permute.xlu0 %2032
        %2034 = vrot.lane.b32.xlu0 %v1852, 1
        %v2035 = vpop.permute.xlu0 %2034
        %2036 = vrot.lane.b32.xlu0 %v1855, 1
        %v2037 = vpop.permute.xlu0 %2036
        %2038 = vrot.lane.b32.xlu0 %v1858, 1
        %v2039 = vpop.permute.xlu0 %2038
        %2040 = vrot.lane.b32.xlu0 %v1861, 1
        %v2041 = vpop.permute.xlu0 %2040
        %v2042 = vsel %vm398, %v2027, %v2035
        %v2043 = vsel %vm398, %v2029, %v2037
        %v2044 = vsel %vm398, %v2031, %v2039
        %v2045 = vsel %vm398, %v2033, %v2041
        %v2046 = vsel %vm398, %v2019, %v2027
        %v2047 = vsel %vm398, %v2021, %v2029
        %v2048 = vsel %vm398, %v2023, %v2031
        %v2049 = vsel %vm398, %v2025, %v2033
        %v2050 = vsel %vm398, %v2035, %v2019
        %v2051 = vsel %vm398, %v2037, %v2021
        %v2052 = vsel %vm398, %v2039, %v2023
        %v2053 = vsel %vm398, %v2041, %v2025
        %v2054 = vpack.c.bf16 %v2051, %v2050
        %v2055 = vpack.c.bf16 %v2047, %v2046
        %v2056 = vpack.c.bf16 %v2043, %v2042
        %v2057 = vpack.c.bf16 %v2053, %v2052
        %v2058 = vpack.c.bf16 %v2049, %v2048
        %v2059 = vpack.c.bf16 %v2045, %v2044
        %2060 = vst [vmem:[#allocation2 + $0x90] sm:$0xff] %v2054
        %2061 = vst [vmem:[#allocation2 + $0x98] sm:$0xff] %v2055
        %2062 = vst [vmem:[#allocation2 + $0xa0] sm:$0xff] %v2056
        %2063 = vst [vmem:[#allocation2 + $0xa8] sm:$0xff] %v2057
        %2064 = vst [vmem:[#allocation2 + $0xb0] sm:$0xff] %v2058
        %2065 = vst [vmem:[#allocation2 + $0xb8] sm:$0xff] %v2059
        %v2066 = vpack.c.bf16 %v1853, %v1850
        %v2067 = vpack.c.bf16 %v1854, %v1851
        %v2068 = vpack.c.bf16 %v1855, %v1852
        %v2069 = vpack.c.bf16 %v1859, %v1856
        %v2070 = vpack.c.bf16 %v1860, %v1857
        %v2071 = vpack.c.bf16 %v1861, %v1858
        %2072 = vst [vmem:[#allocation2 + $0xc0] sm:$0xff] %v2066
        %2073 = vst [vmem:[#allocation2 + $0xc8] sm:$0xff] %v2067
        %2074 = vst [vmem:[#allocation2 + $0xd0] sm:$0xff] %v2068
        %2075 = vst [vmem:[#allocation2 + $0xd8] sm:$0xff] %v2069
        %2076 = vst [vmem:[#allocation2 + $0xe0] sm:$0xff] %v2070
        %2077 = vst [vmem:[#allocation2 + $0xe8] sm:$0xff] %v2071
        %2078 = vrot.lane.b32.xlu0 %v1850, 127
        %v2079 = vpop.permute.xlu0 %2078
        %2080 = vrot.lane.b32.xlu0 %v1853, 127
        %v2081 = vpop.permute.xlu0 %2080
        %2082 = vrot.lane.b32.xlu0 %v1856, 127
        %v2083 = vpop.permute.xlu0 %2082
        %2084 = vrot.lane.b32.xlu0 %v1859, 127
        %v2085 = vpop.permute.xlu0 %2084
        %2086 = vrot.lane.b32.xlu0 %v1851, 127
        %v2087 = vpop.permute.xlu0 %2086
        %2088 = vrot.lane.b32.xlu0 %v1854, 127
        %v2089 = vpop.permute.xlu0 %2088
        %2090 = vrot.lane.b32.xlu0 %v1857, 127
        %v2091 = vpop.permute.xlu0 %2090
        %2092 = vrot.lane.b32.xlu0 %v1860, 127
        %v2093 = vpop.permute.xlu0 %2092
        %2094 = vrot.lane.b32.xlu0 %v1852, 127
        %v2095 = vpop.permute.xlu0 %2094
        %2096 = vrot.lane.b32.xlu0 %v1855, 127
        %v2097 = vpop.permute.xlu0 %2096
        %2098 = vrot.lane.b32.xlu0 %v1858, 127
        %v2099 = vpop.permute.xlu0 %2098
        %2100 = vrot.lane.b32.xlu0 %v1861, 127
        %v2101 = vpop.permute.xlu0 %2100
        %v2102 = vsel %vm459, %v2087, %v2095
        %v2103 = vsel %vm459, %v2089, %v2097
        %v2104 = vsel %vm459, %v2091, %v2099
        %v2105 = vsel %vm459, %v2093, %v2101
        %v2106 = vsel %vm459, %v2079, %v2087
        %v2107 = vsel %vm459, %v2081, %v2089
        %v2108 = vsel %vm459, %v2083, %v2091
        %v2109 = vsel %vm459, %v2085, %v2093
        %v2110 = vsel %vm459, %v2095, %v2079
        %v2111 = vsel %vm459, %v2097, %v2081
        %v2112 = vsel %vm459, %v2099, %v2083
        %v2113 = vsel %vm459, %v2101, %v2085
        %v2114 = vpack.c.bf16 %v2107, %v2106
        %v2115 = vpack.c.bf16 %v2103, %v2102
        %v2116 = vpack.c.bf16 %v2111, %v2110
        %v2117 = vpack.c.bf16 %v2109, %v2108
        %v2118 = vpack.c.bf16 %v2105, %v2104
        %v2119 = vpack.c.bf16 %v2113, %v2112
        %2120 = vst [vmem:[#allocation2 + $0xf0] sm:$0xff] %v2114
        %2121 = vst [vmem:[#allocation2 + $0xf8] sm:$0xff] %v2115
        %2122 = vst [vmem:[#allocation2 + $0x100] sm:$0xff] %v2116
        %2123 = vst [vmem:[#allocation2 + $0x108] sm:$0xff] %v2117
        %2124 = vst [vmem:[#allocation2 + $0x110] sm:$0xff] %v2118
        %2125 = vst [vmem:[#allocation2 + $0x118] sm:$0xff] %v2119
        %2126 = vrot.lane.b32.xlu0 %v1850, 111
        %v2127 = vpop.permute.xlu0 %2126
        %2128 = vrot.lane.b32.xlu0 %v1853, 111
        %v2129 = vpop.permute.xlu0 %2128
        %2130 = vrot.lane.b32.xlu0 %v1856, 111
        %v2131 = vpop.permute.xlu0 %2130
        %2132 = vrot.lane.b32.xlu0 %v1859, 111
        %v2133 = vpop.permute.xlu0 %2132
        %2134 = vrot.lane.b32.xlu0 %v1851, 111
        %v2135 = vpop.permute.xlu0 %2134
        %2136 = vrot.lane.b32.xlu0 %v1854, 111
        %v2137 = vpop.permute.xlu0 %2136
        %2138 = vrot.lane.b32.xlu0 %v1857, 111
        %v2139 = vpop.permute.xlu0 %2138
        %2140 = vrot.lane.b32.xlu0 %v1860, 111
        %v2141 = vpop.permute.xlu0 %2140
        %2142 = vrot.lane.b32.xlu0 %v1852, 111
        %v2143 = vpop.permute.xlu0 %2142
        %2144 = vrot.lane.b32.xlu0 %v1855, 111
        %v2145 = vpop.permute.xlu0 %2144
        %2146 = vrot.lane.b32.xlu0 %v1858, 111
        %v2147 = vpop.permute.xlu0 %2146
        %2148 = vrot.lane.b32.xlu0 %v1861, 111
        %v2149 = vpop.permute.xlu0 %2148
        %v2150 = vsel %vm508, %v2135, %v2143
        %v2151 = vsel %vm508, %v2137, %v2145
        %v2152 = vsel %vm508, %v2139, %v2147
        %v2153 = vsel %vm508, %v2141, %v2149
        %v2154 = vsel %vm508, %v2127, %v2135
        %v2155 = vsel %vm508, %v2129, %v2137
        %v2156 = vsel %vm508, %v2131, %v2139
        %v2157 = vsel %vm508, %v2133, %v2141
        %v2158 = vsel %vm508, %v2143, %v2127
        %v2159 = vsel %vm508, %v2145, %v2129
        %v2160 = vsel %vm508, %v2147, %v2131
        %v2161 = vsel %vm508, %v2149, %v2133
        %v2162 = vpack.c.bf16 %v2155, %v2154
        %v2163 = vpack.c.bf16 %v2151, %v2150
        %v2164 = vpack.c.bf16 %v2159, %v2158
        %v2165 = vpack.c.bf16 %v2157, %v2156
        %v2166 = vpack.c.bf16 %v2153, %v2152
        %v2167 = vpack.c.bf16 %v2161, %v2160
        %2168 = vst [vmem:[#allocation2 + $0x120] sm:$0xff] %v2162
        %2169 = vst [vmem:[#allocation2 + $0x128] sm:$0xff] %v2163
        %2170 = vst [vmem:[#allocation2 + $0x130] sm:$0xff] %v2164
        %2171 = vst [vmem:[#allocation2 + $0x138] sm:$0xff] %v2165
        %2172 = vst [vmem:[#allocation2 + $0x140] sm:$0xff] %v2166
        %2173 = vst [vmem:[#allocation2 + $0x148] sm:$0xff] %v2167
        %2174 = vrot.lane.b32.xlu0 %v1850, 110
        %v2175 = vpop.permute.xlu0 %2174
        %2176 = vrot.lane.b32.xlu0 %v1853, 110
        %v2177 = vpop.permute.xlu0 %2176
        %2178 = vrot.lane.b32.xlu0 %v1856, 110
        %v2179 = vpop.permute.xlu0 %2178
        %2180 = vrot.lane.b32.xlu0 %v1859, 110
        %v2181 = vpop.permute.xlu0 %2180
        %2182 = vrot.lane.b32.xlu0 %v1851, 110
        %v2183 = vpop.permute.xlu0 %2182
        %2184 = vrot.lane.b32.xlu0 %v1854, 110
        %v2185 = vpop.permute.xlu0 %2184
        %2186 = vrot.lane.b32.xlu0 %v1857, 110
        %v2187 = vpop.permute.xlu0 %2186
        %2188 = vrot.lane.b32.xlu0 %v1860, 110
        %v2189 = vpop.permute.xlu0 %2188
        %2190 = vrot.lane.b32.xlu0 %v1852, 110
        %v2191 = vpop.permute.xlu0 %2190
        %2192 = vrot.lane.b32.xlu0 %v1855, 110
        %v2193 = vpop.permute.xlu0 %2192
        %2194 = vrot.lane.b32.xlu0 %v1858, 110
        %v2195 = vpop.permute.xlu0 %2194
        %2196 = vrot.lane.b32.xlu0 %v1861, 110
        %v2197 = vpop.permute.xlu0 %2196
        %v2198 = vsel %vm557, %v2183, %v2191
        %v2199 = vsel %vm557, %v2185, %v2193
        %v2200 = vsel %vm557, %v2187, %v2195
        %v2201 = vsel %vm557, %v2189, %v2197
        %v2202 = vsel %vm557, %v2175, %v2183
        %v2203 = vsel %vm557, %v2177, %v2185
        %v2204 = vsel %vm557, %v2179, %v2187
        %v2205 = vsel %vm557, %v2181, %v2189
        %v2206 = vsel %vm557, %v2191, %v2175
        %v2207 = vsel %vm557, %v2193, %v2177
        %v2208 = vsel %vm557, %v2195, %v2179
        %v2209 = vsel %vm557, %v2197, %v2181
        %v2210 = vpack.c.bf16 %v2203, %v2202
        %v2211 = vpack.c.bf16 %v2199, %v2198
        %v2212 = vpack.c.bf16 %v2207, %v2206
        %v2213 = vpack.c.bf16 %v2205, %v2204
        %v2214 = vpack.c.bf16 %v2201, %v2200
        %v2215 = vpack.c.bf16 %v2209, %v2208
        %2216 = vst [vmem:[#allocation2 + $0x150] sm:$0xff] %v2210
        %2217 = vst [vmem:[#allocation2 + $0x158] sm:$0xff] %v2211
        %2218 = vst [vmem:[#allocation2 + $0x160] sm:$0xff] %v2212
        %2219 = vst [vmem:[#allocation2 + $0x168] sm:$0xff] %v2213
        %2220 = vst [vmem:[#allocation2 + $0x170] sm:$0xff] %v2214
        %2221 = vst [vmem:[#allocation2 + $0x178] sm:$0xff] %v2215
        %2222 = vrot.lane.b32.xlu0 %v1850, 109
        %v2223 = vpop.permute.xlu0 %2222
        %2224 = vrot.lane.b32.xlu0 %v1853, 109
        %v2225 = vpop.permute.xlu0 %2224
        %2226 = vrot.lane.b32.xlu0 %v1856, 109
        %v2227 = vpop.permute.xlu0 %2226
        %2228 = vrot.lane.b32.xlu0 %v1859, 109
        %v2229 = vpop.permute.xlu0 %2228
        %2230 = vrot.lane.b32.xlu0 %v1851, 109
        %v2231 = vpop.permute.xlu0 %2230
        %2232 = vrot.lane.b32.xlu0 %v1854, 109
        %v2233 = vpop.permute.xlu0 %2232
        %2234 = vrot.lane.b32.xlu0 %v1857, 109
        %v2235 = vpop.permute.xlu0 %2234
        %2236 = vrot.lane.b32.xlu0 %v1860, 109
        %v2237 = vpop.permute.xlu0 %2236
        %2238 = vrot.lane.b32.xlu0 %v1852, 109
        %v2239 = vpop.permute.xlu0 %2238
        %2240 = vrot.lane.b32.xlu0 %v1855, 109
        %v2241 = vpop.permute.xlu0 %2240
        %2242 = vrot.lane.b32.xlu0 %v1858, 109
        %v2243 = vpop.permute.xlu0 %2242
        %2244 = vrot.lane.b32.xlu0 %v1861, 109
        %v2245 = vpop.permute.xlu0 %2244
        %v2246 = vsel %vm606, %v2231, %v2239
        %v2247 = vsel %vm606, %v2233, %v2241
        %v2248 = vsel %vm606, %v2235, %v2243
        %v2249 = vsel %vm606, %v2237, %v2245
        %v2250 = vsel %vm606, %v2223, %v2231
        %v2251 = vsel %vm606, %v2225, %v2233
        %v2252 = vsel %vm606, %v2227, %v2235
        %v2253 = vsel %vm606, %v2229, %v2237
        %v2254 = vsel %vm606, %v2239, %v2223
        %v2255 = vsel %vm606, %v2241, %v2225
        %v2256 = vsel %vm606, %v2243, %v2227
        %v2257 = vsel %vm606, %v2245, %v2229
        %v2258 = vpack.c.bf16 %v2251, %v2250
        %v2259 = vpack.c.bf16 %v2247, %v2246
        %v2260 = vpack.c.bf16 %v2255, %v2254
        %v2261 = vpack.c.bf16 %v2253, %v2252
        %v2262 = vpack.c.bf16 %v2249, %v2248
        %v2263 = vpack.c.bf16 %v2257, %v2256
        %2264 = vst [vmem:[#allocation2 + $0x180] sm:$0xff] %v2258
        %2265 = vst [vmem:[#allocation2 + $0x188] sm:$0xff] %v2259
        %2266 = vst [vmem:[#allocation2 + $0x190] sm:$0xff] %v2260
        %2267 = vst [vmem:[#allocation2 + $0x198] sm:$0xff] %v2261
        %2268 = vst [vmem:[#allocation2 + $0x1a0] sm:$0xff] %v2262
        %2269 = vst [vmem:[#allocation2 + $0x1a8] sm:$0xff] %v2263
        %s2270 = scalar_lea.vmem [#allocation5], 96
        %v2271 = vld [vmem:[%s2270] sm:$0xff]
        %v2272 = vld [vmem:[%s2270 + $0x8] sm:$0xf]
        %v2273 = vld [vmem:[%s2270 + $0xc] sm:$0xff]
        %v2274 = vld [vmem:[%s2270 + $0x14] sm:$0xf]
        %v2275 = vld [vmem:[%s2270 + $0x18] sm:$0xff]
        %v2276 = vld [vmem:[%s2270 + $0x20] sm:$0xf]
        %v2277 = vld [vmem:[%s2270 + $0x24] sm:$0xff]
        %v2278 = vld [vmem:[%s2270 + $0x2c] sm:$0xf]
        %v2279 = vld [vmem:[#allocation2] sm:$0xff]
        %v2280 = vld [vmem:[#allocation2 + $0x8] sm:$0xff]
        %v2281 = vld [vmem:[#allocation2 + $0x10] sm:$0xff]
        %v2282 = vld [vmem:[#allocation2 + $0x18] sm:$0xff]
        %v2283 = vld [vmem:[#allocation2 + $0x20] sm:$0xff]
        %v2284 = vld [vmem:[#allocation2 + $0x28] sm:$0xff]
        %v2285 = vld [vmem:[#allocation2 + $0x30] sm:$0xff]
        %v2286 = vld [vmem:[#allocation2 + $0x38] sm:$0xff]
        %v2287 = vld [vmem:[#allocation2 + $0x40] sm:$0xff]
        %v2288 = vld [vmem:[#allocation2 + $0x48] sm:$0xff]
        %v2289 = vld [vmem:[#allocation2 + $0x50] sm:$0xff]
        %v2290 = vld [vmem:[#allocation2 + $0x58] sm:$0xff]
        %v2291 = vld [vmem:[#allocation2 + $0x60] sm:$0xff]
        %v2292 = vld [vmem:[#allocation2 + $0x68] sm:$0xff]
        %v2293 = vld [vmem:[#allocation2 + $0x70] sm:$0xff]
        %v2294 = vld [vmem:[#allocation2 + $0x78] sm:$0xff]
        %v2295 = vld [vmem:[#allocation2 + $0x80] sm:$0xff]
        %v2296 = vld [vmem:[#allocation2 + $0x88] sm:$0xff]
        %v2297 = vld [vmem:[#allocation2 + $0x90] sm:$0xff]
        %v2298 = vld [vmem:[#allocation2 + $0x98] sm:$0xff]
        %v2299 = vld [vmem:[#allocation2 + $0xa0] sm:$0xff]
        %v2300 = vld [vmem:[#allocation2 + $0xa8] sm:$0xff]
        %v2301 = vld [vmem:[#allocation2 + $0xb0] sm:$0xff]
        %v2302 = vld [vmem:[#allocation2 + $0xb8] sm:$0xff]
        %v2303 = vld [vmem:[#allocation2 + $0xc0] sm:$0xff]
        %v2304 = vld [vmem:[#allocation2 + $0xc8] sm:$0xff]
        %v2305 = vld [vmem:[#allocation2 + $0xd0] sm:$0xff]
        %v2306 = vld [vmem:[#allocation2 + $0xd8] sm:$0xff]
        %v2307 = vld [vmem:[#allocation2 + $0xe0] sm:$0xff]
        %v2308 = vld [vmem:[#allocation2 + $0xe8] sm:$0xff]
        %v2309 = vld [vmem:[#allocation2 + $0xf0] sm:$0xff]
        %v2310 = vld [vmem:[#allocation2 + $0xf8] sm:$0xff]
        %v2311 = vld [vmem:[#allocation2 + $0x100] sm:$0xff]
        %v2312 = vld [vmem:[#allocation2 + $0x108] sm:$0xff]
        %v2313 = vld [vmem:[#allocation2 + $0x110] sm:$0xff]
        %v2314 = vld [vmem:[#allocation2 + $0x118] sm:$0xff]
        %v2315 = vld [vmem:[#allocation2 + $0x120] sm:$0xff]
        %v2316 = vld [vmem:[#allocation2 + $0x128] sm:$0xff]
        %v2317 = vld [vmem:[#allocation2 + $0x130] sm:$0xff]
        %v2318 = vld [vmem:[#allocation2 + $0x138] sm:$0xff]
        %v2319 = vld [vmem:[#allocation2 + $0x140] sm:$0xff]
        %v2320 = vld [vmem:[#allocation2 + $0x148] sm:$0xff]
        %v2321 = vld [vmem:[#allocation2 + $0x150] sm:$0xff]
        %v2322 = vld [vmem:[#allocation2 + $0x158] sm:$0xff]
        %v2323 = vld [vmem:[#allocation2 + $0x160] sm:$0xff]
        %v2324 = vld [vmem:[#allocation2 + $0x168] sm:$0xff]
        %v2325 = vld [vmem:[#allocation2 + $0x170] sm:$0xff]
        %v2326 = vld [vmem:[#allocation2 + $0x178] sm:$0xff]
        %v2327 = vld [vmem:[#allocation2 + $0x180] sm:$0xff]
        %v2328 = vld [vmem:[#allocation2 + $0x188] sm:$0xff]
        %v2329 = vld [vmem:[#allocation2 + $0x190] sm:$0xff]
        %v2330 = vld [vmem:[#allocation2 + $0x198] sm:$0xff]
        %v2331 = vld [vmem:[#allocation2 + $0x1a0] sm:$0xff]
        %v2332 = vld [vmem:[#allocation2 + $0x1a8] sm:$0xff]
        %s2333 = scalar_lea.vmem %s2, 64
        %v2334 = vld [vmem:[%s2333] sm:$0xff]
        %v2335 = vld [vmem:[%s2333 + $0x8] sm:$0xff]
        %v2336 = vld [vmem:[%s2333 + $0x10] sm:$0xff]
        %v2337 = vld [vmem:[%s2333 + $0x18] sm:$0xff]
        %2339 = vset.pattern.permute.xlu0 0
        %2340 = vperm.xlu0 %2339, %v2334
        %v2341 = vpop.permute.xlu0 %2340
        %2344 = vset.pattern.permute.xlu0 0
        %2345 = vperm.xlu0 %2344, %v2335
        %v2346 = vpop.permute.xlu0 %2345
        %2349 = vset.pattern.permute.xlu0 0
        %2350 = vperm.xlu0 %2349, %v2336
        %v2351 = vpop.permute.xlu0 %2350
        %2354 = vset.pattern.permute.xlu0 0
        %2355 = vperm.xlu0 %2354, %v2337
        %v2356 = vpop.permute.xlu0 %2355
        %v2366 = vunpack.c.l.b16 %v2271
        %v2367 = vunpack.c.h.b16 %v2271
        %v2368 = vunpack.c.l.b16 %v2272
        %v2369 = vunpack.c.l.b16 %v2273
        %v2370 = vunpack.c.h.b16 %v2273
        %v2371 = vunpack.c.l.b16 %v2274
        %v2372 = vunpack.c.l.b16 %v2275
        %v2373 = vunpack.c.h.b16 %v2275
        %v2374 = vunpack.c.l.b16 %v2276
        %v2375 = vunpack.c.l.b16 %v2277
        %v2376 = vunpack.c.h.b16 %v2277
        %v2377 = vunpack.c.l.b16 %v2278
        %v2378 = vpack.c.b16 %v2369, %v2366
        %v2379 = vpack.c.b16 %v2370, %v2367
        %v2380 = vpack.c.b16 %v2371, %v2368
        %v2381 = vpack.c.b16 %v2375, %v2372
        %v2382 = vpack.c.b16 %v2376, %v2373
        %v2383 = vpack.c.b16 %v2377, %v2374
        %v2389 = vsel %vm747, %v2380, 0
        %v2392 = vsel %vm747, %v2383, 0
        %2394 = vmatprep.subr.bf16.mxu0 %v2280
        %2395 = vmatpush1.bf16.msra.mxu0 %v2279
        %2396 = vmatprep.subr.bf16.mxu0 %v2283
        %2397 = vmatpush1.bf16.msra.mxu0 %v2282
        %2398 = vmatprep.subr.bf16.mxu0 %v2286
        %2399 = vmatpush1.bf16.msra.mxu0 %v2285
        %2400 = vmatprep.subr.bf16.mxu0 %v2289
        %2401 = vmatpush1.bf16.msra.mxu0 %v2288
        %2402 = vmatprep.subr.bf16.mxu0 %v2292
        %2403 = vmatpush1.bf16.msra.mxu0 %v2291
        %2404 = vmatprep.subr.bf16.mxu0 %v2295
        %2405 = vmatpush1.bf16.msra.mxu0 %v2294
        %2406 = vmatprep.subr.bf16.mxu0 %v2298
        %2407 = vmatpush1.bf16.msra.mxu0 %v2297
        %2408 = vmatprep.subr.bf16.mxu0 %v2301
        %2409 = vmatpush1.bf16.msra.mxu0 %v2300
        %2410 = vmatprep.subr.bf16.mxu0 %v2304
        %2411 = vmatpush1.bf16.msra.mxu0 %v2303
        %2412 = vmatprep.subr.bf16.mxu0 %v2307
        %2413 = vmatpush1.bf16.msra.mxu0 %v2306
        %2414 = vmatprep.subr.bf16.mxu0 %v2310
        %2415 = vmatpush1.bf16.msra.mxu0 %v2309
        %2416 = vmatprep.subr.bf16.mxu0 %v2313
        %2417 = vmatpush1.bf16.msra.mxu0 %v2312
        %2418 = vmatprep.subr.bf16.mxu0 %v2316
        %2419 = vmatpush1.bf16.msra.mxu0 %v2315
        %2420 = vmatprep.subr.bf16.mxu0 %v2319
        %2421 = vmatpush1.bf16.msra.mxu0 %v2318
        %2422 = vmatprep.subr.bf16.mxu0 %v2322
        %2423 = vmatpush1.bf16.msra.mxu0 %v2321
        %2424 = vmatprep.subr.bf16.mxu0 %v2325
        %2425 = vmatpush1.bf16.msra.mxu0 %v2324
        %2426 = vmatprep.mubr.bf16.mxu0 %v2379
        %2427 = vmatmul.mubr.bf16.gmra.mrb[0].mxu0 %v2378
        %v2428 = vpop.f32.mrb[0].mxu0
        %v2429 = vadd.f32 %v2341, %v2428
        %v2430 = vpop.f32.mrb[0].mxu0
        %v2431 = vadd.f32 %v2341, %v2430
        %v2432 = vpop.f32.mrb[0].mxu0
        %v2433 = vadd.f32 %v2346, %v2432
        %v2434 = vpop.f32.mrb[0].mxu0
        %v2435 = vadd.f32 %v2346, %v2434
        %2436 = vmatprep.mubr.bf16.mxu0 %v2382
        %2437 = vmatmul.mubr.bf16.gmra.mrb[0].mxu0 %v2381
        %v2438 = vpop.f32.mrb[0].mxu0
        %v2439 = vadd.f32 %v2351, %v2438
        %v2440 = vpop.f32.mrb[0].mxu0
        %v2441 = vadd.f32 %v2351, %v2440
        %v2442 = vpop.f32.mrb[0].mxu0
        %v2443 = vadd.f32 %v2356, %v2442
        %v2444 = vpop.f32.mrb[0].mxu0
        %v2445 = vadd.f32 %v2356, %v2444
        %2446 = vdwg.mxu0
        %2447 = vmatprep.subr.bf16.mxu0 %v2328
        %2448 = vmatpush1.bf16.msra.mxu0 %v2327
        %2449 = vmatprep.subr.bf16.mxu0 %v2331
        %2450 = vmatpush1.bf16.msra.mxu0 %v2330
        %2451 = vmatprep.subr.bf16.mxu0 0
        %2452 = vmatpush1.bf16.msra.mxu0 0
        %2453 = vmatprep.subr.bf16.mxu0 0
        %2454 = vmatpush1.bf16.msra.mxu0 0
        %2455 = vmatprep.subr.bf16.mxu0 0
        %2456 = vmatpush1.bf16.msra.mxu0 0
        %2457 = vmatprep.subr.bf16.mxu0 0
        %2458 = vmatpush1.bf16.msra.mxu0 0
        %2459 = vmatprep.subr.bf16.mxu0 0
        %2460 = vmatpush1.bf16.msra.mxu0 0
        %2461 = vmatprep.subr.bf16.mxu0 0
        %2462 = vmatpush1.bf16.msra.mxu0 0
        %2463 = vmatprep.subr.bf16.mxu0 0
        %2464 = vmatpush1.bf16.msra.mxu0 0
        %2465 = vmatprep.subr.bf16.mxu0 0
        %2466 = vmatpush1.bf16.msra.mxu0 0
        %2467 = vmatprep.subr.bf16.mxu0 0
        %2468 = vmatpush1.bf16.msra.mxu0 0
        %2469 = vmatprep.subr.bf16.mxu0 0
        %2470 = vmatpush1.bf16.msra.mxu0 0
        %2471 = vmatprep.subr.bf16.mxu0 0
        %2472 = vmatpush1.bf16.msra.mxu0 0
        %2473 = vmatprep.subr.bf16.mxu0 0
        %2474 = vmatpush1.bf16.msra.mxu0 0
        %2475 = vmatprep.subr.bf16.mxu0 0
        %2476 = vmatpush1.bf16.msra.mxu0 0
        %2477 = vmatprep.subr.bf16.mxu0 0
        %2478 = vmatpush1.bf16.msra.mxu0 0
        %2479 = vmatprep.mubr.bf16.mxu0 0
        %2480 = vmatmul.mubr.bf16.gmra.mrb[0].mxu0 %v2389
        %v2481 = vpop.f32.mrb[0].mxu0
        %v2482 = vadd.f32 %v2429, %v2481
        %v2483 = vpop.f32.mrb[0].mxu0
        %v2484 = vadd.f32 %v2431, %v2483
        %v2485 = vpop.f32.mrb[0].mxu0
        %v2486 = vadd.f32 %v2433, %v2485
        %v2487 = vpop.f32.mrb[0].mxu0
        %v2488 = vadd.f32 %v2435, %v2487
        %2489 = vmatprep.mubr.bf16.mxu0 0
        %2490 = vmatmul.mubr.bf16.gmra.mrb[0].mxu0 %v2392
        %v2491 = vpop.f32.mrb[0].mxu0
        %v2492 = vadd.f32 %v2439, %v2491
        %v2493 = vpop.f32.mrb[0].mxu0
        %v2494 = vadd.f32 %v2441, %v2493
        %v2495 = vpop.f32.mrb[0].mxu0
        %v2496 = vadd.f32 %v2443, %v2495
        %v2497 = vpop.f32.mrb[0].mxu0
        %v2498 = vadd.f32 %v2445, %v2497
        %2499 = vdwg.mxu0
        %2500 = vmatprep.subr.bf16.mxu0 0
        %2501 = vmatpush1.bf16.msra.mxu0 %v2281
        %2502 = vmatprep.subr.bf16.mxu0 0
        %2503 = vmatpush1.bf16.msra.mxu0 %v2284
        %2504 = vmatprep.subr.bf16.mxu0 0
        %2505 = vmatpush1.bf16.msra.mxu0 %v2287
        %2506 = vmatprep.subr.bf16.mxu0 0
        %2507 = vmatpush1.bf16.msra.mxu0 %v2290
        %2508 = vmatprep.subr.bf16.mxu0 0
        %2509 = vmatpush1.bf16.msra.mxu0 %v2293
        %2510 = vmatprep.subr.bf16.mxu0 0
        %2511 = vmatpush1.bf16.msra.mxu0 %v2296
        %2512 = vmatprep.subr.bf16.mxu0 0
        %2513 = vmatpush1.bf16.msra.mxu0 %v2299
        %2514 = vmatprep.subr.bf16.mxu0 0
        %2515 = vmatpush1.bf16.msra.mxu0 %v2302
        %2516 = vmatprep.subr.bf16.mxu0 0
        %2517 = vmatpush1.bf16.msra.mxu0 %v2305
        %2518 = vmatprep.subr.bf16.mxu0 0
        %2519 = vmatpush1.bf16.msra.mxu0 %v2308
        %2520 = vmatprep.subr.bf16.mxu0 0
        %2521 = vmatpush1.bf16.msra.mxu0 %v2311
        %2522 = vmatprep.subr.bf16.mxu0 0
        %2523 = vmatpush1.bf16.msra.mxu0 %v2314
        %2524 = vmatprep.subr.bf16.mxu0 0
        %2525 = vmatpush1.bf16.msra.mxu0 %v2317
        %2526 = vmatprep.subr.bf16.mxu0 0
        %2527 = vmatpush1.bf16.msra.mxu0 %v2320
        %2528 = vmatprep.subr.bf16.mxu0 0
        %2529 = vmatpush1.bf16.msra.mxu0 %v2323
        %2530 = vmatprep.subr.bf16.mxu0 0
        %2531 = vmatpush1.bf16.msra.mxu0 %v2326
        %2532 = vmatprep.mubr.bf16.mxu0 %v2379
        %2533 = vmatmul.mubr.bf16.gmra.mrb[0].mxu0 %v2378
        %v2534 = vpop.f32.mrb[0].mxu0
        %v2535 = vadd.f32 %v2341, %v2534
        %v2536 = vpop.f32.mrb[0].mxu0
        %v2537 = vpop.f32.mrb[0].mxu0
        %v2538 = vadd.f32 %v2346, %v2537
        %v2539 = vpop.f32.mrb[0].mxu0
        %2540 = vmatprep.mubr.bf16.mxu0 %v2382
        %2541 = vmatmul.mubr.bf16.gmra.mrb[0].mxu0 %v2381
        %v2542 = vpop.f32.mrb[0].mxu0
        %v2543 = vadd.f32 %v2351, %v2542
        %v2544 = vpop.f32.mrb[0].mxu0
        %v2545 = vpop.f32.mrb[0].mxu0
        %v2546 = vadd.f32 %v2356, %v2545
        %v2547 = vpop.f32.mrb[0].mxu0
        %2548 = vdwg.mxu0
        %2549 = vmatprep.subr.bf16.mxu0 0
        %2550 = vmatpush1.bf16.msra.mxu0 %v2329
        %2551 = vmatprep.subr.bf16.mxu0 0
        %2552 = vmatpush1.bf16.msra.mxu0 %v2332
        %2553 = vmatprep.subr.bf16.mxu0 0
        %2554 = vmatpush1.bf16.msra.mxu0 0
        %2555 = vmatprep.subr.bf16.mxu0 0
        %2556 = vmatpush1.bf16.msra.mxu0 0
        %2557 = vmatprep.subr.bf16.mxu0 0
        %2558 = vmatpush1.bf16.msra.mxu0 0
        %2559 = vmatprep.subr.bf16.mxu0 0
        %2560 = vmatpush1.bf16.msra.mxu0 0
        %2561 = vmatprep.subr.bf16.mxu0 0
        %2562 = vmatpush1.bf16.msra.mxu0 0
        %2563 = vmatprep.subr.bf16.mxu0 0
        %2564 = vmatpush1.bf16.msra.mxu0 0
        %2565 = vmatprep.subr.bf16.mxu0 0
        %2566 = vmatpush1.bf16.msra.mxu0 0
        %2567 = vmatprep.subr.bf16.mxu0 0
        %2568 = vmatpush1.bf16.msra.mxu0 0
        %2569 = vmatprep.subr.bf16.mxu0 0
        %2570 = vmatpush1.bf16.msra.mxu0 0
        %2571 = vmatprep.subr.bf16.mxu0 0
        %2572 = vmatpush1.bf16.msra.mxu0 0
        %2573 = vmatprep.subr.bf16.mxu0 0
        %2574 = vmatpush1.bf16.msra.mxu0 0
        %2575 = vmatprep.subr.bf16.mxu0 0
        %2576 = vmatpush1.bf16.msra.mxu0 0
        %2577 = vmatprep.subr.bf16.mxu0 0
        %2578 = vmatpush1.bf16.msra.mxu0 0
        %2579 = vmatprep.subr.bf16.mxu0 0
        %2580 = vmatpush1.bf16.msra.mxu0 0
        %2581 = vmatprep.mubr.bf16.mxu0 0
        %2582 = vmatmul.mubr.bf16.gmra.mrb[0].mxu0 %v2389
        %v2583 = vpop.f32.mrb[0].mxu0
        %v2584 = vadd.f32 %v2535, %v2583
        %v2585 = vpop.f32.mrb[0].mxu0
        %v2586 = vpop.f32.mrb[0].mxu0
        %v2587 = vadd.f32 %v2538, %v2586
        %v2588 = vpop.f32.mrb[0].mxu0
        %2589 = vmatprep.mubr.bf16.mxu0 0
        %2590 = vmatmul.mubr.bf16.gmra.mrb[0].mxu0 %v2392
        %v2591 = vpop.f32.mrb[0].mxu0
        %v2592 = vadd.f32 %v2543, %v2591
        %v2593 = vpop.f32.mrb[0].mxu0
        %v2594 = vpop.f32.mrb[0].mxu0
        %v2595 = vadd.f32 %v2546, %v2594
        %v2596 = vpop.f32.mrb[0].mxu0
        %2597 = vdwg.mxu0
        %vm2598 = vcmp.ge.f32.partialorder %v2482, 0.0
        %vm2599 = vcmp.ge.f32.partialorder %v2484, 0.0
        %vm2600 = vcmp.ge.f32.partialorder %v2584, 0.0
        %vm2601 = vcmp.ge.f32.partialorder %v2486, 0.0
        %vm2602 = vcmp.ge.f32.partialorder %v2488, 0.0
        %vm2603 = vcmp.ge.f32.partialorder %v2587, 0.0
        %vm2604 = vcmp.ge.f32.partialorder %v2492, 0.0
        %vm2605 = vcmp.ge.f32.partialorder %v2494, 0.0
        %vm2606 = vcmp.ge.f32.partialorder %v2592, 0.0
        %vm2607 = vcmp.ge.f32.partialorder %v2496, 0.0
        %vm2608 = vcmp.ge.f32.partialorder %v2498, 0.0
        %vm2609 = vcmp.ge.f32.partialorder %v2595, 0.0
        %2610 = vset.pattern.permute.xlu0 1
        %2611 = vperm.xlu0 %2610, %v2334
        %v2612 = vpop.permute.xlu0 %2611
        %2614 = vset.pattern.permute.xlu0 1
        %2615 = vperm.xlu0 %2614, %v2335
        %v2616 = vpop.permute.xlu0 %2615
        %2618 = vset.pattern.permute.xlu0 1
        %2619 = vperm.xlu0 %2618, %v2336
        %v2620 = vpop.permute.xlu0 %2619
        %2622 = vset.pattern.permute.xlu0 1
        %2623 = vperm.xlu0 %2622, %v2337
        %v2624 = vpop.permute.xlu0 %2623
        %v2626 = vmul.f32 %v2612, %v2482
        %v2627 = vmul.f32 %v2612, %v2484
        %v2628 = vmul.f32 %v2612, %v2584
        %v2629 = vmul.f32 %v2616, %v2486
        %v2630 = vmul.f32 %v2616, %v2488
        %v2631 = vmul.f32 %v2616, %v2587
        %v2632 = vmul.f32 %v2620, %v2492
        %v2633 = vmul.f32 %v2620, %v2494
        %v2634 = vmul.f32 %v2620, %v2592
        %v2635 = vmul.f32 %v2624, %v2496
        %v2636 = vmul.f32 %v2624, %v2498
        %v2637 = vmul.f32 %v2624, %v2595
        %v2638 = vsel %vm2598, %v2482, %v2626
        %v2639 = vsel %vm2599, %v2484, %v2627
        %v2640 = vsel %vm2600, %v2584, %v2628
        %v2641 = vsel %vm2601, %v2486, %v2629
        %v2642 = vsel %vm2602, %v2488, %v2630
        %v2643 = vsel %vm2603, %v2587, %v2631
        %v2644 = vsel %vm2604, %v2492, %v2632
        %v2645 = vsel %vm2605, %v2494, %v2633
        %v2646 = vsel %vm2606, %v2592, %v2634
        %v2647 = vsel %vm2607, %v2496, %v2635
        %v2648 = vsel %vm2608, %v2498, %v2636
        %v2649 = vsel %vm2609, %v2595, %v2637
        %v2650 = vmul.f32 %v2638, %v1014
        %v2651 = vmul.f32 %v2639, %v1018
        %v2652 = vmul.f32 %v2640, %v1022
        %v2653 = vmul.f32 %v2641, %v1014
        %v2654 = vmul.f32 %v2642, %v1018
        %v2655 = vmul.f32 %v2643, %v1022
        %v2656 = vmul.f32 %v2644, %v1014
        %v2657 = vmul.f32 %v2645, %v1018
        %v2658 = vmul.f32 %v2646, %v1022
        %v2659 = vmul.f32 %v2647, %v1014
        %v2660 = vmul.f32 %v2648, %v1018
        %v2661 = vmul.f32 %v2649, %v1022
        %v2662 = vadd.f32 %v1862, %v2650
        %v2663 = vadd.f32 %v1863, %v2651
        %v2664 = vadd.f32 %v1864, %v2652
        %v2665 = vadd.f32 %v1865, %v2653
        %v2666 = vadd.f32 %v1866, %v2654
        %v2667 = vadd.f32 %v1867, %v2655
        %v2668 = vadd.f32 %v1868, %v2656
        %v2669 = vadd.f32 %v1869, %v2657
        %v2670 = vadd.f32 %v1870, %v2658
        %v2671 = vadd.f32 %v1871, %v2659
        %v2672 = vadd.f32 %v1872, %v2660
        %v2673 = vadd.f32 %v1873, %v2661
        %2674 = vst [vmem:[#allocation4] sm:$0xff] %v2662
        %2675 = vst [vmem:[#allocation4 + $0x8] sm:$0xff] %v2663
        %2676 = vst [vmem:[#allocation4 + $0x10] sm:$0xff] %v2664
        %2677 = vst [vmem:[#allocation4 + $0x18] sm:$0xff] %v2665
        %2678 = vst [vmem:[#allocation4 + $0x20] sm:$0xff] %v2666
        %2679 = vst [vmem:[#allocation4 + $0x28] sm:$0xff] %v2667
        %2680 = vst [vmem:[#allocation4 + $0x30] sm:$0xff] %v2668
        %2681 = vst [vmem:[#allocation4 + $0x38] sm:$0xff] %v2669
        %2682 = vst [vmem:[#allocation4 + $0x40] sm:$0xff] %v2670
        %2683 = vst [vmem:[#allocation4 + $0x48] sm:$0xff] %v2671
        %2684 = vst [vmem:[#allocation4 + $0x50] sm:$0xff] %v2672
        %2685 = vst [vmem:[#allocation4 + $0x58] sm:$0xff] %v2673
        %v2686 = vld [vmem:[#allocation4] sm:$0xff]
        %v2687 = vld [vmem:[#allocation4 + $0x8] sm:$0xff]
        %v2688 = vld [vmem:[#allocation4 + $0x10] sm:$0xff]
        %v2689 = vld [vmem:[#allocation4 + $0x18] sm:$0xff]
        %v2690 = vld [vmem:[#allocation4 + $0x20] sm:$0xff]
        %v2691 = vld [vmem:[#allocation4 + $0x28] sm:$0xff]
        %v2692 = vld [vmem:[#allocation4 + $0x30] sm:$0xff]
        %v2693 = vld [vmem:[#allocation4 + $0x38] sm:$0xff]
        %v2694 = vld [vmem:[#allocation4 + $0x40] sm:$0xff]
        %v2695 = vld [vmem:[#allocation4 + $0x48] sm:$0xff]
        %v2696 = vld [vmem:[#allocation4 + $0x50] sm:$0xff]
        %v2697 = vld [vmem:[#allocation4 + $0x58] sm:$0xff]
        %2698 = vrot.lane.b32.xlu0 %v2686, 19
        %v2699 = vpop.permute.xlu0 %2698
        %2700 = vrot.lane.b32.xlu0 %v2689, 19
        %v2701 = vpop.permute.xlu0 %2700
        %2702 = vrot.lane.b32.xlu0 %v2692, 19
        %v2703 = vpop.permute.xlu0 %2702
        %2704 = vrot.lane.b32.xlu0 %v2695, 19
        %v2705 = vpop.permute.xlu0 %2704
        %2706 = vrot.lane.b32.xlu0 %v2687, 19
        %v2707 = vpop.permute.xlu0 %2706
        %2708 = vrot.lane.b32.xlu0 %v2690, 19
        %v2709 = vpop.permute.xlu0 %2708
        %2710 = vrot.lane.b32.xlu0 %v2693, 19
        %v2711 = vpop.permute.xlu0 %2710
        %2712 = vrot.lane.b32.xlu0 %v2696, 19
        %v2713 = vpop.permute.xlu0 %2712
        %2714 = vrot.lane.b32.xlu0 %v2688, 19
        %v2715 = vpop.permute.xlu0 %2714
        %2716 = vrot.lane.b32.xlu0 %v2691, 19
        %v2717 = vpop.permute.xlu0 %2716
        %2718 = vrot.lane.b32.xlu0 %v2694, 19
        %v2719 = vpop.permute.xlu0 %2718
        %2720 = vrot.lane.b32.xlu0 %v2697, 19
        %v2721 = vpop.permute.xlu0 %2720
        %v2722 = vsel %vm251, %v2707, %v2715
        %v2723 = vsel %vm251, %v2709, %v2717
        %v2724 = vsel %vm251, %v2711, %v2719
        %v2725 = vsel %vm251, %v2713, %v2721
        %v2726 = vsel %vm251, %v2699, %v2707
        %v2727 = vsel %vm251, %v2701, %v2709
        %v2728 = vsel %vm251, %v2703, %v2711
        %v2729 = vsel %vm251, %v2705, %v2713
        %v2730 = vsel %vm251, %v2715, %v2699
        %v2731 = vsel %vm251, %v2717, %v2701
        %v2732 = vsel %vm251, %v2719, %v2703
        %v2733 = vsel %vm251, %v2721, %v2705
        %v2734 = vpack.c.bf16 %v2731, %v2730
        %v2735 = vpack.c.bf16 %v2727, %v2726
        %v2736 = vpack.c.bf16 %v2723, %v2722
        %v2737 = vpack.c.bf16 %v2733, %v2732
        %v2738 = vpack.c.bf16 %v2729, %v2728
        %v2739 = vpack.c.bf16 %v2725, %v2724
        %2740 = vst [vmem:[#allocation2] sm:$0xff] %v2734
        %2741 = vst [vmem:[#allocation2 + $0x8] sm:$0xff] %v2735
        %2742 = vst [vmem:[#allocation2 + $0x10] sm:$0xff] %v2736
        %2743 = vst [vmem:[#allocation2 + $0x18] sm:$0xff] %v2737
        %2744 = vst [vmem:[#allocation2 + $0x20] sm:$0xff] %v2738
        %2745 = vst [vmem:[#allocation2 + $0x28] sm:$0xff] %v2739
        %2746 = vrot.lane.b32.xlu0 %v2686, 18
        %v2747 = vpop.permute.xlu0 %2746
        %2748 = vrot.lane.b32.xlu0 %v2689, 18
        %v2749 = vpop.permute.xlu0 %2748
        %2750 = vrot.lane.b32.xlu0 %v2692, 18
        %v2751 = vpop.permute.xlu0 %2750
        %2752 = vrot.lane.b32.xlu0 %v2695, 18
        %v2753 = vpop.permute.xlu0 %2752
        %2754 = vrot.lane.b32.xlu0 %v2687, 18
        %v2755 = vpop.permute.xlu0 %2754
        %2756 = vrot.lane.b32.xlu0 %v2690, 18
        %v2757 = vpop.permute.xlu0 %2756
        %2758 = vrot.lane.b32.xlu0 %v2693, 18
        %v2759 = vpop.permute.xlu0 %2758
        %2760 = vrot.lane.b32.xlu0 %v2696, 18
        %v2761 = vpop.permute.xlu0 %2760
        %2762 = vrot.lane.b32.xlu0 %v2688, 18
        %v2763 = vpop.permute.xlu0 %2762
        %2764 = vrot.lane.b32.xlu0 %v2691, 18
        %v2765 = vpop.permute.xlu0 %2764
        %2766 = vrot.lane.b32.xlu0 %v2694, 18
        %v2767 = vpop.permute.xlu0 %2766
        %2768 = vrot.lane.b32.xlu0 %v2697, 18
        %v2769 = vpop.permute.xlu0 %2768
        %v2770 = vsel %vm300, %v2755, %v2763
        %v2771 = vsel %vm300, %v2757, %v2765
        %v2772 = vsel %vm300, %v2759, %v2767
        %v2773 = vsel %vm300, %v2761, %v2769
        %v2774 = vsel %vm300, %v2747, %v2755
        %v2775 = vsel %vm300, %v2749, %v2757
        %v2776 = vsel %vm300, %v2751, %v2759
        %v2777 = vsel %vm300, %v2753, %v2761
        %v2778 = vsel %vm300, %v2763, %v2747
        %v2779 = vsel %vm300, %v2765, %v2749
        %v2780 = vsel %vm300, %v2767, %v2751
        %v2781 = vsel %vm300, %v2769, %v2753
        %v2782 = vpack.c.bf16 %v2779, %v2778
        %v2783 = vpack.c.bf16 %v2775, %v2774
        %v2784 = vpack.c.bf16 %v2771, %v2770
        %v2785 = vpack.c.bf16 %v2781, %v2780
        %v2786 = vpack.c.bf16 %v2777, %v2776
        %v2787 = vpack.c.bf16 %v2773, %v2772
        %2788 = vst [vmem:[#allocation2 + $0x30] sm:$0xff] %v2782
        %2789 = vst [vmem:[#allocation2 + $0x38] sm:$0xff] %v2783
        %2790 = vst [vmem:[#allocation2 + $0x40] sm:$0xff] %v2784
        %2791 = vst [vmem:[#allocation2 + $0x48] sm:$0xff] %v2785
        %2792 = vst [vmem:[#allocation2 + $0x50] sm:$0xff] %v2786
        %2793 = vst [vmem:[#allocation2 + $0x58] sm:$0xff] %v2787
        %2794 = vrot.lane.b32.xlu0 %v2686, 17
        %v2795 = vpop.permute.xlu0 %2794
        %2796 = vrot.lane.b32.xlu0 %v2689, 17
        %v2797 = vpop.permute.xlu0 %2796
        %2798 = vrot.lane.b32.xlu0 %v2692, 17
        %v2799 = vpop.permute.xlu0 %2798
        %2800 = vrot.lane.b32.xlu0 %v2695, 17
        %v2801 = vpop.permute.xlu0 %2800
        %2802 = vrot.lane.b32.xlu0 %v2687, 17
        %v2803 = vpop.permute.xlu0 %2802
        %2804 = vrot.lane.b32.xlu0 %v2690, 17
        %v2805 = vpop.permute.xlu0 %2804
        %2806 = vrot.lane.b32.xlu0 %v2693, 17
        %v2807 = vpop.permute.xlu0 %2806
        %2808 = vrot.lane.b32.xlu0 %v2696, 17
        %v2809 = vpop.permute.xlu0 %2808
        %2810 = vrot.lane.b32.xlu0 %v2688, 17
        %v2811 = vpop.permute.xlu0 %2810
        %2812 = vrot.lane.b32.xlu0 %v2691, 17
        %v2813 = vpop.permute.xlu0 %2812
        %2814 = vrot.lane.b32.xlu0 %v2694, 17
        %v2815 = vpop.permute.xlu0 %2814
        %2816 = vrot.lane.b32.xlu0 %v2697, 17
        %v2817 = vpop.permute.xlu0 %2816
        %v2818 = vsel %vm349, %v2803, %v2811
        %v2819 = vsel %vm349, %v2805, %v2813
        %v2820 = vsel %vm349, %v2807, %v2815
        %v2821 = vsel %vm349, %v2809, %v2817
        %v2822 = vsel %vm349, %v2795, %v2803
        %v2823 = vsel %vm349, %v2797, %v2805
        %v2824 = vsel %vm349, %v2799, %v2807
        %v2825 = vsel %vm349, %v2801, %v2809
        %v2826 = vsel %vm349, %v2811, %v2795
        %v2827 = vsel %vm349, %v2813, %v2797
        %v2828 = vsel %vm349, %v2815, %v2799
        %v2829 = vsel %vm349, %v2817, %v2801
        %v2830 = vpack.c.bf16 %v2827, %v2826
        %v2831 = vpack.c.bf16 %v2823, %v2822
        %v2832 = vpack.c.bf16 %v2819, %v2818
        %v2833 = vpack.c.bf16 %v2829, %v2828
        %v2834 = vpack.c.bf16 %v2825, %v2824
        %v2835 = vpack.c.bf16 %v2821, %v2820
        %2836 = vst [vmem:[#allocation2 + $0x60] sm:$0xff] %v2830
        %2837 = vst [vmem:[#allocation2 + $0x68] sm:$0xff] %v2831
        %2838 = vst [vmem:[#allocation2 + $0x70] sm:$0xff] %v2832
        %2839 = vst [vmem:[#allocation2 + $0x78] sm:$0xff] %v2833
        %2840 = vst [vmem:[#allocation2 + $0x80] sm:$0xff] %v2834
        %2841 = vst [vmem:[#allocation2 + $0x88] sm:$0xff] %v2835
        %2842 = vrot.lane.b32.xlu0 %v2686, 1
        %v2843 = vpop.permute.xlu0 %2842
        %2844 = vrot.lane.b32.xlu0 %v2689, 1
        %v2845 = vpop.permute.xlu0 %2844
        %2846 = vrot.lane.b32.xlu0 %v2692, 1
        %v2847 = vpop.permute.xlu0 %2846
        %2848 = vrot.lane.b32.xlu0 %v2695, 1
        %v2849 = vpop.permute.xlu0 %2848
        %2850 = vrot.lane.b32.xlu0 %v2687, 1
        %v2851 = vpop.permute.xlu0 %2850
        %2852 = vrot.lane.b32.xlu0 %v2690, 1
        %v2853 = vpop.permute.xlu0 %2852
        %2854 = vrot.lane.b32.xlu0 %v2693, 1
        %v2855 = vpop.permute.xlu0 %2854
        %2856 = vrot.lane.b32.xlu0 %v2696, 1
        %v2857 = vpop.permute.xlu0 %2856
        %2858 = vrot.lane.b32.xlu0 %v2688, 1
        %v2859 = vpop.permute.xlu0 %2858
        %2860 = vrot.lane.b32.xlu0 %v2691, 1
        %v2861 = vpop.permute.xlu0 %2860
        %2862 = vrot.lane.b32.xlu0 %v2694, 1
        %v2863 = vpop.permute.xlu0 %2862
        %2864 = vrot.lane.b32.xlu0 %v2697, 1
        %v2865 = vpop.permute.xlu0 %2864
        %v2866 = vsel %vm398, %v2851, %v2859
        %v2867 = vsel %vm398, %v2853, %v2861
        %v2868 = vsel %vm398, %v2855, %v2863
        %v2869 = vsel %vm398, %v2857, %v2865
        %v2870 = vsel %vm398, %v2843, %v2851
        %v2871 = vsel %vm398, %v2845, %v2853
        %v2872 = vsel %vm398, %v2847, %v2855
        %v2873 = vsel %vm398, %v2849, %v2857
        %v2874 = vsel %vm398, %v2859, %v2843
        %v2875 = vsel %vm398, %v2861, %v2845
        %v2876 = vsel %vm398, %v2863, %v2847
        %v2877 = vsel %vm398, %v2865, %v2849
        %v2878 = vpack.c.bf16 %v2875, %v2874
        %v2879 = vpack.c.bf16 %v2871, %v2870
        %v2880 = vpack.c.bf16 %v2867, %v2866
        %v2881 = vpack.c.bf16 %v2877, %v2876
        %v2882 = vpack.c.bf16 %v2873, %v2872
        %v2883 = vpack.c.bf16 %v2869, %v2868
        %2884 = vst [vmem:[#allocation2 + $0x90] sm:$0xff] %v2878
        %2885 = vst [vmem:[#allocation2 + $0x98] sm:$0xff] %v2879
        %2886 = vst [vmem:[#allocation2 + $0xa0] sm:$0xff] %v2880
        %2887 = vst [vmem:[#allocation2 + $0xa8] sm:$0xff] %v2881
        %2888 = vst [vmem:[#allocation2 + $0xb0] sm:$0xff] %v2882
        %2889 = vst [vmem:[#allocation2 + $0xb8] sm:$0xff] %v2883
        %v2890 = vpack.c.bf16 %v2689, %v2686
        %v2891 = vpack.c.bf16 %v2690, %v2687
        %v2892 = vpack.c.bf16 %v2691, %v2688
        %v2893 = vpack.c.bf16 %v2695, %v2692
        %v2894 = vpack.c.bf16 %v2696, %v2693
        %v2895 = vpack.c.bf16 %v2697, %v2694
        %2896 = vst [vmem:[#allocation2 + $0xc0] sm:$0xff] %v2890
        %2897 = vst [vmem:[#allocation2 + $0xc8] sm:$0xff] %v2891
        %2898 = vst [vmem:[#allocation2 + $0xd0] sm:$0xff] %v2892
        %2899 = vst [vmem:[#allocation2 + $0xd8] sm:$0xff] %v2893
        %2900 = vst [vmem:[#allocation2 + $0xe0] sm:$0xff] %v2894
        %2901 = vst [vmem:[#allocation2 + $0xe8] sm:$0xff] %v2895
        %2902 = vrot.lane.b32.xlu0 %v2686, 127
        %v2903 = vpop.permute.xlu0 %2902
        %2904 = vrot.lane.b32.xlu0 %v2689, 127
        %v2905 = vpop.permute.xlu0 %2904
        %2906 = vrot.lane.b32.xlu0 %v2692, 127
        %v2907 = vpop.permute.xlu0 %2906
        %2908 = vrot.lane.b32.xlu0 %v2695, 127
        %v2909 = vpop.permute.xlu0 %2908
        %2910 = vrot.lane.b32.xlu0 %v2687, 127
        %v2911 = vpop.permute.xlu0 %2910
        %2912 = vrot.lane.b32.xlu0 %v2690, 127
        %v2913 = vpop.permute.xlu0 %2912
        %2914 = vrot.lane.b32.xlu0 %v2693, 127
        %v2915 = vpop.permute.xlu0 %2914
        %2916 = vrot.lane.b32.xlu0 %v2696, 127
        %v2917 = vpop.permute.xlu0 %2916
        %2918 = vrot.lane.b32.xlu0 %v2688, 127
        %v2919 = vpop.permute.xlu0 %2918
        %2920 = vrot.lane.b32.xlu0 %v2691, 127
        %v2921 = vpop.permute.xlu0 %2920
        %2922 = vrot.lane.b32.xlu0 %v2694, 127
        %v2923 = vpop.permute.xlu0 %2922
        %2924 = vrot.lane.b32.xlu0 %v2697, 127
        %v2925 = vpop.permute.xlu0 %2924
        %v2926 = vsel %vm459, %v2911, %v2919
        %v2927 = vsel %vm459, %v2913, %v2921
        %v2928 = vsel %vm459, %v2915, %v2923
        %v2929 = vsel %vm459, %v2917, %v2925
        %v2930 = vsel %vm459, %v2903, %v2911
        %v2931 = vsel %vm459, %v2905, %v2913
        %v2932 = vsel %vm459, %v2907, %v2915
        %v2933 = vsel %vm459, %v2909, %v2917
        %v2934 = vsel %vm459, %v2919, %v2903
        %v2935 = vsel %vm459, %v2921, %v2905
        %v2936 = vsel %vm459, %v2923, %v2907
        %v2937 = vsel %vm459, %v2925, %v2909
        %v2938 = vpack.c.bf16 %v2931, %v2930
        %v2939 = vpack.c.bf16 %v2927, %v2926
        %v2940 = vpack.c.bf16 %v2935, %v2934
        %v2941 = vpack.c.bf16 %v2933, %v2932
        %v2942 = vpack.c.bf16 %v2929, %v2928
        %v2943 = vpack.c.bf16 %v2937, %v2936
        %2944 = vst [vmem:[#allocation2 + $0xf0] sm:$0xff] %v2938
        %2945 = vst [vmem:[#allocation2 + $0xf8] sm:$0xff] %v2939
        %2946 = vst [vmem:[#allocation2 + $0x100] sm:$0xff] %v2940
        %2947 = vst [vmem:[#allocation2 + $0x108] sm:$0xff] %v2941
        %2948 = vst [vmem:[#allocation2 + $0x110] sm:$0xff] %v2942
        %2949 = vst [vmem:[#allocation2 + $0x118] sm:$0xff] %v2943
        %2950 = vrot.lane.b32.xlu0 %v2686, 111
        %v2951 = vpop.permute.xlu0 %2950
        %2952 = vrot.lane.b32.xlu0 %v2689, 111
        %v2953 = vpop.permute.xlu0 %2952
        %2954 = vrot.lane.b32.xlu0 %v2692, 111
        %v2955 = vpop.permute.xlu0 %2954
        %2956 = vrot.lane.b32.xlu0 %v2695, 111
        %v2957 = vpop.permute.xlu0 %2956
        %2958 = vrot.lane.b32.xlu0 %v2687, 111
        %v2959 = vpop.permute.xlu0 %2958
        %2960 = vrot.lane.b32.xlu0 %v2690, 111
        %v2961 = vpop.permute.xlu0 %2960
        %2962 = vrot.lane.b32.xlu0 %v2693, 111
        %v2963 = vpop.permute.xlu0 %2962
        %2964 = vrot.lane.b32.xlu0 %v2696, 111
        %v2965 = vpop.permute.xlu0 %2964
        %2966 = vrot.lane.b32.xlu0 %v2688, 111
        %v2967 = vpop.permute.xlu0 %2966
        %2968 = vrot.lane.b32.xlu0 %v2691, 111
        %v2969 = vpop.permute.xlu0 %2968
        %2970 = vrot.lane.b32.xlu0 %v2694, 111
        %v2971 = vpop.permute.xlu0 %2970
        %2972 = vrot.lane.b32.xlu0 %v2697, 111
        %v2973 = vpop.permute.xlu0 %2972
        %v2974 = vsel %vm508, %v2959, %v2967
        %v2975 = vsel %vm508, %v2961, %v2969
        %v2976 = vsel %vm508, %v2963, %v2971
        %v2977 = vsel %vm508, %v2965, %v2973
        %v2978 = vsel %vm508, %v2951, %v2959
        %v2979 = vsel %vm508, %v2953, %v2961
        %v2980 = vsel %vm508, %v2955, %v2963
        %v2981 = vsel %vm508, %v2957, %v2965
        %v2982 = vsel %vm508, %v2967, %v2951
        %v2983 = vsel %vm508, %v2969, %v2953
        %v2984 = vsel %vm508, %v2971, %v2955
        %v2985 = vsel %vm508, %v2973, %v2957
        %v2986 = vpack.c.bf16 %v2979, %v2978
        %v2987 = vpack.c.bf16 %v2975, %v2974
        %v2988 = vpack.c.bf16 %v2983, %v2982
        %v2989 = vpack.c.bf16 %v2981, %v2980
        %v2990 = vpack.c.bf16 %v2977, %v2976
        %v2991 = vpack.c.bf16 %v2985, %v2984
        %2992 = vst [vmem:[#allocation2 + $0x120] sm:$0xff] %v2986
        %2993 = vst [vmem:[#allocation2 + $0x128] sm:$0xff] %v2987
        %2994 = vst [vmem:[#allocation2 + $0x130] sm:$0xff] %v2988
        %2995 = vst [vmem:[#allocation2 + $0x138] sm:$0xff] %v2989
        %2996 = vst [vmem:[#allocation2 + $0x140] sm:$0xff] %v2990
        %2997 = vst [vmem:[#allocation2 + $0x148] sm:$0xff] %v2991
        %2998 = vrot.lane.b32.xlu0 %v2686, 110
        %v2999 = vpop.permute.xlu0 %2998
        %3000 = vrot.lane.b32.xlu0 %v2689, 110
        %v3001 = vpop.permute.xlu0 %3000
        %3002 = vrot.lane.b32.xlu0 %v2692, 110
        %v3003 = vpop.permute.xlu0 %3002
        %3004 = vrot.lane.b32.xlu0 %v2695, 110
        %v3005 = vpop.permute.xlu0 %3004
        %3006 = vrot.lane.b32.xlu0 %v2687, 110
        %v3007 = vpop.permute.xlu0 %3006
        %3008 = vrot.lane.b32.xlu0 %v2690, 110
        %v3009 = vpop.permute.xlu0 %3008
        %3010 = vrot.lane.b32.xlu0 %v2693, 110
        %v3011 = vpop.permute.xlu0 %3010
        %3012 = vrot.lane.b32.xlu0 %v2696, 110
        %v3013 = vpop.permute.xlu0 %3012
        %3014 = vrot.lane.b32.xlu0 %v2688, 110
        %v3015 = vpop.permute.xlu0 %3014
        %3016 = vrot.lane.b32.xlu0 %v2691, 110
        %v3017 = vpop.permute.xlu0 %3016
        %3018 = vrot.lane.b32.xlu0 %v2694, 110
        %v3019 = vpop.permute.xlu0 %3018
        %3020 = vrot.lane.b32.xlu0 %v2697, 110
        %v3021 = vpop.permute.xlu0 %3020
        %v3022 = vsel %vm557, %v3007, %v3015
        %v3023 = vsel %vm557, %v3009, %v3017
        %v3024 = vsel %vm557, %v3011, %v3019
        %v3025 = vsel %vm557, %v3013, %v3021
        %v3026 = vsel %vm557, %v2999, %v3007
        %v3027 = vsel %vm557, %v3001, %v3009
        %v3028 = vsel %vm557, %v3003, %v3011
        %v3029 = vsel %vm557, %v3005, %v3013
        %v3030 = vsel %vm557, %v3015, %v2999
        %v3031 = vsel %vm557, %v3017, %v3001
        %v3032 = vsel %vm557, %v3019, %v3003
        %v3033 = vsel %vm557, %v3021, %v3005
        %v3034 = vpack.c.bf16 %v3027, %v3026
        %v3035 = vpack.c.bf16 %v3023, %v3022
        %v3036 = vpack.c.bf16 %v3031, %v3030
        %v3037 = vpack.c.bf16 %v3029, %v3028
        %v3038 = vpack.c.bf16 %v3025, %v3024
        %v3039 = vpack.c.bf16 %v3033, %v3032
        %3040 = vst [vmem:[#allocation2 + $0x150] sm:$0xff] %v3034
        %3041 = vst [vmem:[#allocation2 + $0x158] sm:$0xff] %v3035
        %3042 = vst [vmem:[#allocation2 + $0x160] sm:$0xff] %v3036
        %3043 = vst [vmem:[#allocation2 + $0x168] sm:$0xff] %v3037
        %3044 = vst [vmem:[#allocation2 + $0x170] sm:$0xff] %v3038
        %3045 = vst [vmem:[#allocation2 + $0x178] sm:$0xff] %v3039
        %3046 = vrot.lane.b32.xlu0 %v2686, 109
        %v3047 = vpop.permute.xlu0 %3046
        %3048 = vrot.lane.b32.xlu0 %v2689, 109
        %v3049 = vpop.permute.xlu0 %3048
        %3050 = vrot.lane.b32.xlu0 %v2692, 109
        %v3051 = vpop.permute.xlu0 %3050
        %3052 = vrot.lane.b32.xlu0 %v2695, 109
        %v3053 = vpop.permute.xlu0 %3052
        %3054 = vrot.lane.b32.xlu0 %v2687, 109
        %v3055 = vpop.permute.xlu0 %3054
        %3056 = vrot.lane.b32.xlu0 %v2690, 109
        %v3057 = vpop.permute.xlu0 %3056
        %3058 = vrot.lane.b32.xlu0 %v2693, 109
        %v3059 = vpop.permute.xlu0 %3058
        %3060 = vrot.lane.b32.xlu0 %v2696, 109
        %v3061 = vpop.permute.xlu0 %3060
        %3062 = vrot.lane.b32.xlu0 %v2688, 109
        %v3063 = vpop.permute.xlu0 %3062
        %3064 = vrot.lane.b32.xlu0 %v2691, 109
        %v3065 = vpop.permute.xlu0 %3064
        %3066 = vrot.lane.b32.xlu0 %v2694, 109
        %v3067 = vpop.permute.xlu0 %3066
        %3068 = vrot.lane.b32.xlu0 %v2697, 109
        %v3069 = vpop.permute.xlu0 %3068
        %v3070 = vsel %vm606, %v3055, %v3063
        %v3071 = vsel %vm606, %v3057, %v3065
        %v3072 = vsel %vm606, %v3059, %v3067
        %v3073 = vsel %vm606, %v3061, %v3069
        %v3074 = vsel %vm606, %v3047, %v3055
        %v3075 = vsel %vm606, %v3049, %v3057
        %v3076 = vsel %vm606, %v3051, %v3059
        %v3077 = vsel %vm606, %v3053, %v3061
        %v3078 = vsel %vm606, %v3063, %v3047
        %v3079 = vsel %vm606, %v3065, %v3049
        %v3080 = vsel %vm606, %v3067, %v3051
        %v3081 = vsel %vm606, %v3069, %v3053
        %v3082 = vpack.c.bf16 %v3075, %v3074
        %v3083 = vpack.c.bf16 %v3071, %v3070
        %v3084 = vpack.c.bf16 %v3079, %v3078
        %v3085 = vpack.c.bf16 %v3077, %v3076
        %v3086 = vpack.c.bf16 %v3073, %v3072
        %v3087 = vpack.c.bf16 %v3081, %v3080
        %3088 = vst [vmem:[#allocation2 + $0x180] sm:$0xff] %v3082
        %3089 = vst [vmem:[#allocation2 + $0x188] sm:$0xff] %v3083
        %3090 = vst [vmem:[#allocation2 + $0x190] sm:$0xff] %v3084
        %3091 = vst [vmem:[#allocation2 + $0x198] sm:$0xff] %v3085
        %3092 = vst [vmem:[#allocation2 + $0x1a0] sm:$0xff] %v3086
        %3093 = vst [vmem:[#allocation2 + $0x1a8] sm:$0xff] %v3087
        %s3094 = scalar_lea.vmem [#allocation5], 144
        %v3095 = vld [vmem:[%s3094] sm:$0xff]
        %v3096 = vld [vmem:[%s3094 + $0x8] sm:$0xf]
        %v3097 = vld [vmem:[%s3094 + $0xc] sm:$0xff]
        %v3098 = vld [vmem:[%s3094 + $0x14] sm:$0xf]
        %v3099 = vld [vmem:[%s3094 + $0x18] sm:$0xff]
        %v3100 = vld [vmem:[%s3094 + $0x20] sm:$0xf]
        %v3101 = vld [vmem:[%s3094 + $0x24] sm:$0xff]
        %v3102 = vld [vmem:[%s3094 + $0x2c] sm:$0xf]
        %v3103 = vld [vmem:[#allocation2] sm:$0xff]
        %v3104 = vld [vmem:[#allocation2 + $0x8] sm:$0xff]
        %v3105 = vld [vmem:[#allocation2 + $0x10] sm:$0xff]
        %v3106 = vld [vmem:[#allocation2 + $0x18] sm:$0xff]
        %v3107 = vld [vmem:[#allocation2 + $0x20] sm:$0xff]
        %v3108 = vld [vmem:[#allocation2 + $0x28] sm:$0xff]
        %v3109 = vld [vmem:[#allocation2 + $0x30] sm:$0xff]
        %v3110 = vld [vmem:[#allocation2 + $0x38] sm:$0xff]
        %v3111 = vld [vmem:[#allocation2 + $0x40] sm:$0xff]
        %v3112 = vld [vmem:[#allocation2 + $0x48] sm:$0xff]
        %v3113 = vld [vmem:[#allocation2 + $0x50] sm:$0xff]
        %v3114 = vld [vmem:[#allocation2 + $0x58] sm:$0xff]
        %v3115 = vld [vmem:[#allocation2 + $0x60] sm:$0xff]
        %v3116 = vld [vmem:[#allocation2 + $0x68] sm:$0xff]
        %v3117 = vld [vmem:[#allocation2 + $0x70] sm:$0xff]
        %v3118 = vld [vmem:[#allocation2 + $0x78] sm:$0xff]
        %v3119 = vld [vmem:[#allocation2 + $0x80] sm:$0xff]
        %v3120 = vld [vmem:[#allocation2 + $0x88] sm:$0xff]
        %v3121 = vld [vmem:[#allocation2 + $0x90] sm:$0xff]
        %v3122 = vld [vmem:[#allocation2 + $0x98] sm:$0xff]
        %v3123 = vld [vmem:[#allocation2 + $0xa0] sm:$0xff]
        %v3124 = vld [vmem:[#allocation2 + $0xa8] sm:$0xff]
        %v3125 = vld [vmem:[#allocation2 + $0xb0] sm:$0xff]
        %v3126 = vld [vmem:[#allocation2 + $0xb8] sm:$0xff]
        %v3127 = vld [vmem:[#allocation2 + $0xc0] sm:$0xff]
        %v3128 = vld [vmem:[#allocation2 + $0xc8] sm:$0xff]
        %v3129 = vld [vmem:[#allocation2 + $0xd0] sm:$0xff]
        %v3130 = vld [vmem:[#allocation2 + $0xd8] sm:$0xff]
        %v3131 = vld [vmem:[#allocation2 + $0xe0] sm:$0xff]
        %v3132 = vld [vmem:[#allocation2 + $0xe8] sm:$0xff]
        %v3133 = vld [vmem:[#allocation2 + $0xf0] sm:$0xff]
        %v3134 = vld [vmem:[#allocation2 + $0xf8] sm:$0xff]
        %v3135 = vld [vmem:[#allocation2 + $0x100] sm:$0xff]
        %v3136 = vld [vmem:[#allocation2 + $0x108] sm:$0xff]
        %v3137 = vld [vmem:[#allocation2 + $0x110] sm:$0xff]
        %v3138 = vld [vmem:[#allocation2 + $0x118] sm:$0xff]
        %v3139 = vld [vmem:[#allocation2 + $0x120] sm:$0xff]
        %v3140 = vld [vmem:[#allocation2 + $0x128] sm:$0xff]
        %v3141 = vld [vmem:[#allocation2 + $0x130] sm:$0xff]
        %v3142 = vld [vmem:[#allocation2 + $0x138] sm:$0xff]
        %v3143 = vld [vmem:[#allocation2 + $0x140] sm:$0xff]
        %v3144 = vld [vmem:[#allocation2 + $0x148] sm:$0xff]
        %v3145 = vld [vmem:[#allocation2 + $0x150] sm:$0xff]
        %v3146 = vld [vmem:[#allocation2 + $0x158] sm:$0xff]
        %v3147 = vld [vmem:[#allocation2 + $0x160] sm:$0xff]
        %v3148 = vld [vmem:[#allocation2 + $0x168] sm:$0xff]
        %v3149 = vld [vmem:[#allocation2 + $0x170] sm:$0xff]
        %v3150 = vld [vmem:[#allocation2 + $0x178] sm:$0xff]
        %v3151 = vld [vmem:[#allocation2 + $0x180] sm:$0xff]
        %v3152 = vld [vmem:[#allocation2 + $0x188] sm:$0xff]
        %v3153 = vld [vmem:[#allocation2 + $0x190] sm:$0xff]
        %v3154 = vld [vmem:[#allocation2 + $0x198] sm:$0xff]
        %v3155 = vld [vmem:[#allocation2 + $0x1a0] sm:$0xff]
        %v3156 = vld [vmem:[#allocation2 + $0x1a8] sm:$0xff]
        %s3157 = scalar_lea.vmem %s2, 96
        %v3158 = vld [vmem:[%s3157] sm:$0xff]
        %v3159 = vld [vmem:[%s3157 + $0x8] sm:$0xff]
        %v3160 = vld [vmem:[%s3157 + $0x10] sm:$0xff]
        %v3161 = vld [vmem:[%s3157 + $0x18] sm:$0xff]
        %3163 = vset.pattern.permute.xlu0 0
        %3164 = vperm.xlu0 %3163, %v3158
        %v3165 = vpop.permute.xlu0 %3164
        %3168 = vset.pattern.permute.xlu0 0
        %3169 = vperm.xlu0 %3168, %v3159
        %v3170 = vpop.permute.xlu0 %3169
        %3173 = vset.pattern.permute.xlu0 0
        %3174 = vperm.xlu0 %3173, %v3160
        %v3175 = vpop.permute.xlu0 %3174
        %3178 = vset.pattern.permute.xlu0 0
        %3179 = vperm.xlu0 %3178, %v3161
        %v3180 = vpop.permute.xlu0 %3179
        %v3190 = vunpack.c.l.b16 %v3095
        %v3191 = vunpack.c.h.b16 %v3095
        %v3192 = vunpack.c.l.b16 %v3096
        %v3193 = vunpack.c.l.b16 %v3097
        %v3194 = vunpack.c.h.b16 %v3097
        %v3195 = vunpack.c.l.b16 %v3098
        %v3196 = vunpack.c.l.b16 %v3099
        %v3197 = vunpack.c.h.b16 %v3099
        %v3198 = vunpack.c.l.b16 %v3100
        %v3199 = vunpack.c.l.b16 %v3101
        %v3200 = vunpack.c.h.b16 %v3101
        %v3201 = vunpack.c.l.b16 %v3102
        %v3202 = vpack.c.b16 %v3193, %v3190
        %v3203 = vpack.c.b16 %v3194, %v3191
        %v3204 = vpack.c.b16 %v3195, %v3192
        %v3205 = vpack.c.b16 %v3199, %v3196
        %v3206 = vpack.c.b16 %v3200, %v3197
        %v3207 = vpack.c.b16 %v3201, %v3198
        %v3213 = vsel %vm747, %v3204, 0
        %v3216 = vsel %vm747, %v3207, 0
        %3218 = vmatprep.subr.bf16.mxu0 %v3104
        %3219 = vmatpush1.bf16.msra.mxu0 %v3103
        %3220 = vmatprep.subr.bf16.mxu0 %v3107
        %3221 = vmatpush1.bf16.msra.mxu0 %v3106
        %3222 = vmatprep.subr.bf16.mxu0 %v3110
        %3223 = vmatpush1.bf16.msra.mxu0 %v3109
        %3224 = vmatprep.subr.bf16.mxu0 %v3113
        %3225 = vmatpush1.bf16.msra.mxu0 %v3112
        %3226 = vmatprep.subr.bf16.mxu0 %v3116
        %3227 = vmatpush1.bf16.msra.mxu0 %v3115
        %3228 = vmatprep.subr.bf16.mxu0 %v3119
        %3229 = vmatpush1.bf16.msra.mxu0 %v3118
        %3230 = vmatprep.subr.bf16.mxu0 %v3122
        %3231 = vmatpush1.bf16.msra.mxu0 %v3121
        %3232 = vmatprep.subr.bf16.mxu0 %v3125
        %3233 = vmatpush1.bf16.msra.mxu0 %v3124
        %3234 = vmatprep.subr.bf16.mxu0 %v3128
        %3235 = vmatpush1.bf16.msra.mxu0 %v3127
        %3236 = vmatprep.subr.bf16.mxu0 %v3131
        %3237 = vmatpush1.bf16.msra.mxu0 %v3130
        %3238 = vmatprep.subr.bf16.mxu0 %v3134
        %3239 = vmatpush1.bf16.msra.mxu0 %v3133
        %3240 = vmatprep.subr.bf16.mxu0 %v3137
        %3241 = vmatpush1.bf16.msra.mxu0 %v3136
        %3242 = vmatprep.subr.bf16.mxu0 %v3140
        %3243 = vmatpush1.bf16.msra.mxu0 %v3139
        %3244 = vmatprep.subr.bf16.mxu0 %v3143
        %3245 = vmatpush1.bf16.msra.mxu0 %v3142
        %3246 = vmatprep.subr.bf16.mxu0 %v3146
        %3247 = vmatpush1.bf16.msra.mxu0 %v3145
        %3248 = vmatprep.subr.bf16.mxu0 %v3149
        %3249 = vmatpush1.bf16.msra.mxu0 %v3148
        %3250 = vmatprep.mubr.bf16.mxu0 %v3203
        %3251 = vmatmul.mubr.bf16.gmra.mrb[0].mxu0 %v3202
        %v3252 = vpop.f32.mrb[0].mxu0
        %v3253 = vadd.f32 %v3165, %v3252
        %v3254 = vpop.f32.mrb[0].mxu0
        %v3255 = vadd.f32 %v3165, %v3254
        %v3256 = vpop.f32.mrb[0].mxu0
        %v3257 = vadd.f32 %v3170, %v3256
        %v3258 = vpop.f32.mrb[0].mxu0
        %v3259 = vadd.f32 %v3170, %v3258
        %3260 = vmatprep.mubr.bf16.mxu0 %v3206
        %3261 = vmatmul.mubr.bf16.gmra.mrb[0].mxu0 %v3205
        %v3262 = vpop.f32.mrb[0].mxu0
        %v3263 = vadd.f32 %v3175, %v3262
        %v3264 = vpop.f32.mrb[0].mxu0
        %v3265 = vadd.f32 %v3175, %v3264
        %v3266 = vpop.f32.mrb[0].mxu0
        %v3267 = vadd.f32 %v3180, %v3266
        %v3268 = vpop.f32.mrb[0].mxu0
        %v3269 = vadd.f32 %v3180, %v3268
        %3270 = vdwg.mxu0
        %3271 = vmatprep.subr.bf16.mxu0 %v3152
        %3272 = vmatpush1.bf16.msra.mxu0 %v3151
        %3273 = vmatprep.subr.bf16.mxu0 %v3155
        %3274 = vmatpush1.bf16.msra.mxu0 %v3154
        %3275 = vmatprep.subr.bf16.mxu0 0
        %3276 = vmatpush1.bf16.msra.mxu0 0
        %3277 = vmatprep.subr.bf16.mxu0 0
        %3278 = vmatpush1.bf16.msra.mxu0 0
        %3279 = vmatprep.subr.bf16.mxu0 0
        %3280 = vmatpush1.bf16.msra.mxu0 0
        %3281 = vmatprep.subr.bf16.mxu0 0
        %3282 = vmatpush1.bf16.msra.mxu0 0
        %3283 = vmatprep.subr.bf16.mxu0 0
        %3284 = vmatpush1.bf16.msra.mxu0 0
        %3285 = vmatprep.subr.bf16.mxu0 0
        %3286 = vmatpush1.bf16.msra.mxu0 0
        %3287 = vmatprep.subr.bf16.mxu0 0
        %3288 = vmatpush1.bf16.msra.mxu0 0
        %3289 = vmatprep.subr.bf16.mxu0 0
        %3290 = vmatpush1.bf16.msra.mxu0 0
        %3291 = vmatprep.subr.bf16.mxu0 0
        %3292 = vmatpush1.bf16.msra.mxu0 0
        %3293 = vmatprep.subr.bf16.mxu0 0
        %3294 = vmatpush1.bf16.msra.mxu0 0
        %3295 = vmatprep.subr.bf16.mxu0 0
        %3296 = vmatpush1.bf16.msra.mxu0 0
        %3297 = vmatprep.subr.bf16.mxu0 0
        %3298 = vmatpush1.bf16.msra.mxu0 0
        %3299 = vmatprep.subr.bf16.mxu0 0
        %3300 = vmatpush1.bf16.msra.mxu0 0
        %3301 = vmatprep.subr.bf16.mxu0 0
        %3302 = vmatpush1.bf16.msra.mxu0 0
        %3303 = vmatprep.mubr.bf16.mxu0 0
        %3304 = vmatmul.mubr.bf16.gmra.mrb[0].mxu0 %v3213
        %v3305 = vpop.f32.mrb[0].mxu0
        %v3306 = vadd.f32 %v3253, %v3305
        %v3307 = vpop.f32.mrb[0].mxu0
        %v3308 = vadd.f32 %v3255, %v3307
        %v3309 = vpop.f32.mrb[0].mxu0
        %v3310 = vadd.f32 %v3257, %v3309
        %v3311 = vpop.f32.mrb[0].mxu0
        %v3312 = vadd.f32 %v3259, %v3311
        %3313 = vmatprep.mubr.bf16.mxu0 0
        %3314 = vmatmul.mubr.bf16.gmra.mrb[0].mxu0 %v3216
        %v3315 = vpop.f32.mrb[0].mxu0
        %v3316 = vadd.f32 %v3263, %v3315
        %v3317 = vpop.f32.mrb[0].mxu0
        %v3318 = vadd.f32 %v3265, %v3317
        %v3319 = vpop.f32.mrb[0].mxu0
        %v3320 = vadd.f32 %v3267, %v3319
        %v3321 = vpop.f32.mrb[0].mxu0
        %v3322 = vadd.f32 %v3269, %v3321
        %3323 = vdwg.mxu0
        %3324 = vmatprep.subr.bf16.mxu0 0
        %3325 = vmatpush1.bf16.msra.mxu0 %v3105
        %3326 = vmatprep.subr.bf16.mxu0 0
        %3327 = vmatpush1.bf16.msra.mxu0 %v3108
        %3328 = vmatprep.subr.bf16.mxu0 0
        %3329 = vmatpush1.bf16.msra.mxu0 %v3111
        %3330 = vmatprep.subr.bf16.mxu0 0
        %3331 = vmatpush1.bf16.msra.mxu0 %v3114
        %3332 = vmatprep.subr.bf16.mxu0 0
        %3333 = vmatpush1.bf16.msra.mxu0 %v3117
        %3334 = vmatprep.subr.bf16.mxu0 0
        %3335 = vmatpush1.bf16.msra.mxu0 %v3120
        %3336 = vmatprep.subr.bf16.mxu0 0
        %3337 = vmatpush1.bf16.msra.mxu0 %v3123
        %3338 = vmatprep.subr.bf16.mxu0 0
        %3339 = vmatpush1.bf16.msra.mxu0 %v3126
        %3340 = vmatprep.subr.bf16.mxu0 0
        %3341 = vmatpush1.bf16.msra.mxu0 %v3129
        %3342 = vmatprep.subr.bf16.mxu0 0
        %3343 = vmatpush1.bf16.msra.mxu0 %v3132
        %3344 = vmatprep.subr.bf16.mxu0 0
        %3345 = vmatpush1.bf16.msra.mxu0 %v3135
        %3346 = vmatprep.subr.bf16.mxu0 0
        %3347 = vmatpush1.bf16.msra.mxu0 %v3138
        %3348 = vmatprep.subr.bf16.mxu0 0
        %3349 = vmatpush1.bf16.msra.mxu0 %v3141
        %3350 = vmatprep.subr.bf16.mxu0 0
        %3351 = vmatpush1.bf16.msra.mxu0 %v3144
        %3352 = vmatprep.subr.bf16.mxu0 0
        %3353 = vmatpush1.bf16.msra.mxu0 %v3147
        %3354 = vmatprep.subr.bf16.mxu0 0
        %3355 = vmatpush1.bf16.msra.mxu0 %v3150
        %3356 = vmatprep.mubr.bf16.mxu0 %v3203
        %3357 = vmatmul.mubr.bf16.gmra.mrb[0].mxu0 %v3202
        %v3358 = vpop.f32.mrb[0].mxu0
        %v3359 = vadd.f32 %v3165, %v3358
        %v3360 = vpop.f32.mrb[0].mxu0
        %v3361 = vpop.f32.mrb[0].mxu0
        %v3362 = vadd.f32 %v3170, %v3361
        %v3363 = vpop.f32.mrb[0].mxu0
        %3364 = vmatprep.mubr.bf16.mxu0 %v3206
        %3365 = vmatmul.mubr.bf16.gmra.mrb[0].mxu0 %v3205
        %v3366 = vpop.f32.mrb[0].mxu0
        %v3367 = vadd.f32 %v3175, %v3366
        %v3368 = vpop.f32.mrb[0].mxu0
        %v3369 = vpop.f32.mrb[0].mxu0
        %v3370 = vadd.f32 %v3180, %v3369
        %v3371 = vpop.f32.mrb[0].mxu0
        %3372 = vdwg.mxu0
        %3373 = vmatprep.subr.bf16.mxu0 0
        %3374 = vmatpush1.bf16.msra.mxu0 %v3153
        %3375 = vmatprep.subr.bf16.mxu0 0
        %3376 = vmatpush1.bf16.msra.mxu0 %v3156
        %3377 = vmatprep.subr.bf16.mxu0 0
        %3378 = vmatpush1.bf16.msra.mxu0 0
        %3379 = vmatprep.subr.bf16.mxu0 0
        %3380 = vmatpush1.bf16.msra.mxu0 0
        %3381 = vmatprep.subr.bf16.mxu0 0
        %3382 = vmatpush1.bf16.msra.mxu0 0
        %3383 = vmatprep.subr.bf16.mxu0 0
        %3384 = vmatpush1.bf16.msra.mxu0 0
        %3385 = vmatprep.subr.bf16.mxu0 0
        %3386 = vmatpush1.bf16.msra.mxu0 0
        %3387 = vmatprep.subr.bf16.mxu0 0
        %3388 = vmatpush1.bf16.msra.mxu0 0
        %3389 = vmatprep.subr.bf16.mxu0 0
        %3390 = vmatpush1.bf16.msra.mxu0 0
        %3391 = vmatprep.subr.bf16.mxu0 0
        %3392 = vmatpush1.bf16.msra.mxu0 0
        %3393 = vmatprep.subr.bf16.mxu0 0
        %3394 = vmatpush1.bf16.msra.mxu0 0
        %3395 = vmatprep.subr.bf16.mxu0 0
        %3396 = vmatpush1.bf16.msra.mxu0 0
        %3397 = vmatprep.subr.bf16.mxu0 0
        %3398 = vmatpush1.bf16.msra.mxu0 0
        %3399 = vmatprep.subr.bf16.mxu0 0
        %3400 = vmatpush1.bf16.msra.mxu0 0
        %3401 = vmatprep.subr.bf16.mxu0 0
        %3402 = vmatpush1.bf16.msra.mxu0 0
        %3403 = vmatprep.subr.bf16.mxu0 0
        %3404 = vmatpush1.bf16.msra.mxu0 0
        %3405 = vmatprep.mubr.bf16.mxu0 0
        %3406 = vmatmul.mubr.bf16.gmra.mrb[0].mxu0 %v3213
        %v3407 = vpop.f32.mrb[0].mxu0
        %v3408 = vadd.f32 %v3359, %v3407
        %v3409 = vpop.f32.mrb[0].mxu0
        %v3410 = vpop.f32.mrb[0].mxu0
        %v3411 = vadd.f32 %v3362, %v3410
        %v3412 = vpop.f32.mrb[0].mxu0
        %3413 = vmatprep.mubr.bf16.mxu0 0
        %3414 = vmatmul.mubr.bf16.gmra.mrb[0].mxu0 %v3216
        %v3415 = vpop.f32.mrb[0].mxu0
        %v3416 = vadd.f32 %v3367, %v3415
        %v3417 = vpop.f32.mrb[0].mxu0
        %v3418 = vpop.f32.mrb[0].mxu0
        %v3419 = vadd.f32 %v3370, %v3418
        %v3420 = vpop.f32.mrb[0].mxu0
        %3421 = vdwg.mxu0
        %vm3422 = vcmp.ge.f32.partialorder %v3306, 0.0
        %vm3423 = vcmp.ge.f32.partialorder %v3308, 0.0
        %vm3424 = vcmp.ge.f32.partialorder %v3408, 0.0
        %vm3425 = vcmp.ge.f32.partialorder %v3310, 0.0
        %vm3426 = vcmp.ge.f32.partialorder %v3312, 0.0
        %vm3427 = vcmp.ge.f32.partialorder %v3411, 0.0
        %vm3428 = vcmp.ge.f32.partialorder %v3316, 0.0
        %vm3429 = vcmp.ge.f32.partialorder %v3318, 0.0
        %vm3430 = vcmp.ge.f32.partialorder %v3416, 0.0
        %vm3431 = vcmp.ge.f32.partialorder %v3320, 0.0
        %vm3432 = vcmp.ge.f32.partialorder %v3322, 0.0
        %vm3433 = vcmp.ge.f32.partialorder %v3419, 0.0
        %3434 = vset.pattern.permute.xlu0 1
        %3435 = vperm.xlu0 %3434, %v3158
        %v3436 = vpop.permute.xlu0 %3435
        %3438 = vset.pattern.permute.xlu0 1
        %3439 = vperm.xlu0 %3438, %v3159
        %v3440 = vpop.permute.xlu0 %3439
        %3442 = vset.pattern.permute.xlu0 1
        %3443 = vperm.xlu0 %3442, %v3160
        %v3444 = vpop.permute.xlu0 %3443
        %3446 = vset.pattern.permute.xlu0 1
        %3447 = vperm.xlu0 %3446, %v3161
        %v3448 = vpop.permute.xlu0 %3447
        %v3450 = vmul.f32 %v3436, %v3306
        %v3451 = vmul.f32 %v3436, %v3308
        %v3452 = vmul.f32 %v3436, %v3408
        %v3453 = vmul.f32 %v3440, %v3310
        %v3454 = vmul.f32 %v3440, %v3312
        %v3455 = vmul.f32 %v3440, %v3411
        %v3456 = vmul.f32 %v3444, %v3316
        %v3457 = vmul.f32 %v3444, %v3318
        %v3458 = vmul.f32 %v3444, %v3416
        %v3459 = vmul.f32 %v3448, %v3320
        %v3460 = vmul.f32 %v3448, %v3322
        %v3461 = vmul.f32 %v3448, %v3419
        %v3462 = vsel %vm3422, %v3306, %v3450
        %v3463 = vsel %vm3423, %v3308, %v3451
        %v3464 = vsel %vm3424, %v3408, %v3452
        %v3465 = vsel %vm3425, %v3310, %v3453
        %v3466 = vsel %vm3426, %v3312, %v3454
        %v3467 = vsel %vm3427, %v3411, %v3455
        %v3468 = vsel %vm3428, %v3316, %v3456
        %v3469 = vsel %vm3429, %v3318, %v3457
        %v3470 = vsel %vm3430, %v3416, %v3458
        %v3471 = vsel %vm3431, %v3320, %v3459
        %v3472 = vsel %vm3432, %v3322, %v3460
        %v3473 = vsel %vm3433, %v3419, %v3461
        %v3474 = vmul.f32 %v3462, %v1014
        %v3475 = vmul.f32 %v3463, %v1018
        %v3476 = vmul.f32 %v3464, %v1022
        %v3477 = vmul.f32 %v3465, %v1014
        %v3478 = vmul.f32 %v3466, %v1018
        %v3479 = vmul.f32 %v3467, %v1022
        %v3480 = vmul.f32 %v3468, %v1014
        %v3481 = vmul.f32 %v3469, %v1018
        %v3482 = vmul.f32 %v3470, %v1022
        %v3483 = vmul.f32 %v3471, %v1014
        %v3484 = vmul.f32 %v3472, %v1018
        %v3485 = vmul.f32 %v3473, %v1022
        %v3486 = vld [vmem:[#allocation4] sm:$0xff]
        %v3487 = vld [vmem:[#allocation4 + $0x8] sm:$0xff]
        %v3488 = vld [vmem:[#allocation4 + $0x10] sm:$0xff]
        %v3489 = vld [vmem:[#allocation4 + $0x18] sm:$0xff]
        %v3490 = vld [vmem:[#allocation4 + $0x20] sm:$0xff]
        %v3491 = vld [vmem:[#allocation4 + $0x28] sm:$0xff]
        %v3492 = vld [vmem:[#allocation4 + $0x30] sm:$0xff]
        %v3493 = vld [vmem:[#allocation4 + $0x38] sm:$0xff]
        %v3494 = vld [vmem:[#allocation4 + $0x40] sm:$0xff]
        %v3495 = vld [vmem:[#allocation4 + $0x48] sm:$0xff]
        %v3496 = vld [vmem:[#allocation4 + $0x50] sm:$0xff]
        %v3497 = vld [vmem:[#allocation4 + $0x58] sm:$0xff]
        %3498 = vrot.lane.b32.xlu0 %v3474, 19
        %v3499 = vpop.permute.xlu0 %3498
        %3500 = vrot.lane.b32.xlu0 %v3477, 19
        %v3501 = vpop.permute.xlu0 %3500
        %3502 = vrot.lane.b32.xlu0 %v3480, 19
        %v3503 = vpop.permute.xlu0 %3502
        %3504 = vrot.lane.b32.xlu0 %v3483, 19
        %v3505 = vpop.permute.xlu0 %3504
        %3506 = vrot.lane.b32.xlu0 %v3475, 19
        %v3507 = vpop.permute.xlu0 %3506
        %3508 = vrot.lane.b32.xlu0 %v3478, 19
        %v3509 = vpop.permute.xlu0 %3508
        %3510 = vrot.lane.b32.xlu0 %v3481, 19
        %v3511 = vpop.permute.xlu0 %3510
        %3512 = vrot.lane.b32.xlu0 %v3484, 19
        %v3513 = vpop.permute.xlu0 %3512
        %3514 = vrot.lane.b32.xlu0 %v3476, 19
        %v3515 = vpop.permute.xlu0 %3514
        %3516 = vrot.lane.b32.xlu0 %v3479, 19
        %v3517 = vpop.permute.xlu0 %3516
        %3518 = vrot.lane.b32.xlu0 %v3482, 19
        %v3519 = vpop.permute.xlu0 %3518
        %3520 = vrot.lane.b32.xlu0 %v3485, 19
        %v3521 = vpop.permute.xlu0 %3520
        %v3522 = vsel %vm251, %v3507, %v3515
        %v3523 = vsel %vm251, %v3509, %v3517
        %v3524 = vsel %vm251, %v3511, %v3519
        %v3525 = vsel %vm251, %v3513, %v3521
        %v3526 = vsel %vm251, %v3499, %v3507
        %v3527 = vsel %vm251, %v3501, %v3509
        %v3528 = vsel %vm251, %v3503, %v3511
        %v3529 = vsel %vm251, %v3505, %v3513
        %v3530 = vsel %vm251, %v3515, %v3499
        %v3531 = vsel %vm251, %v3517, %v3501
        %v3532 = vsel %vm251, %v3519, %v3503
        %v3533 = vsel %vm251, %v3521, %v3505
        %v3534 = vpack.c.bf16 %v3531, %v3530
        %v3535 = vpack.c.bf16 %v3527, %v3526
        %v3536 = vpack.c.bf16 %v3523, %v3522
        %v3537 = vpack.c.bf16 %v3533, %v3532
        %v3538 = vpack.c.bf16 %v3529, %v3528
        %v3539 = vpack.c.bf16 %v3525, %v3524
        %3540 = vst [vmem:[#allocation2] sm:$0xff] %v3534
        %3541 = vst [vmem:[#allocation2 + $0x8] sm:$0xff] %v3535
        %3542 = vst [vmem:[#allocation2 + $0x10] sm:$0xff] %v3536
        %3543 = vst [vmem:[#allocation2 + $0x18] sm:$0xff] %v3537
        %3544 = vst [vmem:[#allocation2 + $0x20] sm:$0xff] %v3538
        %3545 = vst [vmem:[#allocation2 + $0x28] sm:$0xff] %v3539
        %3546 = vrot.lane.b32.xlu0 %v3474, 18
        %v3547 = vpop.permute.xlu0 %3546
        %3548 = vrot.lane.b32.xlu0 %v3477, 18
        %v3549 = vpop.permute.xlu0 %3548
        %3550 = vrot.lane.b32.xlu0 %v3480, 18
        %v3551 = vpop.permute.xlu0 %3550
        %3552 = vrot.lane.b32.xlu0 %v3483, 18
        %v3553 = vpop.permute.xlu0 %3552
        %3554 = vrot.lane.b32.xlu0 %v3475, 18
        %v3555 = vpop.permute.xlu0 %3554
        %3556 = vrot.lane.b32.xlu0 %v3478, 18
        %v3557 = vpop.permute.xlu0 %3556
        %3558 = vrot.lane.b32.xlu0 %v3481, 18
        %v3559 = vpop.permute.xlu0 %3558
        %3560 = vrot.lane.b32.xlu0 %v3484, 18
        %v3561 = vpop.permute.xlu0 %3560
        %3562 = vrot.lane.b32.xlu0 %v3476, 18
        %v3563 = vpop.permute.xlu0 %3562
        %3564 = vrot.lane.b32.xlu0 %v3479, 18
        %v3565 = vpop.permute.xlu0 %3564
        %3566 = vrot.lane.b32.xlu0 %v3482, 18
        %v3567 = vpop.permute.xlu0 %3566
        %3568 = vrot.lane.b32.xlu0 %v3485, 18
        %v3569 = vpop.permute.xlu0 %3568
        %v3570 = vsel %vm300, %v3555, %v3563
        %v3571 = vsel %vm300, %v3557, %v3565
        %v3572 = vsel %vm300, %v3559, %v3567
        %v3573 = vsel %vm300, %v3561, %v3569
        %v3574 = vsel %vm300, %v3547, %v3555
        %v3575 = vsel %vm300, %v3549, %v3557
        %v3576 = vsel %vm300, %v3551, %v3559
        %v3577 = vsel %vm300, %v3553, %v3561
        %v3578 = vsel %vm300, %v3563, %v3547
        %v3579 = vsel %vm300, %v3565, %v3549
        %v3580 = vsel %vm300, %v3567, %v3551
        %v3581 = vsel %vm300, %v3569, %v3553
        %v3582 = vpack.c.bf16 %v3579, %v3578
        %v3583 = vpack.c.bf16 %v3575, %v3574
        %v3584 = vpack.c.bf16 %v3571, %v3570
        %v3585 = vpack.c.bf16 %v3581, %v3580
        %v3586 = vpack.c.bf16 %v3577, %v3576
        %v3587 = vpack.c.bf16 %v3573, %v3572
        %3588 = vst [vmem:[#allocation2 + $0x30] sm:$0xff] %v3582
        %3589 = vst [vmem:[#allocation2 + $0x38] sm:$0xff] %v3583
        %3590 = vst [vmem:[#allocation2 + $0x40] sm:$0xff] %v3584
        %3591 = vst [vmem:[#allocation2 + $0x48] sm:$0xff] %v3585
        %3592 = vst [vmem:[#allocation2 + $0x50] sm:$0xff] %v3586
        %3593 = vst [vmem:[#allocation2 + $0x58] sm:$0xff] %v3587
        %3594 = vrot.lane.b32.xlu0 %v3474, 17
        %v3595 = vpop.permute.xlu0 %3594
        %3596 = vrot.lane.b32.xlu0 %v3477, 17
        %v3597 = vpop.permute.xlu0 %3596
        %3598 = vrot.lane.b32.xlu0 %v3480, 17
        %v3599 = vpop.permute.xlu0 %3598
        %3600 = vrot.lane.b32.xlu0 %v3483, 17
        %v3601 = vpop.permute.xlu0 %3600
        %3602 = vrot.lane.b32.xlu0 %v3475, 17
        %v3603 = vpop.permute.xlu0 %3602
        %3604 = vrot.lane.b32.xlu0 %v3478, 17
        %v3605 = vpop.permute.xlu0 %3604
        %3606 = vrot.lane.b32.xlu0 %v3481, 17
        %v3607 = vpop.permute.xlu0 %3606
        %3608 = vrot.lane.b32.xlu0 %v3484, 17
        %v3609 = vpop.permute.xlu0 %3608
        %3610 = vrot.lane.b32.xlu0 %v3476, 17
        %v3611 = vpop.permute.xlu0 %3610
        %3612 = vrot.lane.b32.xlu0 %v3479, 17
        %v3613 = vpop.permute.xlu0 %3612
        %3614 = vrot.lane.b32.xlu0 %v3482, 17
        %v3615 = vpop.permute.xlu0 %3614
        %3616 = vrot.lane.b32.xlu0 %v3485, 17
        %v3617 = vpop.permute.xlu0 %3616
        %v3618 = vsel %vm349, %v3603, %v3611
        %v3619 = vsel %vm349, %v3605, %v3613
        %v3620 = vsel %vm349, %v3607, %v3615
        %v3621 = vsel %vm349, %v3609, %v3617
        %v3622 = vsel %vm349, %v3595, %v3603
        %v3623 = vsel %vm349, %v3597, %v3605
        %v3624 = vsel %vm349, %v3599, %v3607
        %v3625 = vsel %vm349, %v3601, %v3609
        %v3626 = vsel %vm349, %v3611, %v3595
        %v3627 = vsel %vm349, %v3613, %v3597
        %v3628 = vsel %vm349, %v3615, %v3599
        %v3629 = vsel %vm349, %v3617, %v3601
        %v3630 = vpack.c.bf16 %v3627, %v3626
        %v3631 = vpack.c.bf16 %v3623, %v3622
        %v3632 = vpack.c.bf16 %v3619, %v3618
        %v3633 = vpack.c.bf16 %v3629, %v3628
        %v3634 = vpack.c.bf16 %v3625, %v3624
        %v3635 = vpack.c.bf16 %v3621, %v3620
        %3636 = vst [vmem:[#allocation2 + $0x60] sm:$0xff] %v3630
        %3637 = vst [vmem:[#allocation2 + $0x68] sm:$0xff] %v3631
        %3638 = vst [vmem:[#allocation2 + $0x70] sm:$0xff] %v3632
        %3639 = vst [vmem:[#allocation2 + $0x78] sm:$0xff] %v3633
        %3640 = vst [vmem:[#allocation2 + $0x80] sm:$0xff] %v3634
        %3641 = vst [vmem:[#allocation2 + $0x88] sm:$0xff] %v3635
        %3642 = vrot.lane.b32.xlu0 %v3474, 1
        %v3643 = vpop.permute.xlu0 %3642
        %3644 = vrot.lane.b32.xlu0 %v3477, 1
        %v3645 = vpop.permute.xlu0 %3644
        %3646 = vrot.lane.b32.xlu0 %v3480, 1
        %v3647 = vpop.permute.xlu0 %3646
        %3648 = vrot.lane.b32.xlu0 %v3483, 1
        %v3649 = vpop.permute.xlu0 %3648
        %3650 = vrot.lane.b32.xlu0 %v3475, 1
        %v3651 = vpop.permute.xlu0 %3650
        %3652 = vrot.lane.b32.xlu0 %v3478, 1
        %v3653 = vpop.permute.xlu0 %3652
        %3654 = vrot.lane.b32.xlu0 %v3481, 1
        %v3655 = vpop.permute.xlu0 %3654
        %3656 = vrot.lane.b32.xlu0 %v3484, 1
        %v3657 = vpop.permute.xlu0 %3656
        %3658 = vrot.lane.b32.xlu0 %v3476, 1
        %v3659 = vpop.permute.xlu0 %3658
        %3660 = vrot.lane.b32.xlu0 %v3479, 1
        %v3661 = vpop.permute.xlu0 %3660
        %3662 = vrot.lane.b32.xlu0 %v3482, 1
        %v3663 = vpop.permute.xlu0 %3662
        %3664 = vrot.lane.b32.xlu0 %v3485, 1
        %v3665 = vpop.permute.xlu0 %3664
        %v3666 = vsel %vm398, %v3651, %v3659
        %v3667 = vsel %vm398, %v3653, %v3661
        %v3668 = vsel %vm398, %v3655, %v3663
        %v3669 = vsel %vm398, %v3657, %v3665
        %v3670 = vsel %vm398, %v3643, %v3651
        %v3671 = vsel %vm398, %v3645, %v3653
        %v3672 = vsel %vm398, %v3647, %v3655
        %v3673 = vsel %vm398, %v3649, %v3657
        %v3674 = vsel %vm398, %v3659, %v3643
        %v3675 = vsel %vm398, %v3661, %v3645
        %v3676 = vsel %vm398, %v3663, %v3647
        %v3677 = vsel %vm398, %v3665, %v3649
        %v3678 = vpack.c.bf16 %v3675, %v3674
        %v3679 = vpack.c.bf16 %v3671, %v3670
        %v3680 = vpack.c.bf16 %v3667, %v3666
        %v3681 = vpack.c.bf16 %v3677, %v3676
        %v3682 = vpack.c.bf16 %v3673, %v3672
        %v3683 = vpack.c.bf16 %v3669, %v3668
        %3684 = vst [vmem:[#allocation2 + $0x90] sm:$0xff] %v3678
        %3685 = vst [vmem:[#allocation2 + $0x98] sm:$0xff] %v3679
        %3686 = vst [vmem:[#allocation2 + $0xa0] sm:$0xff] %v3680
        %3687 = vst [vmem:[#allocation2 + $0xa8] sm:$0xff] %v3681
        %3688 = vst [vmem:[#allocation2 + $0xb0] sm:$0xff] %v3682
        %3689 = vst [vmem:[#allocation2 + $0xb8] sm:$0xff] %v3683
        %v3690 = vpack.c.bf16 %v3477, %v3474
        %v3691 = vpack.c.bf16 %v3478, %v3475
        %v3692 = vpack.c.bf16 %v3479, %v3476
        %v3693 = vpack.c.bf16 %v3483, %v3480
        %v3694 = vpack.c.bf16 %v3484, %v3481
        %v3695 = vpack.c.bf16 %v3485, %v3482
        %3696 = vst [vmem:[#allocation2 + $0xc0] sm:$0xff] %v3690
        %3697 = vst [vmem:[#allocation2 + $0xc8] sm:$0xff] %v3691
        %3698 = vst [vmem:[#allocation2 + $0xd0] sm:$0xff] %v3692
        %3699 = vst [vmem:[#allocation2 + $0xd8] sm:$0xff] %v3693
        %3700 = vst [vmem:[#allocation2 + $0xe0] sm:$0xff] %v3694
        %3701 = vst [vmem:[#allocation2 + $0xe8] sm:$0xff] %v3695
        %3702 = vrot.lane.b32.xlu0 %v3474, 127
        %v3703 = vpop.permute.xlu0 %3702
        %3704 = vrot.lane.b32.xlu0 %v3477, 127
        %v3705 = vpop.permute.xlu0 %3704
        %3706 = vrot.lane.b32.xlu0 %v3480, 127
        %v3707 = vpop.permute.xlu0 %3706
        %3708 = vrot.lane.b32.xlu0 %v3483, 127
        %v3709 = vpop.permute.xlu0 %3708
        %3710 = vrot.lane.b32.xlu0 %v3475, 127
        %v3711 = vpop.permute.xlu0 %3710
        %3712 = vrot.lane.b32.xlu0 %v3478, 127
        %v3713 = vpop.permute.xlu0 %3712
        %3714 = vrot.lane.b32.xlu0 %v3481, 127
        %v3715 = vpop.permute.xlu0 %3714
        %3716 = vrot.lane.b32.xlu0 %v3484, 127
        %v3717 = vpop.permute.xlu0 %3716
        %3718 = vrot.lane.b32.xlu0 %v3476, 127
        %v3719 = vpop.permute.xlu0 %3718
        %3720 = vrot.lane.b32.xlu0 %v3479, 127
        %v3721 = vpop.permute.xlu0 %3720
        %3722 = vrot.lane.b32.xlu0 %v3482, 127
        %v3723 = vpop.permute.xlu0 %3722
        %3724 = vrot.lane.b32.xlu0 %v3485, 127
        %v3725 = vpop.permute.xlu0 %3724
        %v3726 = vsel %vm459, %v3711, %v3719
        %v3727 = vsel %vm459, %v3713, %v3721
        %v3728 = vsel %vm459, %v3715, %v3723
        %v3729 = vsel %vm459, %v3717, %v3725
        %v3730 = vsel %vm459, %v3703, %v3711
        %v3731 = vsel %vm459, %v3705, %v3713
        %v3732 = vsel %vm459, %v3707, %v3715
        %v3733 = vsel %vm459, %v3709, %v3717
        %v3734 = vsel %vm459, %v3719, %v3703
        %v3735 = vsel %vm459, %v3721, %v3705
        %v3736 = vsel %vm459, %v3723, %v3707
        %v3737 = vsel %vm459, %v3725, %v3709
        %v3738 = vpack.c.bf16 %v3731, %v3730
        %v3739 = vpack.c.bf16 %v3727, %v3726
        %v3740 = vpack.c.bf16 %v3735, %v3734
        %v3741 = vpack.c.bf16 %v3733, %v3732
        %v3742 = vpack.c.bf16 %v3729, %v3728
        %v3743 = vpack.c.bf16 %v3737, %v3736
        %3744 = vst [vmem:[#allocation2 + $0xf0] sm:$0xff] %v3738
        %3745 = vst [vmem:[#allocation2 + $0xf8] sm:$0xff] %v3739
        %3746 = vst [vmem:[#allocation2 + $0x100] sm:$0xff] %v3740
        %3747 = vst [vmem:[#allocation2 + $0x108] sm:$0xff] %v3741
        %3748 = vst [vmem:[#allocation2 + $0x110] sm:$0xff] %v3742
        %3749 = vst [vmem:[#allocation2 + $0x118] sm:$0xff] %v3743
        %3750 = vrot.lane.b32.xlu0 %v3474, 111
        %v3751 = vpop.permute.xlu0 %3750
        %3752 = vrot.lane.b32.xlu0 %v3477, 111
        %v3753 = vpop.permute.xlu0 %3752
        %3754 = vrot.lane.b32.xlu0 %v3480, 111
        %v3755 = vpop.permute.xlu0 %3754
        %3756 = vrot.lane.b32.xlu0 %v3483, 111
        %v3757 = vpop.permute.xlu0 %3756
        %3758 = vrot.lane.b32.xlu0 %v3475, 111
        %v3759 = vpop.permute.xlu0 %3758
        %3760 = vrot.lane.b32.xlu0 %v3478, 111
        %v3761 = vpop.permute.xlu0 %3760
        %3762 = vrot.lane.b32.xlu0 %v3481, 111
        %v3763 = vpop.permute.xlu0 %3762
        %3764 = vrot.lane.b32.xlu0 %v3484, 111
        %v3765 = vpop.permute.xlu0 %3764
        %3766 = vrot.lane.b32.xlu0 %v3476, 111
        %v3767 = vpop.permute.xlu0 %3766
        %3768 = vrot.lane.b32.xlu0 %v3479, 111
        %v3769 = vpop.permute.xlu0 %3768
        %3770 = vrot.lane.b32.xlu0 %v3482, 111
        %v3771 = vpop.permute.xlu0 %3770
        %3772 = vrot.lane.b32.xlu0 %v3485, 111
        %v3773 = vpop.permute.xlu0 %3772
        %v3774 = vsel %vm508, %v3759, %v3767
        %v3775 = vsel %vm508, %v3761, %v3769
        %v3776 = vsel %vm508, %v3763, %v3771
        %v3777 = vsel %vm508, %v3765, %v3773
        %v3778 = vsel %vm508, %v3751, %v3759
        %v3779 = vsel %vm508, %v3753, %v3761
        %v3780 = vsel %vm508, %v3755, %v3763
        %v3781 = vsel %vm508, %v3757, %v3765
        %v3782 = vsel %vm508, %v3767, %v3751
        %v3783 = vsel %vm508, %v3769, %v3753
        %v3784 = vsel %vm508, %v3771, %v3755
        %v3785 = vsel %vm508, %v3773, %v3757
        %v3786 = vpack.c.bf16 %v3779, %v3778
        %v3787 = vpack.c.bf16 %v3775, %v3774
        %v3788 = vpack.c.bf16 %v3783, %v3782
        %v3789 = vpack.c.bf16 %v3781, %v3780
        %v3790 = vpack.c.bf16 %v3777, %v3776
        %v3791 = vpack.c.bf16 %v3785, %v3784
        %3792 = vst [vmem:[#allocation2 + $0x120] sm:$0xff] %v3786
        %3793 = vst [vmem:[#allocation2 + $0x128] sm:$0xff] %v3787
        %3794 = vst [vmem:[#allocation2 + $0x130] sm:$0xff] %v3788
        %3795 = vst [vmem:[#allocation2 + $0x138] sm:$0xff] %v3789
        %3796 = vst [vmem:[#allocation2 + $0x140] sm:$0xff] %v3790
        %3797 = vst [vmem:[#allocation2 + $0x148] sm:$0xff] %v3791
        %3798 = vrot.lane.b32.xlu0 %v3474, 110
        %v3799 = vpop.permute.xlu0 %3798
        %3800 = vrot.lane.b32.xlu0 %v3477, 110
        %v3801 = vpop.permute.xlu0 %3800
        %3802 = vrot.lane.b32.xlu0 %v3480, 110
        %v3803 = vpop.permute.xlu0 %3802
        %3804 = vrot.lane.b32.xlu0 %v3483, 110
        %v3805 = vpop.permute.xlu0 %3804
        %3806 = vrot.lane.b32.xlu0 %v3475, 110
        %v3807 = vpop.permute.xlu0 %3806
        %3808 = vrot.lane.b32.xlu0 %v3478, 110
        %v3809 = vpop.permute.xlu0 %3808
        %3810 = vrot.lane.b32.xlu0 %v3481, 110
        %v3811 = vpop.permute.xlu0 %3810
        %3812 = vrot.lane.b32.xlu0 %v3484, 110
        %v3813 = vpop.permute.xlu0 %3812
        %3814 = vrot.lane.b32.xlu0 %v3476, 110
        %v3815 = vpop.permute.xlu0 %3814
        %3816 = vrot.lane.b32.xlu0 %v3479, 110
        %v3817 = vpop.permute.xlu0 %3816
        %3818 = vrot.lane.b32.xlu0 %v3482, 110
        %v3819 = vpop.permute.xlu0 %3818
        %3820 = vrot.lane.b32.xlu0 %v3485, 110
        %v3821 = vpop.permute.xlu0 %3820
        %v3822 = vsel %vm557, %v3807, %v3815
        %v3823 = vsel %vm557, %v3809, %v3817
        %v3824 = vsel %vm557, %v3811, %v3819
        %v3825 = vsel %vm557, %v3813, %v3821
        %v3826 = vsel %vm557, %v3799, %v3807
        %v3827 = vsel %vm557, %v3801, %v3809
        %v3828 = vsel %vm557, %v3803, %v3811
        %v3829 = vsel %vm557, %v3805, %v3813
        %v3830 = vsel %vm557, %v3815, %v3799
        %v3831 = vsel %vm557, %v3817, %v3801
        %v3832 = vsel %vm557, %v3819, %v3803
        %v3833 = vsel %vm557, %v3821, %v3805
        %v3834 = vpack.c.bf16 %v3827, %v3826
        %v3835 = vpack.c.bf16 %v3823, %v3822
        %v3836 = vpack.c.bf16 %v3831, %v3830
        %v3837 = vpack.c.bf16 %v3829, %v3828
        %v3838 = vpack.c.bf16 %v3825, %v3824
        %v3839 = vpack.c.bf16 %v3833, %v3832
        %3840 = vst [vmem:[#allocation2 + $0x150] sm:$0xff] %v3834
        %3841 = vst [vmem:[#allocation2 + $0x158] sm:$0xff] %v3835
        %3842 = vst [vmem:[#allocation2 + $0x160] sm:$0xff] %v3836
        %3843 = vst [vmem:[#allocation2 + $0x168] sm:$0xff] %v3837
        %3844 = vst [vmem:[#allocation2 + $0x170] sm:$0xff] %v3838
        %3845 = vst [vmem:[#allocation2 + $0x178] sm:$0xff] %v3839
        %3846 = vrot.lane.b32.xlu0 %v3474, 109
        %v3847 = vpop.permute.xlu0 %3846
        %3848 = vrot.lane.b32.xlu0 %v3477, 109
        %v3849 = vpop.permute.xlu0 %3848
        %3850 = vrot.lane.b32.xlu0 %v3480, 109
        %v3851 = vpop.permute.xlu0 %3850
        %3852 = vrot.lane.b32.xlu0 %v3483, 109
        %v3853 = vpop.permute.xlu0 %3852
        %3854 = vrot.lane.b32.xlu0 %v3475, 109
        %v3855 = vpop.permute.xlu0 %3854
        %3856 = vrot.lane.b32.xlu0 %v3478, 109
        %v3857 = vpop.permute.xlu0 %3856
        %3858 = vrot.lane.b32.xlu0 %v3481, 109
        %v3859 = vpop.permute.xlu0 %3858
        %3860 = vrot.lane.b32.xlu0 %v3484, 109
        %v3861 = vpop.permute.xlu0 %3860
        %3862 = vrot.lane.b32.xlu0 %v3476, 109
        %v3863 = vpop.permute.xlu0 %3862
        %3864 = vrot.lane.b32.xlu0 %v3479, 109
        %v3865 = vpop.permute.xlu0 %3864
        %3866 = vrot.lane.b32.xlu0 %v3482, 109
        %v3867 = vpop.permute.xlu0 %3866
        %3868 = vrot.lane.b32.xlu0 %v3485, 109
        %v3869 = vpop.permute.xlu0 %3868
        %v3870 = vsel %vm606, %v3855, %v3863
        %v3871 = vsel %vm606, %v3857, %v3865
        %v3872 = vsel %vm606, %v3859, %v3867
        %v3873 = vsel %vm606, %v3861, %v3869
        %v3874 = vsel %vm606, %v3847, %v3855
        %v3875 = vsel %vm606, %v3849, %v3857
        %v3876 = vsel %vm606, %v3851, %v3859
        %v3877 = vsel %vm606, %v3853, %v3861
        %v3878 = vsel %vm606, %v3863, %v3847
        %v3879 = vsel %vm606, %v3865, %v3849
        %v3880 = vsel %vm606, %v3867, %v3851
        %v3881 = vsel %vm606, %v3869, %v3853
        %v3882 = vpack.c.bf16 %v3875, %v3874
        %v3883 = vpack.c.bf16 %v3871, %v3870
        %v3884 = vpack.c.bf16 %v3879, %v3878
        %v3885 = vpack.c.bf16 %v3877, %v3876
        %v3886 = vpack.c.bf16 %v3873, %v3872
        %v3887 = vpack.c.bf16 %v3881, %v3880
        %3888 = vst [vmem:[#allocation2 + $0x180] sm:$0xff] %v3882
        %3889 = vst [vmem:[#allocation2 + $0x188] sm:$0xff] %v3883
        %3890 = vst [vmem:[#allocation2 + $0x190] sm:$0xff] %v3884
        %3891 = vst [vmem:[#allocation2 + $0x198] sm:$0xff] %v3885
        %3892 = vst [vmem:[#allocation2 + $0x1a0] sm:$0xff] %v3886
        %3893 = vst [vmem:[#allocation2 + $0x1a8] sm:$0xff] %v3887
        %s3894 = scalar_lea.vmem [#allocation5], 192
        %v3895 = vld [vmem:[%s3894] sm:$0xff]
        %v3896 = vld [vmem:[%s3894 + $0x8] sm:$0xf]
        %v3897 = vld [vmem:[%s3894 + $0xc] sm:$0xff]
        %v3898 = vld [vmem:[%s3894 + $0x14] sm:$0xf]
        %v3899 = vld [vmem:[%s3894 + $0x18] sm:$0xff]
        %v3900 = vld [vmem:[%s3894 + $0x20] sm:$0xf]
        %v3901 = vld [vmem:[%s3894 + $0x24] sm:$0xff]
        %v3902 = vld [vmem:[%s3894 + $0x2c] sm:$0xf]
        %v3903 = vld [vmem:[#allocation2] sm:$0xff]
        %v3904 = vld [vmem:[#allocation2 + $0x8] sm:$0xff]
        %v3905 = vld [vmem:[#allocation2 + $0x10] sm:$0xff]
        %v3906 = vld [vmem:[#allocation2 + $0x18] sm:$0xff]
        %v3907 = vld [vmem:[#allocation2 + $0x20] sm:$0xff]
        %v3908 = vld [vmem:[#allocation2 + $0x28] sm:$0xff]
        %v3909 = vld [vmem:[#allocation2 + $0x30] sm:$0xff]
        %v3910 = vld [vmem:[#allocation2 + $0x38] sm:$0xff]
        %v3911 = vld [vmem:[#allocation2 + $0x40] sm:$0xff]
        %v3912 = vld [vmem:[#allocation2 + $0x48] sm:$0xff]
        %v3913 = vld [vmem:[#allocation2 + $0x50] sm:$0xff]
        %v3914 = vld [vmem:[#allocation2 + $0x58] sm:$0xff]
        %v3915 = vld [vmem:[#allocation2 + $0x60] sm:$0xff]
        %v3916 = vld [vmem:[#allocation2 + $0x68] sm:$0xff]
        %v3917 = vld [vmem:[#allocation2 + $0x70] sm:$0xff]
        %v3918 = vld [vmem:[#allocation2 + $0x78] sm:$0xff]
        %v3919 = vld [vmem:[#allocation2 + $0x80] sm:$0xff]
        %v3920 = vld [vmem:[#allocation2 + $0x88] sm:$0xff]
        %v3921 = vld [vmem:[#allocation2 + $0x90] sm:$0xff]
        %v3922 = vld [vmem:[#allocation2 + $0x98] sm:$0xff]
        %v3923 = vld [vmem:[#allocation2 + $0xa0] sm:$0xff]
        %v3924 = vld [vmem:[#allocation2 + $0xa8] sm:$0xff]
        %v3925 = vld [vmem:[#allocation2 + $0xb0] sm:$0xff]
        %v3926 = vld [vmem:[#allocation2 + $0xb8] sm:$0xff]
        %v3927 = vld [vmem:[#allocation2 + $0xc0] sm:$0xff]
        %v3928 = vld [vmem:[#allocation2 + $0xc8] sm:$0xff]
        %v3929 = vld [vmem:[#allocation2 + $0xd0] sm:$0xff]
        %v3930 = vld [vmem:[#allocation2 + $0xd8] sm:$0xff]
        %v3931 = vld [vmem:[#allocation2 + $0xe0] sm:$0xff]
        %v3932 = vld [vmem:[#allocation2 + $0xe8] sm:$0xff]
        %v3933 = vld [vmem:[#allocation2 + $0xf0] sm:$0xff]
        %v3934 = vld [vmem:[#allocation2 + $0xf8] sm:$0xff]
        %v3935 = vld [vmem:[#allocation2 + $0x100] sm:$0xff]
        %v3936 = vld [vmem:[#allocation2 + $0x108] sm:$0xff]
        %v3937 = vld [vmem:[#allocation2 + $0x110] sm:$0xff]
        %v3938 = vld [vmem:[#allocation2 + $0x118] sm:$0xff]
        %v3939 = vld [vmem:[#allocation2 + $0x120] sm:$0xff]
        %v3940 = vld [vmem:[#allocation2 + $0x128] sm:$0xff]
        %v3941 = vld [vmem:[#allocation2 + $0x130] sm:$0xff]
        %v3942 = vld [vmem:[#allocation2 + $0x138] sm:$0xff]
        %v3943 = vld [vmem:[#allocation2 + $0x140] sm:$0xff]
        %v3944 = vld [vmem:[#allocation2 + $0x148] sm:$0xff]
        %v3945 = vld [vmem:[#allocation2 + $0x150] sm:$0xff]
        %v3946 = vld [vmem:[#allocation2 + $0x158] sm:$0xff]
        %v3947 = vld [vmem:[#allocation2 + $0x160] sm:$0xff]
        %v3948 = vld [vmem:[#allocation2 + $0x168] sm:$0xff]
        %v3949 = vld [vmem:[#allocation2 + $0x170] sm:$0xff]
        %v3950 = vld [vmem:[#allocation2 + $0x178] sm:$0xff]
        %v3951 = vld [vmem:[#allocation2 + $0x180] sm:$0xff]
        %v3952 = vld [vmem:[#allocation2 + $0x188] sm:$0xff]
        %v3953 = vld [vmem:[#allocation2 + $0x190] sm:$0xff]
        %v3954 = vld [vmem:[#allocation2 + $0x198] sm:$0xff]
        %v3955 = vld [vmem:[#allocation2 + $0x1a0] sm:$0xff]
        %v3956 = vld [vmem:[#allocation2 + $0x1a8] sm:$0xff]
        %s3957 = scalar_lea.vmem %s2, 128
        %v3958 = vld [vmem:[%s3957] sm:$0xff]
        %v3959 = vld [vmem:[%s3957 + $0x8] sm:$0xff]
        %v3960 = vld [vmem:[%s3957 + $0x10] sm:$0xff]
        %v3961 = vld [vmem:[%s3957 + $0x18] sm:$0xff]
        %3963 = vset.pattern.permute.xlu0 0
        %3964 = vperm.xlu0 %3963, %v3958
        %v3965 = vpop.permute.xlu0 %3964
        %3968 = vset.pattern.permute.xlu0 0
        %3969 = vperm.xlu0 %3968, %v3959
        %v3970 = vpop.permute.xlu0 %3969
        %3973 = vset.pattern.permute.xlu0 0
        %3974 = vperm.xlu0 %3973, %v3960
        %v3975 = vpop.permute.xlu0 %3974
        %3978 = vset.pattern.permute.xlu0 0
        %3979 = vperm.xlu0 %3978, %v3961
        %v3980 = vpop.permute.xlu0 %3979
        %v3990 = vunpack.c.l.b16 %v3895
        %v3991 = vunpack.c.h.b16 %v3895
        %v3992 = vunpack.c.l.b16 %v3896
        %v3993 = vunpack.c.l.b16 %v3897
        %v3994 = vunpack.c.h.b16 %v3897
        %v3995 = vunpack.c.l.b16 %v3898
        %v3996 = vunpack.c.l.b16 %v3899
        %v3997 = vunpack.c.h.b16 %v3899
        %v3998 = vunpack.c.l.b16 %v3900
        %v3999 = vunpack.c.l.b16 %v3901
        %v4000 = vunpack.c.h.b16 %v3901
        %v4001 = vunpack.c.l.b16 %v3902
        %v4002 = vpack.c.b16 %v3993, %v3990
        %v4003 = vpack.c.b16 %v3994, %v3991
        %v4004 = vpack.c.b16 %v3995, %v3992
        %v4005 = vpack.c.b16 %v3999, %v3996
        %v4006 = vpack.c.b16 %v4000, %v3997
        %v4007 = vpack.c.b16 %v4001, %v3998
        %v4013 = vsel %vm747, %v4004, 0
        %v4016 = vsel %vm747, %v4007, 0
        %4018 = vmatprep.subr.bf16.mxu0 %v3904
        %4019 = vmatpush1.bf16.msra.mxu0 %v3903
        %4020 = vmatprep.subr.bf16.mxu0 %v3907
        %4021 = vmatpush1.bf16.msra.mxu0 %v3906
        %4022 = vmatprep.subr.bf16.mxu0 %v3910
        %4023 = vmatpush1.bf16.msra.mxu0 %v3909
        %4024 = vmatprep.subr.bf16.mxu0 %v3913
        %4025 = vmatpush1.bf16.msra.mxu0 %v3912
        %4026 = vmatprep.subr.bf16.mxu0 %v3916
        %4027 = vmatpush1.bf16.msra.mxu0 %v3915
        %4028 = vmatprep.subr.bf16.mxu0 %v3919
        %4029 = vmatpush1.bf16.msra.mxu0 %v3918
        %4030 = vmatprep.subr.bf16.mxu0 %v3922
        %4031 = vmatpush1.bf16.msra.mxu0 %v3921
        %4032 = vmatprep.subr.bf16.mxu0 %v3925
        %4033 = vmatpush1.bf16.msra.mxu0 %v3924
        %4034 = vmatprep.subr.bf16.mxu0 %v3928
        %4035 = vmatpush1.bf16.msra.mxu0 %v3927
        %4036 = vmatprep.subr.bf16.mxu0 %v3931
        %4037 = vmatpush1.bf16.msra.mxu0 %v3930
        %4038 = vmatprep.subr.bf16.mxu0 %v3934
        %4039 = vmatpush1.bf16.msra.mxu0 %v3933
        %4040 = vmatprep.subr.bf16.mxu0 %v3937
        %4041 = vmatpush1.bf16.msra.mxu0 %v3936
        %4042 = vmatprep.subr.bf16.mxu0 %v3940
        %4043 = vmatpush1.bf16.msra.mxu0 %v3939
        %4044 = vmatprep.subr.bf16.mxu0 %v3943
        %4045 = vmatpush1.bf16.msra.mxu0 %v3942
        %4046 = vmatprep.subr.bf16.mxu0 %v3946
        %4047 = vmatpush1.bf16.msra.mxu0 %v3945
        %4048 = vmatprep.subr.bf16.mxu0 %v3949
        %4049 = vmatpush1.bf16.msra.mxu0 %v3948
        %4050 = vmatprep.mubr.bf16.mxu0 %v4003
        %4051 = vmatmul.mubr.bf16.gmra.mrb[0].mxu0 %v4002
        %v4052 = vpop.f32.mrb[0].mxu0
        %v4053 = vadd.f32 %v3965, %v4052
        %v4054 = vpop.f32.mrb[0].mxu0
        %v4055 = vadd.f32 %v3965, %v4054
        %v4056 = vpop.f32.mrb[0].mxu0
        %v4057 = vadd.f32 %v3970, %v4056
        %v4058 = vpop.f32.mrb[0].mxu0
        %v4059 = vadd.f32 %v3970, %v4058
        %4060 = vmatprep.mubr.bf16.mxu0 %v4006
        %4061 = vmatmul.mubr.bf16.gmra.mrb[0].mxu0 %v4005
        %v4062 = vpop.f32.mrb[0].mxu0
        %v4063 = vadd.f32 %v3975, %v4062
        %v4064 = vpop.f32.mrb[0].mxu0
        %v4065 = vadd.f32 %v3975, %v4064
        %v4066 = vpop.f32.mrb[0].mxu0
        %v4067 = vadd.f32 %v3980, %v4066
        %v4068 = vpop.f32.mrb[0].mxu0
        %v4069 = vadd.f32 %v3980, %v4068
        %4070 = vdwg.mxu0
        %4071 = vmatprep.subr.bf16.mxu0 %v3952
        %4072 = vmatpush1.bf16.msra.mxu0 %v3951
        %4073 = vmatprep.subr.bf16.mxu0 %v3955
        %4074 = vmatpush1.bf16.msra.mxu0 %v3954
        %4075 = vmatprep.subr.bf16.mxu0 0
        %4076 = vmatpush1.bf16.msra.mxu0 0
        %4077 = vmatprep.subr.bf16.mxu0 0
        %4078 = vmatpush1.bf16.msra.mxu0 0
        %4079 = vmatprep.subr.bf16.mxu0 0
        %4080 = vmatpush1.bf16.msra.mxu0 0
        %4081 = vmatprep.subr.bf16.mxu0 0
        %4082 = vmatpush1.bf16.msra.mxu0 0
        %4083 = vmatprep.subr.bf16.mxu0 0
        %4084 = vmatpush1.bf16.msra.mxu0 0
        %4085 = vmatprep.subr.bf16.mxu0 0
        %4086 = vmatpush1.bf16.msra.mxu0 0
        %4087 = vmatprep.subr.bf16.mxu0 0
        %4088 = vmatpush1.bf16.msra.mxu0 0
        %4089 = vmatprep.subr.bf16.mxu0 0
        %4090 = vmatpush1.bf16.msra.mxu0 0
        %4091 = vmatprep.subr.bf16.mxu0 0
        %4092 = vmatpush1.bf16.msra.mxu0 0
        %4093 = vmatprep.subr.bf16.mxu0 0
        %4094 = vmatpush1.bf16.msra.mxu0 0
        %4095 = vmatprep.subr.bf16.mxu0 0
        %4096 = vmatpush1.bf16.msra.mxu0 0
        %4097 = vmatprep.subr.bf16.mxu0 0
        %4098 = vmatpush1.bf16.msra.mxu0 0
        %4099 = vmatprep.subr.bf16.mxu0 0
        %4100 = vmatpush1.bf16.msra.mxu0 0
        %4101 = vmatprep.subr.bf16.mxu0 0
        %4102 = vmatpush1.bf16.msra.mxu0 0
        %4103 = vmatprep.mubr.bf16.mxu0 0
        %4104 = vmatmul.mubr.bf16.gmra.mrb[0].mxu0 %v4013
        %v4105 = vpop.f32.mrb[0].mxu0
        %v4106 = vadd.f32 %v4053, %v4105
        %v4107 = vpop.f32.mrb[0].mxu0
        %v4108 = vadd.f32 %v4055, %v4107
        %v4109 = vpop.f32.mrb[0].mxu0
        %v4110 = vadd.f32 %v4057, %v4109
        %v4111 = vpop.f32.mrb[0].mxu0
        %v4112 = vadd.f32 %v4059, %v4111
        %4113 = vmatprep.mubr.bf16.mxu0 0
        %4114 = vmatmul.mubr.bf16.gmra.mrb[0].mxu0 %v4016
        %v4115 = vpop.f32.mrb[0].mxu0
        %v4116 = vadd.f32 %v4063, %v4115
        %v4117 = vpop.f32.mrb[0].mxu0
        %v4118 = vadd.f32 %v4065, %v4117
        %v4119 = vpop.f32.mrb[0].mxu0
        %v4120 = vadd.f32 %v4067, %v4119
        %v4121 = vpop.f32.mrb[0].mxu0
        %v4122 = vadd.f32 %v4069, %v4121
        %4123 = vdwg.mxu0
        %4124 = vmatprep.subr.bf16.mxu0 0
        %4125 = vmatpush1.bf16.msra.mxu0 %v3905
        %4126 = vmatprep.subr.bf16.mxu0 0
        %4127 = vmatpush1.bf16.msra.mxu0 %v3908
        %4128 = vmatprep.subr.bf16.mxu0 0
        %4129 = vmatpush1.bf16.msra.mxu0 %v3911
        %4130 = vmatprep.subr.bf16.mxu0 0
        %4131 = vmatpush1.bf16.msra.mxu0 %v3914
        %4132 = vmatprep.subr.bf16.mxu0 0
        %4133 = vmatpush1.bf16.msra.mxu0 %v3917
        %4134 = vmatprep.subr.bf16.mxu0 0
        %4135 = vmatpush1.bf16.msra.mxu0 %v3920
        %4136 = vmatprep.subr.bf16.mxu0 0
        %4137 = vmatpush1.bf16.msra.mxu0 %v3923
        %4138 = vmatprep.subr.bf16.mxu0 0
        %4139 = vmatpush1.bf16.msra.mxu0 %v3926
        %4140 = vmatprep.subr.bf16.mxu0 0
        %4141 = vmatpush1.bf16.msra.mxu0 %v3929
        %4142 = vmatprep.subr.bf16.mxu0 0
        %4143 = vmatpush1.bf16.msra.mxu0 %v3932
        %4144 = vmatprep.subr.bf16.mxu0 0
        %4145 = vmatpush1.bf16.msra.mxu0 %v3935
        %4146 = vmatprep.subr.bf16.mxu0 0
        %4147 = vmatpush1.bf16.msra.mxu0 %v3938
        %4148 = vmatprep.subr.bf16.mxu0 0
        %4149 = vmatpush1.bf16.msra.mxu0 %v3941
        %4150 = vmatprep.subr.bf16.mxu0 0
        %4151 = vmatpush1.bf16.msra.mxu0 %v3944
        %4152 = vmatprep.subr.bf16.mxu0 0
        %4153 = vmatpush1.bf16.msra.mxu0 %v3947
        %4154 = vmatprep.subr.bf16.mxu0 0
        %4155 = vmatpush1.bf16.msra.mxu0 %v3950
        %4156 = vmatprep.mubr.bf16.mxu0 %v4003
        %4157 = vmatmul.mubr.bf16.gmra.mrb[0].mxu0 %v4002
        %v4158 = vpop.f32.mrb[0].mxu0
        %v4159 = vadd.f32 %v3965, %v4158
        %v4160 = vpop.f32.mrb[0].mxu0
        %v4161 = vpop.f32.mrb[0].mxu0
        %v4162 = vadd.f32 %v3970, %v4161
        %v4163 = vpop.f32.mrb[0].mxu0
        %4164 = vmatprep.mubr.bf16.mxu0 %v4006
        %4165 = vmatmul.mubr.bf16.gmra.mrb[0].mxu0 %v4005
        %v4166 = vpop.f32.mrb[0].mxu0
        %v4167 = vadd.f32 %v3975, %v4166
        %v4168 = vpop.f32.mrb[0].mxu0
        %v4169 = vpop.f32.mrb[0].mxu0
        %v4170 = vadd.f32 %v3980, %v4169
        %v4171 = vpop.f32.mrb[0].mxu0
        %4172 = vdwg.mxu0
        %4173 = vmatprep.subr.bf16.mxu0 0
        %4174 = vmatpush1.bf16.msra.mxu0 %v3953
        %4175 = vmatprep.subr.bf16.mxu0 0
        %4176 = vmatpush1.bf16.msra.mxu0 %v3956
        %4177 = vmatprep.subr.bf16.mxu0 0
        %4178 = vmatpush1.bf16.msra.mxu0 0
        %4179 = vmatprep.subr.bf16.mxu0 0
        %4180 = vmatpush1.bf16.msra.mxu0 0
        %4181 = vmatprep.subr.bf16.mxu0 0
        %4182 = vmatpush1.bf16.msra.mxu0 0
        %4183 = vmatprep.subr.bf16.mxu0 0
        %4184 = vmatpush1.bf16.msra.mxu0 0
        %4185 = vmatprep.subr.bf16.mxu0 0
        %4186 = vmatpush1.bf16.msra.mxu0 0
        %4187 = vmatprep.subr.bf16.mxu0 0
        %4188 = vmatpush1.bf16.msra.mxu0 0
        %4189 = vmatprep.subr.bf16.mxu0 0
        %4190 = vmatpush1.bf16.msra.mxu0 0
        %4191 = vmatprep.subr.bf16.mxu0 0
        %4192 = vmatpush1.bf16.msra.mxu0 0
        %4193 = vmatprep.subr.bf16.mxu0 0
        %4194 = vmatpush1.bf16.msra.mxu0 0
        %4195 = vmatprep.subr.bf16.mxu0 0
        %4196 = vmatpush1.bf16.msra.mxu0 0
        %4197 = vmatprep.subr.bf16.mxu0 0
        %4198 = vmatpush1.bf16.msra.mxu0 0
        %4199 = vmatprep.subr.bf16.mxu0 0
        %4200 = vmatpush1.bf16.msra.mxu0 0
        %4201 = vmatprep.subr.bf16.mxu0 0
        %4202 = vmatpush1.bf16.msra.mxu0 0
        %4203 = vmatprep.subr.bf16.mxu0 0
        %4204 = vmatpush1.bf16.msra.mxu0 0
        %4205 = vmatprep.mubr.bf16.mxu0 0
        %4206 = vmatmul.mubr.bf16.gmra.mrb[0].mxu0 %v4013
        %v4207 = vpop.f32.mrb[0].mxu0
        %v4208 = vadd.f32 %v4159, %v4207
        %v4209 = vpop.f32.mrb[0].mxu0
        %v4210 = vpop.f32.mrb[0].mxu0
        %v4211 = vadd.f32 %v4162, %v4210
        %v4212 = vpop.f32.mrb[0].mxu0
        %4213 = vmatprep.mubr.bf16.mxu0 0
        %4214 = vmatmul.mubr.bf16.gmra.mrb[0].mxu0 %v4016
        %v4215 = vpop.f32.mrb[0].mxu0
        %v4216 = vadd.f32 %v4167, %v4215
        %v4217 = vpop.f32.mrb[0].mxu0
        %v4218 = vpop.f32.mrb[0].mxu0
        %v4219 = vadd.f32 %v4170, %v4218
        %v4220 = vpop.f32.mrb[0].mxu0
        %4221 = vdwg.mxu0
        %vm4222 = vcmp.ge.f32.partialorder %v4106, 0.0
        %vm4223 = vcmp.ge.f32.partialorder %v4108, 0.0
        %vm4224 = vcmp.ge.f32.partialorder %v4208, 0.0
        %vm4225 = vcmp.ge.f32.partialorder %v4110, 0.0
        %vm4226 = vcmp.ge.f32.partialorder %v4112, 0.0
        %vm4227 = vcmp.ge.f32.partialorder %v4211, 0.0
        %vm4228 = vcmp.ge.f32.partialorder %v4116, 0.0
        %vm4229 = vcmp.ge.f32.partialorder %v4118, 0.0
        %vm4230 = vcmp.ge.f32.partialorder %v4216, 0.0
        %vm4231 = vcmp.ge.f32.partialorder %v4120, 0.0
        %vm4232 = vcmp.ge.f32.partialorder %v4122, 0.0
        %vm4233 = vcmp.ge.f32.partialorder %v4219, 0.0
        %4234 = vset.pattern.permute.xlu0 1
        %4235 = vperm.xlu0 %4234, %v3958
        %v4236 = vpop.permute.xlu0 %4235
        %4238 = vset.pattern.permute.xlu0 1
        %4239 = vperm.xlu0 %4238, %v3959
        %v4240 = vpop.permute.xlu0 %4239
        %4242 = vset.pattern.permute.xlu0 1
        %4243 = vperm.xlu0 %4242, %v3960
        %v4244 = vpop.permute.xlu0 %4243
        %4246 = vset.pattern.permute.xlu0 1
        %4247 = vperm.xlu0 %4246, %v3961
        %v4248 = vpop.permute.xlu0 %4247
        %v4250 = vmul.f32 %v4236, %v4106
        %v4251 = vmul.f32 %v4236, %v4108
        %v4252 = vmul.f32 %v4236, %v4208
        %v4253 = vmul.f32 %v4240, %v4110
        %v4254 = vmul.f32 %v4240, %v4112
        %v4255 = vmul.f32 %v4240, %v4211
        %v4256 = vmul.f32 %v4244, %v4116
        %v4257 = vmul.f32 %v4244, %v4118
        %v4258 = vmul.f32 %v4244, %v4216
        %v4259 = vmul.f32 %v4248, %v4120
        %v4260 = vmul.f32 %v4248, %v4122
        %v4261 = vmul.f32 %v4248, %v4219
        %v4262 = vsel %vm4222, %v4106, %v4250
        %v4263 = vsel %vm4223, %v4108, %v4251
        %v4264 = vsel %vm4224, %v4208, %v4252
        %v4265 = vsel %vm4225, %v4110, %v4253
        %v4266 = vsel %vm4226, %v4112, %v4254
        %v4267 = vsel %vm4227, %v4211, %v4255
        %v4268 = vsel %vm4228, %v4116, %v4256
        %v4269 = vsel %vm4229, %v4118, %v4257
        %v4270 = vsel %vm4230, %v4216, %v4258
        %v4271 = vsel %vm4231, %v4120, %v4259
        %v4272 = vsel %vm4232, %v4122, %v4260
        %v4273 = vsel %vm4233, %v4219, %v4261
        %v4274 = vmul.f32 %v4262, %v1014
        %v4275 = vmul.f32 %v4263, %v1018
        %v4276 = vmul.f32 %v4264, %v1022
        %v4277 = vmul.f32 %v4265, %v1014
        %v4278 = vmul.f32 %v4266, %v1018
        %v4279 = vmul.f32 %v4267, %v1022
        %v4280 = vmul.f32 %v4268, %v1014
        %v4281 = vmul.f32 %v4269, %v1018
        %v4282 = vmul.f32 %v4270, %v1022
        %v4283 = vmul.f32 %v4271, %v1014
        %v4284 = vmul.f32 %v4272, %v1018
        %v4285 = vmul.f32 %v4273, %v1022
        %v4286 = vadd.f32 %v3486, %v4274
        %v4287 = vadd.f32 %v3487, %v4275
        %v4288 = vadd.f32 %v3488, %v4276
        %v4289 = vadd.f32 %v3489, %v4277
        %v4290 = vadd.f32 %v3490, %v4278
        %v4291 = vadd.f32 %v3491, %v4279
        %v4292 = vadd.f32 %v3492, %v4280
        %v4293 = vadd.f32 %v3493, %v4281
        %v4294 = vadd.f32 %v3494, %v4282
        %v4295 = vadd.f32 %v3495, %v4283
        %v4296 = vadd.f32 %v3496, %v4284
        %v4297 = vadd.f32 %v3497, %v4285
        %4298 = vst [vmem:[#allocation4] sm:$0xff] %v4286
        %4299 = vst [vmem:[#allocation4 + $0x8] sm:$0xff] %v4287
        %4300 = vst [vmem:[#allocation4 + $0x10] sm:$0xff] %v4288
        %4301 = vst [vmem:[#allocation4 + $0x18] sm:$0xff] %v4289
        %4302 = vst [vmem:[#allocation4 + $0x20] sm:$0xff] %v4290
        %4303 = vst [vmem:[#allocation4 + $0x28] sm:$0xff] %v4291
        %4304 = vst [vmem:[#allocation4 + $0x30] sm:$0xff] %v4292
        %4305 = vst [vmem:[#allocation4 + $0x38] sm:$0xff] %v4293
        %4306 = vst [vmem:[#allocation4 + $0x40] sm:$0xff] %v4294
        %4307 = vst [vmem:[#allocation4 + $0x48] sm:$0xff] %v4295
        %4308 = vst [vmem:[#allocation4 + $0x50] sm:$0xff] %v4296
        %4309 = vst [vmem:[#allocation4 + $0x58] sm:$0xff] %v4297
        %v4310 = vld [vmem:[#allocation4] sm:$0xff]
        %v4311 = vld [vmem:[#allocation4 + $0x8] sm:$0xff]
        %v4312 = vld [vmem:[#allocation4 + $0x10] sm:$0xff]
        %v4313 = vld [vmem:[#allocation4 + $0x18] sm:$0xff]
        %v4314 = vld [vmem:[#allocation4 + $0x20] sm:$0xff]
        %v4315 = vld [vmem:[#allocation4 + $0x28] sm:$0xff]
        %v4316 = vld [vmem:[#allocation4 + $0x30] sm:$0xff]
        %v4317 = vld [vmem:[#allocation4 + $0x38] sm:$0xff]
        %v4318 = vld [vmem:[#allocation4 + $0x40] sm:$0xff]
        %v4319 = vld [vmem:[#allocation4 + $0x48] sm:$0xff]
        %v4320 = vld [vmem:[#allocation4 + $0x50] sm:$0xff]
        %v4321 = vld [vmem:[#allocation4 + $0x58] sm:$0xff]
        %4322 = vrot.lane.b32.xlu0 %v4310, 19
        %v4323 = vpop.permute.xlu0 %4322
        %4324 = vrot.lane.b32.xlu0 %v4313, 19
        %v4325 = vpop.permute.xlu0 %4324
        %4326 = vrot.lane.b32.xlu0 %v4316, 19
        %v4327 = vpop.permute.xlu0 %4326
        %4328 = vrot.lane.b32.xlu0 %v4319, 19
        %v4329 = vpop.permute.xlu0 %4328
        %4330 = vrot.lane.b32.xlu0 %v4311, 19
        %v4331 = vpop.permute.xlu0 %4330
        %4332 = vrot.lane.b32.xlu0 %v4314, 19
        %v4333 = vpop.permute.xlu0 %4332
        %4334 = vrot.lane.b32.xlu0 %v4317, 19
        %v4335 = vpop.permute.xlu0 %4334
        %4336 = vrot.lane.b32.xlu0 %v4320, 19
        %v4337 = vpop.permute.xlu0 %4336
        %4338 = vrot.lane.b32.xlu0 %v4312, 19
        %v4339 = vpop.permute.xlu0 %4338
        %4340 = vrot.lane.b32.xlu0 %v4315, 19
        %v4341 = vpop.permute.xlu0 %4340
        %4342 = vrot.lane.b32.xlu0 %v4318, 19
        %v4343 = vpop.permute.xlu0 %4342
        %4344 = vrot.lane.b32.xlu0 %v4321, 19
        %v4345 = vpop.permute.xlu0 %4344
        %v4346 = vsel %vm251, %v4331, %v4339
        %v4347 = vsel %vm251, %v4333, %v4341
        %v4348 = vsel %vm251, %v4335, %v4343
        %v4349 = vsel %vm251, %v4337, %v4345
        %v4350 = vsel %vm251, %v4323, %v4331
        %v4351 = vsel %vm251, %v4325, %v4333
        %v4352 = vsel %vm251, %v4327, %v4335
        %v4353 = vsel %vm251, %v4329, %v4337
        %v4354 = vsel %vm251, %v4339, %v4323
        %v4355 = vsel %vm251, %v4341, %v4325
        %v4356 = vsel %vm251, %v4343, %v4327
        %v4357 = vsel %vm251, %v4345, %v4329
        %v4358 = vpack.c.bf16 %v4355, %v4354
        %v4359 = vpack.c.bf16 %v4351, %v4350
        %v4360 = vpack.c.bf16 %v4347, %v4346
        %v4361 = vpack.c.bf16 %v4357, %v4356
        %v4362 = vpack.c.bf16 %v4353, %v4352
        %v4363 = vpack.c.bf16 %v4349, %v4348
        %4364 = vst [vmem:[#allocation2] sm:$0xff] %v4358
        %4365 = vst [vmem:[#allocation2 + $0x8] sm:$0xff] %v4359
        %4366 = vst [vmem:[#allocation2 + $0x10] sm:$0xff] %v4360
        %4367 = vst [vmem:[#allocation2 + $0x18] sm:$0xff] %v4361
        %4368 = vst [vmem:[#allocation2 + $0x20] sm:$0xff] %v4362
        %4369 = vst [vmem:[#allocation2 + $0x28] sm:$0xff] %v4363
        %4370 = vrot.lane.b32.xlu0 %v4310, 18
        %v4371 = vpop.permute.xlu0 %4370
        %4372 = vrot.lane.b32.xlu0 %v4313, 18
        %v4373 = vpop.permute.xlu0 %4372
        %4374 = vrot.lane.b32.xlu0 %v4316, 18
        %v4375 = vpop.permute.xlu0 %4374
        %4376 = vrot.lane.b32.xlu0 %v4319, 18
        %v4377 = vpop.permute.xlu0 %4376
        %4378 = vrot.lane.b32.xlu0 %v4311, 18
        %v4379 = vpop.permute.xlu0 %4378
        %4380 = vrot.lane.b32.xlu0 %v4314, 18
        %v4381 = vpop.permute.xlu0 %4380
        %4382 = vrot.lane.b32.xlu0 %v4317, 18
        %v4383 = vpop.permute.xlu0 %4382
        %4384 = vrot.lane.b32.xlu0 %v4320, 18
        %v4385 = vpop.permute.xlu0 %4384
        %4386 = vrot.lane.b32.xlu0 %v4312, 18
        %v4387 = vpop.permute.xlu0 %4386
        %4388 = vrot.lane.b32.xlu0 %v4315, 18
        %v4389 = vpop.permute.xlu0 %4388
        %4390 = vrot.lane.b32.xlu0 %v4318, 18
        %v4391 = vpop.permute.xlu0 %4390
        %4392 = vrot.lane.b32.xlu0 %v4321, 18
        %v4393 = vpop.permute.xlu0 %4392
        %v4394 = vsel %vm300, %v4379, %v4387
        %v4395 = vsel %vm300, %v4381, %v4389
        %v4396 = vsel %vm300, %v4383, %v4391
        %v4397 = vsel %vm300, %v4385, %v4393
        %v4398 = vsel %vm300, %v4371, %v4379
        %v4399 = vsel %vm300, %v4373, %v4381
        %v4400 = vsel %vm300, %v4375, %v4383
        %v4401 = vsel %vm300, %v4377, %v4385
        %v4402 = vsel %vm300, %v4387, %v4371
        %v4403 = vsel %vm300, %v4389, %v4373
        %v4404 = vsel %vm300, %v4391, %v4375
        %v4405 = vsel %vm300, %v4393, %v4377
        %v4406 = vpack.c.bf16 %v4403, %v4402
        %v4407 = vpack.c.bf16 %v4399, %v4398
        %v4408 = vpack.c.bf16 %v4395, %v4394
        %v4409 = vpack.c.bf16 %v4405, %v4404
        %v4410 = vpack.c.bf16 %v4401, %v4400
        %v4411 = vpack.c.bf16 %v4397, %v4396
        %4412 = vst [vmem:[#allocation2 + $0x30] sm:$0xff] %v4406
        %4413 = vst [vmem:[#allocation2 + $0x38] sm:$0xff] %v4407
        %4414 = vst [vmem:[#allocation2 + $0x40] sm:$0xff] %v4408
        %4415 = vst [vmem:[#allocation2 + $0x48] sm:$0xff] %v4409
        %4416 = vst [vmem:[#allocation2 + $0x50] sm:$0xff] %v4410
        %4417 = vst [vmem:[#allocation2 + $0x58] sm:$0xff] %v4411
        %4418 = vrot.lane.b32.xlu0 %v4310, 17
        %v4419 = vpop.permute.xlu0 %4418
        %4420 = vrot.lane.b32.xlu0 %v4313, 17
        %v4421 = vpop.permute.xlu0 %4420
        %4422 = vrot.lane.b32.xlu0 %v4316, 17
        %v4423 = vpop.permute.xlu0 %4422
        %4424 = vrot.lane.b32.xlu0 %v4319, 17
        %v4425 = vpop.permute.xlu0 %4424
        %4426 = vrot.lane.b32.xlu0 %v4311, 17
        %v4427 = vpop.permute.xlu0 %4426
        %4428 = vrot.lane.b32.xlu0 %v4314, 17
        %v4429 = vpop.permute.xlu0 %4428
        %4430 = vrot.lane.b32.xlu0 %v4317, 17
        %v4431 = vpop.permute.xlu0 %4430
        %4432 = vrot.lane.b32.xlu0 %v4320, 17
        %v4433 = vpop.permute.xlu0 %4432
        %4434 = vrot.lane.b32.xlu0 %v4312, 17
        %v4435 = vpop.permute.xlu0 %4434
        %4436 = vrot.lane.b32.xlu0 %v4315, 17
        %v4437 = vpop.permute.xlu0 %4436
        %4438 = vrot.lane.b32.xlu0 %v4318, 17
        %v4439 = vpop.permute.xlu0 %4438
        %4440 = vrot.lane.b32.xlu0 %v4321, 17
        %v4441 = vpop.permute.xlu0 %4440
        %v4442 = vsel %vm349, %v4427, %v4435
        %v4443 = vsel %vm349, %v4429, %v4437
        %v4444 = vsel %vm349, %v4431, %v4439
        %v4445 = vsel %vm349, %v4433, %v4441
        %v4446 = vsel %vm349, %v4419, %v4427
        %v4447 = vsel %vm349, %v4421, %v4429
        %v4448 = vsel %vm349, %v4423, %v4431
        %v4449 = vsel %vm349, %v4425, %v4433
        %v4450 = vsel %vm349, %v4435, %v4419
        %v4451 = vsel %vm349, %v4437, %v4421
        %v4452 = vsel %vm349, %v4439, %v4423
        %v4453 = vsel %vm349, %v4441, %v4425
        %v4454 = vpack.c.bf16 %v4451, %v4450
        %v4455 = vpack.c.bf16 %v4447, %v4446
        %v4456 = vpack.c.bf16 %v4443, %v4442
        %v4457 = vpack.c.bf16 %v4453, %v4452
        %v4458 = vpack.c.bf16 %v4449, %v4448
        %v4459 = vpack.c.bf16 %v4445, %v4444
        %4460 = vst [vmem:[#allocation2 + $0x60] sm:$0xff] %v4454
        %4461 = vst [vmem:[#allocation2 + $0x68] sm:$0xff] %v4455
        %4462 = vst [vmem:[#allocation2 + $0x70] sm:$0xff] %v4456
        %4463 = vst [vmem:[#allocation2 + $0x78] sm:$0xff] %v4457
        %4464 = vst [vmem:[#allocation2 + $0x80] sm:$0xff] %v4458
        %4465 = vst [vmem:[#allocation2 + $0x88] sm:$0xff] %v4459
        %4466 = vrot.lane.b32.xlu0 %v4310, 1
        %v4467 = vpop.permute.xlu0 %4466
        %4468 = vrot.lane.b32.xlu0 %v4313, 1
        %v4469 = vpop.permute.xlu0 %4468
        %4470 = vrot.lane.b32.xlu0 %v4316, 1
        %v4471 = vpop.permute.xlu0 %4470
        %4472 = vrot.lane.b32.xlu0 %v4319, 1
        %v4473 = vpop.permute.xlu0 %4472
        %4474 = vrot.lane.b32.xlu0 %v4311, 1
        %v4475 = vpop.permute.xlu0 %4474
        %4476 = vrot.lane.b32.xlu0 %v4314, 1
        %v4477 = vpop.permute.xlu0 %4476
        %4478 = vrot.lane.b32.xlu0 %v4317, 1
        %v4479 = vpop.permute.xlu0 %4478
        %4480 = vrot.lane.b32.xlu0 %v4320, 1
        %v4481 = vpop.permute.xlu0 %4480
        %4482 = vrot.lane.b32.xlu0 %v4312, 1
        %v4483 = vpop.permute.xlu0 %4482
        %4484 = vrot.lane.b32.xlu0 %v4315, 1
        %v4485 = vpop.permute.xlu0 %4484
        %4486 = vrot.lane.b32.xlu0 %v4318, 1
        %v4487 = vpop.permute.xlu0 %4486
        %4488 = vrot.lane.b32.xlu0 %v4321, 1
        %v4489 = vpop.permute.xlu0 %4488
        %v4490 = vsel %vm398, %v4475, %v4483
        %v4491 = vsel %vm398, %v4477, %v4485
        %v4492 = vsel %vm398, %v4479, %v4487
        %v4493 = vsel %vm398, %v4481, %v4489
        %v4494 = vsel %vm398, %v4467, %v4475
        %v4495 = vsel %vm398, %v4469, %v4477
        %v4496 = vsel %vm398, %v4471, %v4479
        %v4497 = vsel %vm398, %v4473, %v4481
        %v4498 = vsel %vm398, %v4483, %v4467
        %v4499 = vsel %vm398, %v4485, %v4469
        %v4500 = vsel %vm398, %v4487, %v4471
        %v4501 = vsel %vm398, %v4489, %v4473
        %v4502 = vpack.c.bf16 %v4499, %v4498
        %v4503 = vpack.c.bf16 %v4495, %v4494
        %v4504 = vpack.c.bf16 %v4491, %v4490
        %v4505 = vpack.c.bf16 %v4501, %v4500
        %v4506 = vpack.c.bf16 %v4497, %v4496
        %v4507 = vpack.c.bf16 %v4493, %v4492
        %4508 = vst [vmem:[#allocation2 + $0x90] sm:$0xff] %v4502
        %4509 = vst [vmem:[#allocation2 + $0x98] sm:$0xff] %v4503
        %4510 = vst [vmem:[#allocation2 + $0xa0] sm:$0xff] %v4504
        %4511 = vst [vmem:[#allocation2 + $0xa8] sm:$0xff] %v4505
        %4512 = vst [vmem:[#allocation2 + $0xb0] sm:$0xff] %v4506
        %4513 = vst [vmem:[#allocation2 + $0xb8] sm:$0xff] %v4507
        %v4514 = vpack.c.bf16 %v4313, %v4310
        %v4515 = vpack.c.bf16 %v4314, %v4311
        %v4516 = vpack.c.bf16 %v4315, %v4312
        %v4517 = vpack.c.bf16 %v4319, %v4316
        %v4518 = vpack.c.bf16 %v4320, %v4317
        %v4519 = vpack.c.bf16 %v4321, %v4318
        %4520 = vst [vmem:[#allocation2 + $0xc0] sm:$0xff] %v4514
        %4521 = vst [vmem:[#allocation2 + $0xc8] sm:$0xff] %v4515
        %4522 = vst [vmem:[#allocation2 + $0xd0] sm:$0xff] %v4516
        %4523 = vst [vmem:[#allocation2 + $0xd8] sm:$0xff] %v4517
        %4524 = vst [vmem:[#allocation2 + $0xe0] sm:$0xff] %v4518
        %4525 = vst [vmem:[#allocation2 + $0xe8] sm:$0xff] %v4519
        %4526 = vrot.lane.b32.xlu0 %v4310, 127
        %v4527 = vpop.permute.xlu0 %4526
        %4528 = vrot.lane.b32.xlu0 %v4313, 127
        %v4529 = vpop.permute.xlu0 %4528
        %4530 = vrot.lane.b32.xlu0 %v4316, 127
        %v4531 = vpop.permute.xlu0 %4530
        %4532 = vrot.lane.b32.xlu0 %v4319, 127
        %v4533 = vpop.permute.xlu0 %4532
        %4534 = vrot.lane.b32.xlu0 %v4311, 127
        %v4535 = vpop.permute.xlu0 %4534
        %4536 = vrot.lane.b32.xlu0 %v4314, 127
        %v4537 = vpop.permute.xlu0 %4536
        %4538 = vrot.lane.b32.xlu0 %v4317, 127
        %v4539 = vpop.permute.xlu0 %4538
        %4540 = vrot.lane.b32.xlu0 %v4320, 127
        %v4541 = vpop.permute.xlu0 %4540
        %4542 = vrot.lane.b32.xlu0 %v4312, 127
        %v4543 = vpop.permute.xlu0 %4542
        %4544 = vrot.lane.b32.xlu0 %v4315, 127
        %v4545 = vpop.permute.xlu0 %4544
        %4546 = vrot.lane.b32.xlu0 %v4318, 127
        %v4547 = vpop.permute.xlu0 %4546
        %4548 = vrot.lane.b32.xlu0 %v4321, 127
        %v4549 = vpop.permute.xlu0 %4548
        %v4550 = vsel %vm459, %v4535, %v4543
        %v4551 = vsel %vm459, %v4537, %v4545
        %v4552 = vsel %vm459, %v4539, %v4547
        %v4553 = vsel %vm459, %v4541, %v4549
        %v4554 = vsel %vm459, %v4527, %v4535
        %v4555 = vsel %vm459, %v4529, %v4537
        %v4556 = vsel %vm459, %v4531, %v4539
        %v4557 = vsel %vm459, %v4533, %v4541
        %v4558 = vsel %vm459, %v4543, %v4527
        %v4559 = vsel %vm459, %v4545, %v4529
        %v4560 = vsel %vm459, %v4547, %v4531
        %v4561 = vsel %vm459, %v4549, %v4533
        %v4562 = vpack.c.bf16 %v4555, %v4554
        %v4563 = vpack.c.bf16 %v4551, %v4550
        %v4564 = vpack.c.bf16 %v4559, %v4558
        %v4565 = vpack.c.bf16 %v4557, %v4556
        %v4566 = vpack.c.bf16 %v4553, %v4552
        %v4567 = vpack.c.bf16 %v4561, %v4560
        %4568 = vst [vmem:[#allocation2 + $0xf0] sm:$0xff] %v4562
        %4569 = vst [vmem:[#allocation2 + $0xf8] sm:$0xff] %v4563
        %4570 = vst [vmem:[#allocation2 + $0x100] sm:$0xff] %v4564
        %4571 = vst [vmem:[#allocation2 + $0x108] sm:$0xff] %v4565
        %4572 = vst [vmem:[#allocation2 + $0x110] sm:$0xff] %v4566
        %4573 = vst [vmem:[#allocation2 + $0x118] sm:$0xff] %v4567
        %4574 = vrot.lane.b32.xlu0 %v4310, 111
        %v4575 = vpop.permute.xlu0 %4574
        %4576 = vrot.lane.b32.xlu0 %v4313, 111
        %v4577 = vpop.permute.xlu0 %4576
        %4578 = vrot.lane.b32.xlu0 %v4316, 111
        %v4579 = vpop.permute.xlu0 %4578
        %4580 = vrot.lane.b32.xlu0 %v4319, 111
        %v4581 = vpop.permute.xlu0 %4580
        %4582 = vrot.lane.b32.xlu0 %v4311, 111
        %v4583 = vpop.permute.xlu0 %4582
        %4584 = vrot.lane.b32.xlu0 %v4314, 111
        %v4585 = vpop.permute.xlu0 %4584
        %4586 = vrot.lane.b32.xlu0 %v4317, 111
        %v4587 = vpop.permute.xlu0 %4586
        %4588 = vrot.lane.b32.xlu0 %v4320, 111
        %v4589 = vpop.permute.xlu0 %4588
        %4590 = vrot.lane.b32.xlu0 %v4312, 111
        %v4591 = vpop.permute.xlu0 %4590
        %4592 = vrot.lane.b32.xlu0 %v4315, 111
        %v4593 = vpop.permute.xlu0 %4592
        %4594 = vrot.lane.b32.xlu0 %v4318, 111
        %v4595 = vpop.permute.xlu0 %4594
        %4596 = vrot.lane.b32.xlu0 %v4321, 111
        %v4597 = vpop.permute.xlu0 %4596
        %v4598 = vsel %vm508, %v4583, %v4591
        %v4599 = vsel %vm508, %v4585, %v4593
        %v4600 = vsel %vm508, %v4587, %v4595
        %v4601 = vsel %vm508, %v4589, %v4597
        %v4602 = vsel %vm508, %v4575, %v4583
        %v4603 = vsel %vm508, %v4577, %v4585
        %v4604 = vsel %vm508, %v4579, %v4587
        %v4605 = vsel %vm508, %v4581, %v4589
        %v4606 = vsel %vm508, %v4591, %v4575
        %v4607 = vsel %vm508, %v4593, %v4577
        %v4608 = vsel %vm508, %v4595, %v4579
        %v4609 = vsel %vm508, %v4597, %v4581
        %v4610 = vpack.c.bf16 %v4603, %v4602
        %v4611 = vpack.c.bf16 %v4599, %v4598
        %v4612 = vpack.c.bf16 %v4607, %v4606
        %v4613 = vpack.c.bf16 %v4605, %v4604
        %v4614 = vpack.c.bf16 %v4601, %v4600
        %v4615 = vpack.c.bf16 %v4609, %v4608
        %4616 = vst [vmem:[#allocation2 + $0x120] sm:$0xff] %v4610
        %4617 = vst [vmem:[#allocation2 + $0x128] sm:$0xff] %v4611
        %4618 = vst [vmem:[#allocation2 + $0x130] sm:$0xff] %v4612
        %4619 = vst [vmem:[#allocation2 + $0x138] sm:$0xff] %v4613
        %4620 = vst [vmem:[#allocation2 + $0x140] sm:$0xff] %v4614
        %4621 = vst [vmem:[#allocation2 + $0x148] sm:$0xff] %v4615
        %4622 = vrot.lane.b32.xlu0 %v4310, 110
        %v4623 = vpop.permute.xlu0 %4622
        %4624 = vrot.lane.b32.xlu0 %v4313, 110
        %v4625 = vpop.permute.xlu0 %4624
        %4626 = vrot.lane.b32.xlu0 %v4316, 110
        %v4627 = vpop.permute.xlu0 %4626
        %4628 = vrot.lane.b32.xlu0 %v4319, 110
        %v4629 = vpop.permute.xlu0 %4628
        %4630 = vrot.lane.b32.xlu0 %v4311, 110
        %v4631 = vpop.permute.xlu0 %4630
        %4632 = vrot.lane.b32.xlu0 %v4314, 110
        %v4633 = vpop.permute.xlu0 %4632
        %4634 = vrot.lane.b32.xlu0 %v4317, 110
        %v4635 = vpop.permute.xlu0 %4634
        %4636 = vrot.lane.b32.xlu0 %v4320, 110
        %v4637 = vpop.permute.xlu0 %4636
        %4638 = vrot.lane.b32.xlu0 %v4312, 110
        %v4639 = vpop.permute.xlu0 %4638
        %4640 = vrot.lane.b32.xlu0 %v4315, 110
        %v4641 = vpop.permute.xlu0 %4640
        %4642 = vrot.lane.b32.xlu0 %v4318, 110
        %v4643 = vpop.permute.xlu0 %4642
        %4644 = vrot.lane.b32.xlu0 %v4321, 110
        %v4645 = vpop.permute.xlu0 %4644
        %v4646 = vsel %vm557, %v4631, %v4639
        %v4647 = vsel %vm557, %v4633, %v4641
        %v4648 = vsel %vm557, %v4635, %v4643
        %v4649 = vsel %vm557, %v4637, %v4645
        %v4650 = vsel %vm557, %v4623, %v4631
        %v4651 = vsel %vm557, %v4625, %v4633
        %v4652 = vsel %vm557, %v4627, %v4635
        %v4653 = vsel %vm557, %v4629, %v4637
        %v4654 = vsel %vm557, %v4639, %v4623
        %v4655 = vsel %vm557, %v4641, %v4625
        %v4656 = vsel %vm557, %v4643, %v4627
        %v4657 = vsel %vm557, %v4645, %v4629
        %v4658 = vpack.c.bf16 %v4651, %v4650
        %v4659 = vpack.c.bf16 %v4647, %v4646
        %v4660 = vpack.c.bf16 %v4655, %v4654
        %v4661 = vpack.c.bf16 %v4653, %v4652
        %v4662 = vpack.c.bf16 %v4649, %v4648
        %v4663 = vpack.c.bf16 %v4657, %v4656
        %4664 = vst [vmem:[#allocation2 + $0x150] sm:$0xff] %v4658
        %4665 = vst [vmem:[#allocation2 + $0x158] sm:$0xff] %v4659
        %4666 = vst [vmem:[#allocation2 + $0x160] sm:$0xff] %v4660
        %4667 = vst [vmem:[#allocation2 + $0x168] sm:$0xff] %v4661
        %4668 = vst [vmem:[#allocation2 + $0x170] sm:$0xff] %v4662
        %4669 = vst [vmem:[#allocation2 + $0x178] sm:$0xff] %v4663
        %4670 = vrot.lane.b32.xlu0 %v4310, 109
        %v4671 = vpop.permute.xlu0 %4670
        %4672 = vrot.lane.b32.xlu0 %v4313, 109
        %v4673 = vpop.permute.xlu0 %4672
        %4674 = vrot.lane.b32.xlu0 %v4316, 109
        %v4675 = vpop.permute.xlu0 %4674
        %4676 = vrot.lane.b32.xlu0 %v4319, 109
        %v4677 = vpop.permute.xlu0 %4676
        %4678 = vrot.lane.b32.xlu0 %v4311, 109
        %v4679 = vpop.permute.xlu0 %4678
        %4680 = vrot.lane.b32.xlu0 %v4314, 109
        %v4681 = vpop.permute.xlu0 %4680
        %4682 = vrot.lane.b32.xlu0 %v4317, 109
        %v4683 = vpop.permute.xlu0 %4682
        %4684 = vrot.lane.b32.xlu0 %v4320, 109
        %v4685 = vpop.permute.xlu0 %4684
        %4686 = vrot.lane.b32.xlu0 %v4312, 109
        %v4687 = vpop.permute.xlu0 %4686
        %4688 = vrot.lane.b32.xlu0 %v4315, 109
        %v4689 = vpop.permute.xlu0 %4688
        %4690 = vrot.lane.b32.xlu0 %v4318, 109
        %v4691 = vpop.permute.xlu0 %4690
        %4692 = vrot.lane.b32.xlu0 %v4321, 109
        %v4693 = vpop.permute.xlu0 %4692
        %v4694 = vsel %vm606, %v4679, %v4687
        %v4695 = vsel %vm606, %v4681, %v4689
        %v4696 = vsel %vm606, %v4683, %v4691
        %v4697 = vsel %vm606, %v4685, %v4693
        %v4698 = vsel %vm606, %v4671, %v4679
        %v4699 = vsel %vm606, %v4673, %v4681
        %v4700 = vsel %vm606, %v4675, %v4683
        %v4701 = vsel %vm606, %v4677, %v4685
        %v4702 = vsel %vm606, %v4687, %v4671
        %v4703 = vsel %vm606, %v4689, %v4673
        %v4704 = vsel %vm606, %v4691, %v4675
        %v4705 = vsel %vm606, %v4693, %v4677
        %v4706 = vpack.c.bf16 %v4699, %v4698
        %v4707 = vpack.c.bf16 %v4695, %v4694
        %v4708 = vpack.c.bf16 %v4703, %v4702
        %v4709 = vpack.c.bf16 %v4701, %v4700
        %v4710 = vpack.c.bf16 %v4697, %v4696
        %v4711 = vpack.c.bf16 %v4705, %v4704
        %4712 = vst [vmem:[#allocation2 + $0x180] sm:$0xff] %v4706
        %4713 = vst [vmem:[#allocation2 + $0x188] sm:$0xff] %v4707
        %4714 = vst [vmem:[#allocation2 + $0x190] sm:$0xff] %v4708
        %4715 = vst [vmem:[#allocation2 + $0x198] sm:$0xff] %v4709
        %4716 = vst [vmem:[#allocation2 + $0x1a0] sm:$0xff] %v4710
        %4717 = vst [vmem:[#allocation2 + $0x1a8] sm:$0xff] %v4711
        %s4718 = scalar_lea.vmem [#allocation5], 240
        %v4719 = vld [vmem:[%s4718] sm:$0xff]
        %v4720 = vld [vmem:[%s4718 + $0x8] sm:$0xf]
        %v4721 = vld [vmem:[%s4718 + $0xc] sm:$0xff]
        %v4722 = vld [vmem:[%s4718 + $0x14] sm:$0xf]
        %v4723 = vld [vmem:[%s4718 + $0x18] sm:$0xff]
        %v4724 = vld [vmem:[%s4718 + $0x20] sm:$0xf]
        %v4725 = vld [vmem:[%s4718 + $0x24] sm:$0xff]
        %v4726 = vld [vmem:[%s4718 + $0x2c] sm:$0xf]
        %v4727 = vld [vmem:[#allocation2] sm:$0xff]
        %v4728 = vld [vmem:[#allocation2 + $0x8] sm:$0xff]
        %v4729 = vld [vmem:[#allocation2 + $0x10] sm:$0xff]
        %v4730 = vld [vmem:[#allocation2 + $0x18] sm:$0xff]
        %v4731 = vld [vmem:[#allocation2 + $0x20] sm:$0xff]
        %v4732 = vld [vmem:[#allocation2 + $0x28] sm:$0xff]
        %v4733 = vld [vmem:[#allocation2 + $0x30] sm:$0xff]
        %v4734 = vld [vmem:[#allocation2 + $0x38] sm:$0xff]
        %v4735 = vld [vmem:[#allocation2 + $0x40] sm:$0xff]
        %v4736 = vld [vmem:[#allocation2 + $0x48] sm:$0xff]
        %v4737 = vld [vmem:[#allocation2 + $0x50] sm:$0xff]
        %v4738 = vld [vmem:[#allocation2 + $0x58] sm:$0xff]
        %v4739 = vld [vmem:[#allocation2 + $0x60] sm:$0xff]
        %v4740 = vld [vmem:[#allocation2 + $0x68] sm:$0xff]
        %v4741 = vld [vmem:[#allocation2 + $0x70] sm:$0xff]
        %v4742 = vld [vmem:[#allocation2 + $0x78] sm:$0xff]
        %v4743 = vld [vmem:[#allocation2 + $0x80] sm:$0xff]
        %v4744 = vld [vmem:[#allocation2 + $0x88] sm:$0xff]
        %v4745 = vld [vmem:[#allocation2 + $0x90] sm:$0xff]
        %v4746 = vld [vmem:[#allocation2 + $0x98] sm:$0xff]
        %v4747 = vld [vmem:[#allocation2 + $0xa0] sm:$0xff]
        %v4748 = vld [vmem:[#allocation2 + $0xa8] sm:$0xff]
        %v4749 = vld [vmem:[#allocation2 + $0xb0] sm:$0xff]
        %v4750 = vld [vmem:[#allocation2 + $0xb8] sm:$0xff]
        %v4751 = vld [vmem:[#allocation2 + $0xc0] sm:$0xff]
        %v4752 = vld [vmem:[#allocation2 + $0xc8] sm:$0xff]
        %v4753 = vld [vmem:[#allocation2 + $0xd0] sm:$0xff]
        %v4754 = vld [vmem:[#allocation2 + $0xd8] sm:$0xff]
        %v4755 = vld [vmem:[#allocation2 + $0xe0] sm:$0xff]
        %v4756 = vld [vmem:[#allocation2 + $0xe8] sm:$0xff]
        %v4757 = vld [vmem:[#allocation2 + $0xf0] sm:$0xff]
        %v4758 = vld [vmem:[#allocation2 + $0xf8] sm:$0xff]
        %v4759 = vld [vmem:[#allocation2 + $0x100] sm:$0xff]
        %v4760 = vld [vmem:[#allocation2 + $0x108] sm:$0xff]
        %v4761 = vld [vmem:[#allocation2 + $0x110] sm:$0xff]
        %v4762 = vld [vmem:[#allocation2 + $0x118] sm:$0xff]
        %v4763 = vld [vmem:[#allocation2 + $0x120] sm:$0xff]
        %v4764 = vld [vmem:[#allocation2 + $0x128] sm:$0xff]
        %v4765 = vld [vmem:[#allocation2 + $0x130] sm:$0xff]
        %v4766 = vld [vmem:[#allocation2 + $0x138] sm:$0xff]
        %v4767 = vld [vmem:[#allocation2 + $0x140] sm:$0xff]
        %v4768 = vld [vmem:[#allocation2 + $0x148] sm:$0xff]
        %v4769 = vld [vmem:[#allocation2 + $0x150] sm:$0xff]
        %v4770 = vld [vmem:[#allocation2 + $0x158] sm:$0xff]
        %v4771 = vld [vmem:[#allocation2 + $0x160] sm:$0xff]
        %v4772 = vld [vmem:[#allocation2 + $0x168] sm:$0xff]
        %v4773 = vld [vmem:[#allocation2 + $0x170] sm:$0xff]
        %v4774 = vld [vmem:[#allocation2 + $0x178] sm:$0xff]
        %v4775 = vld [vmem:[#allocation2 + $0x180] sm:$0xff]
        %v4776 = vld [vmem:[#allocation2 + $0x188] sm:$0xff]
        %v4777 = vld [vmem:[#allocation2 + $0x190] sm:$0xff]
        %v4778 = vld [vmem:[#allocation2 + $0x198] sm:$0xff]
        %v4779 = vld [vmem:[#allocation2 + $0x1a0] sm:$0xff]
        %v4780 = vld [vmem:[#allocation2 + $0x1a8] sm:$0xff]
        %s4781 = scalar_lea.vmem %s2, 160
        %v4782 = vld [vmem:[%s4781] sm:$0xff]
        %v4783 = vld [vmem:[%s4781 + $0x8] sm:$0xff]
        %v4784 = vld [vmem:[%s4781 + $0x10] sm:$0xff]
        %v4785 = vld [vmem:[%s4781 + $0x18] sm:$0xff]
        %4787 = vset.pattern.permute.xlu0 0
        %4788 = vperm.xlu0 %4787, %v4782
        %v4789 = vpop.permute.xlu0 %4788
        %4792 = vset.pattern.permute.xlu0 0
        %4793 = vperm.xlu0 %4792, %v4783
        %v4794 = vpop.permute.xlu0 %4793
        %4797 = vset.pattern.permute.xlu0 0
        %4798 = vperm.xlu0 %4797, %v4784
        %v4799 = vpop.permute.xlu0 %4798
        %4802 = vset.pattern.permute.xlu0 0
        %4803 = vperm.xlu0 %4802, %v4785
        %v4804 = vpop.permute.xlu0 %4803
        %v4814 = vunpack.c.l.b16 %v4719
        %v4815 = vunpack.c.h.b16 %v4719
        %v4816 = vunpack.c.l.b16 %v4720
        %v4817 = vunpack.c.l.b16 %v4721
        %v4818 = vunpack.c.h.b16 %v4721
        %v4819 = vunpack.c.l.b16 %v4722
        %v4820 = vunpack.c.l.b16 %v4723
        %v4821 = vunpack.c.h.b16 %v4723
        %v4822 = vunpack.c.l.b16 %v4724
        %v4823 = vunpack.c.l.b16 %v4725
        %v4824 = vunpack.c.h.b16 %v4725
        %v4825 = vunpack.c.l.b16 %v4726
        %v4826 = vpack.c.b16 %v4817, %v4814
        %v4827 = vpack.c.b16 %v4818, %v4815
        %v4828 = vpack.c.b16 %v4819, %v4816
        %v4829 = vpack.c.b16 %v4823, %v4820
        %v4830 = vpack.c.b16 %v4824, %v4821
        %v4831 = vpack.c.b16 %v4825, %v4822
        %v4837 = vsel %vm747, %v4828, 0
        %v4840 = vsel %vm747, %v4831, 0
        %4842 = vmatprep.subr.bf16.mxu0 %v4728
        %4843 = vmatpush1.bf16.msra.mxu0 %v4727
        %4844 = vmatprep.subr.bf16.mxu0 %v4731
        %4845 = vmatpush1.bf16.msra.mxu0 %v4730
        %4846 = vmatprep.subr.bf16.mxu0 %v4734
        %4847 = vmatpush1.bf16.msra.mxu0 %v4733
        %4848 = vmatprep.subr.bf16.mxu0 %v4737
        %4849 = vmatpush1.bf16.msra.mxu0 %v4736
        %4850 = vmatprep.subr.bf16.mxu0 %v4740
        %4851 = vmatpush1.bf16.msra.mxu0 %v4739
        %4852 = vmatprep.subr.bf16.mxu0 %v4743
        %4853 = vmatpush1.bf16.msra.mxu0 %v4742
        %4854 = vmatprep.subr.bf16.mxu0 %v4746
        %4855 = vmatpush1.bf16.msra.mxu0 %v4745
        %4856 = vmatprep.subr.bf16.mxu0 %v4749
        %4857 = vmatpush1.bf16.msra.mxu0 %v4748
        %4858 = vmatprep.subr.bf16.mxu0 %v4752
        %4859 = vmatpush1.bf16.msra.mxu0 %v4751
        %4860 = vmatprep.subr.bf16.mxu0 %v4755
        %4861 = vmatpush1.bf16.msra.mxu0 %v4754
        %4862 = vmatprep.subr.bf16.mxu0 %v4758
        %4863 = vmatpush1.bf16.msra.mxu0 %v4757
        %4864 = vmatprep.subr.bf16.mxu0 %v4761
        %4865 = vmatpush1.bf16.msra.mxu0 %v4760
        %4866 = vmatprep.subr.bf16.mxu0 %v4764
        %4867 = vmatpush1.bf16.msra.mxu0 %v4763
        %4868 = vmatprep.subr.bf16.mxu0 %v4767
        %4869 = vmatpush1.bf16.msra.mxu0 %v4766
        %4870 = vmatprep.subr.bf16.mxu0 %v4770
        %4871 = vmatpush1.bf16.msra.mxu0 %v4769
        %4872 = vmatprep.subr.bf16.mxu0 %v4773
        %4873 = vmatpush1.bf16.msra.mxu0 %v4772
        %4874 = vmatprep.mubr.bf16.mxu0 %v4827
        %4875 = vmatmul.mubr.bf16.gmra.mrb[0].mxu0 %v4826
        %v4876 = vpop.f32.mrb[0].mxu0
        %v4877 = vadd.f32 %v4789, %v4876
        %v4878 = vpop.f32.mrb[0].mxu0
        %v4879 = vadd.f32 %v4789, %v4878
        %v4880 = vpop.f32.mrb[0].mxu0
        %v4881 = vadd.f32 %v4794, %v4880
        %v4882 = vpop.f32.mrb[0].mxu0
        %v4883 = vadd.f32 %v4794, %v4882
        %4884 = vmatprep.mubr.bf16.mxu0 %v4830
        %4885 = vmatmul.mubr.bf16.gmra.mrb[0].mxu0 %v4829
        %v4886 = vpop.f32.mrb[0].mxu0
        %v4887 = vadd.f32 %v4799, %v4886
        %v4888 = vpop.f32.mrb[0].mxu0
        %v4889 = vadd.f32 %v4799, %v4888
        %v4890 = vpop.f32.mrb[0].mxu0
        %v4891 = vadd.f32 %v4804, %v4890
        %v4892 = vpop.f32.mrb[0].mxu0
        %v4893 = vadd.f32 %v4804, %v4892
        %4894 = vdwg.mxu0
        %4895 = vmatprep.subr.bf16.mxu0 %v4776
        %4896 = vmatpush1.bf16.msra.mxu0 %v4775
        %4897 = vmatprep.subr.bf16.mxu0 %v4779
        %4898 = vmatpush1.bf16.msra.mxu0 %v4778
        %4899 = vmatprep.subr.bf16.mxu0 0
        %4900 = vmatpush1.bf16.msra.mxu0 0
        %4901 = vmatprep.subr.bf16.mxu0 0
        %4902 = vmatpush1.bf16.msra.mxu0 0
        %4903 = vmatprep.subr.bf16.mxu0 0
        %4904 = vmatpush1.bf16.msra.mxu0 0
        %4905 = vmatprep.subr.bf16.mxu0 0
        %4906 = vmatpush1.bf16.msra.mxu0 0
        %4907 = vmatprep.subr.bf16.mxu0 0
        %4908 = vmatpush1.bf16.msra.mxu0 0
        %4909 = vmatprep.subr.bf16.mxu0 0
        %4910 = vmatpush1.bf16.msra.mxu0 0
        %4911 = vmatprep.subr.bf16.mxu0 0
        %4912 = vmatpush1.bf16.msra.mxu0 0
        %4913 = vmatprep.subr.bf16.mxu0 0
        %4914 = vmatpush1.bf16.msra.mxu0 0
        %4915 = vmatprep.subr.bf16.mxu0 0
        %4916 = vmatpush1.bf16.msra.mxu0 0
        %4917 = vmatprep.subr.bf16.mxu0 0
        %4918 = vmatpush1.bf16.msra.mxu0 0
        %4919 = vmatprep.subr.bf16.mxu0 0
        %4920 = vmatpush1.bf16.msra.mxu0 0
        %4921 = vmatprep.subr.bf16.mxu0 0
        %4922 = vmatpush1.bf16.msra.mxu0 0
        %4923 = vmatprep.subr.bf16.mxu0 0
        %4924 = vmatpush1.bf16.msra.mxu0 0
        %4925 = vmatprep.subr.bf16.mxu0 0
        %4926 = vmatpush1.bf16.msra.mxu0 0
        %4927 = vmatprep.mubr.bf16.mxu0 0
        %4928 = vmatmul.mubr.bf16.gmra.mrb[0].mxu0 %v4837
        %v4929 = vpop.f32.mrb[0].mxu0
        %v4930 = vadd.f32 %v4877, %v4929
        %v4931 = vpop.f32.mrb[0].mxu0
        %v4932 = vadd.f32 %v4879, %v4931
        %v4933 = vpop.f32.mrb[0].mxu0
        %v4934 = vadd.f32 %v4881, %v4933
        %v4935 = vpop.f32.mrb[0].mxu0
        %v4936 = vadd.f32 %v4883, %v4935
        %4937 = vmatprep.mubr.bf16.mxu0 0
        %4938 = vmatmul.mubr.bf16.gmra.mrb[0].mxu0 %v4840
        %v4939 = vpop.f32.mrb[0].mxu0
        %v4940 = vadd.f32 %v4887, %v4939
        %v4941 = vpop.f32.mrb[0].mxu0
        %v4942 = vadd.f32 %v4889, %v4941
        %v4943 = vpop.f32.mrb[0].mxu0
        %v4944 = vadd.f32 %v4891, %v4943
        %v4945 = vpop.f32.mrb[0].mxu0
        %v4946 = vadd.f32 %v4893, %v4945
        %4947 = vdwg.mxu0
        %4948 = vmatprep.subr.bf16.mxu0 0
        %4949 = vmatpush1.bf16.msra.mxu0 %v4729
        %4950 = vmatprep.subr.bf16.mxu0 0
        %4951 = vmatpush1.bf16.msra.mxu0 %v4732
        %4952 = vmatprep.subr.bf16.mxu0 0
        %4953 = vmatpush1.bf16.msra.mxu0 %v4735
        %4954 = vmatprep.subr.bf16.mxu0 0
        %4955 = vmatpush1.bf16.msra.mxu0 %v4738
        %4956 = vmatprep.subr.bf16.mxu0 0
        %4957 = vmatpush1.bf16.msra.mxu0 %v4741
        %4958 = vmatprep.subr.bf16.mxu0 0
        %4959 = vmatpush1.bf16.msra.mxu0 %v4744
        %4960 = vmatprep.subr.bf16.mxu0 0
        %4961 = vmatpush1.bf16.msra.mxu0 %v4747
        %4962 = vmatprep.subr.bf16.mxu0 0
        %4963 = vmatpush1.bf16.msra.mxu0 %v4750
        %4964 = vmatprep.subr.bf16.mxu0 0
        %4965 = vmatpush1.bf16.msra.mxu0 %v4753
        %4966 = vmatprep.subr.bf16.mxu0 0
        %4967 = vmatpush1.bf16.msra.mxu0 %v4756
        %4968 = vmatprep.subr.bf16.mxu0 0
        %4969 = vmatpush1.bf16.msra.mxu0 %v4759
        %4970 = vmatprep.subr.bf16.mxu0 0
        %4971 = vmatpush1.bf16.msra.mxu0 %v4762
        %4972 = vmatprep.subr.bf16.mxu0 0
        %4973 = vmatpush1.bf16.msra.mxu0 %v4765
        %4974 = vmatprep.subr.bf16.mxu0 0
        %4975 = vmatpush1.bf16.msra.mxu0 %v4768
        %4976 = vmatprep.subr.bf16.mxu0 0
        %4977 = vmatpush1.bf16.msra.mxu0 %v4771
        %4978 = vmatprep.subr.bf16.mxu0 0
        %4979 = vmatpush1.bf16.msra.mxu0 %v4774
        %4980 = vmatprep.mubr.bf16.mxu0 %v4827
        %4981 = vmatmul.mubr.bf16.gmra.mrb[0].mxu0 %v4826
        %v4982 = vpop.f32.mrb[0].mxu0
        %v4983 = vadd.f32 %v4789, %v4982
        %v4984 = vpop.f32.mrb[0].mxu0
        %v4985 = vpop.f32.mrb[0].mxu0
        %v4986 = vadd.f32 %v4794, %v4985
        %v4987 = vpop.f32.mrb[0].mxu0
        %4988 = vmatprep.mubr.bf16.mxu0 %v4830
        %4989 = vmatmul.mubr.bf16.gmra.mrb[0].mxu0 %v4829
        %v4990 = vpop.f32.mrb[0].mxu0
        %v4991 = vadd.f32 %v4799, %v4990
        %v4992 = vpop.f32.mrb[0].mxu0
        %v4993 = vpop.f32.mrb[0].mxu0
        %v4994 = vadd.f32 %v4804, %v4993
        %v4995 = vpop.f32.mrb[0].mxu0
        %4996 = vdwg.mxu0
        %4997 = vmatprep.subr.bf16.mxu0 0
        %4998 = vmatpush1.bf16.msra.mxu0 %v4777
        %4999 = vmatprep.subr.bf16.mxu0 0
        %5000 = vmatpush1.bf16.msra.mxu0 %v4780
        %5001 = vmatprep.subr.bf16.mxu0 0
        %5002 = vmatpush1.bf16.msra.mxu0 0
        %5003 = vmatprep.subr.bf16.mxu0 0
        %5004 = vmatpush1.bf16.msra.mxu0 0
        %5005 = vmatprep.subr.bf16.mxu0 0
        %5006 = vmatpush1.bf16.msra.mxu0 0
        %5007 = vmatprep.subr.bf16.mxu0 0
        %5008 = vmatpush1.bf16.msra.mxu0 0
        %5009 = vmatprep.subr.bf16.mxu0 0
        %5010 = vmatpush1.bf16.msra.mxu0 0
        %5011 = vmatprep.subr.bf16.mxu0 0
        %5012 = vmatpush1.bf16.msra.mxu0 0
        %5013 = vmatprep.subr.bf16.mxu0 0
        %5014 = vmatpush1.bf16.msra.mxu0 0
        %5015 = vmatprep.subr.bf16.mxu0 0
        %5016 = vmatpush1.bf16.msra.mxu0 0
        %5017 = vmatprep.subr.bf16.mxu0 0
        %5018 = vmatpush1.bf16.msra.mxu0 0
        %5019 = vmatprep.subr.bf16.mxu0 0
        %5020 = vmatpush1.bf16.msra.mxu0 0
        %5021 = vmatprep.subr.bf16.mxu0 0
        %5022 = vmatpush1.bf16.msra.mxu0 0
        %5023 = vmatprep.subr.bf16.mxu0 0
        %5024 = vmatpush1.bf16.msra.mxu0 0
        %5025 = vmatprep.subr.bf16.mxu0 0
        %5026 = vmatpush1.bf16.msra.mxu0 0
        %5027 = vmatprep.subr.bf16.mxu0 0
        %5028 = vmatpush1.bf16.msra.mxu0 0
        %5029 = vmatprep.mubr.bf16.mxu0 0
        %5030 = vmatmul.mubr.bf16.gmra.mrb[0].mxu0 %v4837
        %v5031 = vpop.f32.mrb[0].mxu0
        %v5032 = vadd.f32 %v4983, %v5031
        %v5033 = vpop.f32.mrb[0].mxu0
        %v5034 = vpop.f32.mrb[0].mxu0
        %v5035 = vadd.f32 %v4986, %v5034
        %v5036 = vpop.f32.mrb[0].mxu0
        %5037 = vmatprep.mubr.bf16.mxu0 0
        %5038 = vmatmul.mubr.bf16.gmra.mrb[0].mxu0 %v4840
        %v5039 = vpop.f32.mrb[0].mxu0
        %v5040 = vadd.f32 %v4991, %v5039
        %v5041 = vpop.f32.mrb[0].mxu0
        %v5042 = vpop.f32.mrb[0].mxu0
        %v5043 = vadd.f32 %v4994, %v5042
        %v5044 = vpop.f32.mrb[0].mxu0
        %5045 = vdwg.mxu0
        %vm5046 = vcmp.ge.f32.partialorder %v4930, 0.0
        %vm5047 = vcmp.ge.f32.partialorder %v4932, 0.0
        %vm5048 = vcmp.ge.f32.partialorder %v5032, 0.0
        %vm5049 = vcmp.ge.f32.partialorder %v4934, 0.0
        %vm5050 = vcmp.ge.f32.partialorder %v4936, 0.0
        %vm5051 = vcmp.ge.f32.partialorder %v5035, 0.0
        %vm5052 = vcmp.ge.f32.partialorder %v4940, 0.0
        %vm5053 = vcmp.ge.f32.partialorder %v4942, 0.0
        %vm5054 = vcmp.ge.f32.partialorder %v5040, 0.0
        %vm5055 = vcmp.ge.f32.partialorder %v4944, 0.0
        %vm5056 = vcmp.ge.f32.partialorder %v4946, 0.0
        %vm5057 = vcmp.ge.f32.partialorder %v5043, 0.0
        %5058 = vset.pattern.permute.xlu0 1
        %5059 = vperm.xlu0 %5058, %v4782
        %v5060 = vpop.permute.xlu0 %5059
        %5062 = vset.pattern.permute.xlu0 1
        %5063 = vperm.xlu0 %5062, %v4783
        %v5064 = vpop.permute.xlu0 %5063
        %5066 = vset.pattern.permute.xlu0 1
        %5067 = vperm.xlu0 %5066, %v4784
        %v5068 = vpop.permute.xlu0 %5067
        %5070 = vset.pattern.permute.xlu0 1
        %5071 = vperm.xlu0 %5070, %v4785
        %v5072 = vpop.permute.xlu0 %5071
        %v5074 = vmul.f32 %v5060, %v4930
        %v5075 = vmul.f32 %v5060, %v4932
        %v5076 = vmul.f32 %v5060, %v5032
        %v5077 = vmul.f32 %v5064, %v4934
        %v5078 = vmul.f32 %v5064, %v4936
        %v5079 = vmul.f32 %v5064, %v5035
        %v5080 = vmul.f32 %v5068, %v4940
        %v5081 = vmul.f32 %v5068, %v4942
        %v5082 = vmul.f32 %v5068, %v5040
        %v5083 = vmul.f32 %v5072, %v4944
        %v5084 = vmul.f32 %v5072, %v4946
        %v5085 = vmul.f32 %v5072, %v5043
        %v5086 = vsel %vm5046, %v4930, %v5074
        %v5087 = vsel %vm5047, %v4932, %v5075
        %v5088 = vsel %vm5048, %v5032, %v5076
        %v5089 = vsel %vm5049, %v4934, %v5077
        %v5090 = vsel %vm5050, %v4936, %v5078
        %v5091 = vsel %vm5051, %v5035, %v5079
        %v5092 = vsel %vm5052, %v4940, %v5080
        %v5093 = vsel %vm5053, %v4942, %v5081
        %v5094 = vsel %vm5054, %v5040, %v5082
        %v5095 = vsel %vm5055, %v4944, %v5083
        %v5096 = vsel %vm5056, %v4946, %v5084
        %v5097 = vsel %vm5057, %v5043, %v5085
        %v5098 = vmul.f32 %v5086, %v1014
        %v5099 = vmul.f32 %v5087, %v1018
        %v5100 = vmul.f32 %v5088, %v1022
        %v5101 = vmul.f32 %v5089, %v1014
        %v5102 = vmul.f32 %v5090, %v1018
        %v5103 = vmul.f32 %v5091, %v1022
        %v5104 = vmul.f32 %v5092, %v1014
        %v5105 = vmul.f32 %v5093, %v1018
        %v5106 = vmul.f32 %v5094, %v1022
        %v5107 = vmul.f32 %v5095, %v1014
        %v5108 = vmul.f32 %v5096, %v1018
        %v5109 = vmul.f32 %v5097, %v1022
        %v5110 = vld [vmem:[#allocation3] sm:$0xff]
        %v5111 = vld [vmem:[#allocation3 + $0x8] sm:$0xff]
        %v5112 = vld [vmem:[#allocation3 + $0x10] sm:$0xff]
        %v5113 = vld [vmem:[#allocation3 + $0x18] sm:$0xff]
        %v5114 = vld [vmem:[#allocation3 + $0x20] sm:$0xff]
        %v5115 = vld [vmem:[#allocation3 + $0x28] sm:$0xff]
        %v5116 = vld [vmem:[#allocation3 + $0x30] sm:$0xff]
        %v5117 = vld [vmem:[#allocation3 + $0x38] sm:$0xff]
        %v5118 = vld [vmem:[#allocation3 + $0x40] sm:$0xff]
        %v5119 = vld [vmem:[#allocation3 + $0x48] sm:$0xff]
        %v5120 = vld [vmem:[#allocation3 + $0x50] sm:$0xff]
        %v5121 = vld [vmem:[#allocation3 + $0x58] sm:$0xff]
        %v5122 = vadd.f32 %v5110, %v5098
        %v5123 = vadd.f32 %v5111, %v5099
        %v5124 = vadd.f32 %v5112, %v5100
        %v5125 = vadd.f32 %v5113, %v5101
        %v5126 = vadd.f32 %v5114, %v5102
        %v5127 = vadd.f32 %v5115, %v5103
        %v5128 = vadd.f32 %v5116, %v5104
        %v5129 = vadd.f32 %v5117, %v5105
        %v5130 = vadd.f32 %v5118, %v5106
        %v5131 = vadd.f32 %v5119, %v5107
        %v5132 = vadd.f32 %v5120, %v5108
        %v5133 = vadd.f32 %v5121, %v5109
        %5134 = vrot.lane.b32.xlu0 %v5122, 19
        %v5135 = vpop.permute.xlu0 %5134
        %5136 = vrot.lane.b32.xlu0 %v5125, 19
        %v5137 = vpop.permute.xlu0 %5136
        %5138 = vrot.lane.b32.xlu0 %v5128, 19
        %v5139 = vpop.permute.xlu0 %5138
        %5140 = vrot.lane.b32.xlu0 %v5131, 19
        %v5141 = vpop.permute.xlu0 %5140
        %5142 = vrot.lane.b32.xlu0 %v5123, 19
        %v5143 = vpop.permute.xlu0 %5142
        %5144 = vrot.lane.b32.xlu0 %v5126, 19
        %v5145 = vpop.permute.xlu0 %5144
        %5146 = vrot.lane.b32.xlu0 %v5129, 19
        %v5147 = vpop.permute.xlu0 %5146
        %5148 = vrot.lane.b32.xlu0 %v5132, 19
        %v5149 = vpop.permute.xlu0 %5148
        %5150 = vrot.lane.b32.xlu0 %v5124, 19
        %v5151 = vpop.permute.xlu0 %5150
        %5152 = vrot.lane.b32.xlu0 %v5127, 19
        %v5153 = vpop.permute.xlu0 %5152
        %5154 = vrot.lane.b32.xlu0 %v5130, 19
        %v5155 = vpop.permute.xlu0 %5154
        %5156 = vrot.lane.b32.xlu0 %v5133, 19
        %v5157 = vpop.permute.xlu0 %5156
        %v5158 = vsel %vm251, %v5143, %v5151
        %v5159 = vsel %vm251, %v5145, %v5153
        %v5160 = vsel %vm251, %v5147, %v5155
        %v5161 = vsel %vm251, %v5149, %v5157
        %v5162 = vsel %vm251, %v5135, %v5143
        %v5163 = vsel %vm251, %v5137, %v5145
        %v5164 = vsel %vm251, %v5139, %v5147
        %v5165 = vsel %vm251, %v5141, %v5149
        %v5166 = vsel %vm251, %v5151, %v5135
        %v5167 = vsel %vm251, %v5153, %v5137
        %v5168 = vsel %vm251, %v5155, %v5139
        %v5169 = vsel %vm251, %v5157, %v5141
        %v5170 = vpack.c.bf16 %v5167, %v5166
        %v5171 = vpack.c.bf16 %v5163, %v5162
        %v5172 = vpack.c.bf16 %v5159, %v5158
        %v5173 = vpack.c.bf16 %v5169, %v5168
        %v5174 = vpack.c.bf16 %v5165, %v5164
        %v5175 = vpack.c.bf16 %v5161, %v5160
        %5176 = vst [vmem:[#allocation2] sm:$0xff] %v5170
        %5177 = vst [vmem:[#allocation2 + $0x8] sm:$0xff] %v5171
        %5178 = vst [vmem:[#allocation2 + $0x10] sm:$0xff] %v5172
        %5179 = vst [vmem:[#allocation2 + $0x18] sm:$0xff] %v5173
        %5180 = vst [vmem:[#allocation2 + $0x20] sm:$0xff] %v5174
        %5181 = vst [vmem:[#allocation2 + $0x28] sm:$0xff] %v5175
        %5182 = vrot.lane.b32.xlu0 %v5122, 18
        %v5183 = vpop.permute.xlu0 %5182
        %5184 = vrot.lane.b32.xlu0 %v5125, 18
        %v5185 = vpop.permute.xlu0 %5184
        %5186 = vrot.lane.b32.xlu0 %v5128, 18
        %v5187 = vpop.permute.xlu0 %5186
        %5188 = vrot.lane.b32.xlu0 %v5131, 18
        %v5189 = vpop.permute.xlu0 %5188
        %5190 = vrot.lane.b32.xlu0 %v5123, 18
        %v5191 = vpop.permute.xlu0 %5190
        %5192 = vrot.lane.b32.xlu0 %v5126, 18
        %v5193 = vpop.permute.xlu0 %5192
        %5194 = vrot.lane.b32.xlu0 %v5129, 18
        %v5195 = vpop.permute.xlu0 %5194
        %5196 = vrot.lane.b32.xlu0 %v5132, 18
        %v5197 = vpop.permute.xlu0 %5196
        %5198 = vrot.lane.b32.xlu0 %v5124, 18
        %v5199 = vpop.permute.xlu0 %5198
        %5200 = vrot.lane.b32.xlu0 %v5127, 18
        %v5201 = vpop.permute.xlu0 %5200
        %5202 = vrot.lane.b32.xlu0 %v5130, 18
        %v5203 = vpop.permute.xlu0 %5202
        %5204 = vrot.lane.b32.xlu0 %v5133, 18
        %v5205 = vpop.permute.xlu0 %5204
        %v5206 = vsel %vm300, %v5191, %v5199
        %v5207 = vsel %vm300, %v5193, %v5201
        %v5208 = vsel %vm300, %v5195, %v5203
        %v5209 = vsel %vm300, %v5197, %v5205
        %v5210 = vsel %vm300, %v5183, %v5191
        %v5211 = vsel %vm300, %v5185, %v5193
        %v5212 = vsel %vm300, %v5187, %v5195
        %v5213 = vsel %vm300, %v5189, %v5197
        %v5214 = vsel %vm300, %v5199, %v5183
        %v5215 = vsel %vm300, %v5201, %v5185
        %v5216 = vsel %vm300, %v5203, %v5187
        %v5217 = vsel %vm300, %v5205, %v5189
        %v5218 = vpack.c.bf16 %v5215, %v5214
        %v5219 = vpack.c.bf16 %v5211, %v5210
        %v5220 = vpack.c.bf16 %v5207, %v5206
        %v5221 = vpack.c.bf16 %v5217, %v5216
        %v5222 = vpack.c.bf16 %v5213, %v5212
        %v5223 = vpack.c.bf16 %v5209, %v5208
        %5224 = vst [vmem:[#allocation2 + $0x30] sm:$0xff] %v5218
        %5225 = vst [vmem:[#allocation2 + $0x38] sm:$0xff] %v5219
        %5226 = vst [vmem:[#allocation2 + $0x40] sm:$0xff] %v5220
        %5227 = vst [vmem:[#allocation2 + $0x48] sm:$0xff] %v5221
        %5228 = vst [vmem:[#allocation2 + $0x50] sm:$0xff] %v5222
        %5229 = vst [vmem:[#allocation2 + $0x58] sm:$0xff] %v5223
        %5230 = vrot.lane.b32.xlu0 %v5122, 17
        %v5231 = vpop.permute.xlu0 %5230
        %5232 = vrot.lane.b32.xlu0 %v5125, 17
        %v5233 = vpop.permute.xlu0 %5232
        %5234 = vrot.lane.b32.xlu0 %v5128, 17
        %v5235 = vpop.permute.xlu0 %5234
        %5236 = vrot.lane.b32.xlu0 %v5131, 17
        %v5237 = vpop.permute.xlu0 %5236
        %5238 = vrot.lane.b32.xlu0 %v5123, 17
        %v5239 = vpop.permute.xlu0 %5238
        %5240 = vrot.lane.b32.xlu0 %v5126, 17
        %v5241 = vpop.permute.xlu0 %5240
        %5242 = vrot.lane.b32.xlu0 %v5129, 17
        %v5243 = vpop.permute.xlu0 %5242
        %5244 = vrot.lane.b32.xlu0 %v5132, 17
        %v5245 = vpop.permute.xlu0 %5244
        %5246 = vrot.lane.b32.xlu0 %v5124, 17
        %v5247 = vpop.permute.xlu0 %5246
        %5248 = vrot.lane.b32.xlu0 %v5127, 17
        %v5249 = vpop.permute.xlu0 %5248
        %5250 = vrot.lane.b32.xlu0 %v5130, 17
        %v5251 = vpop.permute.xlu0 %5250
        %5252 = vrot.lane.b32.xlu0 %v5133, 17
        %v5253 = vpop.permute.xlu0 %5252
        %v5254 = vsel %vm349, %v5239, %v5247
        %v5255 = vsel %vm349, %v5241, %v5249
        %v5256 = vsel %vm349, %v5243, %v5251
        %v5257 = vsel %vm349, %v5245, %v5253
        %v5258 = vsel %vm349, %v5231, %v5239
        %v5259 = vsel %vm349, %v5233, %v5241
        %v5260 = vsel %vm349, %v5235, %v5243
        %v5261 = vsel %vm349, %v5237, %v5245
        %v5262 = vsel %vm349, %v5247, %v5231
        %v5263 = vsel %vm349, %v5249, %v5233
        %v5264 = vsel %vm349, %v5251, %v5235
        %v5265 = vsel %vm349, %v5253, %v5237
        %v5266 = vpack.c.bf16 %v5263, %v5262
        %v5267 = vpack.c.bf16 %v5259, %v5258
        %v5268 = vpack.c.bf16 %v5255, %v5254
        %v5269 = vpack.c.bf16 %v5265, %v5264
        %v5270 = vpack.c.bf16 %v5261, %v5260
        %v5271 = vpack.c.bf16 %v5257, %v5256
        %5272 = vst [vmem:[#allocation2 + $0x60] sm:$0xff] %v5266
        %5273 = vst [vmem:[#allocation2 + $0x68] sm:$0xff] %v5267
        %5274 = vst [vmem:[#allocation2 + $0x70] sm:$0xff] %v5268
        %5275 = vst [vmem:[#allocation2 + $0x78] sm:$0xff] %v5269
        %5276 = vst [vmem:[#allocation2 + $0x80] sm:$0xff] %v5270
        %5277 = vst [vmem:[#allocation2 + $0x88] sm:$0xff] %v5271
        %5278 = vrot.lane.b32.xlu0 %v5122, 1
        %v5279 = vpop.permute.xlu0 %5278
        %5280 = vrot.lane.b32.xlu0 %v5125, 1
        %v5281 = vpop.permute.xlu0 %5280
        %5282 = vrot.lane.b32.xlu0 %v5128, 1
        %v5283 = vpop.permute.xlu0 %5282
        %5284 = vrot.lane.b32.xlu0 %v5131, 1
        %v5285 = vpop.permute.xlu0 %5284
        %5286 = vrot.lane.b32.xlu0 %v5123, 1
        %v5287 = vpop.permute.xlu0 %5286
        %5288 = vrot.lane.b32.xlu0 %v5126, 1
        %v5289 = vpop.permute.xlu0 %5288
        %5290 = vrot.lane.b32.xlu0 %v5129, 1
        %v5291 = vpop.permute.xlu0 %5290
        %5292 = vrot.lane.b32.xlu0 %v5132, 1
        %v5293 = vpop.permute.xlu0 %5292
        %5294 = vrot.lane.b32.xlu0 %v5124, 1
        %v5295 = vpop.permute.xlu0 %5294
        %5296 = vrot.lane.b32.xlu0 %v5127, 1
        %v5297 = vpop.permute.xlu0 %5296
        %5298 = vrot.lane.b32.xlu0 %v5130, 1
        %v5299 = vpop.permute.xlu0 %5298
        %5300 = vrot.lane.b32.xlu0 %v5133, 1
        %v5301 = vpop.permute.xlu0 %5300
        %v5302 = vsel %vm398, %v5287, %v5295
        %v5303 = vsel %vm398, %v5289, %v5297
        %v5304 = vsel %vm398, %v5291, %v5299
        %v5305 = vsel %vm398, %v5293, %v5301
        %v5306 = vsel %vm398, %v5279, %v5287
        %v5307 = vsel %vm398, %v5281, %v5289
        %v5308 = vsel %vm398, %v5283, %v5291
        %v5309 = vsel %vm398, %v5285, %v5293
        %v5310 = vsel %vm398, %v5295, %v5279
        %v5311 = vsel %vm398, %v5297, %v5281
        %v5312 = vsel %vm398, %v5299, %v5283
        %v5313 = vsel %vm398, %v5301, %v5285
        %v5314 = vpack.c.bf16 %v5311, %v5310
        %v5315 = vpack.c.bf16 %v5307, %v5306
        %v5316 = vpack.c.bf16 %v5303, %v5302
        %v5317 = vpack.c.bf16 %v5313, %v5312
        %v5318 = vpack.c.bf16 %v5309, %v5308
        %v5319 = vpack.c.bf16 %v5305, %v5304
        %5320 = vst [vmem:[#allocation2 + $0x90] sm:$0xff] %v5314
        %5321 = vst [vmem:[#allocation2 + $0x98] sm:$0xff] %v5315
        %5322 = vst [vmem:[#allocation2 + $0xa0] sm:$0xff] %v5316
        %5323 = vst [vmem:[#allocation2 + $0xa8] sm:$0xff] %v5317
        %5324 = vst [vmem:[#allocation2 + $0xb0] sm:$0xff] %v5318
        %5325 = vst [vmem:[#allocation2 + $0xb8] sm:$0xff] %v5319
        %v5326 = vpack.c.bf16 %v5125, %v5122
        %v5327 = vpack.c.bf16 %v5126, %v5123
        %v5328 = vpack.c.bf16 %v5127, %v5124
        %v5329 = vpack.c.bf16 %v5131, %v5128
        %v5330 = vpack.c.bf16 %v5132, %v5129
        %v5331 = vpack.c.bf16 %v5133, %v5130
        %5332 = vst [vmem:[#allocation2 + $0xc0] sm:$0xff] %v5326
        %5333 = vst [vmem:[#allocation2 + $0xc8] sm:$0xff] %v5327
        %5334 = vst [vmem:[#allocation2 + $0xd0] sm:$0xff] %v5328
        %5335 = vst [vmem:[#allocation2 + $0xd8] sm:$0xff] %v5329
        %5336 = vst [vmem:[#allocation2 + $0xe0] sm:$0xff] %v5330
        %5337 = vst [vmem:[#allocation2 + $0xe8] sm:$0xff] %v5331
        %5338 = vrot.lane.b32.xlu0 %v5122, 127
        %v5339 = vpop.permute.xlu0 %5338
        %5340 = vrot.lane.b32.xlu0 %v5125, 127
        %v5341 = vpop.permute.xlu0 %5340
        %5342 = vrot.lane.b32.xlu0 %v5128, 127
        %v5343 = vpop.permute.xlu0 %5342
        %5344 = vrot.lane.b32.xlu0 %v5131, 127
        %v5345 = vpop.permute.xlu0 %5344
        %5346 = vrot.lane.b32.xlu0 %v5123, 127
        %v5347 = vpop.permute.xlu0 %5346
        %5348 = vrot.lane.b32.xlu0 %v5126, 127
        %v5349 = vpop.permute.xlu0 %5348
        %5350 = vrot.lane.b32.xlu0 %v5129, 127
        %v5351 = vpop.permute.xlu0 %5350
        %5352 = vrot.lane.b32.xlu0 %v5132, 127
        %v5353 = vpop.permute.xlu0 %5352
        %5354 = vrot.lane.b32.xlu0 %v5124, 127
        %v5355 = vpop.permute.xlu0 %5354
        %5356 = vrot.lane.b32.xlu0 %v5127, 127
        %v5357 = vpop.permute.xlu0 %5356
        %5358 = vrot.lane.b32.xlu0 %v5130, 127
        %v5359 = vpop.permute.xlu0 %5358
        %5360 = vrot.lane.b32.xlu0 %v5133, 127
        %v5361 = vpop.permute.xlu0 %5360
        %v5362 = vsel %vm459, %v5347, %v5355
        %v5363 = vsel %vm459, %v5349, %v5357
        %v5364 = vsel %vm459, %v5351, %v5359
        %v5365 = vsel %vm459, %v5353, %v5361
        %v5366 = vsel %vm459, %v5339, %v5347
        %v5367 = vsel %vm459, %v5341, %v5349
        %v5368 = vsel %vm459, %v5343, %v5351
        %v5369 = vsel %vm459, %v5345, %v5353
        %v5370 = vsel %vm459, %v5355, %v5339
        %v5371 = vsel %vm459, %v5357, %v5341
        %v5372 = vsel %vm459, %v5359, %v5343
        %v5373 = vsel %vm459, %v5361, %v5345
        %v5374 = vpack.c.bf16 %v5367, %v5366
        %v5375 = vpack.c.bf16 %v5363, %v5362
        %v5376 = vpack.c.bf16 %v5371, %v5370
        %v5377 = vpack.c.bf16 %v5369, %v5368
        %v5378 = vpack.c.bf16 %v5365, %v5364
        %v5379 = vpack.c.bf16 %v5373, %v5372
        %5380 = vst [vmem:[#allocation2 + $0xf0] sm:$0xff] %v5374
        %5381 = vst [vmem:[#allocation2 + $0xf8] sm:$0xff] %v5375
        %5382 = vst [vmem:[#allocation2 + $0x100] sm:$0xff] %v5376
        %5383 = vst [vmem:[#allocation2 + $0x108] sm:$0xff] %v5377
        %5384 = vst [vmem:[#allocation2 + $0x110] sm:$0xff] %v5378
        %5385 = vst [vmem:[#allocation2 + $0x118] sm:$0xff] %v5379
        %5386 = vrot.lane.b32.xlu0 %v5122, 111
        %v5387 = vpop.permute.xlu0 %5386
        %5388 = vrot.lane.b32.xlu0 %v5125, 111
        %v5389 = vpop.permute.xlu0 %5388
        %5390 = vrot.lane.b32.xlu0 %v5128, 111
        %v5391 = vpop.permute.xlu0 %5390
        %5392 = vrot.lane.b32.xlu0 %v5131, 111
        %v5393 = vpop.permute.xlu0 %5392
        %5394 = vrot.lane.b32.xlu0 %v5123, 111
        %v5395 = vpop.permute.xlu0 %5394
        %5396 = vrot.lane.b32.xlu0 %v5126, 111
        %v5397 = vpop.permute.xlu0 %5396
        %5398 = vrot.lane.b32.xlu0 %v5129, 111
        %v5399 = vpop.permute.xlu0 %5398
        %5400 = vrot.lane.b32.xlu0 %v5132, 111
        %v5401 = vpop.permute.xlu0 %5400
        %5402 = vrot.lane.b32.xlu0 %v5124, 111
        %v5403 = vpop.permute.xlu0 %5402
        %5404 = vrot.lane.b32.xlu0 %v5127, 111
        %v5405 = vpop.permute.xlu0 %5404
        %5406 = vrot.lane.b32.xlu0 %v5130, 111
        %v5407 = vpop.permute.xlu0 %5406
        %5408 = vrot.lane.b32.xlu0 %v5133, 111
        %v5409 = vpop.permute.xlu0 %5408
        %v5410 = vsel %vm508, %v5395, %v5403
        %v5411 = vsel %vm508, %v5397, %v5405
        %v5412 = vsel %vm508, %v5399, %v5407
        %v5413 = vsel %vm508, %v5401, %v5409
        %v5414 = vsel %vm508, %v5387, %v5395
        %v5415 = vsel %vm508, %v5389, %v5397
        %v5416 = vsel %vm508, %v5391, %v5399
        %v5417 = vsel %vm508, %v5393, %v5401
        %v5418 = vsel %vm508, %v5403, %v5387
        %v5419 = vsel %vm508, %v5405, %v5389
        %v5420 = vsel %vm508, %v5407, %v5391
        %v5421 = vsel %vm508, %v5409, %v5393
        %v5422 = vpack.c.bf16 %v5415, %v5414
        %v5423 = vpack.c.bf16 %v5411, %v5410
        %v5424 = vpack.c.bf16 %v5419, %v5418
        %v5425 = vpack.c.bf16 %v5417, %v5416
        %v5426 = vpack.c.bf16 %v5413, %v5412
        %v5427 = vpack.c.bf16 %v5421, %v5420
        %5428 = vst [vmem:[#allocation2 + $0x120] sm:$0xff] %v5422
        %5429 = vst [vmem:[#allocation2 + $0x128] sm:$0xff] %v5423
        %5430 = vst [vmem:[#allocation2 + $0x130] sm:$0xff] %v5424
        %5431 = vst [vmem:[#allocation2 + $0x138] sm:$0xff] %v5425
        %5432 = vst [vmem:[#allocation2 + $0x140] sm:$0xff] %v5426
        %5433 = vst [vmem:[#allocation2 + $0x148] sm:$0xff] %v5427
        %5434 = vrot.lane.b32.xlu0 %v5122, 110
        %v5435 = vpop.permute.xlu0 %5434
        %5436 = vrot.lane.b32.xlu0 %v5125, 110
        %v5437 = vpop.permute.xlu0 %5436
        %5438 = vrot.lane.b32.xlu0 %v5128, 110
        %v5439 = vpop.permute.xlu0 %5438
        %5440 = vrot.lane.b32.xlu0 %v5131, 110
        %v5441 = vpop.permute.xlu0 %5440
        %5442 = vrot.lane.b32.xlu0 %v5123, 110
        %v5443 = vpop.permute.xlu0 %5442
        %5444 = vrot.lane.b32.xlu0 %v5126, 110
        %v5445 = vpop.permute.xlu0 %5444
        %5446 = vrot.lane.b32.xlu0 %v5129, 110
        %v5447 = vpop.permute.xlu0 %5446
        %5448 = vrot.lane.b32.xlu0 %v5132, 110
        %v5449 = vpop.permute.xlu0 %5448
        %5450 = vrot.lane.b32.xlu0 %v5124, 110
        %v5451 = vpop.permute.xlu0 %5450
        %5452 = vrot.lane.b32.xlu0 %v5127, 110
        %v5453 = vpop.permute.xlu0 %5452
        %5454 = vrot.lane.b32.xlu0 %v5130, 110
        %v5455 = vpop.permute.xlu0 %5454
        %5456 = vrot.lane.b32.xlu0 %v5133, 110
        %v5457 = vpop.permute.xlu0 %5456
        %v5458 = vsel %vm557, %v5443, %v5451
        %v5459 = vsel %vm557, %v5445, %v5453
        %v5460 = vsel %vm557, %v5447, %v5455
        %v5461 = vsel %vm557, %v5449, %v5457
        %v5462 = vsel %vm557, %v5435, %v5443
        %v5463 = vsel %vm557, %v5437, %v5445
        %v5464 = vsel %vm557, %v5439, %v5447
        %v5465 = vsel %vm557, %v5441, %v5449
        %v5466 = vsel %vm557, %v5451, %v5435
        %v5467 = vsel %vm557, %v5453, %v5437
        %v5468 = vsel %vm557, %v5455, %v5439
        %v5469 = vsel %vm557, %v5457, %v5441
        %v5470 = vpack.c.bf16 %v5463, %v5462
        %v5471 = vpack.c.bf16 %v5459, %v5458
        %v5472 = vpack.c.bf16 %v5467, %v5466
        %v5473 = vpack.c.bf16 %v5465, %v5464
        %v5474 = vpack.c.bf16 %v5461, %v5460
        %v5475 = vpack.c.bf16 %v5469, %v5468
        %5476 = vst [vmem:[#allocation2 + $0x150] sm:$0xff] %v5470
        %5477 = vst [vmem:[#allocation2 + $0x158] sm:$0xff] %v5471
        %5478 = vst [vmem:[#allocation2 + $0x160] sm:$0xff] %v5472
        %5479 = vst [vmem:[#allocation2 + $0x168] sm:$0xff] %v5473
        %5480 = vst [vmem:[#allocation2 + $0x170] sm:$0xff] %v5474
        %5481 = vst [vmem:[#allocation2 + $0x178] sm:$0xff] %v5475
        %5482 = vrot.lane.b32.xlu0 %v5122, 109
        %v5483 = vpop.permute.xlu0 %5482
        %5484 = vrot.lane.b32.xlu0 %v5125, 109
        %v5485 = vpop.permute.xlu0 %5484
        %5486 = vrot.lane.b32.xlu0 %v5128, 109
        %v5487 = vpop.permute.xlu0 %5486
        %5488 = vrot.lane.b32.xlu0 %v5131, 109
        %v5489 = vpop.permute.xlu0 %5488
        %5490 = vrot.lane.b32.xlu0 %v5123, 109
        %v5491 = vpop.permute.xlu0 %5490
        %5492 = vrot.lane.b32.xlu0 %v5126, 109
        %v5493 = vpop.permute.xlu0 %5492
        %5494 = vrot.lane.b32.xlu0 %v5129, 109
        %v5495 = vpop.permute.xlu0 %5494
        %5496 = vrot.lane.b32.xlu0 %v5132, 109
        %v5497 = vpop.permute.xlu0 %5496
        %5498 = vrot.lane.b32.xlu0 %v5124, 109
        %v5499 = vpop.permute.xlu0 %5498
        %5500 = vrot.lane.b32.xlu0 %v5127, 109
        %v5501 = vpop.permute.xlu0 %5500
        %5502 = vrot.lane.b32.xlu0 %v5130, 109
        %v5503 = vpop.permute.xlu0 %5502
        %5504 = vrot.lane.b32.xlu0 %v5133, 109
        %v5505 = vpop.permute.xlu0 %5504
        %v5506 = vsel %vm606, %v5491, %v5499
        %v5507 = vsel %vm606, %v5493, %v5501
        %v5508 = vsel %vm606, %v5495, %v5503
        %v5509 = vsel %vm606, %v5497, %v5505
        %v5510 = vsel %vm606, %v5483, %v5491
        %v5511 = vsel %vm606, %v5485, %v5493
        %v5512 = vsel %vm606, %v5487, %v5495
        %v5513 = vsel %vm606, %v5489, %v5497
        %v5514 = vsel %vm606, %v5499, %v5483
        %v5515 = vsel %vm606, %v5501, %v5485
        %v5516 = vsel %vm606, %v5503, %v5487
        %v5517 = vsel %vm606, %v5505, %v5489
        %v5518 = vpack.c.bf16 %v5511, %v5510
        %v5519 = vpack.c.bf16 %v5507, %v5506
        %v5520 = vpack.c.bf16 %v5515, %v5514
        %v5521 = vpack.c.bf16 %v5513, %v5512
        %v5522 = vpack.c.bf16 %v5509, %v5508
        %v5523 = vpack.c.bf16 %v5517, %v5516
        %5524 = vst [vmem:[#allocation2 + $0x180] sm:$0xff] %v5518
        %5525 = vst [vmem:[#allocation2 + $0x188] sm:$0xff] %v5519
        %5526 = vst [vmem:[#allocation2 + $0x190] sm:$0xff] %v5520
        %5527 = vst [vmem:[#allocation2 + $0x198] sm:$0xff] %v5521
        %5528 = vst [vmem:[#allocation2 + $0x1a0] sm:$0xff] %v5522
        %5529 = vst [vmem:[#allocation2 + $0x1a8] sm:$0xff] %v5523
        %s5530 = scalar_lea.vmem [#allocation5], 288
        %v5531 = vld [vmem:[%s5530] sm:$0xff]
        %v5532 = vld [vmem:[%s5530 + $0x8] sm:$0xf]
        %v5533 = vld [vmem:[%s5530 + $0xc] sm:$0xff]
        %v5534 = vld [vmem:[%s5530 + $0x14] sm:$0xf]
        %v5535 = vld [vmem:[%s5530 + $0x18] sm:$0xff]
        %v5536 = vld [vmem:[%s5530 + $0x20] sm:$0xf]
        %v5537 = vld [vmem:[%s5530 + $0x24] sm:$0xff]
        %v5538 = vld [vmem:[%s5530 + $0x2c] sm:$0xf]
        %v5539 = vld [vmem:[#allocation2] sm:$0xff]
        %v5540 = vld [vmem:[#allocation2 + $0x8] sm:$0xff]
        %v5541 = vld [vmem:[#allocation2 + $0x10] sm:$0xff]
        %v5542 = vld [vmem:[#allocation2 + $0x18] sm:$0xff]
        %v5543 = vld [vmem:[#allocation2 + $0x20] sm:$0xff]
        %v5544 = vld [vmem:[#allocation2 + $0x28] sm:$0xff]
        %v5545 = vld [vmem:[#allocation2 + $0x30] sm:$0xff]
        %v5546 = vld [vmem:[#allocation2 + $0x38] sm:$0xff]
        %v5547 = vld [vmem:[#allocation2 + $0x40] sm:$0xff]
        %v5548 = vld [vmem:[#allocation2 + $0x48] sm:$0xff]
        %v5549 = vld [vmem:[#allocation2 + $0x50] sm:$0xff]
        %v5550 = vld [vmem:[#allocation2 + $0x58] sm:$0xff]
        %v5551 = vld [vmem:[#allocation2 + $0x60] sm:$0xff]
        %v5552 = vld [vmem:[#allocation2 + $0x68] sm:$0xff]
        %v5553 = vld [vmem:[#allocation2 + $0x70] sm:$0xff]
        %v5554 = vld [vmem:[#allocation2 + $0x78] sm:$0xff]
        %v5555 = vld [vmem:[#allocation2 + $0x80] sm:$0xff]
        %v5556 = vld [vmem:[#allocation2 + $0x88] sm:$0xff]
        %v5557 = vld [vmem:[#allocation2 + $0x90] sm:$0xff]
        %v5558 = vld [vmem:[#allocation2 + $0x98] sm:$0xff]
        %v5559 = vld [vmem:[#allocation2 + $0xa0] sm:$0xff]
        %v5560 = vld [vmem:[#allocation2 + $0xa8] sm:$0xff]
        %v5561 = vld [vmem:[#allocation2 + $0xb0] sm:$0xff]
        %v5562 = vld [vmem:[#allocation2 + $0xb8] sm:$0xff]
        %v5563 = vld [vmem:[#allocation2 + $0xc0] sm:$0xff]
        %v5564 = vld [vmem:[#allocation2 + $0xc8] sm:$0xff]
        %v5565 = vld [vmem:[#allocation2 + $0xd0] sm:$0xff]
        %v5566 = vld [vmem:[#allocation2 + $0xd8] sm:$0xff]
        %v5567 = vld [vmem:[#allocation2 + $0xe0] sm:$0xff]
        %v5568 = vld [vmem:[#allocation2 + $0xe8] sm:$0xff]
        %v5569 = vld [vmem:[#allocation2 + $0xf0] sm:$0xff]
        %v5570 = vld [vmem:[#allocation2 + $0xf8] sm:$0xff]
        %v5571 = vld [vmem:[#allocation2 + $0x100] sm:$0xff]
        %v5572 = vld [vmem:[#allocation2 + $0x108] sm:$0xff]
        %v5573 = vld [vmem:[#allocation2 + $0x110] sm:$0xff]
        %v5574 = vld [vmem:[#allocation2 + $0x118] sm:$0xff]
        %v5575 = vld [vmem:[#allocation2 + $0x120] sm:$0xff]
        %v5576 = vld [vmem:[#allocation2 + $0x128] sm:$0xff]
        %v5577 = vld [vmem:[#allocation2 + $0x130] sm:$0xff]
        %v5578 = vld [vmem:[#allocation2 + $0x138] sm:$0xff]
        %v5579 = vld [vmem:[#allocation2 + $0x140] sm:$0xff]
        %v5580 = vld [vmem:[#allocation2 + $0x148] sm:$0xff]
        %v5581 = vld [vmem:[#allocation2 + $0x150] sm:$0xff]
        %v5582 = vld [vmem:[#allocation2 + $0x158] sm:$0xff]
        %v5583 = vld [vmem:[#allocation2 + $0x160] sm:$0xff]
        %v5584 = vld [vmem:[#allocation2 + $0x168] sm:$0xff]
        %v5585 = vld [vmem:[#allocation2 + $0x170] sm:$0xff]
        %v5586 = vld [vmem:[#allocation2 + $0x178] sm:$0xff]
        %v5587 = vld [vmem:[#allocation2 + $0x180] sm:$0xff]
        %v5588 = vld [vmem:[#allocation2 + $0x188] sm:$0xff]
        %v5589 = vld [vmem:[#allocation2 + $0x190] sm:$0xff]
        %v5590 = vld [vmem:[#allocation2 + $0x198] sm:$0xff]
        %v5591 = vld [vmem:[#allocation2 + $0x1a0] sm:$0xff]
        %v5592 = vld [vmem:[#allocation2 + $0x1a8] sm:$0xff]
        %s5593 = scalar_lea.vmem %s2, 192
        %v5594 = vld [vmem:[%s5593] sm:$0xff]
        %v5595 = vld [vmem:[%s5593 + $0x8] sm:$0xff]
        %v5596 = vld [vmem:[%s5593 + $0x10] sm:$0xff]
        %v5597 = vld [vmem:[%s5593 + $0x18] sm:$0xff]
        %5599 = vset.pattern.permute.xlu0 0
        %5600 = vperm.xlu0 %5599, %v5594
        %v5601 = vpop.permute.xlu0 %5600
        %5604 = vset.pattern.permute.xlu0 0
        %5605 = vperm.xlu0 %5604, %v5595
        %v5606 = vpop.permute.xlu0 %5605
        %5609 = vset.pattern.permute.xlu0 0
        %5610 = vperm.xlu0 %5609, %v5596
        %v5611 = vpop.permute.xlu0 %5610
        %5614 = vset.pattern.permute.xlu0 0
        %5615 = vperm.xlu0 %5614, %v5597
        %v5616 = vpop.permute.xlu0 %5615
        %v5626 = vunpack.c.l.b16 %v5531
        %v5627 = vunpack.c.h.b16 %v5531
        %v5628 = vunpack.c.l.b16 %v5532
        %v5629 = vunpack.c.l.b16 %v5533
        %v5630 = vunpack.c.h.b16 %v5533
        %v5631 = vunpack.c.l.b16 %v5534
        %v5632 = vunpack.c.l.b16 %v5535
        %v5633 = vunpack.c.h.b16 %v5535
        %v5634 = vunpack.c.l.b16 %v5536
        %v5635 = vunpack.c.l.b16 %v5537
        %v5636 = vunpack.c.h.b16 %v5537
        %v5637 = vunpack.c.l.b16 %v5538
        %v5638 = vpack.c.b16 %v5629, %v5626
        %v5639 = vpack.c.b16 %v5630, %v5627
        %v5640 = vpack.c.b16 %v5631, %v5628
        %v5641 = vpack.c.b16 %v5635, %v5632
        %v5642 = vpack.c.b16 %v5636, %v5633
        %v5643 = vpack.c.b16 %v5637, %v5634
        %v5649 = vsel %vm747, %v5640, 0
        %v5652 = vsel %vm747, %v5643, 0
        %5654 = vmatprep.subr.bf16.mxu0 %v5540
        %5655 = vmatpush1.bf16.msra.mxu0 %v5539
        %5656 = vmatprep.subr.bf16.mxu0 %v5543
        %5657 = vmatpush1.bf16.msra.mxu0 %v5542
        %5658 = vmatprep.subr.bf16.mxu0 %v5546
        %5659 = vmatpush1.bf16.msra.mxu0 %v5545
        %5660 = vmatprep.subr.bf16.mxu0 %v5549
        %5661 = vmatpush1.bf16.msra.mxu0 %v5548
        %5662 = vmatprep.subr.bf16.mxu0 %v5552
        %5663 = vmatpush1.bf16.msra.mxu0 %v5551
        %5664 = vmatprep.subr.bf16.mxu0 %v5555
        %5665 = vmatpush1.bf16.msra.mxu0 %v5554
        %5666 = vmatprep.subr.bf16.mxu0 %v5558
        %5667 = vmatpush1.bf16.msra.mxu0 %v5557
        %5668 = vmatprep.subr.bf16.mxu0 %v5561
        %5669 = vmatpush1.bf16.msra.mxu0 %v5560
        %5670 = vmatprep.subr.bf16.mxu0 %v5564
        %5671 = vmatpush1.bf16.msra.mxu0 %v5563
        %5672 = vmatprep.subr.bf16.mxu0 %v5567
        %5673 = vmatpush1.bf16.msra.mxu0 %v5566
        %5674 = vmatprep.subr.bf16.mxu0 %v5570
        %5675 = vmatpush1.bf16.msra.mxu0 %v5569
        %5676 = vmatprep.subr.bf16.mxu0 %v5573
        %5677 = vmatpush1.bf16.msra.mxu0 %v5572
        %5678 = vmatprep.subr.bf16.mxu0 %v5576
        %5679 = vmatpush1.bf16.msra.mxu0 %v5575
        %5680 = vmatprep.subr.bf16.mxu0 %v5579
        %5681 = vmatpush1.bf16.msra.mxu0 %v5578
        %5682 = vmatprep.subr.bf16.mxu0 %v5582
        %5683 = vmatpush1.bf16.msra.mxu0 %v5581
        %5684 = vmatprep.subr.bf16.mxu0 %v5585
        %5685 = vmatpush1.bf16.msra.mxu0 %v5584
        %5686 = vmatprep.mubr.bf16.mxu0 %v5639
        %5687 = vmatmul.mubr.bf16.gmra.mrb[0].mxu0 %v5638
        %v5688 = vpop.f32.mrb[0].mxu0
        %v5689 = vadd.f32 %v5601, %v5688
        %v5690 = vpop.f32.mrb[0].mxu0
        %v5691 = vadd.f32 %v5601, %v5690
        %v5692 = vpop.f32.mrb[0].mxu0
        %v5693 = vadd.f32 %v5606, %v5692
        %v5694 = vpop.f32.mrb[0].mxu0
        %v5695 = vadd.f32 %v5606, %v5694
        %5696 = vmatprep.mubr.bf16.mxu0 %v5642
        %5697 = vmatmul.mubr.bf16.gmra.mrb[0].mxu0 %v5641
        %v5698 = vpop.f32.mrb[0].mxu0
        %v5699 = vadd.f32 %v5611, %v5698
        %v5700 = vpop.f32.mrb[0].mxu0
        %v5701 = vadd.f32 %v5611, %v5700
        %v5702 = vpop.f32.mrb[0].mxu0
        %v5703 = vadd.f32 %v5616, %v5702
        %v5704 = vpop.f32.mrb[0].mxu0
        %v5705 = vadd.f32 %v5616, %v5704
        %5706 = vdwg.mxu0
        %5707 = vmatprep.subr.bf16.mxu0 %v5588
        %5708 = vmatpush1.bf16.msra.mxu0 %v5587
        %5709 = vmatprep.subr.bf16.mxu0 %v5591
        %5710 = vmatpush1.bf16.msra.mxu0 %v5590
        %5711 = vmatprep.subr.bf16.mxu0 0
        %5712 = vmatpush1.bf16.msra.mxu0 0
        %5713 = vmatprep.subr.bf16.mxu0 0
        %5714 = vmatpush1.bf16.msra.mxu0 0
        %5715 = vmatprep.subr.bf16.mxu0 0
        %5716 = vmatpush1.bf16.msra.mxu0 0
        %5717 = vmatprep.subr.bf16.mxu0 0
        %5718 = vmatpush1.bf16.msra.mxu0 0
        %5719 = vmatprep.subr.bf16.mxu0 0
        %5720 = vmatpush1.bf16.msra.mxu0 0
        %5721 = vmatprep.subr.bf16.mxu0 0
        %5722 = vmatpush1.bf16.msra.mxu0 0
        %5723 = vmatprep.subr.bf16.mxu0 0
        %5724 = vmatpush1.bf16.msra.mxu0 0
        %5725 = vmatprep.subr.bf16.mxu0 0
        %5726 = vmatpush1.bf16.msra.mxu0 0
        %5727 = vmatprep.subr.bf16.mxu0 0
        %5728 = vmatpush1.bf16.msra.mxu0 0
        %5729 = vmatprep.subr.bf16.mxu0 0
        %5730 = vmatpush1.bf16.msra.mxu0 0
        %5731 = vmatprep.subr.bf16.mxu0 0
        %5732 = vmatpush1.bf16.msra.mxu0 0
        %5733 = vmatprep.subr.bf16.mxu0 0
        %5734 = vmatpush1.bf16.msra.mxu0 0
        %5735 = vmatprep.subr.bf16.mxu0 0
        %5736 = vmatpush1.bf16.msra.mxu0 0
        %5737 = vmatprep.subr.bf16.mxu0 0
        %5738 = vmatpush1.bf16.msra.mxu0 0
        %5739 = vmatprep.mubr.bf16.mxu0 0
        %5740 = vmatmul.mubr.bf16.gmra.mrb[0].mxu0 %v5649
        %v5741 = vpop.f32.mrb[0].mxu0
        %v5742 = vadd.f32 %v5689, %v5741
        %v5743 = vpop.f32.mrb[0].mxu0
        %v5744 = vadd.f32 %v5691, %v5743
        %v5745 = vpop.f32.mrb[0].mxu0
        %v5746 = vadd.f32 %v5693, %v5745
        %v5747 = vpop.f32.mrb[0].mxu0
        %v5748 = vadd.f32 %v5695, %v5747
        %5749 = vmatprep.mubr.bf16.mxu0 0
        %5750 = vmatmul.mubr.bf16.gmra.mrb[0].mxu0 %v5652
        %v5751 = vpop.f32.mrb[0].mxu0
        %v5752 = vadd.f32 %v5699, %v5751
        %v5753 = vpop.f32.mrb[0].mxu0
        %v5754 = vadd.f32 %v5701, %v5753
        %v5755 = vpop.f32.mrb[0].mxu0
        %v5756 = vadd.f32 %v5703, %v5755
        %v5757 = vpop.f32.mrb[0].mxu0
        %v5758 = vadd.f32 %v5705, %v5757
        %5759 = vdwg.mxu0
        %5760 = vmatprep.subr.bf16.mxu0 0
        %5761 = vmatpush1.bf16.msra.mxu0 %v5541
        %5762 = vmatprep.subr.bf16.mxu0 0
        %5763 = vmatpush1.bf16.msra.mxu0 %v5544
        %5764 = vmatprep.subr.bf16.mxu0 0
        %5765 = vmatpush1.bf16.msra.mxu0 %v5547
        %5766 = vmatprep.subr.bf16.mxu0 0
        %5767 = vmatpush1.bf16.msra.mxu0 %v5550
        %5768 = vmatprep.subr.bf16.mxu0 0
        %5769 = vmatpush1.bf16.msra.mxu0 %v5553
        %5770 = vmatprep.subr.bf16.mxu0 0
        %5771 = vmatpush1.bf16.msra.mxu0 %v5556
        %5772 = vmatprep.subr.bf16.mxu0 0
        %5773 = vmatpush1.bf16.msra.mxu0 %v5559
        %5774 = vmatprep.subr.bf16.mxu0 0
        %5775 = vmatpush1.bf16.msra.mxu0 %v5562
        %5776 = vmatprep.subr.bf16.mxu0 0
        %5777 = vmatpush1.bf16.msra.mxu0 %v5565
        %5778 = vmatprep.subr.bf16.mxu0 0
        %5779 = vmatpush1.bf16.msra.mxu0 %v5568
        %5780 = vmatprep.subr.bf16.mxu0 0
        %5781 = vmatpush1.bf16.msra.mxu0 %v5571
        %5782 = vmatprep.subr.bf16.mxu0 0
        %5783 = vmatpush1.bf16.msra.mxu0 %v5574
        %5784 = vmatprep.subr.bf16.mxu0 0
        %5785 = vmatpush1.bf16.msra.mxu0 %v5577
        %5786 = vmatprep.subr.bf16.mxu0 0
        %5787 = vmatpush1.bf16.msra.mxu0 %v5580
        %5788 = vmatprep.subr.bf16.mxu0 0
        %5789 = vmatpush1.bf16.msra.mxu0 %v5583
        %5790 = vmatprep.subr.bf16.mxu0 0
        %5791 = vmatpush1.bf16.msra.mxu0 %v5586
        %5792 = vmatprep.mubr.bf16.mxu0 %v5639
        %5793 = vmatmul.mubr.bf16.gmra.mrb[0].mxu0 %v5638
        %v5794 = vpop.f32.mrb[0].mxu0
        %v5795 = vadd.f32 %v5601, %v5794
        %v5796 = vpop.f32.mrb[0].mxu0
        %v5797 = vpop.f32.mrb[0].mxu0
        %v5798 = vadd.f32 %v5606, %v5797
        %v5799 = vpop.f32.mrb[0].mxu0
        %5800 = vmatprep.mubr.bf16.mxu0 %v5642
        %5801 = vmatmul.mubr.bf16.gmra.mrb[0].mxu0 %v5641
        %v5802 = vpop.f32.mrb[0].mxu0
        %v5803 = vadd.f32 %v5611, %v5802
        %v5804 = vpop.f32.mrb[0].mxu0
        %v5805 = vpop.f32.mrb[0].mxu0
        %v5806 = vadd.f32 %v5616, %v5805
        %v5807 = vpop.f32.mrb[0].mxu0
        %5808 = vdwg.mxu0
        %5809 = vmatprep.subr.bf16.mxu0 0
        %5810 = vmatpush1.bf16.msra.mxu0 %v5589
        %5811 = vmatprep.subr.bf16.mxu0 0
        %5812 = vmatpush1.bf16.msra.mxu0 %v5592
        %5813 = vmatprep.subr.bf16.mxu0 0
        %5814 = vmatpush1.bf16.msra.mxu0 0
        %5815 = vmatprep.subr.bf16.mxu0 0
        %5816 = vmatpush1.bf16.msra.mxu0 0
        %5817 = vmatprep.subr.bf16.mxu0 0
        %5818 = vmatpush1.bf16.msra.mxu0 0
        %5819 = vmatprep.subr.bf16.mxu0 0
        %5820 = vmatpush1.bf16.msra.mxu0 0
        %5821 = vmatprep.subr.bf16.mxu0 0
        %5822 = vmatpush1.bf16.msra.mxu0 0
        %5823 = vmatprep.subr.bf16.mxu0 0
        %5824 = vmatpush1.bf16.msra.mxu0 0
        %5825 = vmatprep.subr.bf16.mxu0 0
        %5826 = vmatpush1.bf16.msra.mxu0 0
        %5827 = vmatprep.subr.bf16.mxu0 0
        %5828 = vmatpush1.bf16.msra.mxu0 0
        %5829 = vmatprep.subr.bf16.mxu0 0
        %5830 = vmatpush1.bf16.msra.mxu0 0
        %5831 = vmatprep.subr.bf16.mxu0 0
        %5832 = vmatpush1.bf16.msra.mxu0 0
        %5833 = vmatprep.subr.bf16.mxu0 0
        %5834 = vmatpush1.bf16.msra.mxu0 0
        %5835 = vmatprep.subr.bf16.mxu0 0
        %5836 = vmatpush1.bf16.msra.mxu0 0
        %5837 = vmatprep.subr.bf16.mxu0 0
        %5838 = vmatpush1.bf16.msra.mxu0 0
        %5839 = vmatprep.subr.bf16.mxu0 0
        %5840 = vmatpush1.bf16.msra.mxu0 0
        %5841 = vmatprep.mubr.bf16.mxu0 0
        %5842 = vmatmul.mubr.bf16.gmra.mrb[0].mxu0 %v5649
        %v5843 = vpop.f32.mrb[0].mxu0
        %v5844 = vadd.f32 %v5795, %v5843
        %v5845 = vpop.f32.mrb[0].mxu0
        %v5846 = vpop.f32.mrb[0].mxu0
        %v5847 = vadd.f32 %v5798, %v5846
        %v5848 = vpop.f32.mrb[0].mxu0
        %5849 = vmatprep.mubr.bf16.mxu0 0
        %5850 = vmatmul.mubr.bf16.gmra.mrb[0].mxu0 %v5652
        %v5851 = vpop.f32.mrb[0].mxu0
        %v5852 = vadd.f32 %v5803, %v5851
        %v5853 = vpop.f32.mrb[0].mxu0
        %v5854 = vpop.f32.mrb[0].mxu0
        %v5855 = vadd.f32 %v5806, %v5854
        %v5856 = vpop.f32.mrb[0].mxu0
        %5857 = vdwg.mxu0
        %vm5858 = vcmp.ge.f32.partialorder %v5742, 0.0
        %vm5859 = vcmp.ge.f32.partialorder %v5744, 0.0
        %vm5860 = vcmp.ge.f32.partialorder %v5844, 0.0
        %vm5861 = vcmp.ge.f32.partialorder %v5746, 0.0
        %vm5862 = vcmp.ge.f32.partialorder %v5748, 0.0
        %vm5863 = vcmp.ge.f32.partialorder %v5847, 0.0
        %vm5864 = vcmp.ge.f32.partialorder %v5752, 0.0
        %vm5865 = vcmp.ge.f32.partialorder %v5754, 0.0
        %vm5866 = vcmp.ge.f32.partialorder %v5852, 0.0
        %vm5867 = vcmp.ge.f32.partialorder %v5756, 0.0
        %vm5868 = vcmp.ge.f32.partialorder %v5758, 0.0
        %vm5869 = vcmp.ge.f32.partialorder %v5855, 0.0
        %5870 = vset.pattern.permute.xlu0 1
        %5871 = vperm.xlu0 %5870, %v5594
        %v5872 = vpop.permute.xlu0 %5871
        %5874 = vset.pattern.permute.xlu0 1
        %5875 = vperm.xlu0 %5874, %v5595
        %v5876 = vpop.permute.xlu0 %5875
        %5878 = vset.pattern.permute.xlu0 1
        %5879 = vperm.xlu0 %5878, %v5596
        %v5880 = vpop.permute.xlu0 %5879
        %5882 = vset.pattern.permute.xlu0 1
        %5883 = vperm.xlu0 %5882, %v5597
        %v5884 = vpop.permute.xlu0 %5883
        %v5886 = vmul.f32 %v5872, %v5742
        %v5887 = vmul.f32 %v5872, %v5744
        %v5888 = vmul.f32 %v5872, %v5844
        %v5889 = vmul.f32 %v5876, %v5746
        %v5890 = vmul.f32 %v5876, %v5748
        %v5891 = vmul.f32 %v5876, %v5847
        %v5892 = vmul.f32 %v5880, %v5752
        %v5893 = vmul.f32 %v5880, %v5754
        %v5894 = vmul.f32 %v5880, %v5852
        %v5895 = vmul.f32 %v5884, %v5756
        %v5896 = vmul.f32 %v5884, %v5758
        %v5897 = vmul.f32 %v5884, %v5855
        %v5898 = vsel %vm5858, %v5742, %v5886
        %v5899 = vsel %vm5859, %v5744, %v5887
        %v5900 = vsel %vm5860, %v5844, %v5888
        %v5901 = vsel %vm5861, %v5746, %v5889
        %v5902 = vsel %vm5862, %v5748, %v5890
        %v5903 = vsel %vm5863, %v5847, %v5891
        %v5904 = vsel %vm5864, %v5752, %v5892
        %v5905 = vsel %vm5865, %v5754, %v5893
        %v5906 = vsel %vm5866, %v5852, %v5894
        %v5907 = vsel %vm5867, %v5756, %v5895
        %v5908 = vsel %vm5868, %v5758, %v5896
        %v5909 = vsel %vm5869, %v5855, %v5897
        %v5910 = vmul.f32 %v5898, %v1014
        %v5911 = vmul.f32 %v5899, %v1018
        %v5912 = vmul.f32 %v5900, %v1022
        %v5913 = vmul.f32 %v5901, %v1014
        %v5914 = vmul.f32 %v5902, %v1018
        %v5915 = vmul.f32 %v5903, %v1022
        %v5916 = vmul.f32 %v5904, %v1014
        %v5917 = vmul.f32 %v5905, %v1018
        %v5918 = vmul.f32 %v5906, %v1022
        %v5919 = vmul.f32 %v5907, %v1014
        %v5920 = vmul.f32 %v5908, %v1018
        %v5921 = vmul.f32 %v5909, %v1022
        %5922 = vrot.lane.b32.xlu0 %v5910, 19
        %v5923 = vpop.permute.xlu0 %5922
        %5924 = vrot.lane.b32.xlu0 %v5913, 19
        %v5925 = vpop.permute.xlu0 %5924
        %5926 = vrot.lane.b32.xlu0 %v5916, 19
        %v5927 = vpop.permute.xlu0 %5926
        %5928 = vrot.lane.b32.xlu0 %v5919, 19
        %v5929 = vpop.permute.xlu0 %5928
        %5930 = vrot.lane.b32.xlu0 %v5911, 19
        %v5931 = vpop.permute.xlu0 %5930
        %5932 = vrot.lane.b32.xlu0 %v5914, 19
        %v5933 = vpop.permute.xlu0 %5932
        %5934 = vrot.lane.b32.xlu0 %v5917, 19
        %v5935 = vpop.permute.xlu0 %5934
        %5936 = vrot.lane.b32.xlu0 %v5920, 19
        %v5937 = vpop.permute.xlu0 %5936
        %5938 = vrot.lane.b32.xlu0 %v5912, 19
        %v5939 = vpop.permute.xlu0 %5938
        %5940 = vrot.lane.b32.xlu0 %v5915, 19
        %v5941 = vpop.permute.xlu0 %5940
        %5942 = vrot.lane.b32.xlu0 %v5918, 19
        %v5943 = vpop.permute.xlu0 %5942
        %5944 = vrot.lane.b32.xlu0 %v5921, 19
        %v5945 = vpop.permute.xlu0 %5944
        %v5946 = vsel %vm251, %v5931, %v5939
        %v5947 = vsel %vm251, %v5933, %v5941
        %v5948 = vsel %vm251, %v5935, %v5943
        %v5949 = vsel %vm251, %v5937, %v5945
        %v5950 = vsel %vm251, %v5923, %v5931
        %v5951 = vsel %vm251, %v5925, %v5933
        %v5952 = vsel %vm251, %v5927, %v5935
        %v5953 = vsel %vm251, %v5929, %v5937
        %v5954 = vsel %vm251, %v5939, %v5923
        %v5955 = vsel %vm251, %v5941, %v5925
        %v5956 = vsel %vm251, %v5943, %v5927
        %v5957 = vsel %vm251, %v5945, %v5929
        %v5958 = vpack.c.bf16 %v5955, %v5954
        %v5959 = vpack.c.bf16 %v5951, %v5950
        %v5960 = vpack.c.bf16 %v5947, %v5946
        %v5961 = vpack.c.bf16 %v5957, %v5956
        %v5962 = vpack.c.bf16 %v5953, %v5952
        %v5963 = vpack.c.bf16 %v5949, %v5948
        %5964 = vst [vmem:[#allocation2] sm:$0xff] %v5958
        %5965 = vst [vmem:[#allocation2 + $0x8] sm:$0xff] %v5959
        %5966 = vst [vmem:[#allocation2 + $0x10] sm:$0xff] %v5960
        %5967 = vst [vmem:[#allocation2 + $0x18] sm:$0xff] %v5961
        %5968 = vst [vmem:[#allocation2 + $0x20] sm:$0xff] %v5962
        %5969 = vst [vmem:[#allocation2 + $0x28] sm:$0xff] %v5963
        %5970 = vrot.lane.b32.xlu0 %v5910, 18
        %v5971 = vpop.permute.xlu0 %5970
        %5972 = vrot.lane.b32.xlu0 %v5913, 18
        %v5973 = vpop.permute.xlu0 %5972
        %5974 = vrot.lane.b32.xlu0 %v5916, 18
        %v5975 = vpop.permute.xlu0 %5974
        %5976 = vrot.lane.b32.xlu0 %v5919, 18
        %v5977 = vpop.permute.xlu0 %5976
        %5978 = vrot.lane.b32.xlu0 %v5911, 18
        %v5979 = vpop.permute.xlu0 %5978
        %5980 = vrot.lane.b32.xlu0 %v5914, 18
        %v5981 = vpop.permute.xlu0 %5980
        %5982 = vrot.lane.b32.xlu0 %v5917, 18
        %v5983 = vpop.permute.xlu0 %5982
        %5984 = vrot.lane.b32.xlu0 %v5920, 18
        %v5985 = vpop.permute.xlu0 %5984
        %5986 = vrot.lane.b32.xlu0 %v5912, 18
        %v5987 = vpop.permute.xlu0 %5986
        %5988 = vrot.lane.b32.xlu0 %v5915, 18
        %v5989 = vpop.permute.xlu0 %5988
        %5990 = vrot.lane.b32.xlu0 %v5918, 18
        %v5991 = vpop.permute.xlu0 %5990
        %5992 = vrot.lane.b32.xlu0 %v5921, 18
        %v5993 = vpop.permute.xlu0 %5992
        %v5994 = vsel %vm300, %v5979, %v5987
        %v5995 = vsel %vm300, %v5981, %v5989
        %v5996 = vsel %vm300, %v5983, %v5991
        %v5997 = vsel %vm300, %v5985, %v5993
        %v5998 = vsel %vm300, %v5971, %v5979
        %v5999 = vsel %vm300, %v5973, %v5981
        %v6000 = vsel %vm300, %v5975, %v5983
        %v6001 = vsel %vm300, %v5977, %v5985
        %v6002 = vsel %vm300, %v5987, %v5971
        %v6003 = vsel %vm300, %v5989, %v5973
        %v6004 = vsel %vm300, %v5991, %v5975
        %v6005 = vsel %vm300, %v5993, %v5977
        %v6006 = vpack.c.bf16 %v6003, %v6002
        %v6007 = vpack.c.bf16 %v5999, %v5998
        %v6008 = vpack.c.bf16 %v5995, %v5994
        %v6009 = vpack.c.bf16 %v6005, %v6004
        %v6010 = vpack.c.bf16 %v6001, %v6000
        %v6011 = vpack.c.bf16 %v5997, %v5996
        %6012 = vst [vmem:[#allocation2 + $0x30] sm:$0xff] %v6006
        %6013 = vst [vmem:[#allocation2 + $0x38] sm:$0xff] %v6007
        %6014 = vst [vmem:[#allocation2 + $0x40] sm:$0xff] %v6008
        %6015 = vst [vmem:[#allocation2 + $0x48] sm:$0xff] %v6009
        %6016 = vst [vmem:[#allocation2 + $0x50] sm:$0xff] %v6010
        %6017 = vst [vmem:[#allocation2 + $0x58] sm:$0xff] %v6011
        %6018 = vrot.lane.b32.xlu0 %v5910, 17
        %v6019 = vpop.permute.xlu0 %6018
        %6020 = vrot.lane.b32.xlu0 %v5913, 17
        %v6021 = vpop.permute.xlu0 %6020
        %6022 = vrot.lane.b32.xlu0 %v5916, 17
        %v6023 = vpop.permute.xlu0 %6022
        %6024 = vrot.lane.b32.xlu0 %v5919, 17
        %v6025 = vpop.permute.xlu0 %6024
        %6026 = vrot.lane.b32.xlu0 %v5911, 17
        %v6027 = vpop.permute.xlu0 %6026
        %6028 = vrot.lane.b32.xlu0 %v5914, 17
        %v6029 = vpop.permute.xlu0 %6028
        %6030 = vrot.lane.b32.xlu0 %v5917, 17
        %v6031 = vpop.permute.xlu0 %6030
        %6032 = vrot.lane.b32.xlu0 %v5920, 17
        %v6033 = vpop.permute.xlu0 %6032
        %6034 = vrot.lane.b32.xlu0 %v5912, 17
        %v6035 = vpop.permute.xlu0 %6034
        %6036 = vrot.lane.b32.xlu0 %v5915, 17
        %v6037 = vpop.permute.xlu0 %6036
        %6038 = vrot.lane.b32.xlu0 %v5918, 17
        %v6039 = vpop.permute.xlu0 %6038
        %6040 = vrot.lane.b32.xlu0 %v5921, 17
        %v6041 = vpop.permute.xlu0 %6040
        %v6042 = vsel %vm349, %v6027, %v6035
        %v6043 = vsel %vm349, %v6029, %v6037
        %v6044 = vsel %vm349, %v6031, %v6039
        %v6045 = vsel %vm349, %v6033, %v6041
        %v6046 = vsel %vm349, %v6019, %v6027
        %v6047 = vsel %vm349, %v6021, %v6029
        %v6048 = vsel %vm349, %v6023, %v6031
        %v6049 = vsel %vm349, %v6025, %v6033
        %v6050 = vsel %vm349, %v6035, %v6019
        %v6051 = vsel %vm349, %v6037, %v6021
        %v6052 = vsel %vm349, %v6039, %v6023
        %v6053 = vsel %vm349, %v6041, %v6025
        %v6054 = vpack.c.bf16 %v6051, %v6050
        %v6055 = vpack.c.bf16 %v6047, %v6046
        %v6056 = vpack.c.bf16 %v6043, %v6042
        %v6057 = vpack.c.bf16 %v6053, %v6052
        %v6058 = vpack.c.bf16 %v6049, %v6048
        %v6059 = vpack.c.bf16 %v6045, %v6044
        %6060 = vst [vmem:[#allocation2 + $0x60] sm:$0xff] %v6054
        %6061 = vst [vmem:[#allocation2 + $0x68] sm:$0xff] %v6055
        %6062 = vst [vmem:[#allocation2 + $0x70] sm:$0xff] %v6056
        %6063 = vst [vmem:[#allocation2 + $0x78] sm:$0xff] %v6057
        %6064 = vst [vmem:[#allocation2 + $0x80] sm:$0xff] %v6058
        %6065 = vst [vmem:[#allocation2 + $0x88] sm:$0xff] %v6059
        %6066 = vrot.lane.b32.xlu0 %v5910, 1
        %v6067 = vpop.permute.xlu0 %6066
        %6068 = vrot.lane.b32.xlu0 %v5913, 1
        %v6069 = vpop.permute.xlu0 %6068
        %6070 = vrot.lane.b32.xlu0 %v5916, 1
        %v6071 = vpop.permute.xlu0 %6070
        %6072 = vrot.lane.b32.xlu0 %v5919, 1
        %v6073 = vpop.permute.xlu0 %6072
        %6074 = vrot.lane.b32.xlu0 %v5911, 1
        %v6075 = vpop.permute.xlu0 %6074
        %6076 = vrot.lane.b32.xlu0 %v5914, 1
        %v6077 = vpop.permute.xlu0 %6076
        %6078 = vrot.lane.b32.xlu0 %v5917, 1
        %v6079 = vpop.permute.xlu0 %6078
        %6080 = vrot.lane.b32.xlu0 %v5920, 1
        %v6081 = vpop.permute.xlu0 %6080
        %6082 = vrot.lane.b32.xlu0 %v5912, 1
        %v6083 = vpop.permute.xlu0 %6082
        %6084 = vrot.lane.b32.xlu0 %v5915, 1
        %v6085 = vpop.permute.xlu0 %6084
        %6086 = vrot.lane.b32.xlu0 %v5918, 1
        %v6087 = vpop.permute.xlu0 %6086
        %6088 = vrot.lane.b32.xlu0 %v5921, 1
        %v6089 = vpop.permute.xlu0 %6088
        %v6090 = vsel %vm398, %v6075, %v6083
        %v6091 = vsel %vm398, %v6077, %v6085
        %v6092 = vsel %vm398, %v6079, %v6087
        %v6093 = vsel %vm398, %v6081, %v6089
        %v6094 = vsel %vm398, %v6067, %v6075
        %v6095 = vsel %vm398, %v6069, %v6077
        %v6096 = vsel %vm398, %v6071, %v6079
        %v6097 = vsel %vm398, %v6073, %v6081
        %v6098 = vsel %vm398, %v6083, %v6067
        %v6099 = vsel %vm398, %v6085, %v6069
        %v6100 = vsel %vm398, %v6087, %v6071
        %v6101 = vsel %vm398, %v6089, %v6073
        %v6102 = vpack.c.bf16 %v6099, %v6098
        %v6103 = vpack.c.bf16 %v6095, %v6094
        %v6104 = vpack.c.bf16 %v6091, %v6090
        %v6105 = vpack.c.bf16 %v6101, %v6100
        %v6106 = vpack.c.bf16 %v6097, %v6096
        %v6107 = vpack.c.bf16 %v6093, %v6092
        %6108 = vst [vmem:[#allocation2 + $0x90] sm:$0xff] %v6102
        %6109 = vst [vmem:[#allocation2 + $0x98] sm:$0xff] %v6103
        %6110 = vst [vmem:[#allocation2 + $0xa0] sm:$0xff] %v6104
        %6111 = vst [vmem:[#allocation2 + $0xa8] sm:$0xff] %v6105
        %6112 = vst [vmem:[#allocation2 + $0xb0] sm:$0xff] %v6106
        %6113 = vst [vmem:[#allocation2 + $0xb8] sm:$0xff] %v6107
        %v6114 = vpack.c.bf16 %v5913, %v5910
        %v6115 = vpack.c.bf16 %v5914, %v5911
        %v6116 = vpack.c.bf16 %v5915, %v5912
        %v6117 = vpack.c.bf16 %v5919, %v5916
        %v6118 = vpack.c.bf16 %v5920, %v5917
        %v6119 = vpack.c.bf16 %v5921, %v5918
        %6120 = vst [vmem:[#allocation2 + $0xc0] sm:$0xff] %v6114
        %6121 = vst [vmem:[#allocation2 + $0xc8] sm:$0xff] %v6115
        %6122 = vst [vmem:[#allocation2 + $0xd0] sm:$0xff] %v6116
        %6123 = vst [vmem:[#allocation2 + $0xd8] sm:$0xff] %v6117
        %6124 = vst [vmem:[#allocation2 + $0xe0] sm:$0xff] %v6118
        %6125 = vst [vmem:[#allocation2 + $0xe8] sm:$0xff] %v6119
        %6126 = vrot.lane.b32.xlu0 %v5910, 127
        %v6127 = vpop.permute.xlu0 %6126
        %6128 = vrot.lane.b32.xlu0 %v5913, 127
        %v6129 = vpop.permute.xlu0 %6128
        %6130 = vrot.lane.b32.xlu0 %v5916, 127
        %v6131 = vpop.permute.xlu0 %6130
        %6132 = vrot.lane.b32.xlu0 %v5919, 127
        %v6133 = vpop.permute.xlu0 %6132
        %6134 = vrot.lane.b32.xlu0 %v5911, 127
        %v6135 = vpop.permute.xlu0 %6134
        %6136 = vrot.lane.b32.xlu0 %v5914, 127
        %v6137 = vpop.permute.xlu0 %6136
        %6138 = vrot.lane.b32.xlu0 %v5917, 127
        %v6139 = vpop.permute.xlu0 %6138
        %6140 = vrot.lane.b32.xlu0 %v5920, 127
        %v6141 = vpop.permute.xlu0 %6140
        %6142 = vrot.lane.b32.xlu0 %v5912, 127
        %v6143 = vpop.permute.xlu0 %6142
        %6144 = vrot.lane.b32.xlu0 %v5915, 127
        %v6145 = vpop.permute.xlu0 %6144
        %6146 = vrot.lane.b32.xlu0 %v5918, 127
        %v6147 = vpop.permute.xlu0 %6146
        %6148 = vrot.lane.b32.xlu0 %v5921, 127
        %v6149 = vpop.permute.xlu0 %6148
        %v6150 = vsel %vm459, %v6135, %v6143
        %v6151 = vsel %vm459, %v6137, %v6145
        %v6152 = vsel %vm459, %v6139, %v6147
        %v6153 = vsel %vm459, %v6141, %v6149
        %v6154 = vsel %vm459, %v6127, %v6135
        %v6155 = vsel %vm459, %v6129, %v6137
        %v6156 = vsel %vm459, %v6131, %v6139
        %v6157 = vsel %vm459, %v6133, %v6141
        %v6158 = vsel %vm459, %v6143, %v6127
        %v6159 = vsel %vm459, %v6145, %v6129
        %v6160 = vsel %vm459, %v6147, %v6131
        %v6161 = vsel %vm459, %v6149, %v6133
        %v6162 = vpack.c.bf16 %v6155, %v6154
        %v6163 = vpack.c.bf16 %v6151, %v6150
        %v6164 = vpack.c.bf16 %v6159, %v6158
        %v6165 = vpack.c.bf16 %v6157, %v6156
        %v6166 = vpack.c.bf16 %v6153, %v6152
        %v6167 = vpack.c.bf16 %v6161, %v6160
        %6168 = vst [vmem:[#allocation2 + $0xf0] sm:$0xff] %v6162
        %6169 = vst [vmem:[#allocation2 + $0xf8] sm:$0xff] %v6163
        %6170 = vst [vmem:[#allocation2 + $0x100] sm:$0xff] %v6164
        %6171 = vst [vmem:[#allocation2 + $0x108] sm:$0xff] %v6165
        %6172 = vst [vmem:[#allocation2 + $0x110] sm:$0xff] %v6166
        %6173 = vst [vmem:[#allocation2 + $0x118] sm:$0xff] %v6167
        %6174 = vrot.lane.b32.xlu0 %v5910, 111
        %v6175 = vpop.permute.xlu0 %6174
        %6176 = vrot.lane.b32.xlu0 %v5913, 111
        %v6177 = vpop.permute.xlu0 %6176
        %6178 = vrot.lane.b32.xlu0 %v5916, 111
        %v6179 = vpop.permute.xlu0 %6178
        %6180 = vrot.lane.b32.xlu0 %v5919, 111
        %v6181 = vpop.permute.xlu0 %6180
        %6182 = vrot.lane.b32.xlu0 %v5911, 111
        %v6183 = vpop.permute.xlu0 %6182
        %6184 = vrot.lane.b32.xlu0 %v5914, 111
        %v6185 = vpop.permute.xlu0 %6184
        %6186 = vrot.lane.b32.xlu0 %v5917, 111
        %v6187 = vpop.permute.xlu0 %6186
        %6188 = vrot.lane.b32.xlu0 %v5920, 111
        %v6189 = vpop.permute.xlu0 %6188
        %6190 = vrot.lane.b32.xlu0 %v5912, 111
        %v6191 = vpop.permute.xlu0 %6190
        %6192 = vrot.lane.b32.xlu0 %v5915, 111
        %v6193 = vpop.permute.xlu0 %6192
        %6194 = vrot.lane.b32.xlu0 %v5918, 111
        %v6195 = vpop.permute.xlu0 %6194
        %6196 = vrot.lane.b32.xlu0 %v5921, 111
        %v6197 = vpop.permute.xlu0 %6196
        %v6198 = vsel %vm508, %v6183, %v6191
        %v6199 = vsel %vm508, %v6185, %v6193
        %v6200 = vsel %vm508, %v6187, %v6195
        %v6201 = vsel %vm508, %v6189, %v6197
        %v6202 = vsel %vm508, %v6175, %v6183
        %v6203 = vsel %vm508, %v6177, %v6185
        %v6204 = vsel %vm508, %v6179, %v6187
        %v6205 = vsel %vm508, %v6181, %v6189
        %v6206 = vsel %vm508, %v6191, %v6175
        %v6207 = vsel %vm508, %v6193, %v6177
        %v6208 = vsel %vm508, %v6195, %v6179
        %v6209 = vsel %vm508, %v6197, %v6181
        %v6210 = vpack.c.bf16 %v6203, %v6202
        %v6211 = vpack.c.bf16 %v6199, %v6198
        %v6212 = vpack.c.bf16 %v6207, %v6206
        %v6213 = vpack.c.bf16 %v6205, %v6204
        %v6214 = vpack.c.bf16 %v6201, %v6200
        %v6215 = vpack.c.bf16 %v6209, %v6208
        %6216 = vst [vmem:[#allocation2 + $0x120] sm:$0xff] %v6210
        %6217 = vst [vmem:[#allocation2 + $0x128] sm:$0xff] %v6211
        %6218 = vst [vmem:[#allocation2 + $0x130] sm:$0xff] %v6212
        %6219 = vst [vmem:[#allocation2 + $0x138] sm:$0xff] %v6213
        %6220 = vst [vmem:[#allocation2 + $0x140] sm:$0xff] %v6214
        %6221 = vst [vmem:[#allocation2 + $0x148] sm:$0xff] %v6215
        %6222 = vrot.lane.b32.xlu0 %v5910, 110
        %v6223 = vpop.permute.xlu0 %6222
        %6224 = vrot.lane.b32.xlu0 %v5913, 110
        %v6225 = vpop.permute.xlu0 %6224
        %6226 = vrot.lane.b32.xlu0 %v5916, 110
        %v6227 = vpop.permute.xlu0 %6226
        %6228 = vrot.lane.b32.xlu0 %v5919, 110
        %v6229 = vpop.permute.xlu0 %6228
        %6230 = vrot.lane.b32.xlu0 %v5911, 110
        %v6231 = vpop.permute.xlu0 %6230
        %6232 = vrot.lane.b32.xlu0 %v5914, 110
        %v6233 = vpop.permute.xlu0 %6232
        %6234 = vrot.lane.b32.xlu0 %v5917, 110
        %v6235 = vpop.permute.xlu0 %6234
        %6236 = vrot.lane.b32.xlu0 %v5920, 110
        %v6237 = vpop.permute.xlu0 %6236
        %6238 = vrot.lane.b32.xlu0 %v5912, 110
        %v6239 = vpop.permute.xlu0 %6238
        %6240 = vrot.lane.b32.xlu0 %v5915, 110
        %v6241 = vpop.permute.xlu0 %6240
        %6242 = vrot.lane.b32.xlu0 %v5918, 110
        %v6243 = vpop.permute.xlu0 %6242
        %6244 = vrot.lane.b32.xlu0 %v5921, 110
        %v6245 = vpop.permute.xlu0 %6244
        %v6246 = vsel %vm557, %v6231, %v6239
        %v6247 = vsel %vm557, %v6233, %v6241
        %v6248 = vsel %vm557, %v6235, %v6243
        %v6249 = vsel %vm557, %v6237, %v6245
        %v6250 = vsel %vm557, %v6223, %v6231
        %v6251 = vsel %vm557, %v6225, %v6233
        %v6252 = vsel %vm557, %v6227, %v6235
        %v6253 = vsel %vm557, %v6229, %v6237
        %v6254 = vsel %vm557, %v6239, %v6223
        %v6255 = vsel %vm557, %v6241, %v6225
        %v6256 = vsel %vm557, %v6243, %v6227
        %v6257 = vsel %vm557, %v6245, %v6229
        %v6258 = vpack.c.bf16 %v6251, %v6250
        %v6259 = vpack.c.bf16 %v6247, %v6246
        %v6260 = vpack.c.bf16 %v6255, %v6254
        %v6261 = vpack.c.bf16 %v6253, %v6252
        %v6262 = vpack.c.bf16 %v6249, %v6248
        %v6263 = vpack.c.bf16 %v6257, %v6256
        %6264 = vst [vmem:[#allocation2 + $0x150] sm:$0xff] %v6258
        %6265 = vst [vmem:[#allocation2 + $0x158] sm:$0xff] %v6259
        %6266 = vst [vmem:[#allocation2 + $0x160] sm:$0xff] %v6260
        %6267 = vst [vmem:[#allocation2 + $0x168] sm:$0xff] %v6261
        %6268 = vst [vmem:[#allocation2 + $0x170] sm:$0xff] %v6262
        %6269 = vst [vmem:[#allocation2 + $0x178] sm:$0xff] %v6263
        %6270 = vrot.lane.b32.xlu0 %v5910, 109
        %v6271 = vpop.permute.xlu0 %6270
        %6272 = vrot.lane.b32.xlu0 %v5913, 109
        %v6273 = vpop.permute.xlu0 %6272
        %6274 = vrot.lane.b32.xlu0 %v5916, 109
        %v6275 = vpop.permute.xlu0 %6274
        %6276 = vrot.lane.b32.xlu0 %v5919, 109
        %v6277 = vpop.permute.xlu0 %6276
        %6278 = vrot.lane.b32.xlu0 %v5911, 109
        %v6279 = vpop.permute.xlu0 %6278
        %6280 = vrot.lane.b32.xlu0 %v5914, 109
        %v6281 = vpop.permute.xlu0 %6280
        %6282 = vrot.lane.b32.xlu0 %v5917, 109
        %v6283 = vpop.permute.xlu0 %6282
        %6284 = vrot.lane.b32.xlu0 %v5920, 109
        %v6285 = vpop.permute.xlu0 %6284
        %6286 = vrot.lane.b32.xlu0 %v5912, 109
        %v6287 = vpop.permute.xlu0 %6286
        %6288 = vrot.lane.b32.xlu0 %v5915, 109
        %v6289 = vpop.permute.xlu0 %6288
        %6290 = vrot.lane.b32.xlu0 %v5918, 109
        %v6291 = vpop.permute.xlu0 %6290
        %6292 = vrot.lane.b32.xlu0 %v5921, 109
        %v6293 = vpop.permute.xlu0 %6292
        %v6294 = vsel %vm606, %v6279, %v6287
        %v6295 = vsel %vm606, %v6281, %v6289
        %v6296 = vsel %vm606, %v6283, %v6291
        %v6297 = vsel %vm606, %v6285, %v6293
        %v6298 = vsel %vm606, %v6271, %v6279
        %v6299 = vsel %vm606, %v6273, %v6281
        %v6300 = vsel %vm606, %v6275, %v6283
        %v6301 = vsel %vm606, %v6277, %v6285
        %v6302 = vsel %vm606, %v6287, %v6271
        %v6303 = vsel %vm606, %v6289, %v6273
        %v6304 = vsel %vm606, %v6291, %v6275
        %v6305 = vsel %vm606, %v6293, %v6277
        %v6306 = vpack.c.bf16 %v6299, %v6298
        %v6307 = vpack.c.bf16 %v6295, %v6294
        %v6308 = vpack.c.bf16 %v6303, %v6302
        %v6309 = vpack.c.bf16 %v6301, %v6300
        %v6310 = vpack.c.bf16 %v6297, %v6296
        %v6311 = vpack.c.bf16 %v6305, %v6304
        %6312 = vst [vmem:[#allocation2 + $0x180] sm:$0xff] %v6306
        %6313 = vst [vmem:[#allocation2 + $0x188] sm:$0xff] %v6307
        %6314 = vst [vmem:[#allocation2 + $0x190] sm:$0xff] %v6308
        %6315 = vst [vmem:[#allocation2 + $0x198] sm:$0xff] %v6309
        %6316 = vst [vmem:[#allocation2 + $0x1a0] sm:$0xff] %v6310
        %6317 = vst [vmem:[#allocation2 + $0x1a8] sm:$0xff] %v6311
        %s6318 = scalar_lea.vmem [#allocation5], 336
        %v6319 = vld [vmem:[%s6318] sm:$0xff]
        %v6320 = vld [vmem:[%s6318 + $0x8] sm:$0xf]
        %v6321 = vld [vmem:[%s6318 + $0xc] sm:$0xff]
        %v6322 = vld [vmem:[%s6318 + $0x14] sm:$0xf]
        %v6323 = vld [vmem:[%s6318 + $0x18] sm:$0xff]
        %v6324 = vld [vmem:[%s6318 + $0x20] sm:$0xf]
        %v6325 = vld [vmem:[%s6318 + $0x24] sm:$0xff]
        %v6326 = vld [vmem:[%s6318 + $0x2c] sm:$0xf]
        %v6327 = vld [vmem:[#allocation2] sm:$0xff]
        %v6328 = vld [vmem:[#allocation2 + $0x8] sm:$0xff]
        %v6329 = vld [vmem:[#allocation2 + $0x10] sm:$0xff]
        %v6330 = vld [vmem:[#allocation2 + $0x18] sm:$0xff]
        %v6331 = vld [vmem:[#allocation2 + $0x20] sm:$0xff]
        %v6332 = vld [vmem:[#allocation2 + $0x28] sm:$0xff]
        %v6333 = vld [vmem:[#allocation2 + $0x30] sm:$0xff]
        %v6334 = vld [vmem:[#allocation2 + $0x38] sm:$0xff]
        %v6335 = vld [vmem:[#allocation2 + $0x40] sm:$0xff]
        %v6336 = vld [vmem:[#allocation2 + $0x48] sm:$0xff]
        %v6337 = vld [vmem:[#allocation2 + $0x50] sm:$0xff]
        %v6338 = vld [vmem:[#allocation2 + $0x58] sm:$0xff]
        %v6339 = vld [vmem:[#allocation2 + $0x60] sm:$0xff]
        %v6340 = vld [vmem:[#allocation2 + $0x68] sm:$0xff]
        %v6341 = vld [vmem:[#allocation2 + $0x70] sm:$0xff]
        %v6342 = vld [vmem:[#allocation2 + $0x78] sm:$0xff]
        %v6343 = vld [vmem:[#allocation2 + $0x80] sm:$0xff]
        %v6344 = vld [vmem:[#allocation2 + $0x88] sm:$0xff]
        %v6345 = vld [vmem:[#allocation2 + $0x90] sm:$0xff]
        %v6346 = vld [vmem:[#allocation2 + $0x98] sm:$0xff]
        %v6347 = vld [vmem:[#allocation2 + $0xa0] sm:$0xff]
        %v6348 = vld [vmem:[#allocation2 + $0xa8] sm:$0xff]
        %v6349 = vld [vmem:[#allocation2 + $0xb0] sm:$0xff]
        %v6350 = vld [vmem:[#allocation2 + $0xb8] sm:$0xff]
        %v6351 = vld [vmem:[#allocation2 + $0xc0] sm:$0xff]
        %v6352 = vld [vmem:[#allocation2 + $0xc8] sm:$0xff]
        %v6353 = vld [vmem:[#allocation2 + $0xd0] sm:$0xff]
        %v6354 = vld [vmem:[#allocation2 + $0xd8] sm:$0xff]
        %v6355 = vld [vmem:[#allocation2 + $0xe0] sm:$0xff]
        %v6356 = vld [vmem:[#allocation2 + $0xe8] sm:$0xff]
        %v6357 = vld [vmem:[#allocation2 + $0xf0] sm:$0xff]
        %v6358 = vld [vmem:[#allocation2 + $0xf8] sm:$0xff]
        %v6359 = vld [vmem:[#allocation2 + $0x100] sm:$0xff]
        %v6360 = vld [vmem:[#allocation2 + $0x108] sm:$0xff]
        %v6361 = vld [vmem:[#allocation2 + $0x110] sm:$0xff]
        %v6362 = vld [vmem:[#allocation2 + $0x118] sm:$0xff]
        %v6363 = vld [vmem:[#allocation2 + $0x120] sm:$0xff]
        %v6364 = vld [vmem:[#allocation2 + $0x128] sm:$0xff]
        %v6365 = vld [vmem:[#allocation2 + $0x130] sm:$0xff]
        %v6366 = vld [vmem:[#allocation2 + $0x138] sm:$0xff]
        %v6367 = vld [vmem:[#allocation2 + $0x140] sm:$0xff]
        %v6368 = vld [vmem:[#allocation2 + $0x148] sm:$0xff]
        %v6369 = vld [vmem:[#allocation2 + $0x150] sm:$0xff]
        %v6370 = vld [vmem:[#allocation2 + $0x158] sm:$0xff]
        %v6371 = vld [vmem:[#allocation2 + $0x160] sm:$0xff]
        %v6372 = vld [vmem:[#allocation2 + $0x168] sm:$0xff]
        %v6373 = vld [vmem:[#allocation2 + $0x170] sm:$0xff]
        %v6374 = vld [vmem:[#allocation2 + $0x178] sm:$0xff]
        %v6375 = vld [vmem:[#allocation2 + $0x180] sm:$0xff]
        %v6376 = vld [vmem:[#allocation2 + $0x188] sm:$0xff]
        %v6377 = vld [vmem:[#allocation2 + $0x190] sm:$0xff]
        %v6378 = vld [vmem:[#allocation2 + $0x198] sm:$0xff]
        %v6379 = vld [vmem:[#allocation2 + $0x1a0] sm:$0xff]
        %v6380 = vld [vmem:[#allocation2 + $0x1a8] sm:$0xff]
        %s6381 = scalar_lea.vmem %s2, 224
        %v6382 = vld [vmem:[%s6381] sm:$0xff]
        %v6383 = vld [vmem:[%s6381 + $0x8] sm:$0xff]
        %v6384 = vld [vmem:[%s6381 + $0x10] sm:$0xff]
        %v6385 = vld [vmem:[%s6381 + $0x18] sm:$0xff]
        %6387 = vset.pattern.permute.xlu0 0
        %6388 = vperm.xlu0 %6387, %v6382
        %v6389 = vpop.permute.xlu0 %6388
        %6392 = vset.pattern.permute.xlu0 0
        %6393 = vperm.xlu0 %6392, %v6383
        %v6394 = vpop.permute.xlu0 %6393
        %6397 = vset.pattern.permute.xlu0 0
        %6398 = vperm.xlu0 %6397, %v6384
        %v6399 = vpop.permute.xlu0 %6398
        %6402 = vset.pattern.permute.xlu0 0
        %6403 = vperm.xlu0 %6402, %v6385
        %v6404 = vpop.permute.xlu0 %6403
        %v6414 = vunpack.c.l.b16 %v6319
        %v6415 = vunpack.c.h.b16 %v6319
        %v6416 = vunpack.c.l.b16 %v6320
        %v6417 = vunpack.c.l.b16 %v6321
        %v6418 = vunpack.c.h.b16 %v6321
        %v6419 = vunpack.c.l.b16 %v6322
        %v6420 = vunpack.c.l.b16 %v6323
        %v6421 = vunpack.c.h.b16 %v6323
        %v6422 = vunpack.c.l.b16 %v6324
        %v6423 = vunpack.c.l.b16 %v6325
        %v6424 = vunpack.c.h.b16 %v6325
        %v6425 = vunpack.c.l.b16 %v6326
        %v6426 = vpack.c.b16 %v6417, %v6414
        %v6427 = vpack.c.b16 %v6418, %v6415
        %v6428 = vpack.c.b16 %v6419, %v6416
        %v6429 = vpack.c.b16 %v6423, %v6420
        %v6430 = vpack.c.b16 %v6424, %v6421
        %v6431 = vpack.c.b16 %v6425, %v6422
        %v6437 = vsel %vm747, %v6428, 0
        %v6440 = vsel %vm747, %v6431, 0
        %6442 = vmatprep.subr.bf16.mxu0 %v6328
        %6443 = vmatpush1.bf16.msra.mxu0 %v6327
        %6444 = vmatprep.subr.bf16.mxu0 %v6331
        %6445 = vmatpush1.bf16.msra.mxu0 %v6330
        %6446 = vmatprep.subr.bf16.mxu0 %v6334
        %6447 = vmatpush1.bf16.msra.mxu0 %v6333
        %6448 = vmatprep.subr.bf16.mxu0 %v6337
        %6449 = vmatpush1.bf16.msra.mxu0 %v6336
        %6450 = vmatprep.subr.bf16.mxu0 %v6340
        %6451 = vmatpush1.bf16.msra.mxu0 %v6339
        %6452 = vmatprep.subr.bf16.mxu0 %v6343
        %6453 = vmatpush1.bf16.msra.mxu0 %v6342
        %6454 = vmatprep.subr.bf16.mxu0 %v6346
        %6455 = vmatpush1.bf16.msra.mxu0 %v6345
        %6456 = vmatprep.subr.bf16.mxu0 %v6349
        %6457 = vmatpush1.bf16.msra.mxu0 %v6348
        %6458 = vmatprep.subr.bf16.mxu0 %v6352
        %6459 = vmatpush1.bf16.msra.mxu0 %v6351
        %6460 = vmatprep.subr.bf16.mxu0 %v6355
        %6461 = vmatpush1.bf16.msra.mxu0 %v6354
        %6462 = vmatprep.subr.bf16.mxu0 %v6358
        %6463 = vmatpush1.bf16.msra.mxu0 %v6357
        %6464 = vmatprep.subr.bf16.mxu0 %v6361
        %6465 = vmatpush1.bf16.msra.mxu0 %v6360
        %6466 = vmatprep.subr.bf16.mxu0 %v6364
        %6467 = vmatpush1.bf16.msra.mxu0 %v6363
        %6468 = vmatprep.subr.bf16.mxu0 %v6367
        %6469 = vmatpush1.bf16.msra.mxu0 %v6366
        %6470 = vmatprep.subr.bf16.mxu0 %v6370
        %6471 = vmatpush1.bf16.msra.mxu0 %v6369
        %6472 = vmatprep.subr.bf16.mxu0 %v6373
        %6473 = vmatpush1.bf16.msra.mxu0 %v6372
        %6474 = vmatprep.mubr.bf16.mxu0 %v6427
        %6475 = vmatmul.mubr.bf16.gmra.mrb[0].mxu0 %v6426
        %v6476 = vpop.f32.mrb[0].mxu0
        %v6477 = vadd.f32 %v6389, %v6476
        %v6478 = vpop.f32.mrb[0].mxu0
        %v6479 = vadd.f32 %v6389, %v6478
        %v6480 = vpop.f32.mrb[0].mxu0
        %v6481 = vadd.f32 %v6394, %v6480
        %v6482 = vpop.f32.mrb[0].mxu0
        %v6483 = vadd.f32 %v6394, %v6482
        %6484 = vmatprep.mubr.bf16.mxu0 %v6430
        %6485 = vmatmul.mubr.bf16.gmra.mrb[0].mxu0 %v6429
        %v6486 = vpop.f32.mrb[0].mxu0
        %v6487 = vadd.f32 %v6399, %v6486
        %v6488 = vpop.f32.mrb[0].mxu0
        %v6489 = vadd.f32 %v6399, %v6488
        %v6490 = vpop.f32.mrb[0].mxu0
        %v6491 = vadd.f32 %v6404, %v6490
        %v6492 = vpop.f32.mrb[0].mxu0
        %v6493 = vadd.f32 %v6404, %v6492
        %6494 = vdwg.mxu0
        %6495 = vmatprep.subr.bf16.mxu0 %v6376
        %6496 = vmatpush1.bf16.msra.mxu0 %v6375
        %6497 = vmatprep.subr.bf16.mxu0 %v6379
        %6498 = vmatpush1.bf16.msra.mxu0 %v6378
        %6499 = vmatprep.subr.bf16.mxu0 0
        %6500 = vmatpush1.bf16.msra.mxu0 0
        %6501 = vmatprep.subr.bf16.mxu0 0
        %6502 = vmatpush1.bf16.msra.mxu0 0
        %6503 = vmatprep.subr.bf16.mxu0 0
        %6504 = vmatpush1.bf16.msra.mxu0 0
        %6505 = vmatprep.subr.bf16.mxu0 0
        %6506 = vmatpush1.bf16.msra.mxu0 0
        %6507 = vmatprep.subr.bf16.mxu0 0
        %6508 = vmatpush1.bf16.msra.mxu0 0
        %6509 = vmatprep.subr.bf16.mxu0 0
        %6510 = vmatpush1.bf16.msra.mxu0 0
        %6511 = vmatprep.subr.bf16.mxu0 0
        %6512 = vmatpush1.bf16.msra.mxu0 0
        %6513 = vmatprep.subr.bf16.mxu0 0
        %6514 = vmatpush1.bf16.msra.mxu0 0
        %6515 = vmatprep.subr.bf16.mxu0 0
        %6516 = vmatpush1.bf16.msra.mxu0 0
        %6517 = vmatprep.subr.bf16.mxu0 0
        %6518 = vmatpush1.bf16.msra.mxu0 0
        %6519 = vmatprep.subr.bf16.mxu0 0
        %6520 = vmatpush1.bf16.msra.mxu0 0
        %6521 = vmatprep.subr.bf16.mxu0 0
        %6522 = vmatpush1.bf16.msra.mxu0 0
        %6523 = vmatprep.subr.bf16.mxu0 0
        %6524 = vmatpush1.bf16.msra.mxu0 0
        %6525 = vmatprep.subr.bf16.mxu0 0
        %6526 = vmatpush1.bf16.msra.mxu0 0
        %6527 = vmatprep.mubr.bf16.mxu0 0
        %6528 = vmatmul.mubr.bf16.gmra.mrb[0].mxu0 %v6437
        %v6529 = vpop.f32.mrb[0].mxu0
        %v6530 = vadd.f32 %v6477, %v6529
        %v6531 = vpop.f32.mrb[0].mxu0
        %v6532 = vadd.f32 %v6479, %v6531
        %v6533 = vpop.f32.mrb[0].mxu0
        %v6534 = vadd.f32 %v6481, %v6533
        %v6535 = vpop.f32.mrb[0].mxu0
        %v6536 = vadd.f32 %v6483, %v6535
        %6537 = vmatprep.mubr.bf16.mxu0 0
        %6538 = vmatmul.mubr.bf16.gmra.mrb[0].mxu0 %v6440
        %v6539 = vpop.f32.mrb[0].mxu0
        %v6540 = vadd.f32 %v6487, %v6539
        %v6541 = vpop.f32.mrb[0].mxu0
        %v6542 = vadd.f32 %v6489, %v6541
        %v6543 = vpop.f32.mrb[0].mxu0
        %v6544 = vadd.f32 %v6491, %v6543
        %v6545 = vpop.f32.mrb[0].mxu0
        %v6546 = vadd.f32 %v6493, %v6545
        %6547 = vdwg.mxu0
        %6548 = vmatprep.subr.bf16.mxu0 0
        %6549 = vmatpush1.bf16.msra.mxu0 %v6329
        %6550 = vmatprep.subr.bf16.mxu0 0
        %6551 = vmatpush1.bf16.msra.mxu0 %v6332
        %6552 = vmatprep.subr.bf16.mxu0 0
        %6553 = vmatpush1.bf16.msra.mxu0 %v6335
        %6554 = vmatprep.subr.bf16.mxu0 0
        %6555 = vmatpush1.bf16.msra.mxu0 %v6338
        %6556 = vmatprep.subr.bf16.mxu0 0
        %6557 = vmatpush1.bf16.msra.mxu0 %v6341
        %6558 = vmatprep.subr.bf16.mxu0 0
        %6559 = vmatpush1.bf16.msra.mxu0 %v6344
        %6560 = vmatprep.subr.bf16.mxu0 0
        %6561 = vmatpush1.bf16.msra.mxu0 %v6347
        %6562 = vmatprep.subr.bf16.mxu0 0
        %6563 = vmatpush1.bf16.msra.mxu0 %v6350
        %6564 = vmatprep.subr.bf16.mxu0 0
        %6565 = vmatpush1.bf16.msra.mxu0 %v6353
        %6566 = vmatprep.subr.bf16.mxu0 0
        %6567 = vmatpush1.bf16.msra.mxu0 %v6356
        %6568 = vmatprep.subr.bf16.mxu0 0
        %6569 = vmatpush1.bf16.msra.mxu0 %v6359
        %6570 = vmatprep.subr.bf16.mxu0 0
        %6571 = vmatpush1.bf16.msra.mxu0 %v6362
        %6572 = vmatprep.subr.bf16.mxu0 0
        %6573 = vmatpush1.bf16.msra.mxu0 %v6365
        %6574 = vmatprep.subr.bf16.mxu0 0
        %6575 = vmatpush1.bf16.msra.mxu0 %v6368
        %6576 = vmatprep.subr.bf16.mxu0 0
        %6577 = vmatpush1.bf16.msra.mxu0 %v6371
        %6578 = vmatprep.subr.bf16.mxu0 0
        %6579 = vmatpush1.bf16.msra.mxu0 %v6374
        %6580 = vmatprep.mubr.bf16.mxu0 %v6427
        %6581 = vmatmul.mubr.bf16.gmra.mrb[0].mxu0 %v6426
        %v6582 = vpop.f32.mrb[0].mxu0
        %v6583 = vadd.f32 %v6389, %v6582
        %v6584 = vpop.f32.mrb[0].mxu0
        %v6585 = vpop.f32.mrb[0].mxu0
        %v6586 = vadd.f32 %v6394, %v6585
        %v6587 = vpop.f32.mrb[0].mxu0
        %6588 = vmatprep.mubr.bf16.mxu0 %v6430
        %6589 = vmatmul.mubr.bf16.gmra.mrb[0].mxu0 %v6429
        %v6590 = vpop.f32.mrb[0].mxu0
        %v6591 = vadd.f32 %v6399, %v6590
        %v6592 = vpop.f32.mrb[0].mxu0
        %v6593 = vpop.f32.mrb[0].mxu0
        %v6594 = vadd.f32 %v6404, %v6593
        %v6595 = vpop.f32.mrb[0].mxu0
        %6596 = vdwg.mxu0
        %6597 = vmatprep.subr.bf16.mxu0 0
        %6598 = vmatpush1.bf16.msra.mxu0 %v6377
        %6599 = vmatprep.subr.bf16.mxu0 0
        %6600 = vmatpush1.bf16.msra.mxu0 %v6380
        %6601 = vmatprep.subr.bf16.mxu0 0
        %6602 = vmatpush1.bf16.msra.mxu0 0
        %6603 = vmatprep.subr.bf16.mxu0 0
        %6604 = vmatpush1.bf16.msra.mxu0 0
        %6605 = vmatprep.subr.bf16.mxu0 0
        %6606 = vmatpush1.bf16.msra.mxu0 0
        %6607 = vmatprep.subr.bf16.mxu0 0
        %6608 = vmatpush1.bf16.msra.mxu0 0
        %6609 = vmatprep.subr.bf16.mxu0 0
        %6610 = vmatpush1.bf16.msra.mxu0 0
        %6611 = vmatprep.subr.bf16.mxu0 0
        %6612 = vmatpush1.bf16.msra.mxu0 0
        %6613 = vmatprep.subr.bf16.mxu0 0
        %6614 = vmatpush1.bf16.msra.mxu0 0
        %6615 = vmatprep.subr.bf16.mxu0 0
        %6616 = vmatpush1.bf16.msra.mxu0 0
        %6617 = vmatprep.subr.bf16.mxu0 0
        %6618 = vmatpush1.bf16.msra.mxu0 0
        %6619 = vmatprep.subr.bf16.mxu0 0
        %6620 = vmatpush1.bf16.msra.mxu0 0
        %6621 = vmatprep.subr.bf16.mxu0 0
        %6622 = vmatpush1.bf16.msra.mxu0 0
        %6623 = vmatprep.subr.bf16.mxu0 0
        %6624 = vmatpush1.bf16.msra.mxu0 0
        %6625 = vmatprep.subr.bf16.mxu0 0
        %6626 = vmatpush1.bf16.msra.mxu0 0
        %6627 = vmatprep.subr.bf16.mxu0 0
        %6628 = vmatpush1.bf16.msra.mxu0 0
        %6629 = vmatprep.mubr.bf16.mxu0 0
        %6630 = vmatmul.mubr.bf16.gmra.mrb[0].mxu0 %v6437
        %v6631 = vpop.f32.mrb[0].mxu0
        %v6632 = vadd.f32 %v6583, %v6631
        %v6633 = vpop.f32.mrb[0].mxu0
        %v6634 = vpop.f32.mrb[0].mxu0
        %v6635 = vadd.f32 %v6586, %v6634
        %v6636 = vpop.f32.mrb[0].mxu0
        %6637 = vmatprep.mubr.bf16.mxu0 0
        %6638 = vmatmul.mubr.bf16.gmra.mrb[0].mxu0 %v6440
        %v6639 = vpop.f32.mrb[0].mxu0
        %v6640 = vadd.f32 %v6591, %v6639
        %v6641 = vpop.f32.mrb[0].mxu0
        %v6642 = vpop.f32.mrb[0].mxu0
        %v6643 = vadd.f32 %v6594, %v6642
        %v6644 = vpop.f32.mrb[0].mxu0
        %6645 = vdwg.mxu0
        %vm6646 = vcmp.ge.f32.partialorder %v6530, 0.0
        %vm6647 = vcmp.ge.f32.partialorder %v6532, 0.0
        %vm6648 = vcmp.ge.f32.partialorder %v6632, 0.0
        %vm6649 = vcmp.ge.f32.partialorder %v6534, 0.0
        %vm6650 = vcmp.ge.f32.partialorder %v6536, 0.0
        %vm6651 = vcmp.ge.f32.partialorder %v6635, 0.0
        %vm6652 = vcmp.ge.f32.partialorder %v6540, 0.0
        %vm6653 = vcmp.ge.f32.partialorder %v6542, 0.0
        %vm6654 = vcmp.ge.f32.partialorder %v6640, 0.0
        %vm6655 = vcmp.ge.f32.partialorder %v6544, 0.0
        %vm6656 = vcmp.ge.f32.partialorder %v6546, 0.0
        %vm6657 = vcmp.ge.f32.partialorder %v6643, 0.0
        %6658 = vset.pattern.permute.xlu0 1
        %6659 = vperm.xlu0 %6658, %v6382
        %v6660 = vpop.permute.xlu0 %6659
        %6662 = vset.pattern.permute.xlu0 1
        %6663 = vperm.xlu0 %6662, %v6383
        %v6664 = vpop.permute.xlu0 %6663
        %6666 = vset.pattern.permute.xlu0 1
        %6667 = vperm.xlu0 %6666, %v6384
        %v6668 = vpop.permute.xlu0 %6667
        %6670 = vset.pattern.permute.xlu0 1
        %6671 = vperm.xlu0 %6670, %v6385
        %v6672 = vpop.permute.xlu0 %6671
        %v6674 = vmul.f32 %v6660, %v6530
        %v6675 = vmul.f32 %v6660, %v6532
        %v6676 = vmul.f32 %v6660, %v6632
        %v6677 = vmul.f32 %v6664, %v6534
        %v6678 = vmul.f32 %v6664, %v6536
        %v6679 = vmul.f32 %v6664, %v6635
        %v6680 = vmul.f32 %v6668, %v6540
        %v6681 = vmul.f32 %v6668, %v6542
        %v6682 = vmul.f32 %v6668, %v6640
        %v6683 = vmul.f32 %v6672, %v6544
        %v6684 = vmul.f32 %v6672, %v6546
        %v6685 = vmul.f32 %v6672, %v6643
        %v6686 = vsel %vm6646, %v6530, %v6674
        %v6687 = vsel %vm6647, %v6532, %v6675
        %v6688 = vsel %vm6648, %v6632, %v6676
        %v6689 = vsel %vm6649, %v6534, %v6677
        %v6690 = vsel %vm6650, %v6536, %v6678
        %v6691 = vsel %vm6651, %v6635, %v6679
        %v6692 = vsel %vm6652, %v6540, %v6680
        %v6693 = vsel %vm6653, %v6542, %v6681
        %v6694 = vsel %vm6654, %v6640, %v6682
        %v6695 = vsel %vm6655, %v6544, %v6683
        %v6696 = vsel %vm6656, %v6546, %v6684
        %v6697 = vsel %vm6657, %v6643, %v6685
        %v6698 = vmul.f32 %v6686, %v1014
        %v6699 = vmul.f32 %v6687, %v1018
        %v6700 = vmul.f32 %v6688, %v1022
        %v6701 = vmul.f32 %v6689, %v1014
        %v6702 = vmul.f32 %v6690, %v1018
        %v6703 = vmul.f32 %v6691, %v1022
        %v6704 = vmul.f32 %v6692, %v1014
        %v6705 = vmul.f32 %v6693, %v1018
        %v6706 = vmul.f32 %v6694, %v1022
        %v6707 = vmul.f32 %v6695, %v1014
        %v6708 = vmul.f32 %v6696, %v1018
        %v6709 = vmul.f32 %v6697, %v1022
        %6710 = vrot.lane.b32.xlu0 %v6698, 19
        %v6711 = vpop.permute.xlu0 %6710
        %6712 = vrot.lane.b32.xlu0 %v6701, 19
        %v6713 = vpop.permute.xlu0 %6712
        %6714 = vrot.lane.b32.xlu0 %v6704, 19
        %v6715 = vpop.permute.xlu0 %6714
        %6716 = vrot.lane.b32.xlu0 %v6707, 19
        %v6717 = vpop.permute.xlu0 %6716
        %6718 = vrot.lane.b32.xlu0 %v6699, 19
        %v6719 = vpop.permute.xlu0 %6718
        %6720 = vrot.lane.b32.xlu0 %v6702, 19
        %v6721 = vpop.permute.xlu0 %6720
        %6722 = vrot.lane.b32.xlu0 %v6705, 19
        %v6723 = vpop.permute.xlu0 %6722
        %6724 = vrot.lane.b32.xlu0 %v6708, 19
        %v6725 = vpop.permute.xlu0 %6724
        %6726 = vrot.lane.b32.xlu0 %v6700, 19
        %v6727 = vpop.permute.xlu0 %6726
        %6728 = vrot.lane.b32.xlu0 %v6703, 19
        %v6729 = vpop.permute.xlu0 %6728
        %6730 = vrot.lane.b32.xlu0 %v6706, 19
        %v6731 = vpop.permute.xlu0 %6730
        %6732 = vrot.lane.b32.xlu0 %v6709, 19
        %v6733 = vpop.permute.xlu0 %6732
        %v6734 = vsel %vm251, %v6719, %v6727
        %v6735 = vsel %vm251, %v6721, %v6729
        %v6736 = vsel %vm251, %v6723, %v6731
        %v6737 = vsel %vm251, %v6725, %v6733
        %v6738 = vsel %vm251, %v6711, %v6719
        %v6739 = vsel %vm251, %v6713, %v6721
        %v6740 = vsel %vm251, %v6715, %v6723
        %v6741 = vsel %vm251, %v6717, %v6725
        %v6742 = vsel %vm251, %v6727, %v6711
        %v6743 = vsel %vm251, %v6729, %v6713
        %v6744 = vsel %vm251, %v6731, %v6715
        %v6745 = vsel %vm251, %v6733, %v6717
        %v6746 = vpack.c.bf16 %v6743, %v6742
        %v6747 = vpack.c.bf16 %v6739, %v6738
        %v6748 = vpack.c.bf16 %v6735, %v6734
        %v6749 = vpack.c.bf16 %v6745, %v6744
        %v6750 = vpack.c.bf16 %v6741, %v6740
        %v6751 = vpack.c.bf16 %v6737, %v6736
        %6752 = vst [vmem:[#allocation2] sm:$0xff] %v6746
        %6753 = vst [vmem:[#allocation2 + $0x8] sm:$0xff] %v6747
        %6754 = vst [vmem:[#allocation2 + $0x10] sm:$0xff] %v6748
        %6755 = vst [vmem:[#allocation2 + $0x18] sm:$0xff] %v6749
        %6756 = vst [vmem:[#allocation2 + $0x20] sm:$0xff] %v6750
        %6757 = vst [vmem:[#allocation2 + $0x28] sm:$0xff] %v6751
        %6758 = vrot.lane.b32.xlu0 %v6698, 18
        %v6759 = vpop.permute.xlu0 %6758
        %6760 = vrot.lane.b32.xlu0 %v6701, 18
        %v6761 = vpop.permute.xlu0 %6760
        %6762 = vrot.lane.b32.xlu0 %v6704, 18
        %v6763 = vpop.permute.xlu0 %6762
        %6764 = vrot.lane.b32.xlu0 %v6707, 18
        %v6765 = vpop.permute.xlu0 %6764
        %6766 = vrot.lane.b32.xlu0 %v6699, 18
        %v6767 = vpop.permute.xlu0 %6766
        %6768 = vrot.lane.b32.xlu0 %v6702, 18
        %v6769 = vpop.permute.xlu0 %6768
        %6770 = vrot.lane.b32.xlu0 %v6705, 18
        %v6771 = vpop.permute.xlu0 %6770
        %6772 = vrot.lane.b32.xlu0 %v6708, 18
        %v6773 = vpop.permute.xlu0 %6772
        %6774 = vrot.lane.b32.xlu0 %v6700, 18
        %v6775 = vpop.permute.xlu0 %6774
        %6776 = vrot.lane.b32.xlu0 %v6703, 18
        %v6777 = vpop.permute.xlu0 %6776
        %6778 = vrot.lane.b32.xlu0 %v6706, 18
        %v6779 = vpop.permute.xlu0 %6778
        %6780 = vrot.lane.b32.xlu0 %v6709, 18
        %v6781 = vpop.permute.xlu0 %6780
        %v6782 = vsel %vm300, %v6767, %v6775
        %v6783 = vsel %vm300, %v6769, %v6777
        %v6784 = vsel %vm300, %v6771, %v6779
        %v6785 = vsel %vm300, %v6773, %v6781
        %v6786 = vsel %vm300, %v6759, %v6767
        %v6787 = vsel %vm300, %v6761, %v6769
        %v6788 = vsel %vm300, %v6763, %v6771
        %v6789 = vsel %vm300, %v6765, %v6773
        %v6790 = vsel %vm300, %v6775, %v6759
        %v6791 = vsel %vm300, %v6777, %v6761
        %v6792 = vsel %vm300, %v6779, %v6763
        %v6793 = vsel %vm300, %v6781, %v6765
        %v6794 = vpack.c.bf16 %v6791, %v6790
        %v6795 = vpack.c.bf16 %v6787, %v6786
        %v6796 = vpack.c.bf16 %v6783, %v6782
        %v6797 = vpack.c.bf16 %v6793, %v6792
        %v6798 = vpack.c.bf16 %v6789, %v6788
        %v6799 = vpack.c.bf16 %v6785, %v6784
        %6800 = vst [vmem:[#allocation2 + $0x30] sm:$0xff] %v6794
        %6801 = vst [vmem:[#allocation2 + $0x38] sm:$0xff] %v6795
        %6802 = vst [vmem:[#allocation2 + $0x40] sm:$0xff] %v6796
        %6803 = vst [vmem:[#allocation2 + $0x48] sm:$0xff] %v6797
        %6804 = vst [vmem:[#allocation2 + $0x50] sm:$0xff] %v6798
        %6805 = vst [vmem:[#allocation2 + $0x58] sm:$0xff] %v6799
        %6806 = vrot.lane.b32.xlu0 %v6698, 17
        %v6807 = vpop.permute.xlu0 %6806
        %6808 = vrot.lane.b32.xlu0 %v6701, 17
        %v6809 = vpop.permute.xlu0 %6808
        %6810 = vrot.lane.b32.xlu0 %v6704, 17
        %v6811 = vpop.permute.xlu0 %6810
        %6812 = vrot.lane.b32.xlu0 %v6707, 17
        %v6813 = vpop.permute.xlu0 %6812
        %6814 = vrot.lane.b32.xlu0 %v6699, 17
        %v6815 = vpop.permute.xlu0 %6814
        %6816 = vrot.lane.b32.xlu0 %v6702, 17
        %v6817 = vpop.permute.xlu0 %6816
        %6818 = vrot.lane.b32.xlu0 %v6705, 17
        %v6819 = vpop.permute.xlu0 %6818
        %6820 = vrot.lane.b32.xlu0 %v6708, 17
        %v6821 = vpop.permute.xlu0 %6820
        %6822 = vrot.lane.b32.xlu0 %v6700, 17
        %v6823 = vpop.permute.xlu0 %6822
        %6824 = vrot.lane.b32.xlu0 %v6703, 17
        %v6825 = vpop.permute.xlu0 %6824
        %6826 = vrot.lane.b32.xlu0 %v6706, 17
        %v6827 = vpop.permute.xlu0 %6826
        %6828 = vrot.lane.b32.xlu0 %v6709, 17
        %v6829 = vpop.permute.xlu0 %6828
        %v6830 = vsel %vm349, %v6815, %v6823
        %v6831 = vsel %vm349, %v6817, %v6825
        %v6832 = vsel %vm349, %v6819, %v6827
        %v6833 = vsel %vm349, %v6821, %v6829
        %v6834 = vsel %vm349, %v6807, %v6815
        %v6835 = vsel %vm349, %v6809, %v6817
        %v6836 = vsel %vm349, %v6811, %v6819
        %v6837 = vsel %vm349, %v6813, %v6821
        %v6838 = vsel %vm349, %v6823, %v6807
        %v6839 = vsel %vm349, %v6825, %v6809
        %v6840 = vsel %vm349, %v6827, %v6811
        %v6841 = vsel %vm349, %v6829, %v6813
        %v6842 = vpack.c.bf16 %v6839, %v6838
        %v6843 = vpack.c.bf16 %v6835, %v6834
        %v6844 = vpack.c.bf16 %v6831, %v6830
        %v6845 = vpack.c.bf16 %v6841, %v6840
        %v6846 = vpack.c.bf16 %v6837, %v6836
        %v6847 = vpack.c.bf16 %v6833, %v6832
        %6848 = vst [vmem:[#allocation2 + $0x60] sm:$0xff] %v6842
        %6849 = vst [vmem:[#allocation2 + $0x68] sm:$0xff] %v6843
        %6850 = vst [vmem:[#allocation2 + $0x70] sm:$0xff] %v6844
        %6851 = vst [vmem:[#allocation2 + $0x78] sm:$0xff] %v6845
        %6852 = vst [vmem:[#allocation2 + $0x80] sm:$0xff] %v6846
        %6853 = vst [vmem:[#allocation2 + $0x88] sm:$0xff] %v6847
        %6854 = vrot.lane.b32.xlu0 %v6698, 1
        %v6855 = vpop.permute.xlu0 %6854
        %6856 = vrot.lane.b32.xlu0 %v6701, 1
        %v6857 = vpop.permute.xlu0 %6856
        %6858 = vrot.lane.b32.xlu0 %v6704, 1
        %v6859 = vpop.permute.xlu0 %6858
        %6860 = vrot.lane.b32.xlu0 %v6707, 1
        %v6861 = vpop.permute.xlu0 %6860
        %6862 = vrot.lane.b32.xlu0 %v6699, 1
        %v6863 = vpop.permute.xlu0 %6862
        %6864 = vrot.lane.b32.xlu0 %v6702, 1
        %v6865 = vpop.permute.xlu0 %6864
        %6866 = vrot.lane.b32.xlu0 %v6705, 1
        %v6867 = vpop.permute.xlu0 %6866
        %6868 = vrot.lane.b32.xlu0 %v6708, 1
        %v6869 = vpop.permute.xlu0 %6868
        %6870 = vrot.lane.b32.xlu0 %v6700, 1
        %v6871 = vpop.permute.xlu0 %6870
        %6872 = vrot.lane.b32.xlu0 %v6703, 1
        %v6873 = vpop.permute.xlu0 %6872
        %6874 = vrot.lane.b32.xlu0 %v6706, 1
        %v6875 = vpop.permute.xlu0 %6874
        %6876 = vrot.lane.b32.xlu0 %v6709, 1
        %v6877 = vpop.permute.xlu0 %6876
        %v6878 = vsel %vm398, %v6863, %v6871
        %v6879 = vsel %vm398, %v6865, %v6873
        %v6880 = vsel %vm398, %v6867, %v6875
        %v6881 = vsel %vm398, %v6869, %v6877
        %v6882 = vsel %vm398, %v6855, %v6863
        %v6883 = vsel %vm398, %v6857, %v6865
        %v6884 = vsel %vm398, %v6859, %v6867
        %v6885 = vsel %vm398, %v6861, %v6869
        %v6886 = vsel %vm398, %v6871, %v6855
        %v6887 = vsel %vm398, %v6873, %v6857
        %v6888 = vsel %vm398, %v6875, %v6859
        %v6889 = vsel %vm398, %v6877, %v6861
        %v6890 = vpack.c.bf16 %v6887, %v6886
        %v6891 = vpack.c.bf16 %v6883, %v6882
        %v6892 = vpack.c.bf16 %v6879, %v6878
        %v6893 = vpack.c.bf16 %v6889, %v6888
        %v6894 = vpack.c.bf16 %v6885, %v6884
        %v6895 = vpack.c.bf16 %v6881, %v6880
        %6896 = vst [vmem:[#allocation2 + $0x90] sm:$0xff] %v6890
        %6897 = vst [vmem:[#allocation2 + $0x98] sm:$0xff] %v6891
        %6898 = vst [vmem:[#allocation2 + $0xa0] sm:$0xff] %v6892
        %6899 = vst [vmem:[#allocation2 + $0xa8] sm:$0xff] %v6893
        %6900 = vst [vmem:[#allocation2 + $0xb0] sm:$0xff] %v6894
        %6901 = vst [vmem:[#allocation2 + $0xb8] sm:$0xff] %v6895
        %v6902 = vpack.c.bf16 %v6701, %v6698
        %v6903 = vpack.c.bf16 %v6702, %v6699
        %v6904 = vpack.c.bf16 %v6703, %v6700
        %v6905 = vpack.c.bf16 %v6707, %v6704
        %v6906 = vpack.c.bf16 %v6708, %v6705
        %v6907 = vpack.c.bf16 %v6709, %v6706
        %6908 = vst [vmem:[#allocation2 + $0xc0] sm:$0xff] %v6902
        %6909 = vst [vmem:[#allocation2 + $0xc8] sm:$0xff] %v6903
        %6910 = vst [vmem:[#allocation2 + $0xd0] sm:$0xff] %v6904
        %6911 = vst [vmem:[#allocation2 + $0xd8] sm:$0xff] %v6905
        %6912 = vst [vmem:[#allocation2 + $0xe0] sm:$0xff] %v6906
        %6913 = vst [vmem:[#allocation2 + $0xe8] sm:$0xff] %v6907
        %6914 = vrot.lane.b32.xlu0 %v6698, 127
        %v6915 = vpop.permute.xlu0 %6914
        %6916 = vrot.lane.b32.xlu0 %v6701, 127
        %v6917 = vpop.permute.xlu0 %6916
        %6918 = vrot.lane.b32.xlu0 %v6704, 127
        %v6919 = vpop.permute.xlu0 %6918
        %6920 = vrot.lane.b32.xlu0 %v6707, 127
        %v6921 = vpop.permute.xlu0 %6920
        %6922 = vrot.lane.b32.xlu0 %v6699, 127
        %v6923 = vpop.permute.xlu0 %6922
        %6924 = vrot.lane.b32.xlu0 %v6702, 127
        %v6925 = vpop.permute.xlu0 %6924
        %6926 = vrot.lane.b32.xlu0 %v6705, 127
        %v6927 = vpop.permute.xlu0 %6926
        %6928 = vrot.lane.b32.xlu0 %v6708, 127
        %v6929 = vpop.permute.xlu0 %6928
        %6930 = vrot.lane.b32.xlu0 %v6700, 127
        %v6931 = vpop.permute.xlu0 %6930
        %6932 = vrot.lane.b32.xlu0 %v6703, 127
        %v6933 = vpop.permute.xlu0 %6932
        %6934 = vrot.lane.b32.xlu0 %v6706, 127
        %v6935 = vpop.permute.xlu0 %6934
        %6936 = vrot.lane.b32.xlu0 %v6709, 127
        %v6937 = vpop.permute.xlu0 %6936
        %v6938 = vsel %vm459, %v6923, %v6931
        %v6939 = vsel %vm459, %v6925, %v6933
        %v6940 = vsel %vm459, %v6927, %v6935
        %v6941 = vsel %vm459, %v6929, %v6937
        %v6942 = vsel %vm459, %v6915, %v6923
        %v6943 = vsel %vm459, %v6917, %v6925
        %v6944 = vsel %vm459, %v6919, %v6927
        %v6945 = vsel %vm459, %v6921, %v6929
        %v6946 = vsel %vm459, %v6931, %v6915
        %v6947 = vsel %vm459, %v6933, %v6917
        %v6948 = vsel %vm459, %v6935, %v6919
        %v6949 = vsel %vm459, %v6937, %v6921
        %v6950 = vpack.c.bf16 %v6943, %v6942
        %v6951 = vpack.c.bf16 %v6939, %v6938
        %v6952 = vpack.c.bf16 %v6947, %v6946
        %v6953 = vpack.c.bf16 %v6945, %v6944
        %v6954 = vpack.c.bf16 %v6941, %v6940
        %v6955 = vpack.c.bf16 %v6949, %v6948
        %6956 = vst [vmem:[#allocation2 + $0xf0] sm:$0xff] %v6950
        %6957 = vst [vmem:[#allocation2 + $0xf8] sm:$0xff] %v6951
        %6958 = vst [vmem:[#allocation2 + $0x100] sm:$0xff] %v6952
        %6959 = vst [vmem:[#allocation2 + $0x108] sm:$0xff] %v6953
        %6960 = vst [vmem:[#allocation2 + $0x110] sm:$0xff] %v6954
        %6961 = vst [vmem:[#allocation2 + $0x118] sm:$0xff] %v6955
        %6962 = vrot.lane.b32.xlu0 %v6698, 111
        %v6963 = vpop.permute.xlu0 %6962
        %6964 = vrot.lane.b32.xlu0 %v6701, 111
        %v6965 = vpop.permute.xlu0 %6964
        %6966 = vrot.lane.b32.xlu0 %v6704, 111
        %v6967 = vpop.permute.xlu0 %6966
        %6968 = vrot.lane.b32.xlu0 %v6707, 111
        %v6969 = vpop.permute.xlu0 %6968
        %6970 = vrot.lane.b32.xlu0 %v6699, 111
        %v6971 = vpop.permute.xlu0 %6970
        %6972 = vrot.lane.b32.xlu0 %v6702, 111
        %v6973 = vpop.permute.xlu0 %6972
        %6974 = vrot.lane.b32.xlu0 %v6705, 111
        %v6975 = vpop.permute.xlu0 %6974
        %6976 = vrot.lane.b32.xlu0 %v6708, 111
        %v6977 = vpop.permute.xlu0 %6976
        %6978 = vrot.lane.b32.xlu0 %v6700, 111
        %v6979 = vpop.permute.xlu0 %6978
        %6980 = vrot.lane.b32.xlu0 %v6703, 111
        %v6981 = vpop.permute.xlu0 %6980
        %6982 = vrot.lane.b32.xlu0 %v6706, 111
        %v6983 = vpop.permute.xlu0 %6982
        %6984 = vrot.lane.b32.xlu0 %v6709, 111
        %v6985 = vpop.permute.xlu0 %6984
        %v6986 = vsel %vm508, %v6971, %v6979
        %v6987 = vsel %vm508, %v6973, %v6981
        %v6988 = vsel %vm508, %v6975, %v6983
        %v6989 = vsel %vm508, %v6977, %v6985
        %v6990 = vsel %vm508, %v6963, %v6971
        %v6991 = vsel %vm508, %v6965, %v6973
        %v6992 = vsel %vm508, %v6967, %v6975
        %v6993 = vsel %vm508, %v6969, %v6977
        %v6994 = vsel %vm508, %v6979, %v6963
        %v6995 = vsel %vm508, %v6981, %v6965
        %v6996 = vsel %vm508, %v6983, %v6967
        %v6997 = vsel %vm508, %v6985, %v6969
        %v6998 = vpack.c.bf16 %v6991, %v6990
        %v6999 = vpack.c.bf16 %v6987, %v6986
        %v7000 = vpack.c.bf16 %v6995, %v6994
        %v7001 = vpack.c.bf16 %v6993, %v6992
        %v7002 = vpack.c.bf16 %v6989, %v6988
        %v7003 = vpack.c.bf16 %v6997, %v6996
        %7004 = vst [vmem:[#allocation2 + $0x120] sm:$0xff] %v6998
        %7005 = vst [vmem:[#allocation2 + $0x128] sm:$0xff] %v6999
        %7006 = vst [vmem:[#allocation2 + $0x130] sm:$0xff] %v7000
        %7007 = vst [vmem:[#allocation2 + $0x138] sm:$0xff] %v7001
        %7008 = vst [vmem:[#allocation2 + $0x140] sm:$0xff] %v7002
        %7009 = vst [vmem:[#allocation2 + $0x148] sm:$0xff] %v7003
        %7010 = vrot.lane.b32.xlu0 %v6698, 110
        %v7011 = vpop.permute.xlu0 %7010
        %7012 = vrot.lane.b32.xlu0 %v6701, 110
        %v7013 = vpop.permute.xlu0 %7012
        %7014 = vrot.lane.b32.xlu0 %v6704, 110
        %v7015 = vpop.permute.xlu0 %7014
        %7016 = vrot.lane.b32.xlu0 %v6707, 110
        %v7017 = vpop.permute.xlu0 %7016
        %7018 = vrot.lane.b32.xlu0 %v6699, 110
        %v7019 = vpop.permute.xlu0 %7018
        %7020 = vrot.lane.b32.xlu0 %v6702, 110
        %v7021 = vpop.permute.xlu0 %7020
        %7022 = vrot.lane.b32.xlu0 %v6705, 110
        %v7023 = vpop.permute.xlu0 %7022
        %7024 = vrot.lane.b32.xlu0 %v6708, 110
        %v7025 = vpop.permute.xlu0 %7024
        %7026 = vrot.lane.b32.xlu0 %v6700, 110
        %v7027 = vpop.permute.xlu0 %7026
        %7028 = vrot.lane.b32.xlu0 %v6703, 110
        %v7029 = vpop.permute.xlu0 %7028
        %7030 = vrot.lane.b32.xlu0 %v6706, 110
        %v7031 = vpop.permute.xlu0 %7030
        %7032 = vrot.lane.b32.xlu0 %v6709, 110
        %v7033 = vpop.permute.xlu0 %7032
        %v7034 = vsel %vm557, %v7019, %v7027
        %v7035 = vsel %vm557, %v7021, %v7029
        %v7036 = vsel %vm557, %v7023, %v7031
        %v7037 = vsel %vm557, %v7025, %v7033
        %v7038 = vsel %vm557, %v7011, %v7019
        %v7039 = vsel %vm557, %v7013, %v7021
        %v7040 = vsel %vm557, %v7015, %v7023
        %v7041 = vsel %vm557, %v7017, %v7025
        %v7042 = vsel %vm557, %v7027, %v7011
        %v7043 = vsel %vm557, %v7029, %v7013
        %v7044 = vsel %vm557, %v7031, %v7015
        %v7045 = vsel %vm557, %v7033, %v7017
        %v7046 = vpack.c.bf16 %v7039, %v7038
        %v7047 = vpack.c.bf16 %v7035, %v7034
        %v7048 = vpack.c.bf16 %v7043, %v7042
        %v7049 = vpack.c.bf16 %v7041, %v7040
        %v7050 = vpack.c.bf16 %v7037, %v7036
        %v7051 = vpack.c.bf16 %v7045, %v7044
        %7052 = vst [vmem:[#allocation2 + $0x150] sm:$0xff] %v7046
        %7053 = vst [vmem:[#allocation2 + $0x158] sm:$0xff] %v7047
        %7054 = vst [vmem:[#allocation2 + $0x160] sm:$0xff] %v7048
        %7055 = vst [vmem:[#allocation2 + $0x168] sm:$0xff] %v7049
        %7056 = vst [vmem:[#allocation2 + $0x170] sm:$0xff] %v7050
        %7057 = vst [vmem:[#allocation2 + $0x178] sm:$0xff] %v7051
        %7058 = vrot.lane.b32.xlu0 %v6698, 109
        %v7059 = vpop.permute.xlu0 %7058
        %7060 = vrot.lane.b32.xlu0 %v6701, 109
        %v7061 = vpop.permute.xlu0 %7060
        %7062 = vrot.lane.b32.xlu0 %v6704, 109
        %v7063 = vpop.permute.xlu0 %7062
        %7064 = vrot.lane.b32.xlu0 %v6707, 109
        %v7065 = vpop.permute.xlu0 %7064
        %7066 = vrot.lane.b32.xlu0 %v6699, 109
        %v7067 = vpop.permute.xlu0 %7066
        %7068 = vrot.lane.b32.xlu0 %v6702, 109
        %v7069 = vpop.permute.xlu0 %7068
        %7070 = vrot.lane.b32.xlu0 %v6705, 109
        %v7071 = vpop.permute.xlu0 %7070
        %7072 = vrot.lane.b32.xlu0 %v6708, 109
        %v7073 = vpop.permute.xlu0 %7072
        %7074 = vrot.lane.b32.xlu0 %v6700, 109
        %v7075 = vpop.permute.xlu0 %7074
        %7076 = vrot.lane.b32.xlu0 %v6703, 109
        %v7077 = vpop.permute.xlu0 %7076
        %7078 = vrot.lane.b32.xlu0 %v6706, 109
        %v7079 = vpop.permute.xlu0 %7078
        %7080 = vrot.lane.b32.xlu0 %v6709, 109
        %v7081 = vpop.permute.xlu0 %7080
        %v7082 = vsel %vm606, %v7067, %v7075
        %v7083 = vsel %vm606, %v7069, %v7077
        %v7084 = vsel %vm606, %v7071, %v7079
        %v7085 = vsel %vm606, %v7073, %v7081
        %v7086 = vsel %vm606, %v7059, %v7067
        %v7087 = vsel %vm606, %v7061, %v7069
        %v7088 = vsel %vm606, %v7063, %v7071
        %v7089 = vsel %vm606, %v7065, %v7073
        %v7090 = vsel %vm606, %v7075, %v7059
        %v7091 = vsel %vm606, %v7077, %v7061
        %v7092 = vsel %vm606, %v7079, %v7063
        %v7093 = vsel %vm606, %v7081, %v7065
        %v7094 = vpack.c.bf16 %v7087, %v7086
        %v7095 = vpack.c.bf16 %v7083, %v7082
        %v7096 = vpack.c.bf16 %v7091, %v7090
        %v7097 = vpack.c.bf16 %v7089, %v7088
        %v7098 = vpack.c.bf16 %v7085, %v7084
        %v7099 = vpack.c.bf16 %v7093, %v7092
        %7100 = vst [vmem:[#allocation2 + $0x180] sm:$0xff] %v7094
        %7101 = vst [vmem:[#allocation2 + $0x188] sm:$0xff] %v7095
        %7102 = vst [vmem:[#allocation2 + $0x190] sm:$0xff] %v7096
        %7103 = vst [vmem:[#allocation2 + $0x198] sm:$0xff] %v7097
        %7104 = vst [vmem:[#allocation2 + $0x1a0] sm:$0xff] %v7098
        %7105 = vst [vmem:[#allocation2 + $0x1a8] sm:$0xff] %v7099
        %s7106 = scalar_lea.vmem [#allocation5], 384
        %v7107 = vld [vmem:[%s7106] sm:$0xff]
        %v7108 = vld [vmem:[%s7106 + $0x8] sm:$0xf]
        %v7109 = vld [vmem:[%s7106 + $0xc] sm:$0xff]
        %v7110 = vld [vmem:[%s7106 + $0x14] sm:$0xf]
        %v7111 = vld [vmem:[%s7106 + $0x18] sm:$0xff]
        %v7112 = vld [vmem:[%s7106 + $0x20] sm:$0xf]
        %v7113 = vld [vmem:[%s7106 + $0x24] sm:$0xff]
        %v7114 = vld [vmem:[%s7106 + $0x2c] sm:$0xf]
        %v7115 = vld [vmem:[#allocation2] sm:$0xff]
        %v7116 = vld [vmem:[#allocation2 + $0x8] sm:$0xff]
        %v7117 = vld [vmem:[#allocation2 + $0x10] sm:$0xff]
        %v7118 = vld [vmem:[#allocation2 + $0x18] sm:$0xff]
        %v7119 = vld [vmem:[#allocation2 + $0x20] sm:$0xff]
        %v7120 = vld [vmem:[#allocation2 + $0x28] sm:$0xff]
        %v7121 = vld [vmem:[#allocation2 + $0x30] sm:$0xff]
        %v7122 = vld [vmem:[#allocation2 + $0x38] sm:$0xff]
        %v7123 = vld [vmem:[#allocation2 + $0x40] sm:$0xff]
        %v7124 = vld [vmem:[#allocation2 + $0x48] sm:$0xff]
        %v7125 = vld [vmem:[#allocation2 + $0x50] sm:$0xff]
        %v7126 = vld [vmem:[#allocation2 + $0x58] sm:$0xff]
        %v7127 = vld [vmem:[#allocation2 + $0x60] sm:$0xff]
        %v7128 = vld [vmem:[#allocation2 + $0x68] sm:$0xff]
        %v7129 = vld [vmem:[#allocation2 + $0x70] sm:$0xff]
        %v7130 = vld [vmem:[#allocation2 + $0x78] sm:$0xff]
        %v7131 = vld [vmem:[#allocation2 + $0x80] sm:$0xff]
        %v7132 = vld [vmem:[#allocation2 + $0x88] sm:$0xff]
        %v7133 = vld [vmem:[#allocation2 + $0x90] sm:$0xff]
        %v7134 = vld [vmem:[#allocation2 + $0x98] sm:$0xff]
        %v7135 = vld [vmem:[#allocation2 + $0xa0] sm:$0xff]
        %v7136 = vld [vmem:[#allocation2 + $0xa8] sm:$0xff]
        %v7137 = vld [vmem:[#allocation2 + $0xb0] sm:$0xff]
        %v7138 = vld [vmem:[#allocation2 + $0xb8] sm:$0xff]
        %v7139 = vld [vmem:[#allocation2 + $0xc0] sm:$0xff]
        %v7140 = vld [vmem:[#allocation2 + $0xc8] sm:$0xff]
        %v7141 = vld [vmem:[#allocation2 + $0xd0] sm:$0xff]
        %v7142 = vld [vmem:[#allocation2 + $0xd8] sm:$0xff]
        %v7143 = vld [vmem:[#allocation2 + $0xe0] sm:$0xff]
        %v7144 = vld [vmem:[#allocation2 + $0xe8] sm:$0xff]
        %v7145 = vld [vmem:[#allocation2 + $0xf0] sm:$0xff]
        %v7146 = vld [vmem:[#allocation2 + $0xf8] sm:$0xff]
        %v7147 = vld [vmem:[#allocation2 + $0x100] sm:$0xff]
        %v7148 = vld [vmem:[#allocation2 + $0x108] sm:$0xff]
        %v7149 = vld [vmem:[#allocation2 + $0x110] sm:$0xff]
        %v7150 = vld [vmem:[#allocation2 + $0x118] sm:$0xff]
        %v7151 = vld [vmem:[#allocation2 + $0x120] sm:$0xff]
        %v7152 = vld [vmem:[#allocation2 + $0x128] sm:$0xff]
        %v7153 = vld [vmem:[#allocation2 + $0x130] sm:$0xff]
        %v7154 = vld [vmem:[#allocation2 + $0x138] sm:$0xff]
        %v7155 = vld [vmem:[#allocation2 + $0x140] sm:$0xff]
        %v7156 = vld [vmem:[#allocation2 + $0x148] sm:$0xff]
        %v7157 = vld [vmem:[#allocation2 + $0x150] sm:$0xff]
        %v7158 = vld [vmem:[#allocation2 + $0x158] sm:$0xff]
        %v7159 = vld [vmem:[#allocation2 + $0x160] sm:$0xff]
        %v7160 = vld [vmem:[#allocation2 + $0x168] sm:$0xff]
        %v7161 = vld [vmem:[#allocation2 + $0x170] sm:$0xff]
        %v7162 = vld [vmem:[#allocation2 + $0x178] sm:$0xff]
        %v7163 = vld [vmem:[#allocation2 + $0x180] sm:$0xff]
        %v7164 = vld [vmem:[#allocation2 + $0x188] sm:$0xff]
        %v7165 = vld [vmem:[#allocation2 + $0x190] sm:$0xff]
        %v7166 = vld [vmem:[#allocation2 + $0x198] sm:$0xff]
        %v7167 = vld [vmem:[#allocation2 + $0x1a0] sm:$0xff]
        %v7168 = vld [vmem:[#allocation2 + $0x1a8] sm:$0xff]
        %s7169 = scalar_lea.vmem %s2, 256
        %v7170 = vld [vmem:[%s7169] sm:$0xff]
        %v7171 = vld [vmem:[%s7169 + $0x8] sm:$0xff]
        %v7172 = vld [vmem:[%s7169 + $0x10] sm:$0xff]
        %v7173 = vld [vmem:[%s7169 + $0x18] sm:$0xff]
        %7175 = vset.pattern.permute.xlu0 0
        %7176 = vperm.xlu0 %7175, %v7170
        %v7177 = vpop.permute.xlu0 %7176
        %7180 = vset.pattern.permute.xlu0 0
        %7181 = vperm.xlu0 %7180, %v7171
        %v7182 = vpop.permute.xlu0 %7181
        %7185 = vset.pattern.permute.xlu0 0
        %7186 = vperm.xlu0 %7185, %v7172
        %v7187 = vpop.permute.xlu0 %7186
        %7190 = vset.pattern.permute.xlu0 0
        %7191 = vperm.xlu0 %7190, %v7173
        %v7192 = vpop.permute.xlu0 %7191
        %v7202 = vunpack.c.l.b16 %v7107
        %v7203 = vunpack.c.h.b16 %v7107
        %v7204 = vunpack.c.l.b16 %v7108
        %v7205 = vunpack.c.l.b16 %v7109
        %v7206 = vunpack.c.h.b16 %v7109
        %v7207 = vunpack.c.l.b16 %v7110
        %v7208 = vunpack.c.l.b16 %v7111
        %v7209 = vunpack.c.h.b16 %v7111
        %v7210 = vunpack.c.l.b16 %v7112
        %v7211 = vunpack.c.l.b16 %v7113
        %v7212 = vunpack.c.h.b16 %v7113
        %v7213 = vunpack.c.l.b16 %v7114
        %v7214 = vpack.c.b16 %v7205, %v7202
        %v7215 = vpack.c.b16 %v7206, %v7203
        %v7216 = vpack.c.b16 %v7207, %v7204
        %v7217 = vpack.c.b16 %v7211, %v7208
        %v7218 = vpack.c.b16 %v7212, %v7209
        %v7219 = vpack.c.b16 %v7213, %v7210
        %v7225 = vsel %vm747, %v7216, 0
        %v7228 = vsel %vm747, %v7219, 0
        %7230 = vmatprep.subr.bf16.mxu0 %v7116
        %7231 = vmatpush1.bf16.msra.mxu0 %v7115
        %7232 = vmatprep.subr.bf16.mxu0 %v7119
        %7233 = vmatpush1.bf16.msra.mxu0 %v7118
        %7234 = vmatprep.subr.bf16.mxu0 %v7122
        %7235 = vmatpush1.bf16.msra.mxu0 %v7121
        %7236 = vmatprep.subr.bf16.mxu0 %v7125
        %7237 = vmatpush1.bf16.msra.mxu0 %v7124
        %7238 = vmatprep.subr.bf16.mxu0 %v7128
        %7239 = vmatpush1.bf16.msra.mxu0 %v7127
        %7240 = vmatprep.subr.bf16.mxu0 %v7131
        %7241 = vmatpush1.bf16.msra.mxu0 %v7130
        %7242 = vmatprep.subr.bf16.mxu0 %v7134
        %7243 = vmatpush1.bf16.msra.mxu0 %v7133
        %7244 = vmatprep.subr.bf16.mxu0 %v7137
        %7245 = vmatpush1.bf16.msra.mxu0 %v7136
        %7246 = vmatprep.subr.bf16.mxu0 %v7140
        %7247 = vmatpush1.bf16.msra.mxu0 %v7139
        %7248 = vmatprep.subr.bf16.mxu0 %v7143
        %7249 = vmatpush1.bf16.msra.mxu0 %v7142
        %7250 = vmatprep.subr.bf16.mxu0 %v7146
        %7251 = vmatpush1.bf16.msra.mxu0 %v7145
        %7252 = vmatprep.subr.bf16.mxu0 %v7149
        %7253 = vmatpush1.bf16.msra.mxu0 %v7148
        %7254 = vmatprep.subr.bf16.mxu0 %v7152
        %7255 = vmatpush1.bf16.msra.mxu0 %v7151
        %7256 = vmatprep.subr.bf16.mxu0 %v7155
        %7257 = vmatpush1.bf16.msra.mxu0 %v7154
        %7258 = vmatprep.subr.bf16.mxu0 %v7158
        %7259 = vmatpush1.bf16.msra.mxu0 %v7157
        %7260 = vmatprep.subr.bf16.mxu0 %v7161
        %7261 = vmatpush1.bf16.msra.mxu0 %v7160
        %7262 = vmatprep.mubr.bf16.mxu0 %v7215
        %7263 = vmatmul.mubr.bf16.gmra.mrb[0].mxu0 %v7214
        %v7264 = vpop.f32.mrb[0].mxu0
        %v7265 = vadd.f32 %v7177, %v7264
        %v7266 = vpop.f32.mrb[0].mxu0
        %v7267 = vadd.f32 %v7177, %v7266
        %v7268 = vpop.f32.mrb[0].mxu0
        %v7269 = vadd.f32 %v7182, %v7268
        %v7270 = vpop.f32.mrb[0].mxu0
        %v7271 = vadd.f32 %v7182, %v7270
        %7272 = vmatprep.mubr.bf16.mxu0 %v7218
        %7273 = vmatmul.mubr.bf16.gmra.mrb[0].mxu0 %v7217
        %v7274 = vpop.f32.mrb[0].mxu0
        %v7275 = vadd.f32 %v7187, %v7274
        %v7276 = vpop.f32.mrb[0].mxu0
        %v7277 = vadd.f32 %v7187, %v7276
        %v7278 = vpop.f32.mrb[0].mxu0
        %v7279 = vadd.f32 %v7192, %v7278
        %v7280 = vpop.f32.mrb[0].mxu0
        %v7281 = vadd.f32 %v7192, %v7280
        %7282 = vdwg.mxu0
        %7283 = vmatprep.subr.bf16.mxu0 %v7164
        %7284 = vmatpush1.bf16.msra.mxu0 %v7163
        %7285 = vmatprep.subr.bf16.mxu0 %v7167
        %7286 = vmatpush1.bf16.msra.mxu0 %v7166
        %7287 = vmatprep.subr.bf16.mxu0 0
        %7288 = vmatpush1.bf16.msra.mxu0 0
        %7289 = vmatprep.subr.bf16.mxu0 0
        %7290 = vmatpush1.bf16.msra.mxu0 0
        %7291 = vmatprep.subr.bf16.mxu0 0
        %7292 = vmatpush1.bf16.msra.mxu0 0
        %7293 = vmatprep.subr.bf16.mxu0 0
        %7294 = vmatpush1.bf16.msra.mxu0 0
        %7295 = vmatprep.subr.bf16.mxu0 0
        %7296 = vmatpush1.bf16.msra.mxu0 0
        %7297 = vmatprep.subr.bf16.mxu0 0
        %7298 = vmatpush1.bf16.msra.mxu0 0
        %7299 = vmatprep.subr.bf16.mxu0 0
        %7300 = vmatpush1.bf16.msra.mxu0 0
        %7301 = vmatprep.subr.bf16.mxu0 0
        %7302 = vmatpush1.bf16.msra.mxu0 0
        %7303 = vmatprep.subr.bf16.mxu0 0
        %7304 = vmatpush1.bf16.msra.mxu0 0
        %7305 = vmatprep.subr.bf16.mxu0 0
        %7306 = vmatpush1.bf16.msra.mxu0 0
        %7307 = vmatprep.subr.bf16.mxu0 0
        %7308 = vmatpush1.bf16.msra.mxu0 0
        %7309 = vmatprep.subr.bf16.mxu0 0
        %7310 = vmatpush1.bf16.msra.mxu0 0
        %7311 = vmatprep.subr.bf16.mxu0 0
        %7312 = vmatpush1.bf16.msra.mxu0 0
        %7313 = vmatprep.subr.bf16.mxu0 0
        %7314 = vmatpush1.bf16.msra.mxu0 0
        %7315 = vmatprep.mubr.bf16.mxu0 0
        %7316 = vmatmul.mubr.bf16.gmra.mrb[0].mxu0 %v7225
        %v7317 = vpop.f32.mrb[0].mxu0
        %v7318 = vadd.f32 %v7265, %v7317
        %v7319 = vpop.f32.mrb[0].mxu0
        %v7320 = vadd.f32 %v7267, %v7319
        %v7321 = vpop.f32.mrb[0].mxu0
        %v7322 = vadd.f32 %v7269, %v7321
        %v7323 = vpop.f32.mrb[0].mxu0
        %v7324 = vadd.f32 %v7271, %v7323
        %7325 = vmatprep.mubr.bf16.mxu0 0
        %7326 = vmatmul.mubr.bf16.gmra.mrb[0].mxu0 %v7228
        %v7327 = vpop.f32.mrb[0].mxu0
        %v7328 = vadd.f32 %v7275, %v7327
        %v7329 = vpop.f32.mrb[0].mxu0
        %v7330 = vadd.f32 %v7277, %v7329
        %v7331 = vpop.f32.mrb[0].mxu0
        %v7332 = vadd.f32 %v7279, %v7331
        %v7333 = vpop.f32.mrb[0].mxu0
        %v7334 = vadd.f32 %v7281, %v7333
        %7335 = vdwg.mxu0
        %7336 = vmatprep.subr.bf16.mxu0 0
        %7337 = vmatpush1.bf16.msra.mxu0 %v7117
        %7338 = vmatprep.subr.bf16.mxu0 0
        %7339 = vmatpush1.bf16.msra.mxu0 %v7120
        %7340 = vmatprep.subr.bf16.mxu0 0
        %7341 = vmatpush1.bf16.msra.mxu0 %v7123
        %7342 = vmatprep.subr.bf16.mxu0 0
        %7343 = vmatpush1.bf16.msra.mxu0 %v7126
        %7344 = vmatprep.subr.bf16.mxu0 0
        %7345 = vmatpush1.bf16.msra.mxu0 %v7129
        %7346 = vmatprep.subr.bf16.mxu0 0
        %7347 = vmatpush1.bf16.msra.mxu0 %v7132
        %7348 = vmatprep.subr.bf16.mxu0 0
        %7349 = vmatpush1.bf16.msra.mxu0 %v7135
        %7350 = vmatprep.subr.bf16.mxu0 0
        %7351 = vmatpush1.bf16.msra.mxu0 %v7138
        %7352 = vmatprep.subr.bf16.mxu0 0
        %7353 = vmatpush1.bf16.msra.mxu0 %v7141
        %7354 = vmatprep.subr.bf16.mxu0 0
        %7355 = vmatpush1.bf16.msra.mxu0 %v7144
        %7356 = vmatprep.subr.bf16.mxu0 0
        %7357 = vmatpush1.bf16.msra.mxu0 %v7147
        %7358 = vmatprep.subr.bf16.mxu0 0
        %7359 = vmatpush1.bf16.msra.mxu0 %v7150
        %7360 = vmatprep.subr.bf16.mxu0 0
        %7361 = vmatpush1.bf16.msra.mxu0 %v7153
        %7362 = vmatprep.subr.bf16.mxu0 0
        %7363 = vmatpush1.bf16.msra.mxu0 %v7156
        %7364 = vmatprep.subr.bf16.mxu0 0
        %7365 = vmatpush1.bf16.msra.mxu0 %v7159
        %7366 = vmatprep.subr.bf16.mxu0 0
        %7367 = vmatpush1.bf16.msra.mxu0 %v7162
        %7368 = vmatprep.mubr.bf16.mxu0 %v7215
        %7369 = vmatmul.mubr.bf16.gmra.mrb[0].mxu0 %v7214
        %v7370 = vpop.f32.mrb[0].mxu0
        %v7371 = vadd.f32 %v7177, %v7370
        %v7372 = vpop.f32.mrb[0].mxu0
        %v7373 = vpop.f32.mrb[0].mxu0
        %v7374 = vadd.f32 %v7182, %v7373
        %v7375 = vpop.f32.mrb[0].mxu0
        %7376 = vmatprep.mubr.bf16.mxu0 %v7218
        %7377 = vmatmul.mubr.bf16.gmra.mrb[0].mxu0 %v7217
        %v7378 = vpop.f32.mrb[0].mxu0
        %v7379 = vadd.f32 %v7187, %v7378
        %v7380 = vpop.f32.mrb[0].mxu0
        %v7381 = vpop.f32.mrb[0].mxu0
        %v7382 = vadd.f32 %v7192, %v7381
        %v7383 = vpop.f32.mrb[0].mxu0
        %7384 = vdwg.mxu0
        %7385 = vmatprep.subr.bf16.mxu0 0
        %7386 = vmatpush1.bf16.msra.mxu0 %v7165
        %7387 = vmatprep.subr.bf16.mxu0 0
        %7388 = vmatpush1.bf16.msra.mxu0 %v7168
        %7389 = vmatprep.subr.bf16.mxu0 0
        %7390 = vmatpush1.bf16.msra.mxu0 0
        %7391 = vmatprep.subr.bf16.mxu0 0
        %7392 = vmatpush1.bf16.msra.mxu0 0
        %7393 = vmatprep.subr.bf16.mxu0 0
        %7394 = vmatpush1.bf16.msra.mxu0 0
        %7395 = vmatprep.subr.bf16.mxu0 0
        %7396 = vmatpush1.bf16.msra.mxu0 0
        %7397 = vmatprep.subr.bf16.mxu0 0
        %7398 = vmatpush1.bf16.msra.mxu0 0
        %7399 = vmatprep.subr.bf16.mxu0 0
        %7400 = vmatpush1.bf16.msra.mxu0 0
        %7401 = vmatprep.subr.bf16.mxu0 0
        %7402 = vmatpush1.bf16.msra.mxu0 0
        %7403 = vmatprep.subr.bf16.mxu0 0
        %7404 = vmatpush1.bf16.msra.mxu0 0
        %7405 = vmatprep.subr.bf16.mxu0 0
        %7406 = vmatpush1.bf16.msra.mxu0 0
        %7407 = vmatprep.subr.bf16.mxu0 0
        %7408 = vmatpush1.bf16.msra.mxu0 0
        %7409 = vmatprep.subr.bf16.mxu0 0
        %7410 = vmatpush1.bf16.msra.mxu0 0
        %7411 = vmatprep.subr.bf16.mxu0 0
        %7412 = vmatpush1.bf16.msra.mxu0 0
        %7413 = vmatprep.subr.bf16.mxu0 0
        %7414 = vmatpush1.bf16.msra.mxu0 0
        %7415 = vmatprep.subr.bf16.mxu0 0
        %7416 = vmatpush1.bf16.msra.mxu0 0
        %7417 = vmatprep.mubr.bf16.mxu0 0
        %7418 = vmatmul.mubr.bf16.gmra.mrb[0].mxu0 %v7225
        %v7419 = vpop.f32.mrb[0].mxu0
        %v7420 = vadd.f32 %v7371, %v7419
        %v7421 = vpop.f32.mrb[0].mxu0
        %v7422 = vpop.f32.mrb[0].mxu0
        %v7423 = vadd.f32 %v7374, %v7422
        %v7424 = vpop.f32.mrb[0].mxu0
        %7425 = vmatprep.mubr.bf16.mxu0 0
        %7426 = vmatmul.mubr.bf16.gmra.mrb[0].mxu0 %v7228
        %v7427 = vpop.f32.mrb[0].mxu0
        %v7428 = vadd.f32 %v7379, %v7427
        %v7429 = vpop.f32.mrb[0].mxu0
        %v7430 = vpop.f32.mrb[0].mxu0
        %v7431 = vadd.f32 %v7382, %v7430
        %v7432 = vpop.f32.mrb[0].mxu0
        %7433 = vdwg.mxu0
        %vm7434 = vcmp.ge.f32.partialorder %v7318, 0.0
        %vm7435 = vcmp.ge.f32.partialorder %v7320, 0.0
        %vm7436 = vcmp.ge.f32.partialorder %v7420, 0.0
        %vm7437 = vcmp.ge.f32.partialorder %v7322, 0.0
        %vm7438 = vcmp.ge.f32.partialorder %v7324, 0.0
        %vm7439 = vcmp.ge.f32.partialorder %v7423, 0.0
        %vm7440 = vcmp.ge.f32.partialorder %v7328, 0.0
        %vm7441 = vcmp.ge.f32.partialorder %v7330, 0.0
        %vm7442 = vcmp.ge.f32.partialorder %v7428, 0.0
        %vm7443 = vcmp.ge.f32.partialorder %v7332, 0.0
        %vm7444 = vcmp.ge.f32.partialorder %v7334, 0.0
        %vm7445 = vcmp.ge.f32.partialorder %v7431, 0.0
        %7446 = vset.pattern.permute.xlu0 1
        %7447 = vperm.xlu0 %7446, %v7170
        %v7448 = vpop.permute.xlu0 %7447
        %7450 = vset.pattern.permute.xlu0 1
        %7451 = vperm.xlu0 %7450, %v7171
        %v7452 = vpop.permute.xlu0 %7451
        %7454 = vset.pattern.permute.xlu0 1
        %7455 = vperm.xlu0 %7454, %v7172
        %v7456 = vpop.permute.xlu0 %7455
        %7458 = vset.pattern.permute.xlu0 1
        %7459 = vperm.xlu0 %7458, %v7173
        %v7460 = vpop.permute.xlu0 %7459
        %v7462 = vmul.f32 %v7448, %v7318
        %v7463 = vmul.f32 %v7448, %v7320
        %v7464 = vmul.f32 %v7448, %v7420
        %v7465 = vmul.f32 %v7452, %v7322
        %v7466 = vmul.f32 %v7452, %v7324
        %v7467 = vmul.f32 %v7452, %v7423
        %v7468 = vmul.f32 %v7456, %v7328
        %v7469 = vmul.f32 %v7456, %v7330
        %v7470 = vmul.f32 %v7456, %v7428
        %v7471 = vmul.f32 %v7460, %v7332
        %v7472 = vmul.f32 %v7460, %v7334
        %v7473 = vmul.f32 %v7460, %v7431
        %v7474 = vsel %vm7434, %v7318, %v7462
        %v7475 = vsel %vm7435, %v7320, %v7463
        %v7476 = vsel %vm7436, %v7420, %v7464
        %v7477 = vsel %vm7437, %v7322, %v7465
        %v7478 = vsel %vm7438, %v7324, %v7466
        %v7479 = vsel %vm7439, %v7423, %v7467
        %v7480 = vsel %vm7440, %v7328, %v7468
        %v7481 = vsel %vm7441, %v7330, %v7469
        %v7482 = vsel %vm7442, %v7428, %v7470
        %v7483 = vsel %vm7443, %v7332, %v7471
        %v7484 = vsel %vm7444, %v7334, %v7472
        %v7485 = vsel %vm7445, %v7431, %v7473
        %v7486 = vmul.f32 %v7474, %v1014
        %v7487 = vmul.f32 %v7475, %v1018
        %v7488 = vmul.f32 %v7476, %v1022
        %v7489 = vmul.f32 %v7477, %v1014
        %v7490 = vmul.f32 %v7478, %v1018
        %v7491 = vmul.f32 %v7479, %v1022
        %v7492 = vmul.f32 %v7480, %v1014
        %v7493 = vmul.f32 %v7481, %v1018
        %v7494 = vmul.f32 %v7482, %v1022
        %v7495 = vmul.f32 %v7483, %v1014
        %v7496 = vmul.f32 %v7484, %v1018
        %v7497 = vmul.f32 %v7485, %v1022
        %7498 = vst [vmem:[%s205] sm:$0xff] %v7486
        %7499 = vst [vmem:[%s205 + $0x8] sm:$0xff] %v7487
        %7500 = vst [vmem:[%s205 + $0x10] sm:$0xff] %v7488
        %7501 = vst [vmem:[%s205 + $0x18] sm:$0xff] %v7489
        %7502 = vst [vmem:[%s205 + $0x20] sm:$0xff] %v7490
        %7503 = vst [vmem:[%s205 + $0x28] sm:$0xff] %v7491
        %7504 = vst [vmem:[%s205 + $0x30] sm:$0xff] %v7492
        %7505 = vst [vmem:[%s205 + $0x38] sm:$0xff] %v7493
        %7506 = vst [vmem:[%s205 + $0x40] sm:$0xff] %v7494
        %7507 = vst [vmem:[%s205 + $0x48] sm:$0xff] %v7495
        %7508 = vst [vmem:[%s205 + $0x50] sm:$0xff] %v7496
        %7509 = vst [vmem:[%s205 + $0x58] sm:$0xff] %v7497
        %s7510 = sand.u32 %s116, 1
        %s7511 = scalar_lea.sflag [#allocation7], %s7510
        %s7512 = sand.u32 %s116, 1
        %s7513 = smul.addr %s7512, 96
        %s7514 = scalar_lea.vmem [#allocation8], %s7513
        // Predicated region
        $region41: #{tpu_custom_call.1} parent=35 // pred_check
          %p7515 = pneg %p126
        $region42: #{tpu_custom_call.1} parent=35 // pred_check_branch
          %7517 = sbr.rel (%p7515) target = $region44
        $region43: #{tpu_custom_call.1} parent=35 // pred_region
          %s7519 = ssub.s32 1536, 1536
          %7520 = vsyncadd %s7511, %s7519
          %s7521 = smul.addr %s19, 12
          %s7522 = smul.addr %s7521, 128
          %s7523 = scalar_lea.hbm %s4, %s7522
          %s7524 = sshll.u32 %s7514, 4
          %s7525 = int_to_ptr.vmem [resolvable:$true] %s7524
          %7530 = dma.vmem_to_hbm [thread:$0]  %s7525, 1536, %s7523, %s7511, 384, 384, 24
        $region44: #{tpu_custom_call.1} parent=35 // pred_fallthru
          _
      $region36: #{tpu_custom_call.1} parent=5 // pred_fallthru
        _
      %p7531 = scmp.le.s32.totalorder 2, %s14
      // Predicated region
      $region45: #{tpu_custom_call.1} parent=5 // pred_check
        %p7532 = pneg %p7531
      $region46: #{tpu_custom_call.1} parent=5 // pred_check_branch
        %7534 = sbr.rel (%p7532) target = $region48
      $region47: #{tpu_custom_call.1} parent=5 // pred_region
        %s7535 = ssub.s32 %s14, 2
        // Predicated region
        $region49: #{tpu_custom_call.1} parent=47 // pred_check
          %p7536 = pneg %p132
        $region50: #{tpu_custom_call.1} parent=47 // pred_check_branch
          %7538 = sbr.rel (%p7536) target = $region52
        $region51: #{tpu_custom_call.1} parent=47 // pred_region
          %s7539 = sand.u32 %s117, 1
          %s7540 = scalar_lea.sflag [#allocation7], %s7539
          %s7541 = sand.u32 %s117, 1
          %s7542 = smul.addr %s7541, 96
          %s7543 = scalar_lea.vmem [#allocation8], %s7542
          %7544 = dma.done %s7540, 1536
        $region52: #{tpu_custom_call.1} parent=47 // pred_fallthru
          _
      $region48: #{tpu_custom_call.1} parent=5 // pred_fallthru
        _
    $region6: #{tpu_custom_call.1} parent=1 // loop_footer
      %s18 = sadd.s32 1, %s14
    $region7: #{tpu_custom_call.1} parent=1 // loop_footer_branch
      %13 = sbr.rel target = $region3
    $region8: #{tpu_custom_call.1} parent=1 // loop_exit
      _
    %7545 = vsyncpa [#allocation6], 1
    %s7546 = scalar_lea.sflag [#allocation6], 1
    %7547 = vsyncpa %s7546, 1
    %7548 = vsyncpa [#allocation7], 1
    %s7549 = scalar_lea.sflag [#allocation7], 1
    %7550 = vsyncpa %s7549, 1

</llo_original>
